<compile_context>
chip_gen: v6e
topology: v6e:2x2x1
jax: 0.10.0
libtpu: 0.0.40
codegen_flags: <defaults>
</compile_context>

<pallas_src>
import functools

import jax
import jax.numpy as jnp
from jax import lax
from jax.experimental import pallas as pl
from jax.experimental.pallas import tpu as pltpu

DILATIONS = (3, 6, 9, 12, 15, 18)


def _aspp_kernel(x_ref, w_ref, b_ref, o_ref, *, H, W, Cin, Cout, P):
    """One batch element per grid step; all 6 dilated branches unrolled.

    x_ref : VMEM (1, H+2P, W+2P, Cin) f32   zero-padded NHWC image
    w_ref : VMEM (6, Cout, 9*Cin)     bf16  per-branch weights, K ordered (kh, kw, cin)
    b_ref : VMEM (6, Cout, 1)         f32   per-branch bias
    o_ref : VMEM (1, 6, Cout, H*W)    f32   lane-dense output
    """
    for bi, d in enumerate(DILATIONS):  # static unroll: all offsets are constants
        taps = []
        for kh in range(3):
            for kw in range(3):
                h0 = P + (kh - 1) * d
                w0 = P + (kw - 1) * d
                taps.append(
                    x_ref[0, pl.ds(h0, H), pl.ds(w0, W), :].reshape(H * W, Cin)
                )
        # im2col: one matmul with K = 9*Cin instead of 9 matmuls with K = Cin.
        patches = jnp.concatenate(taps, axis=-1).astype(jnp.bfloat16)  # (H*W, 9*Cin)
        # (Cout, 9*Cin) . (H*W, 9*Cin)^T -> (Cout, H*W): lane-dense result rows.
        acc = lax.dot_general(
            w_ref[bi],
            patches,
            dimension_numbers=(((1,), (1,)), ((), ())),
            preferred_element_type=jnp.float32,
        )
        o_ref[0, bi] = (acc + b_ref[bi]).astype(o_ref.dtype)


def aspp_forward(x_nchw, weights, biases):
    """x_nchw: (N, Cin, H, W) f32. weights: list of (Cout, Cin, 3, 3). biases: list of (Cout,)."""
    N, Cin, H, W = x_nchw.shape
    Cout = weights[0].shape[0]
    nb = len(DILATIONS)
    P = max(DILATIONS)  # pad once with the largest dilation

    # NCHW -> NHWC, zero-pad spatial dims by P on each side.
    x = jnp.transpose(x_nchw, (0, 2, 3, 1))
    x_pad = jnp.pad(x, ((0, 0), (P, P), (P, P), (0, 0)))

    # (Cout, Cin, 3, 3) -> (Cout, kh, kw, Cin) -> (Cout, 9*Cin); stack branches.
    # Weights are cast to bf16 (MXU native); accumulation stays f32 in-kernel.
    w_stack = jnp.stack(
        [jnp.transpose(w, (0, 2, 3, 1)).reshape(Cout, 9 * Cin) for w in weights]
    ).astype(jnp.bfloat16)  # (6, Cout, 9*Cin)
    b_stack = jnp.stack(biases).reshape(nb, Cout, 1).astype(jnp.float32)  # (6, Cout, 1)

    kernel = functools.partial(_aspp_kernel, H=H, W=W, Cin=Cin, Cout=Cout, P=P)

    out = pl.pallas_call(
        kernel,
        out_shape=jax.ShapeDtypeStruct((N, nb, Cout, H * W), jnp.float32),
        grid_spec=pltpu.PrefetchScalarGridSpec(
            num_scalar_prefetch=0,
            grid=(N,),
            in_specs=[
                # padded image: one block per batch element
                pl.BlockSpec((1, H + 2 * P, W + 2 * P, Cin), lambda n: (n, 0, 0, 0)),
                # constant block index -> weights / bias DMA'd once, stay resident
                pl.BlockSpec((nb, Cout, 9 * Cin), lambda n: (0, 0, 0)),
                pl.BlockSpec((nb, Cout, 1), lambda n: (0, 0, 0)),
            ],
            out_specs=pl.BlockSpec((1, nb, Cout, H * W), lambda n: (n, 0, 0, 0)),
        ),
        compiler_params=pltpu.CompilerParams(
            dimension_semantics=("parallel",),  # batch across cores (v7x megacore)
            vmem_limit_bytes=32 * 1024 * 1024,
        ),
    )(x_pad, w_stack, b_stack)

    # (N, 6, Cout, H*W) -> (N, 6*Cout, H, W): pure reshape (no transpose),
    # identical to torch.cat([...], dim=1) on NCHW branch outputs.
    return out.reshape(N, nb * Cout, H, W)


def _reference(x_nchw, weights, biases):
    # Same bf16 rounding of the matmul operands as the kernel (f32 accumulation),
    # so the comparison is tight and only differs by summation order.
    xq = x_nchw.astype(jnp.bfloat16).astype(jnp.float32)
    outs = []
    for w, b, d in zip(weights, biases, DILATIONS):
        wq = w.astype(jnp.bfloat16).astype(jnp.float32)
        o = lax.conv_general_dilated(
            xq,
            wq,
            window_strides=(1, 1),
            padding=[(d, d), (d, d)],
            rhs_dilation=(d, d),
            dimension_numbers=("NCHW", "OIHW", "NCHW"),
            precision=lax.Precision.HIGHEST,
        )
        outs.append(o + b[None, :, None, None])
    return jnp.concatenate(outs, axis=1)


if __name__ == "__main__":
    # Small synthetic shapes consistent with the module (in_channel, depth scaled down).
    N, Cin, H, W = 2, 8, 16, 16
    Cout = 16  # "depth"

    key = jax.random.PRNGKey(0)
    kx, *kws = jax.random.split(key, 1 + 2 * len(DILATIONS))

    x = jax.random.normal(kx, (N, Cin, H, W), dtype=jnp.float32)

    weights, biases = [], []
    for i in range(len(DILATIONS)):
        kw_, kb_ = kws[2 * i], kws[2 * i + 1]
        weights.append(
            0.1 * jax.random.normal(kw_, (Cout, Cin, 3, 3), dtype=jnp.float32)
        )
        biases.append(0.1 * jax.random.normal(kb_, (Cout,), dtype=jnp.float32))

    out = aspp_forward(x, weights, biases)
    jax.block_until_ready(out)

    ref = _reference(x, weights, biases)
    assert out.shape == (N, len(DILATIONS) * Cout, H, W), out.shape
    max_err = float(jnp.max(jnp.abs(out - ref)))
    assert jnp.allclose(out, ref, atol=1e-3, rtol=1e-3), max_err

    print("KERNEL_OK")
</pallas_src>

<mosaic_0001>
module attributes {stable_mosaic.version = 11 : i64} {
  func.func @_aspp_kernel(%arg0: i32, %arg1: memref<1x52x52x8xf32, #tpu.memory_space<vmem>>, %arg2: memref<6x16x72xbf16, #tpu.memory_space<vmem>>, %arg3: memref<6x16x1xf32, #tpu.memory_space<vmem>>, %arg4: memref<1x6x16x256xf32, #tpu.memory_space<vmem>>) attributes {dimension_semantics = [#tpu.dimension_semantics<parallel>], iteration_bounds = array<i64: 2>, scalar_prefetch = 0 : i64, scratch_operands = 0 : i64, tpu.core_type = #tpu.core_type<tc>, window_params = [{transform_indices = @transform_0, window_bounds = array<i64: 1, 52, 52, 8>}, {pipeline_mode = #tpu.pipeline_mode<synchronous>, transform_indices = @transform_1, window_bounds = array<i64: 6, 16, 72>}, {pipeline_mode = #tpu.pipeline_mode<synchronous>, transform_indices = @transform_2, window_bounds = array<i64: 6, 16, 1>}, {transform_indices = @transform_3, window_bounds = array<i64: 1, 6, 16, 256>}]} {
    %c0 = arith.constant 0 : index
    %c15 = arith.constant 15 : index
    %c15_0 = arith.constant 15 : index
    %c0_1 = arith.constant 0 : index
    %0 = vector.load %arg1[%c0, %c15, %c15_0, %c0_1] : memref<1x52x52x8xf32, #tpu.memory_space<vmem>>, vector<1x16x16x8xf32>
    %1 = vector.shape_cast %0 : vector<1x16x16x8xf32> to vector<16x16x8xf32>
    %2 = vector.shape_cast %1 : vector<16x16x8xf32> to vector<256x8xf32>
    %c0_2 = arith.constant 0 : index
    %c15_3 = arith.constant 15 : index
    %c18 = arith.constant 18 : index
    %c0_4 = arith.constant 0 : index
    %3 = vector.load %arg1[%c0_2, %c15_3, %c18, %c0_4] : memref<1x52x52x8xf32, #tpu.memory_space<vmem>>, vector<1x16x16x8xf32>
    %4 = vector.shape_cast %3 : vector<1x16x16x8xf32> to vector<16x16x8xf32>
    %5 = vector.shape_cast %4 : vector<16x16x8xf32> to vector<256x8xf32>
    %c0_5 = arith.constant 0 : index
    %c15_6 = arith.constant 15 : index
    %c21 = arith.constant 21 : index
    %c0_7 = arith.constant 0 : index
    %6 = vector.load %arg1[%c0_5, %c15_6, %c21, %c0_7] : memref<1x52x52x8xf32, #tpu.memory_space<vmem>>, vector<1x16x16x8xf32>
    %7 = vector.shape_cast %6 : vector<1x16x16x8xf32> to vector<16x16x8xf32>
    %8 = vector.shape_cast %7 : vector<16x16x8xf32> to vector<256x8xf32>
    %c0_8 = arith.constant 0 : index
    %c18_9 = arith.constant 18 : index
    %c15_10 = arith.constant 15 : index
    %c0_11 = arith.constant 0 : index
    %9 = vector.load %arg1[%c0_8, %c18_9, %c15_10, %c0_11] : memref<1x52x52x8xf32, #tpu.memory_space<vmem>>, vector<1x16x16x8xf32>
    %10 = vector.shape_cast %9 : vector<1x16x16x8xf32> to vector<16x16x8xf32>
    %11 = vector.shape_cast %10 : vector<16x16x8xf32> to vector<256x8xf32>
    %c0_12 = arith.constant 0 : index
    %c18_13 = arith.constant 18 : index
    %c18_14 = arith.constant 18 : index
    %c0_15 = arith.constant 0 : index
    %12 = vector.load %arg1[%c0_12, %c18_13, %c18_14, %c0_15] : memref<1x52x52x8xf32, #tpu.memory_space<vmem>>, vector<1x16x16x8xf32>
    %13 = vector.shape_cast %12 : vector<1x16x16x8xf32> to vector<16x16x8xf32>
    %14 = vector.shape_cast %13 : vector<16x16x8xf32> to vector<256x8xf32>
    %c0_16 = arith.constant 0 : index
    %c18_17 = arith.constant 18 : index
    %c21_18 = arith.constant 21 : index
    %c0_19 = arith.constant 0 : index
    %15 = vector.load %arg1[%c0_16, %c18_17, %c21_18, %c0_19] : memref<1x52x52x8xf32, #tpu.memory_space<vmem>>, vector<1x16x16x8xf32>
    %16 = vector.shape_cast %15 : vector<1x16x16x8xf32> to vector<16x16x8xf32>
    %17 = vector.shape_cast %16 : vector<16x16x8xf32> to vector<256x8xf32>
    %c0_20 = arith.constant 0 : index
    %c21_21 = arith.constant 21 : index
    %c15_22 = arith.constant 15 : index
    %c0_23 = arith.constant 0 : index
    %18 = vector.load %arg1[%c0_20, %c21_21, %c15_22, %c0_23] : memref<1x52x52x8xf32, #tpu.memory_space<vmem>>, vector<1x16x16x8xf32>
    %19 = vector.shape_cast %18 : vector<1x16x16x8xf32> to vector<16x16x8xf32>
    %20 = vector.shape_cast %19 : vector<16x16x8xf32> to vector<256x8xf32>
    %c0_24 = arith.constant 0 : index
    %c21_25 = arith.constant 21 : index
    %c18_26 = arith.constant 18 : index
    %c0_27 = arith.constant 0 : index
    %21 = vector.load %arg1[%c0_24, %c21_25, %c18_26, %c0_27] : memref<1x52x52x8xf32, #tpu.memory_space<vmem>>, vector<1x16x16x8xf32>
    %22 = vector.shape_cast %21 : vector<1x16x16x8xf32> to vector<16x16x8xf32>
    %23 = vector.shape_cast %22 : vector<16x16x8xf32> to vector<256x8xf32>
    %c0_28 = arith.constant 0 : index
    %c21_29 = arith.constant 21 : index
    %c21_30 = arith.constant 21 : index
    %c0_31 = arith.constant 0 : index
    %24 = vector.load %arg1[%c0_28, %c21_29, %c21_30, %c0_31] : memref<1x52x52x8xf32, #tpu.memory_space<vmem>>, vector<1x16x16x8xf32>
    %25 = vector.shape_cast %24 : vector<1x16x16x8xf32> to vector<16x16x8xf32>
    %26 = vector.shape_cast %25 : vector<16x16x8xf32> to vector<256x8xf32>
    %27 = tpu.concatenate %2, %5, %8, %11, %14, %17, %20, %23, %26 in 1 : vector<256x8xf32>, vector<256x8xf32>, vector<256x8xf32>, vector<256x8xf32>, vector<256x8xf32>, vector<256x8xf32>, vector<256x8xf32>, vector<256x8xf32>, vector<256x8xf32> -> vector<256x72xf32>
    %28 = arith.truncf %27 : vector<256x72xf32> to vector<256x72xbf16>
    %c0_32 = arith.constant 0 : index
    %c0_33 = arith.constant 0 : index
    %c0_34 = arith.constant 0 : index
    %29 = vector.load %arg2[%c0_32, %c0_33, %c0_34] : memref<6x16x72xbf16, #tpu.memory_space<vmem>>, vector<1x16x72xbf16>
    %30 = vector.shape_cast %29 : vector<1x16x72xbf16> to vector<16x72xbf16>
    %cst = arith.constant dense<0.000000e+00> : vector<16x256xf32>
    %31 = tpu.matmul %30, %28, %cst {dimension_numbers = #tpu.dot_dimension_numbers<[1], [1], [0], [0], [0, 0, 1, 0], [], []>} : vector<16x72xbf16>, vector<256x72xbf16>, vector<16x256xf32> -> vector<16x256xf32>
    %c0_35 = arith.constant 0 : index
    %c0_36 = arith.constant 0 : index
    %c0_37 = arith.constant 0 : index
    %32 = vector.load %arg3[%c0_35, %c0_36, %c0_37] : memref<6x16x1xf32, #tpu.memory_space<vmem>>, vector<1x16x1xf32>
    %33 = vector.shape_cast %32 : vector<1x16x1xf32> to vector<16x1xf32>
    %34 = vector.broadcast %33 : vector<16x1xf32> to vector<16x256xf32>
    %35 = arith.addf %31, %34 : vector<16x256xf32>
    %c0_38 = arith.constant 0 : index
    %c0_39 = arith.constant 0 : index
    %c0_40 = arith.constant 0 : index
    %c0_41 = arith.constant 0 : index
    %36 = vector.load %arg4[%c0_38, %c0_39, %c0_40, %c0_41] : memref<1x6x16x256xf32, #tpu.memory_space<vmem>>, vector<1x1x16x256xf32>
    %37 = vector.shape_cast %36 : vector<1x1x16x256xf32> to vector<16x256xf32>
    %38 = vector.shape_cast %35 : vector<16x256xf32> to vector<1x1x16x256xf32>
    tpu.vector_store %arg4[%c0_38, %c0_39, %c0_40, %c0_41], %38 {strides = array<i32>} : memref<1x6x16x256xf32, #tpu.memory_space<vmem>>, vector<1x1x16x256xf32>,
    %c0_42 = arith.constant 0 : index
    %c12 = arith.constant 12 : index
    %c12_43 = arith.constant 12 : index
    %c0_44 = arith.constant 0 : index
    %39 = vector.load %arg1[%c0_42, %c12, %c12_43, %c0_44] : memref<1x52x52x8xf32, #tpu.memory_space<vmem>>, vector<1x16x16x8xf32>
    %40 = vector.shape_cast %39 : vector<1x16x16x8xf32> to vector<16x16x8xf32>
    %41 = vector.shape_cast %40 : vector<16x16x8xf32> to vector<256x8xf32>
    %c0_45 = arith.constant 0 : index
    %c12_46 = arith.constant 12 : index
    %c18_47 = arith.constant 18 : index
    %c0_48 = arith.constant 0 : index
    %42 = vector.load %arg1[%c0_45, %c12_46, %c18_47, %c0_48] : memref<1x52x52x8xf32, #tpu.memory_space<vmem>>, vector<1x16x16x8xf32>
    %43 = vector.shape_cast %42 : vector<1x16x16x8xf32> to vector<16x16x8xf32>
    %44 = vector.shape_cast %43 : vector<16x16x8xf32> to vector<256x8xf32>
    %c0_49 = arith.constant 0 : index
    %c12_50 = arith.constant 12 : index
    %c24 = arith.constant 24 : index
    %c0_51 = arith.constant 0 : index
    %45 = vector.load %arg1[%c0_49, %c12_50, %c24, %c0_51] : memref<1x52x52x8xf32, #tpu.memory_space<vmem>>, vector<1x16x16x8xf32>
    %46 = vector.shape_cast %45 : vector<1x16x16x8xf32> to vector<16x16x8xf32>
    %47 = vector.shape_cast %46 : vector<16x16x8xf32> to vector<256x8xf32>
    %c0_52 = arith.constant 0 : index
    %c18_53 = arith.constant 18 : index
    %c12_54 = arith.constant 12 : index
    %c0_55 = arith.constant 0 : index
    %48 = vector.load %arg1[%c0_52, %c18_53, %c12_54, %c0_55] : memref<1x52x52x8xf32, #tpu.memory_space<vmem>>, vector<1x16x16x8xf32>
    %49 = vector.shape_cast %48 : vector<1x16x16x8xf32> to vector<16x16x8xf32>
    %50 = vector.shape_cast %49 : vector<16x16x8xf32> to vector<256x8xf32>
    %c0_56 = arith.constant 0 : index
    %c18_57 = arith.constant 18 : index
    %c18_58 = arith.constant 18 : index
    %c0_59 = arith.constant 0 : index
    %51 = vector.load %arg1[%c0_56, %c18_57, %c18_58, %c0_59] : memref<1x52x52x8xf32, #tpu.memory_space<vmem>>, vector<1x16x16x8xf32>
    %52 = vector.shape_cast %51 : vector<1x16x16x8xf32> to vector<16x16x8xf32>
    %53 = vector.shape_cast %52 : vector<16x16x8xf32> to vector<256x8xf32>
    %c0_60 = arith.constant 0 : index
    %c18_61 = arith.constant 18 : index
    %c24_62 = arith.constant 24 : index
    %c0_63 = arith.constant 0 : index
    %54 = vector.load %arg1[%c0_60, %c18_61, %c24_62, %c0_63] : memref<1x52x52x8xf32, #tpu.memory_space<vmem>>, vector<1x16x16x8xf32>
    %55 = vector.shape_cast %54 : vector<1x16x16x8xf32> to vector<16x16x8xf32>
    %56 = vector.shape_cast %55 : vector<16x16x8xf32> to vector<256x8xf32>
    %c0_64 = arith.constant 0 : index
    %c24_65 = arith.constant 24 : index
    %c12_66 = arith.constant 12 : index
    %c0_67 = arith.constant 0 : index
    %57 = vector.load %arg1[%c0_64, %c24_65, %c12_66, %c0_67] : memref<1x52x52x8xf32, #tpu.memory_space<vmem>>, vector<1x16x16x8xf32>
    %58 = vector.shape_cast %57 : vector<1x16x16x8xf32> to vector<16x16x8xf32>
    %59 = vector.shape_cast %58 : vector<16x16x8xf32> to vector<256x8xf32>
    %c0_68 = arith.constant 0 : index
    %c24_69 = arith.constant 24 : index
    %c18_70 = arith.constant 18 : index
    %c0_71 = arith.constant 0 : index
    %60 = vector.load %arg1[%c0_68, %c24_69, %c18_70, %c0_71] : memref<1x52x52x8xf32, #tpu.memory_space<vmem>>, vector<1x16x16x8xf32>
    %61 = vector.shape_cast %60 : vector<1x16x16x8xf32> to vector<16x16x8xf32>
    %62 = vector.shape_cast %61 : vector<16x16x8xf32> to vector<256x8xf32>
    %c0_72 = arith.constant 0 : index
    %c24_73 = arith.constant 24 : index
    %c24_74 = arith.constant 24 : index
    %c0_75 = arith.constant 0 : index
    %63 = vector.load %arg1[%c0_72, %c24_73, %c24_74, %c0_75] : memref<1x52x52x8xf32, #tpu.memory_space<vmem>>, vector<1x16x16x8xf32>
    %64 = vector.shape_cast %63 : vector<1x16x16x8xf32> to vector<16x16x8xf32>
    %65 = vector.shape_cast %64 : vector<16x16x8xf32> to vector<256x8xf32>
    %66 = tpu.concatenate %41, %44, %47, %50, %53, %56, %59, %62, %65 in 1 : vector<256x8xf32>, vector<256x8xf32>, vector<256x8xf32>, vector<256x8xf32>, vector<256x8xf32>, vector<256x8xf32>, vector<256x8xf32>, vector<256x8xf32>, vector<256x8xf32> -> vector<256x72xf32>
    %67 = arith.truncf %66 : vector<256x72xf32> to vector<256x72xbf16>
    %c1 = arith.constant 1 : index
    %c0_76 = arith.constant 0 : index
    %c0_77 = arith.constant 0 : index
    %68 = vector.load %arg2[%c1, %c0_76, %c0_77] : memref<6x16x72xbf16, #tpu.memory_space<vmem>>, vector<1x16x72xbf16>
    %69 = vector.shape_cast %68 : vector<1x16x72xbf16> to vector<16x72xbf16>
    %cst_78 = arith.constant dense<0.000000e+00> : vector<16x256xf32>
    %70 = tpu.matmul %69, %67, %cst_78 {dimension_numbers = #tpu.dot_dimension_numbers<[1], [1], [0], [0], [0, 0, 1, 0], [], []>} : vector<16x72xbf16>, vector<256x72xbf16>, vector<16x256xf32> -> vector<16x256xf32>
    %c1_79 = arith.constant 1 : index
    %c0_80 = arith.constant 0 : index
    %c0_81 = arith.constant 0 : index
    %71 = vector.load %arg3[%c1_79, %c0_80, %c0_81] : memref<6x16x1xf32, #tpu.memory_space<vmem>>, vector<1x16x1xf32>
    %72 = vector.shape_cast %71 : vector<1x16x1xf32> to vector<16x1xf32>
    %73 = vector.broadcast %72 : vector<16x1xf32> to vector<16x256xf32>
    %74 = arith.addf %70, %73 : vector<16x256xf32>
    %c0_82 = arith.constant 0 : index
    %c1_83 = arith.constant 1 : index
    %c0_84 = arith.constant 0 : index
    %c0_85 = arith.constant 0 : index
    %75 = vector.load %arg4[%c0_82, %c1_83, %c0_84, %c0_85] : memref<1x6x16x256xf32, #tpu.memory_space<vmem>>, vector<1x1x16x256xf32>
    %76 = vector.shape_cast %75 : vector<1x1x16x256xf32> to vector<16x256xf32>
    %77 = vector.shape_cast %74 : vector<16x256xf32> to vector<1x1x16x256xf32>
    tpu.vector_store %arg4[%c0_82, %c1_83, %c0_84, %c0_85], %77 {strides = array<i32>} : memref<1x6x16x256xf32, #tpu.memory_space<vmem>>, vector<1x1x16x256xf32>,
    %c0_86 = arith.constant 0 : index
    %c9 = arith.constant 9 : index
    %c9_87 = arith.constant 9 : index
    %c0_88 = arith.constant 0 : index
    %78 = vector.load %arg1[%c0_86, %c9, %c9_87, %c0_88] : memref<1x52x52x8xf32, #tpu.memory_space<vmem>>, vector<1x16x16x8xf32>
    %79 = vector.shape_cast %78 : vector<1x16x16x8xf32> to vector<16x16x8xf32>
    %80 = vector.shape_cast %79 : vector<16x16x8xf32> to vector<256x8xf32>
    %c0_89 = arith.constant 0 : index
    %c9_90 = arith.constant 9 : index
    %c18_91 = arith.constant 18 : index
    %c0_92 = arith.constant 0 : index
    %81 = vector.load %arg1[%c0_89, %c9_90, %c18_91, %c0_92] : memref<1x52x52x8xf32, #tpu.memory_space<vmem>>, vector<1x16x16x8xf32>
    %82 = vector.shape_cast %81 : vector<1x16x16x8xf32> to vector<16x16x8xf32>
    %83 = vector.shape_cast %82 : vector<16x16x8xf32> to vector<256x8xf32>
    %c0_93 = arith.constant 0 : index
    %c9_94 = arith.constant 9 : index
    %c27 = arith.constant 27 : index
    %c0_95 = arith.constant 0 : index
    %84 = vector.load %arg1[%c0_93, %c9_94, %c27, %c0_95] : memref<1x52x52x8xf32, #tpu.memory_space<vmem>>, vector<1x16x16x8xf32>
    %85 = vector.shape_cast %84 : vector<1x16x16x8xf32> to vector<16x16x8xf32>
    %86 = vector.shape_cast %85 : vector<16x16x8xf32> to vector<256x8xf32>
    %c0_96 = arith.constant 0 : index
    %c18_97 = arith.constant 18 : index
    %c9_98 = arith.constant 9 : index
    %c0_99 = arith.constant 0 : index
    %87 = vector.load %arg1[%c0_96, %c18_97, %c9_98, %c0_99] : memref<1x52x52x8xf32, #tpu.memory_space<vmem>>, vector<1x16x16x8xf32>
    %88 = vector.shape_cast %87 : vector<1x16x16x8xf32> to vector<16x16x8xf32>
    %89 = vector.shape_cast %88 : vector<16x16x8xf32> to vector<256x8xf32>
    %c0_100 = arith.constant 0 : index
    %c18_101 = arith.constant 18 : index
    %c18_102 = arith.constant 18 : index
    %c0_103 = arith.constant 0 : index
    %90 = vector.load %arg1[%c0_100, %c18_101, %c18_102, %c0_103] : memref<1x52x52x8xf32, #tpu.memory_space<vmem>>, vector<1x16x16x8xf32>
    %91 = vector.shape_cast %90 : vector<1x16x16x8xf32> to vector<16x16x8xf32>
    %92 = vector.shape_cast %91 : vector<16x16x8xf32> to vector<256x8xf32>
    %c0_104 = arith.constant 0 : index
    %c18_105 = arith.constant 18 : index
    %c27_106 = arith.constant 27 : index
    %c0_107 = arith.constant 0 : index
    %93 = vector.load %arg1[%c0_104, %c18_105, %c27_106, %c0_107] : memref<1x52x52x8xf32, #tpu.memory_space<vmem>>, vector<1x16x16x8xf32>
    %94 = vector.shape_cast %93 : vector<1x16x16x8xf32> to vector<16x16x8xf32>
    %95 = vector.shape_cast %94 : vector<16x16x8xf32> to vector<256x8xf32>
    %c0_108 = arith.constant 0 : index
    %c27_109 = arith.constant 27 : index
    %c9_110 = arith.constant 9 : index
    %c0_111 = arith.constant 0 : index
    %96 = vector.load %arg1[%c0_108, %c27_109, %c9_110, %c0_111] : memref<1x52x52x8xf32, #tpu.memory_space<vmem>>, vector<1x16x16x8xf32>
    %97 = vector.shape_cast %96 : vector<1x16x16x8xf32> to vector<16x16x8xf32>
    %98 = vector.shape_cast %97 : vector<16x16x8xf32> to vector<256x8xf32>
    %c0_112 = arith.constant 0 : index
    %c27_113 = arith.constant 27 : index
    %c18_114 = arith.constant 18 : index
    %c0_115 = arith.constant 0 : index
    %99 = vector.load %arg1[%c0_112, %c27_113, %c18_114, %c0_115] : memref<1x52x52x8xf32, #tpu.memory_space<vmem>>, vector<1x16x16x8xf32>
    %100 = vector.shape_cast %99 : vector<1x16x16x8xf32> to vector<16x16x8xf32>
    %101 = vector.shape_cast %100 : vector<16x16x8xf32> to vector<256x8xf32>
    %c0_116 = arith.constant 0 : index
    %c27_117 = arith.constant 27 : index
    %c27_118 = arith.constant 27 : index
    %c0_119 = arith.constant 0 : index
    %102 = vector.load %arg1[%c0_116, %c27_117, %c27_118, %c0_119] : memref<1x52x52x8xf32, #tpu.memory_space<vmem>>, vector<1x16x16x8xf32>
    %103 = vector.shape_cast %102 : vector<1x16x16x8xf32> to vector<16x16x8xf32>
    %104 = vector.shape_cast %103 : vector<16x16x8xf32> to vector<256x8xf32>
    %105 = tpu.concatenate %80, %83, %86, %89, %92, %95, %98, %101, %104 in 1 : vector<256x8xf32>, vector<256x8xf32>, vector<256x8xf32>, vector<256x8xf32>, vector<256x8xf32>, vector<256x8xf32>, vector<256x8xf32>, vector<256x8xf32>, vector<256x8xf32> -> vector<256x72xf32>
    %106 = arith.truncf %105 : vector<256x72xf32> to vector<256x72xbf16>
    %c2 = arith.constant 2 : index
    %c0_120 = arith.constant 0 : index
    %c0_121 = arith.constant 0 : index
    %107 = vector.load %arg2[%c2, %c0_120, %c0_121] : memref<6x16x72xbf16, #tpu.memory_space<vmem>>, vector<1x16x72xbf16>
    %108 = vector.shape_cast %107 : vector<1x16x72xbf16> to vector<16x72xbf16>
    %cst_122 = arith.constant dense<0.000000e+00> : vector<16x256xf32>
    %109 = tpu.matmul %108, %106, %cst_122 {dimension_numbers = #tpu.dot_dimension_numbers<[1], [1], [0], [0], [0, 0, 1, 0], [], []>} : vector<16x72xbf16>, vector<256x72xbf16>, vector<16x256xf32> -> vector<16x256xf32>
    %c2_123 = arith.constant 2 : index
    %c0_124 = arith.constant 0 : index
    %c0_125 = arith.constant 0 : index
    %110 = vector.load %arg3[%c2_123, %c0_124, %c0_125] : memref<6x16x1xf32, #tpu.memory_space<vmem>>, vector<1x16x1xf32>
    %111 = vector.shape_cast %110 : vector<1x16x1xf32> to vector<16x1xf32>
    %112 = vector.broadcast %111 : vector<16x1xf32> to vector<16x256xf32>
    %113 = arith.addf %109, %112 : vector<16x256xf32>
    %c0_126 = arith.constant 0 : index
    %c2_127 = arith.constant 2 : index
    %c0_128 = arith.constant 0 : index
    %c0_129 = arith.constant 0 : index
    %114 = vector.load %arg4[%c0_126, %c2_127, %c0_128, %c0_129] : memref<1x6x16x256xf32, #tpu.memory_space<vmem>>, vector<1x1x16x256xf32>
    %115 = vector.shape_cast %114 : vector<1x1x16x256xf32> to vector<16x256xf32>
    %116 = vector.shape_cast %113 : vector<16x256xf32> to vector<1x1x16x256xf32>
    tpu.vector_store %arg4[%c0_126, %c2_127, %c0_128, %c0_129], %116 {strides = array<i32>} : memref<1x6x16x256xf32, #tpu.memory_space<vmem>>, vector<1x1x16x256xf32>,
    %c0_130 = arith.constant 0 : index
    %c6 = arith.constant 6 : index
    %c6_131 = arith.constant 6 : index
    %c0_132 = arith.constant 0 : index
    %117 = vector.load %arg1[%c0_130, %c6, %c6_131, %c0_132] : memref<1x52x52x8xf32, #tpu.memory_space<vmem>>, vector<1x16x16x8xf32>
    %118 = vector.shape_cast %117 : vector<1x16x16x8xf32> to vector<16x16x8xf32>
    %119 = vector.shape_cast %118 : vector<16x16x8xf32> to vector<256x8xf32>
    %c0_133 = arith.constant 0 : index
    %c6_134 = arith.constant 6 : index
    %c18_135 = arith.constant 18 : index
    %c0_136 = arith.constant 0 : index
    %120 = vector.load %arg1[%c0_133, %c6_134, %c18_135, %c0_136] : memref<1x52x52x8xf32, #tpu.memory_space<vmem>>, vector<1x16x16x8xf32>
    %121 = vector.shape_cast %120 : vector<1x16x16x8xf32> to vector<16x16x8xf32>
    %122 = vector.shape_cast %121 : vector<16x16x8xf32> to vector<256x8xf32>
    %c0_137 = arith.constant 0 : index
    %c6_138 = arith.constant 6 : index
    %c30 = arith.constant 30 : index
    %c0_139 = arith.constant 0 : index
    %123 = vector.load %arg1[%c0_137, %c6_138, %c30, %c0_139] : memref<1x52x52x8xf32, #tpu.memory_space<vmem>>, vector<1x16x16x8xf32>
    %124 = vector.shape_cast %123 : vector<1x16x16x8xf32> to vector<16x16x8xf32>
    %125 = vector.shape_cast %124 : vector<16x16x8xf32> to vector<256x8xf32>
    %c0_140 = arith.constant 0 : index
    %c18_141 = arith.constant 18 : index
    %c6_142 = arith.constant 6 : index
    %c0_143 = arith.constant 0 : index
    %126 = vector.load %arg1[%c0_140, %c18_141, %c6_142, %c0_143] : memref<1x52x52x8xf32, #tpu.memory_space<vmem>>, vector<1x16x16x8xf32>
    %127 = vector.shape_cast %126 : vector<1x16x16x8xf32> to vector<16x16x8xf32>
    %128 = vector.shape_cast %127 : vector<16x16x8xf32> to vector<256x8xf32>
    %c0_144 = arith.constant 0 : index
    %c18_145 = arith.constant 18 : index
    %c18_146 = arith.constant 18 : index
    %c0_147 = arith.constant 0 : index
    %129 = vector.load %arg1[%c0_144, %c18_145, %c18_146, %c0_147] : memref<1x52x52x8xf32, #tpu.memory_space<vmem>>, vector<1x16x16x8xf32>
    %130 = vector.shape_cast %129 : vector<1x16x16x8xf32> to vector<16x16x8xf32>
    %131 = vector.shape_cast %130 : vector<16x16x8xf32> to vector<256x8xf32>
    %c0_148 = arith.constant 0 : index
    %c18_149 = arith.constant 18 : index
    %c30_150 = arith.constant 30 : index
    %c0_151 = arith.constant 0 : index
    %132 = vector.load %arg1[%c0_148, %c18_149, %c30_150, %c0_151] : memref<1x52x52x8xf32, #tpu.memory_space<vmem>>, vector<1x16x16x8xf32>
    %133 = vector.shape_cast %132 : vector<1x16x16x8xf32> to vector<16x16x8xf32>
    %134 = vector.shape_cast %133 : vector<16x16x8xf32> to vector<256x8xf32>
    %c0_152 = arith.constant 0 : index
    %c30_153 = arith.constant 30 : index
    %c6_154 = arith.constant 6 : index
    %c0_155 = arith.constant 0 : index
    %135 = vector.load %arg1[%c0_152, %c30_153, %c6_154, %c0_155] : memref<1x52x52x8xf32, #tpu.memory_space<vmem>>, vector<1x16x16x8xf32>
    %136 = vector.shape_cast %135 : vector<1x16x16x8xf32> to vector<16x16x8xf32>
    %137 = vector.shape_cast %136 : vector<16x16x8xf32> to vector<256x8xf32>
    %c0_156 = arith.constant 0 : index
    %c30_157 = arith.constant 30 : index
    %c18_158 = arith.constant 18 : index
    %c0_159 = arith.constant 0 : index
    %138 = vector.load %arg1[%c0_156, %c30_157, %c18_158, %c0_159] : memref<1x52x52x8xf32, #tpu.memory_space<vmem>>, vector<1x16x16x8xf32>
    %139 = vector.shape_cast %138 : vector<1x16x16x8xf32> to vector<16x16x8xf32>
    %140 = vector.shape_cast %139 : vector<16x16x8xf32> to vector<256x8xf32>
    %c0_160 = arith.constant 0 : index
    %c30_161 = arith.constant 30 : index
    %c30_162 = arith.constant 30 : index
    %c0_163 = arith.constant 0 : index
    %141 = vector.load %arg1[%c0_160, %c30_161, %c30_162, %c0_163] : memref<1x52x52x8xf32, #tpu.memory_space<vmem>>, vector<1x16x16x8xf32>
    %142 = vector.shape_cast %141 : vector<1x16x16x8xf32> to vector<16x16x8xf32>
    %143 = vector.shape_cast %142 : vector<16x16x8xf32> to vector<256x8xf32>
    %144 = tpu.concatenate %119, %122, %125, %128, %131, %134, %137, %140, %143 in 1 : vector<256x8xf32>, vector<256x8xf32>, vector<256x8xf32>, vector<256x8xf32>, vector<256x8xf32>, vector<256x8xf32>, vector<256x8xf32>, vector<256x8xf32>, vector<256x8xf32> -> vector<256x72xf32>
    %145 = arith.truncf %144 : vector<256x72xf32> to vector<256x72xbf16>
    %c3 = arith.constant 3 : index
    %c0_164 = arith.constant 0 : index
    %c0_165 = arith.constant 0 : index
    %146 = vector.load %arg2[%c3, %c0_164, %c0_165] : memref<6x16x72xbf16, #tpu.memory_space<vmem>>, vector<1x16x72xbf16>
    %147 = vector.shape_cast %146 : vector<1x16x72xbf16> to vector<16x72xbf16>
    %cst_166 = arith.constant dense<0.000000e+00> : vector<16x256xf32>
    %148 = tpu.matmul %147, %145, %cst_166 {dimension_numbers = #tpu.dot_dimension_numbers<[1], [1], [0], [0], [0, 0, 1, 0], [], []>} : vector<16x72xbf16>, vector<256x72xbf16>, vector<16x256xf32> -> vector<16x256xf32>
    %c3_167 = arith.constant 3 : index
    %c0_168 = arith.constant 0 : index
    %c0_169 = arith.constant 0 : index
    %149 = vector.load %arg3[%c3_167, %c0_168, %c0_169] : memref<6x16x1xf32, #tpu.memory_space<vmem>>, vector<1x16x1xf32>
    %150 = vector.shape_cast %149 : vector<1x16x1xf32> to vector<16x1xf32>
    %151 = vector.broadcast %150 : vector<16x1xf32> to vector<16x256xf32>
    %152 = arith.addf %148, %151 : vector<16x256xf32>
    %c0_170 = arith.constant 0 : index
    %c3_171 = arith.constant 3 : index
    %c0_172 = arith.constant 0 : index
    %c0_173 = arith.constant 0 : index
    %153 = vector.load %arg4[%c0_170, %c3_171, %c0_172, %c0_173] : memref<1x6x16x256xf32, #tpu.memory_space<vmem>>, vector<1x1x16x256xf32>
    %154 = vector.shape_cast %153 : vector<1x1x16x256xf32> to vector<16x256xf32>
    %155 = vector.shape_cast %152 : vector<16x256xf32> to vector<1x1x16x256xf32>
    tpu.vector_store %arg4[%c0_170, %c3_171, %c0_172, %c0_173], %155 {strides = array<i32>} : memref<1x6x16x256xf32, #tpu.memory_space<vmem>>, vector<1x1x16x256xf32>,
    %c0_174 = arith.constant 0 : index
    %c3_175 = arith.constant 3 : index
    %c3_176 = arith.constant 3 : index
    %c0_177 = arith.constant 0 : index
    %156 = vector.load %arg1[%c0_174, %c3_175, %c3_176, %c0_177] : memref<1x52x52x8xf32, #tpu.memory_space<vmem>>, vector<1x16x16x8xf32>
    %157 = vector.shape_cast %156 : vector<1x16x16x8xf32> to vector<16x16x8xf32>
    %158 = vector.shape_cast %157 : vector<16x16x8xf32> to vector<256x8xf32>
    %c0_178 = arith.constant 0 : index
    %c3_179 = arith.constant 3 : index
    %c18_180 = arith.constant 18 : index
    %c0_181 = arith.constant 0 : index
    %159 = vector.load %arg1[%c0_178, %c3_179, %c18_180, %c0_181] : memref<1x52x52x8xf32, #tpu.memory_space<vmem>>, vector<1x16x16x8xf32>
    %160 = vector.shape_cast %159 : vector<1x16x16x8xf32> to vector<16x16x8xf32>
    %161 = vector.shape_cast %160 : vector<16x16x8xf32> to vector<256x8xf32>
    %c0_182 = arith.constant 0 : index
    %c3_183 = arith.constant 3 : index
    %c33 = arith.constant 33 : index
    %c0_184 = arith.constant 0 : index
    %162 = vector.load %arg1[%c0_182, %c3_183, %c33, %c0_184] : memref<1x52x52x8xf32, #tpu.memory_space<vmem>>, vector<1x16x16x8xf32>
    %163 = vector.shape_cast %162 : vector<1x16x16x8xf32> to vector<16x16x8xf32>
    %164 = vector.shape_cast %163 : vector<16x16x8xf32> to vector<256x8xf32>
    %c0_185 = arith.constant 0 : index
    %c18_186 = arith.constant 18 : index
    %c3_187 = arith.constant 3 : index
    %c0_188 = arith.constant 0 : index
    %165 = vector.load %arg1[%c0_185, %c18_186, %c3_187, %c0_188] : memref<1x52x52x8xf32, #tpu.memory_space<vmem>>, vector<1x16x16x8xf32>
    %166 = vector.shape_cast %165 : vector<1x16x16x8xf32> to vector<16x16x8xf32>
    %167 = vector.shape_cast %166 : vector<16x16x8xf32> to vector<256x8xf32>
    %c0_189 = arith.constant 0 : index
    %c18_190 = arith.constant 18 : index
    %c18_191 = arith.constant 18 : index
    %c0_192 = arith.constant 0 : index
    %168 = vector.load %arg1[%c0_189, %c18_190, %c18_191, %c0_192] : memref<1x52x52x8xf32, #tpu.memory_space<vmem>>, vector<1x16x16x8xf32>
    %169 = vector.shape_cast %168 : vector<1x16x16x8xf32> to vector<16x16x8xf32>
    %170 = vector.shape_cast %169 : vector<16x16x8xf32> to vector<256x8xf32>
    %c0_193 = arith.constant 0 : index
    %c18_194 = arith.constant 18 : index
    %c33_195 = arith.constant 33 : index
    %c0_196 = arith.constant 0 : index
    %171 = vector.load %arg1[%c0_193, %c18_194, %c33_195, %c0_196] : memref<1x52x52x8xf32, #tpu.memory_space<vmem>>, vector<1x16x16x8xf32>
    %172 = vector.shape_cast %171 : vector<1x16x16x8xf32> to vector<16x16x8xf32>
    %173 = vector.shape_cast %172 : vector<16x16x8xf32> to vector<256x8xf32>
    %c0_197 = arith.constant 0 : index
    %c33_198 = arith.constant 33 : index
    %c3_199 = arith.constant 3 : index
    %c0_200 = arith.constant 0 : index
    %174 = vector.load %arg1[%c0_197, %c33_198, %c3_199, %c0_200] : memref<1x52x52x8xf32, #tpu.memory_space<vmem>>, vector<1x16x16x8xf32>
    %175 = vector.shape_cast %174 : vector<1x16x16x8xf32> to vector<16x16x8xf32>
    %176 = vector.shape_cast %175 : vector<16x16x8xf32> to vector<256x8xf32>
    %c0_201 = arith.constant 0 : index
    %c33_202 = arith.constant 33 : index
    %c18_203 = arith.constant 18 : index
    %c0_204 = arith.constant 0 : index
    %177 = vector.load %arg1[%c0_201, %c33_202, %c18_203, %c0_204] : memref<1x52x52x8xf32, #tpu.memory_space<vmem>>, vector<1x16x16x8xf32>
    %178 = vector.shape_cast %177 : vector<1x16x16x8xf32> to vector<16x16x8xf32>
    %179 = vector.shape_cast %178 : vector<16x16x8xf32> to vector<256x8xf32>
    %c0_205 = arith.constant 0 : index
    %c33_206 = arith.constant 33 : index
    %c33_207 = arith.constant 33 : index
    %c0_208 = arith.constant 0 : index
    %180 = vector.load %arg1[%c0_205, %c33_206, %c33_207, %c0_208] : memref<1x52x52x8xf32, #tpu.memory_space<vmem>>, vector<1x16x16x8xf32>
    %181 = vector.shape_cast %180 : vector<1x16x16x8xf32> to vector<16x16x8xf32>
    %182 = vector.shape_cast %181 : vector<16x16x8xf32> to vector<256x8xf32>
    %183 = tpu.concatenate %158, %161, %164, %167, %170, %173, %176, %179, %182 in 1 : vector<256x8xf32>, vector<256x8xf32>, vector<256x8xf32>, vector<256x8xf32>, vector<256x8xf32>, vector<256x8xf32>, vector<256x8xf32>, vector<256x8xf32>, vector<256x8xf32> -> vector<256x72xf32>
    %184 = arith.truncf %183 : vector<256x72xf32> to vector<256x72xbf16>
    %c4 = arith.constant 4 : index
    %c0_209 = arith.constant 0 : index
    %c0_210 = arith.constant 0 : index
    %185 = vector.load %arg2[%c4, %c0_209, %c0_210] : memref<6x16x72xbf16, #tpu.memory_space<vmem>>, vector<1x16x72xbf16>
    %186 = vector.shape_cast %185 : vector<1x16x72xbf16> to vector<16x72xbf16>
    %cst_211 = arith.constant dense<0.000000e+00> : vector<16x256xf32>
    %187 = tpu.matmul %186, %184, %cst_211 {dimension_numbers = #tpu.dot_dimension_numbers<[1], [1], [0], [0], [0, 0, 1, 0], [], []>} : vector<16x72xbf16>, vector<256x72xbf16>, vector<16x256xf32> -> vector<16x256xf32>
    %c4_212 = arith.constant 4 : index
    %c0_213 = arith.constant 0 : index
    %c0_214 = arith.constant 0 : index
    %188 = vector.load %arg3[%c4_212, %c0_213, %c0_214] : memref<6x16x1xf32, #tpu.memory_space<vmem>>, vector<1x16x1xf32>
    %189 = vector.shape_cast %188 : vector<1x16x1xf32> to vector<16x1xf32>
    %190 = vector.broadcast %189 : vector<16x1xf32> to vector<16x256xf32>
    %191 = arith.addf %187, %190 : vector<16x256xf32>
    %c0_215 = arith.constant 0 : index
    %c4_216 = arith.constant 4 : index
    %c0_217 = arith.constant 0 : index
    %c0_218 = arith.constant 0 : index
    %192 = vector.load %arg4[%c0_215, %c4_216, %c0_217, %c0_218] : memref<1x6x16x256xf32, #tpu.memory_space<vmem>>, vector<1x1x16x256xf32>
    %193 = vector.shape_cast %192 : vector<1x1x16x256xf32> to vector<16x256xf32>
    %194 = vector.shape_cast %191 : vector<16x256xf32> to vector<1x1x16x256xf32>
    tpu.vector_store %arg4[%c0_215, %c4_216, %c0_217, %c0_218], %194 {strides = array<i32>} : memref<1x6x16x256xf32, #tpu.memory_space<vmem>>, vector<1x1x16x256xf32>,
    %c0_219 = arith.constant 0 : index
    %c0_220 = arith.constant 0 : index
    %c0_221 = arith.constant 0 : index
    %c0_222 = arith.constant 0 : index
    %195 = vector.load %arg1[%c0_219, %c0_220, %c0_221, %c0_222] : memref<1x52x52x8xf32, #tpu.memory_space<vmem>>, vector<1x16x16x8xf32>
    %196 = vector.shape_cast %195 : vector<1x16x16x8xf32> to vector<16x16x8xf32>
    %197 = vector.shape_cast %196 : vector<16x16x8xf32> to vector<256x8xf32>
    %c0_223 = arith.constant 0 : index
    %c0_224 = arith.constant 0 : index
    %c18_225 = arith.constant 18 : index
    %c0_226 = arith.constant 0 : index
    %198 = vector.load %arg1[%c0_223, %c0_224, %c18_225, %c0_226] : memref<1x52x52x8xf32, #tpu.memory_space<vmem>>, vector<1x16x16x8xf32>
    %199 = vector.shape_cast %198 : vector<1x16x16x8xf32> to vector<16x16x8xf32>
    %200 = vector.shape_cast %199 : vector<16x16x8xf32> to vector<256x8xf32>
    %c0_227 = arith.constant 0 : index
    %c0_228 = arith.constant 0 : index
    %c36 = arith.constant 36 : index
    %c0_229 = arith.constant 0 : index
    %201 = vector.load %arg1[%c0_227, %c0_228, %c36, %c0_229] : memref<1x52x52x8xf32, #tpu.memory_space<vmem>>, vector<1x16x16x8xf32>
    %202 = vector.shape_cast %201 : vector<1x16x16x8xf32> to vector<16x16x8xf32>
    %203 = vector.shape_cast %202 : vector<16x16x8xf32> to vector<256x8xf32>
    %c0_230 = arith.constant 0 : index
    %c18_231 = arith.constant 18 : index
    %c0_232 = arith.constant 0 : index
    %c0_233 = arith.constant 0 : index
    %204 = vector.load %arg1[%c0_230, %c18_231, %c0_232, %c0_233] : memref<1x52x52x8xf32, #tpu.memory_space<vmem>>, vector<1x16x16x8xf32>
    %205 = vector.shape_cast %204 : vector<1x16x16x8xf32> to vector<16x16x8xf32>
    %206 = vector.shape_cast %205 : vector<16x16x8xf32> to vector<256x8xf32>
    %c0_234 = arith.constant 0 : index
    %c18_235 = arith.constant 18 : index
    %c18_236 = arith.constant 18 : index
    %c0_237 = arith.constant 0 : index
    %207 = vector.load %arg1[%c0_234, %c18_235, %c18_236, %c0_237] : memref<1x52x52x8xf32, #tpu.memory_space<vmem>>, vector<1x16x16x8xf32>
    %208 = vector.shape_cast %207 : vector<1x16x16x8xf32> to vector<16x16x8xf32>
    %209 = vector.shape_cast %208 : vector<16x16x8xf32> to vector<256x8xf32>
    %c0_238 = arith.constant 0 : index
    %c18_239 = arith.constant 18 : index
    %c36_240 = arith.constant 36 : index
    %c0_241 = arith.constant 0 : index
    %210 = vector.load %arg1[%c0_238, %c18_239, %c36_240, %c0_241] : memref<1x52x52x8xf32, #tpu.memory_space<vmem>>, vector<1x16x16x8xf32>
    %211 = vector.shape_cast %210 : vector<1x16x16x8xf32> to vector<16x16x8xf32>
    %212 = vector.shape_cast %211 : vector<16x16x8xf32> to vector<256x8xf32>
    %c0_242 = arith.constant 0 : index
    %c36_243 = arith.constant 36 : index
    %c0_244 = arith.constant 0 : index
    %c0_245 = arith.constant 0 : index
    %213 = vector.load %arg1[%c0_242, %c36_243, %c0_244, %c0_245] : memref<1x52x52x8xf32, #tpu.memory_space<vmem>>, vector<1x16x16x8xf32>
    %214 = vector.shape_cast %213 : vector<1x16x16x8xf32> to vector<16x16x8xf32>
    %215 = vector.shape_cast %214 : vector<16x16x8xf32> to vector<256x8xf32>
    %c0_246 = arith.constant 0 : index
    %c36_247 = arith.constant 36 : index
    %c18_248 = arith.constant 18 : index
    %c0_249 = arith.constant 0 : index
    %216 = vector.load %arg1[%c0_246, %c36_247, %c18_248, %c0_249] : memref<1x52x52x8xf32, #tpu.memory_space<vmem>>, vector<1x16x16x8xf32>
    %217 = vector.shape_cast %216 : vector<1x16x16x8xf32> to vector<16x16x8xf32>
    %218 = vector.shape_cast %217 : vector<16x16x8xf32> to vector<256x8xf32>
    %c0_250 = arith.constant 0 : index
    %c36_251 = arith.constant 36 : index
    %c36_252 = arith.constant 36 : index
    %c0_253 = arith.constant 0 : index
    %219 = vector.load %arg1[%c0_250, %c36_251, %c36_252, %c0_253] : memref<1x52x52x8xf32, #tpu.memory_space<vmem>>, vector<1x16x16x8xf32>
    %220 = vector.shape_cast %219 : vector<1x16x16x8xf32> to vector<16x16x8xf32>
    %221 = vector.shape_cast %220 : vector<16x16x8xf32> to vector<256x8xf32>
    %222 = tpu.concatenate %197, %200, %203, %206, %209, %212, %215, %218, %221 in 1 : vector<256x8xf32>, vector<256x8xf32>, vector<256x8xf32>, vector<256x8xf32>, vector<256x8xf32>, vector<256x8xf32>, vector<256x8xf32>, vector<256x8xf32>, vector<256x8xf32> -> vector<256x72xf32>
    %223 = arith.truncf %222 : vector<256x72xf32> to vector<256x72xbf16>
    %c5 = arith.constant 5 : index
    %c0_254 = arith.constant 0 : index
    %c0_255 = arith.constant 0 : index
    %224 = vector.load %arg2[%c5, %c0_254, %c0_255] : memref<6x16x72xbf16, #tpu.memory_space<vmem>>, vector<1x16x72xbf16>
    %225 = vector.shape_cast %224 : vector<1x16x72xbf16> to vector<16x72xbf16>
    %cst_256 = arith.constant dense<0.000000e+00> : vector<16x256xf32>
    %226 = tpu.matmul %225, %223, %cst_256 {dimension_numbers = #tpu.dot_dimension_numbers<[1], [1], [0], [0], [0, 0, 1, 0], [], []>} : vector<16x72xbf16>, vector<256x72xbf16>, vector<16x256xf32> -> vector<16x256xf32>
    %c5_257 = arith.constant 5 : index
    %c0_258 = arith.constant 0 : index
    %c0_259 = arith.constant 0 : index
    %227 = vector.load %arg3[%c5_257, %c0_258, %c0_259] : memref<6x16x1xf32, #tpu.memory_space<vmem>>, vector<1x16x1xf32>
    %228 = vector.shape_cast %227 : vector<1x16x1xf32> to vector<16x1xf32>
    %229 = vector.broadcast %228 : vector<16x1xf32> to vector<16x256xf32>
    %230 = arith.addf %226, %229 : vector<16x256xf32>
    %c0_260 = arith.constant 0 : index
    %c5_261 = arith.constant 5 : index
    %c0_262 = arith.constant 0 : index
    %c0_263 = arith.constant 0 : index
    %231 = vector.load %arg4[%c0_260, %c5_261, %c0_262, %c0_263] : memref<1x6x16x256xf32, #tpu.memory_space<vmem>>, vector<1x1x16x256xf32>
    %232 = vector.shape_cast %231 : vector<1x1x16x256xf32> to vector<16x256xf32>
    %233 = vector.shape_cast %230 : vector<16x256xf32> to vector<1x1x16x256xf32>
    tpu.vector_store %arg4[%c0_260, %c5_261, %c0_262, %c0_263], %233 {strides = array<i32>} : memref<1x6x16x256xf32, #tpu.memory_space<vmem>>, vector<1x1x16x256xf32>,
    return
  }
  func.func @transform_0(%arg0: i32) -> (i32, i32, i32, i32) {
    %c0_i32 = arith.constant 0 : i32
    %c0_i32_0 = arith.constant 0 : i32
    %c0_i32_1 = arith.constant 0 : i32
    %c0_i32_2 = arith.constant 0 : i32
    return %arg0, %c0_i32, %c0_i32_0, %c0_i32_1 : i32, i32, i32, i32
  }
  func.func @transform_1(%arg0: i32) -> (i32, i32, i32) {
    %c0_i32 = arith.constant 0 : i32
    %c0_i32_0 = arith.constant 0 : i32
    %c0_i32_1 = arith.constant 0 : i32
    %c0_i32_2 = arith.constant 0 : i32
    return %c0_i32, %c0_i32_0, %c0_i32_1 : i32, i32, i32
  }
  func.func @transform_2(%arg0: i32) -> (i32, i32, i32) {
    %c0_i32 = arith.constant 0 : i32
    %c0_i32_0 = arith.constant 0 : i32
    %c0_i32_1 = arith.constant 0 : i32
    %c0_i32_2 = arith.constant 0 : i32
    return %c0_i32, %c0_i32_0, %c0_i32_1 : i32, i32, i32
  }
  func.func @transform_3(%arg0: i32) -> (i32, i32, i32, i32) {
    %c0_i32 = arith.constant 0 : i32
    %c0_i32_0 = arith.constant 0 : i32
    %c0_i32_1 = arith.constant 0 : i32
    %c0_i32_2 = arith.constant 0 : i32
    return %arg0, %c0_i32, %c0_i32_0, %c0_i32_1 : i32, i32, i32, i32
  }
}

</mosaic_0001>

<llo_original>
// kernel: tpu_custom_call.1
$region0: #{tpu_custom_call.1}
  #allocation0 [shape = 'u32[]', space=smem, size = 0x4, offset = 0x4, fixed_abs, tag = 'smem constant byte address 0x4 - core index']
  #allocation1 [shape = 'u32[144,128]{1,0:T(1,128)}', space=vmem, size = 0x12000, scoped, tag = 'internal scratch']
  %s0 = inlined_call_operand.vmem [shape: f32[2,52,52,8], index: 0, kind: input, shape index: {}]
  %s1 = inlined_call_operand.vmem [shape: bf16[6,16,72], index: 1, kind: input, shape index: {}]
  %s2 = inlined_call_operand.vmem [shape: f32[6,16,1], index: 2, kind: input, shape index: {}]
  %s3 = inlined_call_operand.hbm [shape: f32[2,6,16,256], index: 3, kind: output, shape index: {}]
  %s4 = sld [smem:[#allocation0]]
  $region45: #{tpu_custom_call.1} parent=0
    _
  %s6 = ssub.s32 1, %s4
  %s7 = scalar_select 0, %s6, %s4
  $region1: #{tpu_custom_call.1} parent=0
    #allocation2 [shape = 'u8[196608]{0}', space=vmem, size = 0x30000, scoped, tag = 'output window, operand 0']
    #allocation3 [shape = 's32[2]{0}', space=sflag, size = 0x8, scoped, tag = 'scoped memory for tpu_custom_call.1']
    %8 = vsyncpa [#allocation3], 0
    %s9 = scalar_lea.sflag [#allocation3], 1
    %10 = vsyncpa %s9, 0
    loop: start=0, step=1, limit=4
    $region2: #{tpu_custom_call.1} parent=1 // loop_pre_header
      _
    $region3: #{tpu_custom_call.1} parent=1 // loop_header
      %s12 = sphi 0, %s16
      %p13 = scmp.ge.s32.totalorder %s12, 4
      %s22 = sphi 0, %s24
      %s25 = sphi 0, %s22
      %s26 = sphi 0, %s25
      %s42 = sphi 0, %s26
      %s46 = sphi 0, %s46
      %s48 = sphi 0, %s46
      %s49 = sphi 0, %s48
      %s63 = sphi 0, %s49
      %s67 = sphi 0, %s67
      %s69 = sphi 0, %s67
      %s70 = sphi 0, %s69
      %s84 = sphi 0, %s70
      %s90 = sphi 0, %s92
      %s93 = sphi 0, %s90
      %s94 = sphi 0, %s93
      %s110 = sphi 0, %s94
    $region4: #{tpu_custom_call.1} parent=1 // loop_header_branch
      %15 = sbr.rel (%p13) target = $region8
    $region5: #{tpu_custom_call.1} parent=1 // loop_body
      %s17 = ssub.s32 %s12, 1
      %s18 = ssub.s32 %s12, 2
      %s19 = sadd.s32 %s12, 1
      %s20 = ssub.s32 %s12, %s19
      %p21 = scmp.eq.s32.totalorder %s20, 0
      %s23 = sadd.s32 %s22, 1
      %s24 = scalar_select %p21, %s22, %s23
      %p27 = pneg %p21
      %p28 = scmp.eq.s32.totalorder %s12, 1
      %p29 = por %p27, %p28
      %p30 = scmp.ne.s32.totalorder %s22, %s25
      %p31 = scmp.eq.s32.totalorder %s12, 0
      %p32 = por %p30, %p31
      %p33 = scmp.ne.s32.totalorder %s22, %s25
      %p34 = scmp.eq.s32.totalorder %s17, 1
      %p35 = por %p33, %p34
      %p36 = scmp.ne.s32.totalorder %s25, %s26
      %p37 = scmp.eq.s32.totalorder %s17, 0
      %p38 = por %p36, %p37
      %p39 = scmp.ne.s32.totalorder %s25, %s26
      %p40 = scmp.eq.s32.totalorder %s18, 1
      %p41 = por %p39, %p40
      %p43 = scmp.ne.s32.totalorder %s26, %s42
      %p44 = scmp.eq.s32.totalorder %s18, 0
      %p45 = por %p43, %p44
      %s47 = sadd.s32 %s46, 1
      %p50 = scmp.eq.s32.totalorder %s12, 1
      %p51 = scmp.ne.s32.totalorder %s46, %s48
      %p52 = scmp.eq.s32.totalorder %s12, 0
      %p53 = por %p51, %p52
      %p54 = scmp.ne.s32.totalorder %s46, %s48
      %p55 = scmp.eq.s32.totalorder %s17, 1
      %p56 = por %p54, %p55
      %p57 = scmp.ne.s32.totalorder %s48, %s49
      %p58 = scmp.eq.s32.totalorder %s17, 0
      %p59 = por %p57, %p58
      %p60 = scmp.ne.s32.totalorder %s48, %s49
      %p61 = scmp.eq.s32.totalorder %s18, 1
      %p62 = por %p60, %p61
      %p64 = scmp.ne.s32.totalorder %s49, %s63
      %p65 = scmp.eq.s32.totalorder %s18, 0
      %p66 = por %p64, %p65
      %s68 = sadd.s32 %s67, 1
      %p71 = scmp.eq.s32.totalorder %s12, 1
      %p72 = scmp.ne.s32.totalorder %s67, %s69
      %p73 = scmp.eq.s32.totalorder %s12, 0
      %p74 = por %p72, %p73
      %p75 = scmp.ne.s32.totalorder %s67, %s69
      %p76 = scmp.eq.s32.totalorder %s17, 1
      %p77 = por %p75, %p76
      %p78 = scmp.ne.s32.totalorder %s69, %s70
      %p79 = scmp.eq.s32.totalorder %s17, 0
      %p80 = por %p78, %p79
      %p81 = scmp.ne.s32.totalorder %s69, %s70
      %p82 = scmp.eq.s32.totalorder %s18, 1
      %p83 = por %p81, %p82
      %p85 = scmp.ne.s32.totalorder %s70, %s84
      %p86 = scmp.eq.s32.totalorder %s18, 0
      %p87 = por %p85, %p86
      %s88 = ssub.s32 %s12, %s19
      %p89 = scmp.eq.s32.totalorder %s88, 0
      %s91 = sadd.s32 %s90, 1
      %s92 = scalar_select %p89, %s90, %s91
      %p95 = pneg %p89
      %p96 = scmp.eq.s32.totalorder %s12, 1
      %p97 = por %p95, %p96
      %p98 = scmp.ne.s32.totalorder %s90, %s93
      %p99 = scmp.eq.s32.totalorder %s12, 0
      %p100 = por %p98, %p99
      %p101 = scmp.ne.s32.totalorder %s90, %s93
      %p102 = scmp.eq.s32.totalorder %s17, 1
      %p103 = por %p101, %p102
      %p104 = scmp.ne.s32.totalorder %s93, %s94
      %p105 = scmp.eq.s32.totalorder %s17, 0
      %p106 = por %p104, %p105
      %p107 = scmp.ne.s32.totalorder %s93, %s94
      %p108 = scmp.eq.s32.totalorder %s18, 1
      %p109 = por %p107, %p108
      %p111 = scmp.ne.s32.totalorder %s94, %s110
      %p112 = scmp.eq.s32.totalorder %s18, 0
      %p113 = por %p111, %p112
      %p114 = scmp.le.s32.totalorder 1, %s12
      %p115 = scmp.lt.s32.totalorder %s12, 3
      %p116 = pnand %p114, %p115
      %p117 = pneg %p116
      // Predicated region
      $region9: #{tpu_custom_call.1} parent=5 // pred_check
        _
      $region10: #{tpu_custom_call.1} parent=5 // pred_check_branch
        %119 = sbr.rel (%p116) target = $region12
      $region11: #{tpu_custom_call.1} parent=5 // pred_region
        %s120 = ssub.s32 %s12, 1
        // Predicated region
        $region13: #{tpu_custom_call.1} parent=11 // pred_check
          %p121 = pneg %p59
        $region14: #{tpu_custom_call.1} parent=11 // pred_check_branch
          %123 = sbr.rel (%p121) target = $region16
        $region15: #{tpu_custom_call.1} parent=11 // pred_region
          _
        $region16: #{tpu_custom_call.1} parent=11 // pred_fallthru
          _
        // Predicated region
        $region17: #{tpu_custom_call.1} parent=11 // pred_check
          %p124 = pneg %p80
        $region18: #{tpu_custom_call.1} parent=11 // pred_check_branch
          %126 = sbr.rel (%p124) target = $region20
        $region19: #{tpu_custom_call.1} parent=11 // pred_region
          _
        $region20: #{tpu_custom_call.1} parent=11 // pred_fallthru
          _
      $region12: #{tpu_custom_call.1} parent=5 // pred_fallthru
        _
      %p127 = scmp.lt.s32.totalorder %s12, 2
      // Predicated region
      $region21: #{tpu_custom_call.1} parent=5 // pred_check
        %p128 = pneg %p127
      $region22: #{tpu_custom_call.1} parent=5 // pred_check_branch
        %130 = sbr.rel (%p128) target = $region24
      $region23: #{tpu_custom_call.1} parent=5 // pred_region
        // Predicated region
        $region25: #{tpu_custom_call.1} parent=23 // pred_check
          %p131 = pneg %p32
        $region26: #{tpu_custom_call.1} parent=23 // pred_check_branch
          %133 = sbr.rel (%p131) target = $region28
        $region27: #{tpu_custom_call.1} parent=23 // pred_region
          %p134 = scmp.lt.s32.totalorder %s12, 1
          %s135 = scalar_select %p134, %s12, 1
          %s136 = smul.addr %s135, 364
          %s137 = smul.addr %s136, 8
          %s138 = scalar_lea.vmem %s0, %s137
        $region28: #{tpu_custom_call.1} parent=23 // pred_fallthru
          _
      $region24: #{tpu_custom_call.1} parent=5 // pred_fallthru
        _
      %p139 = scmp.le.s32.totalorder 1, %s12
      %p140 = scmp.lt.s32.totalorder %s12, 3
      %p141 = pnand %p139, %p140
      %p142 = pneg %p141
      // Predicated region
      $region29: #{tpu_custom_call.1} parent=5 // pred_check
        _
      $region30: #{tpu_custom_call.1} parent=5 // pred_check_branch
        %144 = sbr.rel (%p141) target = $region32
      $region31: #{tpu_custom_call.1} parent=5 // pred_region
        %s145 = ssub.s32 %s12, 1
        %p146 = scmp.lt.s32.totalorder %s17, 1
        %s147 = scalar_select %p146, %s17, 1
        %s148 = smul.addr %s147, 364
        %s149 = smul.addr %s148, 8
        %s150 = scalar_lea.vmem %s0, %s149
        %p151 = pneg %p38
        %p152 = pneg %p35
        %p153 = pneg %p59
        %p154 = pneg %p56
        %p155 = pneg %p80
        %p156 = pneg %p77
        %p157 = pneg %p106
        %p158 = pneg %p103
        %s159 = sand.u32 %s93, 1
        %s160 = scalar_lea.sflag [#allocation3], %s159
        %s161 = sand.u32 %s93, 1
        %s162 = smul.addr %s161, 192
        %s163 = scalar_lea.vmem [#allocation2], %s162
        %p164 = scmp.lt.s32.totalorder %s17, 1
        %s165 = scalar_select %p164, %s17, 1
        %s166 = smul.addr %s165, 364
        %s167 = smul.addr %s166, 8
        %s168 = scalar_lea.vmem %s0, %s167
        %s170 = scalar_lea.vmem %s168, 840
        %v171 = vld [vmem:[%s170 + $0xf] sm:$0xff]
        %v172 = vld [vmem:[%s170 + $0x17] sm:$0xff]
        %v173 = vld [vmem:[%s170 + $0x47] sm:$0xff]
        %v174 = vld [vmem:[%s170 + $0x4f] sm:$0xff]
        %v175 = vld [vmem:[%s170 + $0x7f] sm:$0xff]
        %v176 = vld [vmem:[%s170 + $0x87] sm:$0xff]
        %v177 = vld [vmem:[%s170 + $0xb7] sm:$0xff]
        %v178 = vld [vmem:[%s170 + $0xbf] sm:$0xff]
        %v179 = vld [vmem:[%s170 + $0xef] sm:$0xff]
        %v180 = vld [vmem:[%s170 + $0xf7] sm:$0xff]
        %v181 = vld [vmem:[%s170 + $0x127] sm:$0xff]
        %v182 = vld [vmem:[%s170 + $0x12f] sm:$0xff]
        %v183 = vld [vmem:[%s170 + $0x15f] sm:$0xff]
        %v184 = vld [vmem:[%s170 + $0x167] sm:$0xff]
        %v185 = vld [vmem:[%s170 + $0x197] sm:$0xff]
        %v186 = vld [vmem:[%s170 + $0x19f] sm:$0xff]
        %v187 = vld [vmem:[%s170 + $0x1cf] sm:$0xff]
        %v188 = vld [vmem:[%s170 + $0x1d7] sm:$0xff]
        %v189 = vld [vmem:[%s170 + $0x207] sm:$0xff]
        %v190 = vld [vmem:[%s170 + $0x20f] sm:$0xff]
        %v191 = vld [vmem:[%s170 + $0x23f] sm:$0xff]
        %v192 = vld [vmem:[%s170 + $0x247] sm:$0xff]
        %v193 = vld [vmem:[%s170 + $0x277] sm:$0xff]
        %v194 = vld [vmem:[%s170 + $0x27f] sm:$0xff]
        %v195 = vld [vmem:[%s170 + $0x2af] sm:$0xff]
        %v196 = vld [vmem:[%s170 + $0x2b7] sm:$0xff]
        %v197 = vld [vmem:[%s170 + $0x2e7] sm:$0xff]
        %v198 = vld [vmem:[%s170 + $0x2ef] sm:$0xff]
        %v199 = vld [vmem:[%s170 + $0x31f] sm:$0xff]
        %v200 = vld [vmem:[%s170 + $0x327] sm:$0xff]
        %v201 = vld [vmem:[%s170 + $0x357] sm:$0xff]
        %v202 = vld [vmem:[%s170 + $0x35f] sm:$0xff]
        %v203 = vld [vmem:[%s170 + $0x12] sm:$0xff]
        %v204 = vld [vmem:[%s170 + $0x1a] sm:$0xff]
        %v205 = vld [vmem:[%s170 + $0x4a] sm:$0xff]
        %v206 = vld [vmem:[%s170 + $0x52] sm:$0xff]
        %v207 = vld [vmem:[%s170 + $0x82] sm:$0xff]
        %v208 = vld [vmem:[%s170 + $0x8a] sm:$0xff]
        %v209 = vld [vmem:[%s170 + $0xba] sm:$0xff]
        %v210 = vld [vmem:[%s170 + $0xc2] sm:$0xff]
        %v211 = vld [vmem:[%s170 + $0xf2] sm:$0xff]
        %v212 = vld [vmem:[%s170 + $0xfa] sm:$0xff]
        %v213 = vld [vmem:[%s170 + $0x12a] sm:$0xff]
        %v214 = vld [vmem:[%s170 + $0x132] sm:$0xff]
        %v215 = vld [vmem:[%s170 + $0x162] sm:$0xff]
        %v216 = vld [vmem:[%s170 + $0x16a] sm:$0xff]
        %v217 = vld [vmem:[%s170 + $0x19a] sm:$0xff]
        %v218 = vld [vmem:[%s170 + $0x1a2] sm:$0xff]
        %v219 = vld [vmem:[%s170 + $0x1d2] sm:$0xff]
        %v220 = vld [vmem:[%s170 + $0x1da] sm:$0xff]
        %v221 = vld [vmem:[%s170 + $0x20a] sm:$0xff]
        %v222 = vld [vmem:[%s170 + $0x212] sm:$0xff]
        %v223 = vld [vmem:[%s170 + $0x242] sm:$0xff]
        %v224 = vld [vmem:[%s170 + $0x24a] sm:$0xff]
        %v225 = vld [vmem:[%s170 + $0x27a] sm:$0xff]
        %v226 = vld [vmem:[%s170 + $0x282] sm:$0xff]
        %v227 = vld [vmem:[%s170 + $0x2b2] sm:$0xff]
        %v228 = vld [vmem:[%s170 + $0x2ba] sm:$0xff]
        %v229 = vld [vmem:[%s170 + $0x2ea] sm:$0xff]
        %v230 = vld [vmem:[%s170 + $0x2f2] sm:$0xff]
        %v231 = vld [vmem:[%s170 + $0x322] sm:$0xff]
        %v232 = vld [vmem:[%s170 + $0x32a] sm:$0xff]
        %v233 = vld [vmem:[%s170 + $0x35a] sm:$0xff]
        %v234 = vld [vmem:[%s170 + $0x362] sm:$0xff]
        %v235 = vld [vmem:[%s170 + $0x15] sm:$0xff]
        %v236 = vld [vmem:[%s170 + $0x1d] sm:$0xff]
        %v237 = vld [vmem:[%s170 + $0x4d] sm:$0xff]
        %v238 = vld [vmem:[%s170 + $0x55] sm:$0xff]
        %v239 = vld [vmem:[%s170 + $0x85] sm:$0xff]
        %v240 = vld [vmem:[%s170 + $0x8d] sm:$0xff]
        %v241 = vld [vmem:[%s170 + $0xbd] sm:$0xff]
        %v242 = vld [vmem:[%s170 + $0xc5] sm:$0xff]
        %v243 = vld [vmem:[%s170 + $0xf5] sm:$0xff]
        %v244 = vld [vmem:[%s170 + $0xfd] sm:$0xff]
        %v245 = vld [vmem:[%s170 + $0x12d] sm:$0xff]
        %v246 = vld [vmem:[%s170 + $0x135] sm:$0xff]
        %v247 = vld [vmem:[%s170 + $0x165] sm:$0xff]
        %v248 = vld [vmem:[%s170 + $0x16d] sm:$0xff]
        %v249 = vld [vmem:[%s170 + $0x19d] sm:$0xff]
        %v250 = vld [vmem:[%s170 + $0x1a5] sm:$0xff]
        %v251 = vld [vmem:[%s170 + $0x1d5] sm:$0xff]
        %v252 = vld [vmem:[%s170 + $0x1dd] sm:$0xff]
        %v253 = vld [vmem:[%s170 + $0x20d] sm:$0xff]
        %v254 = vld [vmem:[%s170 + $0x215] sm:$0xff]
        %v255 = vld [vmem:[%s170 + $0x245] sm:$0xff]
        %v256 = vld [vmem:[%s170 + $0x24d] sm:$0xff]
        %v257 = vld [vmem:[%s170 + $0x27d] sm:$0xff]
        %v258 = vld [vmem:[%s170 + $0x285] sm:$0xff]
        %v259 = vld [vmem:[%s170 + $0x2b5] sm:$0xff]
        %v260 = vld [vmem:[%s170 + $0x2bd] sm:$0xff]
        %v261 = vld [vmem:[%s170 + $0x2ed] sm:$0xff]
        %v262 = vld [vmem:[%s170 + $0x2f5] sm:$0xff]
        %v263 = vld [vmem:[%s170 + $0x325] sm:$0xff]
        %v264 = vld [vmem:[%s170 + $0x32d] sm:$0xff]
        %v265 = vld [vmem:[%s170 + $0x35d] sm:$0xff]
        %v266 = vld [vmem:[%s170 + $0x365] sm:$0xff]
        %s267 = scalar_lea.vmem %s168, 1008
        %v268 = vld [vmem:[%s267 + $0xf] sm:$0xff]
        %v269 = vld [vmem:[%s267 + $0x17] sm:$0xff]
        %v270 = vld [vmem:[%s267 + $0x47] sm:$0xff]
        %v271 = vld [vmem:[%s267 + $0x4f] sm:$0xff]
        %v272 = vld [vmem:[%s267 + $0x7f] sm:$0xff]
        %v273 = vld [vmem:[%s267 + $0x87] sm:$0xff]
        %v274 = vld [vmem:[%s267 + $0xb7] sm:$0xff]
        %v275 = vld [vmem:[%s267 + $0xbf] sm:$0xff]
        %v276 = vld [vmem:[%s267 + $0xef] sm:$0xff]
        %v277 = vld [vmem:[%s267 + $0xf7] sm:$0xff]
        %v278 = vld [vmem:[%s267 + $0x127] sm:$0xff]
        %v279 = vld [vmem:[%s267 + $0x12f] sm:$0xff]
        %v280 = vld [vmem:[%s267 + $0x15f] sm:$0xff]
        %v281 = vld [vmem:[%s267 + $0x167] sm:$0xff]
        %v282 = vld [vmem:[%s267 + $0x197] sm:$0xff]
        %v283 = vld [vmem:[%s267 + $0x19f] sm:$0xff]
        %v284 = vld [vmem:[%s267 + $0x1cf] sm:$0xff]
        %v285 = vld [vmem:[%s267 + $0x1d7] sm:$0xff]
        %v286 = vld [vmem:[%s267 + $0x207] sm:$0xff]
        %v287 = vld [vmem:[%s267 + $0x20f] sm:$0xff]
        %v288 = vld [vmem:[%s267 + $0x23f] sm:$0xff]
        %v289 = vld [vmem:[%s267 + $0x247] sm:$0xff]
        %v290 = vld [vmem:[%s267 + $0x277] sm:$0xff]
        %v291 = vld [vmem:[%s267 + $0x27f] sm:$0xff]
        %v292 = vld [vmem:[%s267 + $0x2af] sm:$0xff]
        %v293 = vld [vmem:[%s267 + $0x2b7] sm:$0xff]
        %v294 = vld [vmem:[%s267 + $0x2e7] sm:$0xff]
        %v295 = vld [vmem:[%s267 + $0x2ef] sm:$0xff]
        %v296 = vld [vmem:[%s267 + $0x31f] sm:$0xff]
        %v297 = vld [vmem:[%s267 + $0x327] sm:$0xff]
        %v298 = vld [vmem:[%s267 + $0x357] sm:$0xff]
        %v299 = vld [vmem:[%s267 + $0x35f] sm:$0xff]
        %v300 = vld [vmem:[%s267 + $0x12] sm:$0xff]
        %v301 = vld [vmem:[%s267 + $0x1a] sm:$0xff]
        %v302 = vld [vmem:[%s267 + $0x4a] sm:$0xff]
        %v303 = vld [vmem:[%s267 + $0x52] sm:$0xff]
        %v304 = vld [vmem:[%s267 + $0x82] sm:$0xff]
        %v305 = vld [vmem:[%s267 + $0x8a] sm:$0xff]
        %v306 = vld [vmem:[%s267 + $0xba] sm:$0xff]
        %v307 = vld [vmem:[%s267 + $0xc2] sm:$0xff]
        %v308 = vld [vmem:[%s267 + $0xf2] sm:$0xff]
        %v309 = vld [vmem:[%s267 + $0xfa] sm:$0xff]
        %v310 = vld [vmem:[%s267 + $0x12a] sm:$0xff]
        %v311 = vld [vmem:[%s267 + $0x132] sm:$0xff]
        %v312 = vld [vmem:[%s267 + $0x162] sm:$0xff]
        %v313 = vld [vmem:[%s267 + $0x16a] sm:$0xff]
        %v314 = vld [vmem:[%s267 + $0x19a] sm:$0xff]
        %v315 = vld [vmem:[%s267 + $0x1a2] sm:$0xff]
        %v316 = vld [vmem:[%s267 + $0x1d2] sm:$0xff]
        %v317 = vld [vmem:[%s267 + $0x1da] sm:$0xff]
        %v318 = vld [vmem:[%s267 + $0x20a] sm:$0xff]
        %v319 = vld [vmem:[%s267 + $0x212] sm:$0xff]
        %v320 = vld [vmem:[%s267 + $0x242] sm:$0xff]
        %v321 = vld [vmem:[%s267 + $0x24a] sm:$0xff]
        %v322 = vld [vmem:[%s267 + $0x27a] sm:$0xff]
        %v323 = vld [vmem:[%s267 + $0x282] sm:$0xff]
        %v324 = vld [vmem:[%s267 + $0x2b2] sm:$0xff]
        %v325 = vld [vmem:[%s267 + $0x2ba] sm:$0xff]
        %v326 = vld [vmem:[%s267 + $0x2ea] sm:$0xff]
        %v327 = vld [vmem:[%s267 + $0x2f2] sm:$0xff]
        %v328 = vld [vmem:[%s267 + $0x322] sm:$0xff]
        %v329 = vld [vmem:[%s267 + $0x32a] sm:$0xff]
        %v330 = vld [vmem:[%s267 + $0x35a] sm:$0xff]
        %v331 = vld [vmem:[%s267 + $0x362] sm:$0xff]
        %v332 = vld [vmem:[%s267 + $0x15] sm:$0xff]
        %v333 = vld [vmem:[%s267 + $0x1d] sm:$0xff]
        %v334 = vld [vmem:[%s267 + $0x4d] sm:$0xff]
        %v335 = vld [vmem:[%s267 + $0x55] sm:$0xff]
        %v336 = vld [vmem:[%s267 + $0x85] sm:$0xff]
        %v337 = vld [vmem:[%s267 + $0x8d] sm:$0xff]
        %v338 = vld [vmem:[%s267 + $0xbd] sm:$0xff]
        %v339 = vld [vmem:[%s267 + $0xc5] sm:$0xff]
        %v340 = vld [vmem:[%s267 + $0xf5] sm:$0xff]
        %v341 = vld [vmem:[%s267 + $0xfd] sm:$0xff]
        %v342 = vld [vmem:[%s267 + $0x12d] sm:$0xff]
        %v343 = vld [vmem:[%s267 + $0x135] sm:$0xff]
        %v344 = vld [vmem:[%s267 + $0x165] sm:$0xff]
        %v345 = vld [vmem:[%s267 + $0x16d] sm:$0xff]
        %v346 = vld [vmem:[%s267 + $0x19d] sm:$0xff]
        %v347 = vld [vmem:[%s267 + $0x1a5] sm:$0xff]
        %v348 = vld [vmem:[%s267 + $0x1d5] sm:$0xff]
        %v349 = vld [vmem:[%s267 + $0x1dd] sm:$0xff]
        %v350 = vld [vmem:[%s267 + $0x20d] sm:$0xff]
        %v351 = vld [vmem:[%s267 + $0x215] sm:$0xff]
        %v352 = vld [vmem:[%s267 + $0x245] sm:$0xff]
        %v353 = vld [vmem:[%s267 + $0x24d] sm:$0xff]
        %v354 = vld [vmem:[%s267 + $0x27d] sm:$0xff]
        %v355 = vld [vmem:[%s267 + $0x285] sm:$0xff]
        %v356 = vld [vmem:[%s267 + $0x2b5] sm:$0xff]
        %v357 = vld [vmem:[%s267 + $0x2bd] sm:$0xff]
        %v358 = vld [vmem:[%s267 + $0x2ed] sm:$0xff]
        %v359 = vld [vmem:[%s267 + $0x2f5] sm:$0xff]
        %v360 = vld [vmem:[%s267 + $0x325] sm:$0xff]
        %v361 = vld [vmem:[%s267 + $0x32d] sm:$0xff]
        %v362 = vld [vmem:[%s267 + $0x35d] sm:$0xff]
        %v363 = vld [vmem:[%s267 + $0x365] sm:$0xff]
        %s364 = scalar_lea.vmem %s168, 1176
        %v365 = vld [vmem:[%s364 + $0xf] sm:$0xff]
        %v366 = vld [vmem:[%s364 + $0x17] sm:$0xff]
        %v367 = vld [vmem:[%s364 + $0x47] sm:$0xff]
        %v368 = vld [vmem:[%s364 + $0x4f] sm:$0xff]
        %v369 = vld [vmem:[%s364 + $0x7f] sm:$0xff]
        %v370 = vld [vmem:[%s364 + $0x87] sm:$0xff]
        %v371 = vld [vmem:[%s364 + $0xb7] sm:$0xff]
        %v372 = vld [vmem:[%s364 + $0xbf] sm:$0xff]
        %v373 = vld [vmem:[%s364 + $0xef] sm:$0xff]
        %v374 = vld [vmem:[%s364 + $0xf7] sm:$0xff]
        %v375 = vld [vmem:[%s364 + $0x127] sm:$0xff]
        %v376 = vld [vmem:[%s364 + $0x12f] sm:$0xff]
        %v377 = vld [vmem:[%s364 + $0x15f] sm:$0xff]
        %v378 = vld [vmem:[%s364 + $0x167] sm:$0xff]
        %v379 = vld [vmem:[%s364 + $0x197] sm:$0xff]
        %v380 = vld [vmem:[%s364 + $0x19f] sm:$0xff]
        %v381 = vld [vmem:[%s364 + $0x1cf] sm:$0xff]
        %v382 = vld [vmem:[%s364 + $0x1d7] sm:$0xff]
        %v383 = vld [vmem:[%s364 + $0x207] sm:$0xff]
        %v384 = vld [vmem:[%s364 + $0x20f] sm:$0xff]
        %v385 = vld [vmem:[%s364 + $0x23f] sm:$0xff]
        %v386 = vld [vmem:[%s364 + $0x247] sm:$0xff]
        %v387 = vld [vmem:[%s364 + $0x277] sm:$0xff]
        %v388 = vld [vmem:[%s364 + $0x27f] sm:$0xff]
        %v389 = vld [vmem:[%s364 + $0x2af] sm:$0xff]
        %v390 = vld [vmem:[%s364 + $0x2b7] sm:$0xff]
        %v391 = vld [vmem:[%s364 + $0x2e7] sm:$0xff]
        %v392 = vld [vmem:[%s364 + $0x2ef] sm:$0xff]
        %v393 = vld [vmem:[%s364 + $0x31f] sm:$0xff]
        %v394 = vld [vmem:[%s364 + $0x327] sm:$0xff]
        %v395 = vld [vmem:[%s364 + $0x357] sm:$0xff]
        %v396 = vld [vmem:[%s364 + $0x35f] sm:$0xff]
        %v397 = vld [vmem:[%s364 + $0x12] sm:$0xff]
        %v398 = vld [vmem:[%s364 + $0x1a] sm:$0xff]
        %v399 = vld [vmem:[%s364 + $0x4a] sm:$0xff]
        %v400 = vld [vmem:[%s364 + $0x52] sm:$0xff]
        %v401 = vld [vmem:[%s364 + $0x82] sm:$0xff]
        %v402 = vld [vmem:[%s364 + $0x8a] sm:$0xff]
        %v403 = vld [vmem:[%s364 + $0xba] sm:$0xff]
        %v404 = vld [vmem:[%s364 + $0xc2] sm:$0xff]
        %v405 = vld [vmem:[%s364 + $0xf2] sm:$0xff]
        %v406 = vld [vmem:[%s364 + $0xfa] sm:$0xff]
        %v407 = vld [vmem:[%s364 + $0x12a] sm:$0xff]
        %v408 = vld [vmem:[%s364 + $0x132] sm:$0xff]
        %v409 = vld [vmem:[%s364 + $0x162] sm:$0xff]
        %v410 = vld [vmem:[%s364 + $0x16a] sm:$0xff]
        %v411 = vld [vmem:[%s364 + $0x19a] sm:$0xff]
        %v412 = vld [vmem:[%s364 + $0x1a2] sm:$0xff]
        %v413 = vld [vmem:[%s364 + $0x1d2] sm:$0xff]
        %v414 = vld [vmem:[%s364 + $0x1da] sm:$0xff]
        %v415 = vld [vmem:[%s364 + $0x20a] sm:$0xff]
        %v416 = vld [vmem:[%s364 + $0x212] sm:$0xff]
        %v417 = vld [vmem:[%s364 + $0x242] sm:$0xff]
        %v418 = vld [vmem:[%s364 + $0x24a] sm:$0xff]
        %v419 = vld [vmem:[%s364 + $0x27a] sm:$0xff]
        %v420 = vld [vmem:[%s364 + $0x282] sm:$0xff]
        %v421 = vld [vmem:[%s364 + $0x2b2] sm:$0xff]
        %v422 = vld [vmem:[%s364 + $0x2ba] sm:$0xff]
        %v423 = vld [vmem:[%s364 + $0x2ea] sm:$0xff]
        %v424 = vld [vmem:[%s364 + $0x2f2] sm:$0xff]
        %v425 = vld [vmem:[%s364 + $0x322] sm:$0xff]
        %v426 = vld [vmem:[%s364 + $0x32a] sm:$0xff]
        %v427 = vld [vmem:[%s364 + $0x35a] sm:$0xff]
        %v428 = vld [vmem:[%s364 + $0x362] sm:$0xff]
        %v429 = vld [vmem:[%s364 + $0x15] sm:$0xff]
        %v430 = vld [vmem:[%s364 + $0x1d] sm:$0xff]
        %v431 = vld [vmem:[%s364 + $0x4d] sm:$0xff]
        %v432 = vld [vmem:[%s364 + $0x55] sm:$0xff]
        %v433 = vld [vmem:[%s364 + $0x85] sm:$0xff]
        %v434 = vld [vmem:[%s364 + $0x8d] sm:$0xff]
        %v435 = vld [vmem:[%s364 + $0xbd] sm:$0xff]
        %v436 = vld [vmem:[%s364 + $0xc5] sm:$0xff]
        %v437 = vld [vmem:[%s364 + $0xf5] sm:$0xff]
        %v438 = vld [vmem:[%s364 + $0xfd] sm:$0xff]
        %v439 = vld [vmem:[%s364 + $0x12d] sm:$0xff]
        %v440 = vld [vmem:[%s364 + $0x135] sm:$0xff]
        %v441 = vld [vmem:[%s364 + $0x165] sm:$0xff]
        %v442 = vld [vmem:[%s364 + $0x16d] sm:$0xff]
        %v443 = vld [vmem:[%s364 + $0x19d] sm:$0xff]
        %v444 = vld [vmem:[%s364 + $0x1a5] sm:$0xff]
        %v445 = vld [vmem:[%s364 + $0x1d5] sm:$0xff]
        %v446 = vld [vmem:[%s364 + $0x1dd] sm:$0xff]
        %v447 = vld [vmem:[%s364 + $0x20d] sm:$0xff]
        %v448 = vld [vmem:[%s364 + $0x215] sm:$0xff]
        %v449 = vld [vmem:[%s364 + $0x245] sm:$0xff]
        %v450 = vld [vmem:[%s364 + $0x24d] sm:$0xff]
        %v451 = vld [vmem:[%s364 + $0x27d] sm:$0xff]
        %v452 = vld [vmem:[%s364 + $0x285] sm:$0xff]
        %v453 = vld [vmem:[%s364 + $0x2b5] sm:$0xff]
        %v454 = vld [vmem:[%s364 + $0x2bd] sm:$0xff]
        %v455 = vld [vmem:[%s364 + $0x2ed] sm:$0xff]
        %v456 = vld [vmem:[%s364 + $0x2f5] sm:$0xff]
        %v457 = vld [vmem:[%s364 + $0x325] sm:$0xff]
        %v458 = vld [vmem:[%s364 + $0x32d] sm:$0xff]
        %v459 = vld [vmem:[%s364 + $0x35d] sm:$0xff]
        %v460 = vld [vmem:[%s364 + $0x365] sm:$0xff]
        %493 = vrot.lane.b32.xlu0 %v203, 8
        %v494 = vpop.permute.xlu0 %493
        %495 = vrot.lane.b32.xlu0 %v204, 8
        %v496 = vpop.permute.xlu0 %495
        %497 = vrot.lane.b32.xlu0 %v205, 8
        %v498 = vpop.permute.xlu0 %497
        %499 = vrot.lane.b32.xlu0 %v206, 8
        %v500 = vpop.permute.xlu0 %499
        %501 = vrot.lane.b32.xlu0 %v207, 8
        %v502 = vpop.permute.xlu0 %501
        %503 = vrot.lane.b32.xlu0 %v208, 8
        %v504 = vpop.permute.xlu0 %503
        %505 = vrot.lane.b32.xlu0 %v209, 8
        %v506 = vpop.permute.xlu0 %505
        %507 = vrot.lane.b32.xlu0 %v210, 8
        %v508 = vpop.permute.xlu0 %507
        %509 = vrot.lane.b32.xlu0 %v211, 8
        %v510 = vpop.permute.xlu0 %509
        %511 = vrot.lane.b32.xlu0 %v212, 8
        %v512 = vpop.permute.xlu0 %511
        %513 = vrot.lane.b32.xlu0 %v213, 8
        %v514 = vpop.permute.xlu0 %513
        %515 = vrot.lane.b32.xlu0 %v214, 8
        %v516 = vpop.permute.xlu0 %515
        %517 = vrot.lane.b32.xlu0 %v215, 8
        %v518 = vpop.permute.xlu0 %517
        %519 = vrot.lane.b32.xlu0 %v216, 8
        %v520 = vpop.permute.xlu0 %519
        %521 = vrot.lane.b32.xlu0 %v217, 8
        %v522 = vpop.permute.xlu0 %521
        %523 = vrot.lane.b32.xlu0 %v218, 8
        %v524 = vpop.permute.xlu0 %523
        %525 = vrot.lane.b32.xlu0 %v219, 8
        %v526 = vpop.permute.xlu0 %525
        %527 = vrot.lane.b32.xlu0 %v220, 8
        %v528 = vpop.permute.xlu0 %527
        %529 = vrot.lane.b32.xlu0 %v221, 8
        %v530 = vpop.permute.xlu0 %529
        %531 = vrot.lane.b32.xlu0 %v222, 8
        %v532 = vpop.permute.xlu0 %531
        %533 = vrot.lane.b32.xlu0 %v223, 8
        %v534 = vpop.permute.xlu0 %533
        %535 = vrot.lane.b32.xlu0 %v224, 8
        %v536 = vpop.permute.xlu0 %535
        %537 = vrot.lane.b32.xlu0 %v225, 8
        %v538 = vpop.permute.xlu0 %537
        %539 = vrot.lane.b32.xlu0 %v226, 8
        %v540 = vpop.permute.xlu0 %539
        %541 = vrot.lane.b32.xlu0 %v227, 8
        %v542 = vpop.permute.xlu0 %541
        %543 = vrot.lane.b32.xlu0 %v228, 8
        %v544 = vpop.permute.xlu0 %543
        %545 = vrot.lane.b32.xlu0 %v229, 8
        %v546 = vpop.permute.xlu0 %545
        %547 = vrot.lane.b32.xlu0 %v230, 8
        %v548 = vpop.permute.xlu0 %547
        %549 = vrot.lane.b32.xlu0 %v231, 8
        %v550 = vpop.permute.xlu0 %549
        %551 = vrot.lane.b32.xlu0 %v232, 8
        %v552 = vpop.permute.xlu0 %551
        %553 = vrot.lane.b32.xlu0 %v233, 8
        %v554 = vpop.permute.xlu0 %553
        %555 = vrot.lane.b32.xlu0 %v234, 8
        %v556 = vpop.permute.xlu0 %555
        %621 = vrot.lane.b32.xlu0 %v235, 16
        %v622 = vpop.permute.xlu0 %621
        %623 = vrot.lane.b32.xlu0 %v236, 16
        %v624 = vpop.permute.xlu0 %623
        %625 = vrot.lane.b32.xlu0 %v237, 16
        %v626 = vpop.permute.xlu0 %625
        %627 = vrot.lane.b32.xlu0 %v238, 16
        %v628 = vpop.permute.xlu0 %627
        %629 = vrot.lane.b32.xlu0 %v239, 16
        %v630 = vpop.permute.xlu0 %629
        %631 = vrot.lane.b32.xlu0 %v240, 16
        %v632 = vpop.permute.xlu0 %631
        %633 = vrot.lane.b32.xlu0 %v241, 16
        %v634 = vpop.permute.xlu0 %633
        %635 = vrot.lane.b32.xlu0 %v242, 16
        %v636 = vpop.permute.xlu0 %635
        %637 = vrot.lane.b32.xlu0 %v243, 16
        %v638 = vpop.permute.xlu0 %637
        %639 = vrot.lane.b32.xlu0 %v244, 16
        %v640 = vpop.permute.xlu0 %639
        %641 = vrot.lane.b32.xlu0 %v245, 16
        %v642 = vpop.permute.xlu0 %641
        %643 = vrot.lane.b32.xlu0 %v246, 16
        %v644 = vpop.permute.xlu0 %643
        %645 = vrot.lane.b32.xlu0 %v247, 16
        %v646 = vpop.permute.xlu0 %645
        %647 = vrot.lane.b32.xlu0 %v248, 16
        %v648 = vpop.permute.xlu0 %647
        %649 = vrot.lane.b32.xlu0 %v249, 16
        %v650 = vpop.permute.xlu0 %649
        %651 = vrot.lane.b32.xlu0 %v250, 16
        %v652 = vpop.permute.xlu0 %651
        %653 = vrot.lane.b32.xlu0 %v251, 16
        %v654 = vpop.permute.xlu0 %653
        %655 = vrot.lane.b32.xlu0 %v252, 16
        %v656 = vpop.permute.xlu0 %655
        %657 = vrot.lane.b32.xlu0 %v253, 16
        %v658 = vpop.permute.xlu0 %657
        %659 = vrot.lane.b32.xlu0 %v254, 16
        %v660 = vpop.permute.xlu0 %659
        %661 = vrot.lane.b32.xlu0 %v255, 16
        %v662 = vpop.permute.xlu0 %661
        %663 = vrot.lane.b32.xlu0 %v256, 16
        %v664 = vpop.permute.xlu0 %663
        %665 = vrot.lane.b32.xlu0 %v257, 16
        %v666 = vpop.permute.xlu0 %665
        %667 = vrot.lane.b32.xlu0 %v258, 16
        %v668 = vpop.permute.xlu0 %667
        %669 = vrot.lane.b32.xlu0 %v259, 16
        %v670 = vpop.permute.xlu0 %669
        %671 = vrot.lane.b32.xlu0 %v260, 16
        %v672 = vpop.permute.xlu0 %671
        %673 = vrot.lane.b32.xlu0 %v261, 16
        %v674 = vpop.permute.xlu0 %673
        %675 = vrot.lane.b32.xlu0 %v262, 16
        %v676 = vpop.permute.xlu0 %675
        %677 = vrot.lane.b32.xlu0 %v263, 16
        %v678 = vpop.permute.xlu0 %677
        %679 = vrot.lane.b32.xlu0 %v264, 16
        %v680 = vpop.permute.xlu0 %679
        %681 = vrot.lane.b32.xlu0 %v265, 16
        %v682 = vpop.permute.xlu0 %681
        %683 = vrot.lane.b32.xlu0 %v266, 16
        %v684 = vpop.permute.xlu0 %683
        %749 = vrot.lane.b32.xlu0 %v268, 24
        %v750 = vpop.permute.xlu0 %749
        %751 = vrot.lane.b32.xlu0 %v269, 24
        %v752 = vpop.permute.xlu0 %751
        %753 = vrot.lane.b32.xlu0 %v270, 24
        %v754 = vpop.permute.xlu0 %753
        %755 = vrot.lane.b32.xlu0 %v271, 24
        %v756 = vpop.permute.xlu0 %755
        %757 = vrot.lane.b32.xlu0 %v272, 24
        %v758 = vpop.permute.xlu0 %757
        %759 = vrot.lane.b32.xlu0 %v273, 24
        %v760 = vpop.permute.xlu0 %759
        %761 = vrot.lane.b32.xlu0 %v274, 24
        %v762 = vpop.permute.xlu0 %761
        %763 = vrot.lane.b32.xlu0 %v275, 24
        %v764 = vpop.permute.xlu0 %763
        %765 = vrot.lane.b32.xlu0 %v276, 24
        %v766 = vpop.permute.xlu0 %765
        %767 = vrot.lane.b32.xlu0 %v277, 24
        %v768 = vpop.permute.xlu0 %767
        %769 = vrot.lane.b32.xlu0 %v278, 24
        %v770 = vpop.permute.xlu0 %769
        %771 = vrot.lane.b32.xlu0 %v279, 24
        %v772 = vpop.permute.xlu0 %771
        %773 = vrot.lane.b32.xlu0 %v280, 24
        %v774 = vpop.permute.xlu0 %773
        %775 = vrot.lane.b32.xlu0 %v281, 24
        %v776 = vpop.permute.xlu0 %775
        %777 = vrot.lane.b32.xlu0 %v282, 24
        %v778 = vpop.permute.xlu0 %777
        %779 = vrot.lane.b32.xlu0 %v283, 24
        %v780 = vpop.permute.xlu0 %779
        %781 = vrot.lane.b32.xlu0 %v284, 24
        %v782 = vpop.permute.xlu0 %781
        %783 = vrot.lane.b32.xlu0 %v285, 24
        %v784 = vpop.permute.xlu0 %783
        %785 = vrot.lane.b32.xlu0 %v286, 24
        %v786 = vpop.permute.xlu0 %785
        %787 = vrot.lane.b32.xlu0 %v287, 24
        %v788 = vpop.permute.xlu0 %787
        %789 = vrot.lane.b32.xlu0 %v288, 24
        %v790 = vpop.permute.xlu0 %789
        %791 = vrot.lane.b32.xlu0 %v289, 24
        %v792 = vpop.permute.xlu0 %791
        %793 = vrot.lane.b32.xlu0 %v290, 24
        %v794 = vpop.permute.xlu0 %793
        %795 = vrot.lane.b32.xlu0 %v291, 24
        %v796 = vpop.permute.xlu0 %795
        %797 = vrot.lane.b32.xlu0 %v292, 24
        %v798 = vpop.permute.xlu0 %797
        %799 = vrot.lane.b32.xlu0 %v293, 24
        %v800 = vpop.permute.xlu0 %799
        %801 = vrot.lane.b32.xlu0 %v294, 24
        %v802 = vpop.permute.xlu0 %801
        %803 = vrot.lane.b32.xlu0 %v295, 24
        %v804 = vpop.permute.xlu0 %803
        %805 = vrot.lane.b32.xlu0 %v296, 24
        %v806 = vpop.permute.xlu0 %805
        %807 = vrot.lane.b32.xlu0 %v297, 24
        %v808 = vpop.permute.xlu0 %807
        %809 = vrot.lane.b32.xlu0 %v298, 24
        %v810 = vpop.permute.xlu0 %809
        %811 = vrot.lane.b32.xlu0 %v299, 24
        %v812 = vpop.permute.xlu0 %811
        %877 = vrot.lane.b32.xlu0 %v300, 32
        %v878 = vpop.permute.xlu0 %877
        %879 = vrot.lane.b32.xlu0 %v301, 32
        %v880 = vpop.permute.xlu0 %879
        %881 = vrot.lane.b32.xlu0 %v302, 32
        %v882 = vpop.permute.xlu0 %881
        %883 = vrot.lane.b32.xlu0 %v303, 32
        %v884 = vpop.permute.xlu0 %883
        %885 = vrot.lane.b32.xlu0 %v304, 32
        %v886 = vpop.permute.xlu0 %885
        %887 = vrot.lane.b32.xlu0 %v305, 32
        %v888 = vpop.permute.xlu0 %887
        %889 = vrot.lane.b32.xlu0 %v306, 32
        %v890 = vpop.permute.xlu0 %889
        %891 = vrot.lane.b32.xlu0 %v307, 32
        %v892 = vpop.permute.xlu0 %891
        %893 = vrot.lane.b32.xlu0 %v308, 32
        %v894 = vpop.permute.xlu0 %893
        %895 = vrot.lane.b32.xlu0 %v309, 32
        %v896 = vpop.permute.xlu0 %895
        %897 = vrot.lane.b32.xlu0 %v310, 32
        %v898 = vpop.permute.xlu0 %897
        %899 = vrot.lane.b32.xlu0 %v311, 32
        %v900 = vpop.permute.xlu0 %899
        %901 = vrot.lane.b32.xlu0 %v312, 32
        %v902 = vpop.permute.xlu0 %901
        %903 = vrot.lane.b32.xlu0 %v313, 32
        %v904 = vpop.permute.xlu0 %903
        %905 = vrot.lane.b32.xlu0 %v314, 32
        %v906 = vpop.permute.xlu0 %905
        %907 = vrot.lane.b32.xlu0 %v315, 32
        %v908 = vpop.permute.xlu0 %907
        %909 = vrot.lane.b32.xlu0 %v316, 32
        %v910 = vpop.permute.xlu0 %909
        %911 = vrot.lane.b32.xlu0 %v317, 32
        %v912 = vpop.permute.xlu0 %911
        %913 = vrot.lane.b32.xlu0 %v318, 32
        %v914 = vpop.permute.xlu0 %913
        %915 = vrot.lane.b32.xlu0 %v319, 32
        %v916 = vpop.permute.xlu0 %915
        %917 = vrot.lane.b32.xlu0 %v320, 32
        %v918 = vpop.permute.xlu0 %917
        %919 = vrot.lane.b32.xlu0 %v321, 32
        %v920 = vpop.permute.xlu0 %919
        %921 = vrot.lane.b32.xlu0 %v322, 32
        %v922 = vpop.permute.xlu0 %921
        %923 = vrot.lane.b32.xlu0 %v323, 32
        %v924 = vpop.permute.xlu0 %923
        %925 = vrot.lane.b32.xlu0 %v324, 32
        %v926 = vpop.permute.xlu0 %925
        %927 = vrot.lane.b32.xlu0 %v325, 32
        %v928 = vpop.permute.xlu0 %927
        %929 = vrot.lane.b32.xlu0 %v326, 32
        %v930 = vpop.permute.xlu0 %929
        %931 = vrot.lane.b32.xlu0 %v327, 32
        %v932 = vpop.permute.xlu0 %931
        %933 = vrot.lane.b32.xlu0 %v328, 32
        %v934 = vpop.permute.xlu0 %933
        %935 = vrot.lane.b32.xlu0 %v329, 32
        %v936 = vpop.permute.xlu0 %935
        %937 = vrot.lane.b32.xlu0 %v330, 32
        %v938 = vpop.permute.xlu0 %937
        %939 = vrot.lane.b32.xlu0 %v331, 32
        %v940 = vpop.permute.xlu0 %939
        %1005 = vrot.lane.b32.xlu0 %v332, 40
        %v1006 = vpop.permute.xlu0 %1005
        %1007 = vrot.lane.b32.xlu0 %v333, 40
        %v1008 = vpop.permute.xlu0 %1007
        %1009 = vrot.lane.b32.xlu0 %v334, 40
        %v1010 = vpop.permute.xlu0 %1009
        %1011 = vrot.lane.b32.xlu0 %v335, 40
        %v1012 = vpop.permute.xlu0 %1011
        %1013 = vrot.lane.b32.xlu0 %v336, 40
        %v1014 = vpop.permute.xlu0 %1013
        %1015 = vrot.lane.b32.xlu0 %v337, 40
        %v1016 = vpop.permute.xlu0 %1015
        %1017 = vrot.lane.b32.xlu0 %v338, 40
        %v1018 = vpop.permute.xlu0 %1017
        %1019 = vrot.lane.b32.xlu0 %v339, 40
        %v1020 = vpop.permute.xlu0 %1019
        %1021 = vrot.lane.b32.xlu0 %v340, 40
        %v1022 = vpop.permute.xlu0 %1021
        %1023 = vrot.lane.b32.xlu0 %v341, 40
        %v1024 = vpop.permute.xlu0 %1023
        %1025 = vrot.lane.b32.xlu0 %v342, 40
        %v1026 = vpop.permute.xlu0 %1025
        %1027 = vrot.lane.b32.xlu0 %v343, 40
        %v1028 = vpop.permute.xlu0 %1027
        %1029 = vrot.lane.b32.xlu0 %v344, 40
        %v1030 = vpop.permute.xlu0 %1029
        %1031 = vrot.lane.b32.xlu0 %v345, 40
        %v1032 = vpop.permute.xlu0 %1031
        %1033 = vrot.lane.b32.xlu0 %v346, 40
        %v1034 = vpop.permute.xlu0 %1033
        %1035 = vrot.lane.b32.xlu0 %v347, 40
        %v1036 = vpop.permute.xlu0 %1035
        %1037 = vrot.lane.b32.xlu0 %v348, 40
        %v1038 = vpop.permute.xlu0 %1037
        %1039 = vrot.lane.b32.xlu0 %v349, 40
        %v1040 = vpop.permute.xlu0 %1039
        %1041 = vrot.lane.b32.xlu0 %v350, 40
        %v1042 = vpop.permute.xlu0 %1041
        %1043 = vrot.lane.b32.xlu0 %v351, 40
        %v1044 = vpop.permute.xlu0 %1043
        %1045 = vrot.lane.b32.xlu0 %v352, 40
        %v1046 = vpop.permute.xlu0 %1045
        %1047 = vrot.lane.b32.xlu0 %v353, 40
        %v1048 = vpop.permute.xlu0 %1047
        %1049 = vrot.lane.b32.xlu0 %v354, 40
        %v1050 = vpop.permute.xlu0 %1049
        %1051 = vrot.lane.b32.xlu0 %v355, 40
        %v1052 = vpop.permute.xlu0 %1051
        %1053 = vrot.lane.b32.xlu0 %v356, 40
        %v1054 = vpop.permute.xlu0 %1053
        %1055 = vrot.lane.b32.xlu0 %v357, 40
        %v1056 = vpop.permute.xlu0 %1055
        %1057 = vrot.lane.b32.xlu0 %v358, 40
        %v1058 = vpop.permute.xlu0 %1057
        %1059 = vrot.lane.b32.xlu0 %v359, 40
        %v1060 = vpop.permute.xlu0 %1059
        %1061 = vrot.lane.b32.xlu0 %v360, 40
        %v1062 = vpop.permute.xlu0 %1061
        %1063 = vrot.lane.b32.xlu0 %v361, 40
        %v1064 = vpop.permute.xlu0 %1063
        %1065 = vrot.lane.b32.xlu0 %v362, 40
        %v1066 = vpop.permute.xlu0 %1065
        %1067 = vrot.lane.b32.xlu0 %v363, 40
        %v1068 = vpop.permute.xlu0 %1067
        %1133 = vrot.lane.b32.xlu0 %v365, 48
        %v1134 = vpop.permute.xlu0 %1133
        %1135 = vrot.lane.b32.xlu0 %v366, 48
        %v1136 = vpop.permute.xlu0 %1135
        %1137 = vrot.lane.b32.xlu0 %v367, 48
        %v1138 = vpop.permute.xlu0 %1137
        %1139 = vrot.lane.b32.xlu0 %v368, 48
        %v1140 = vpop.permute.xlu0 %1139
        %1141 = vrot.lane.b32.xlu0 %v369, 48
        %v1142 = vpop.permute.xlu0 %1141
        %1143 = vrot.lane.b32.xlu0 %v370, 48
        %v1144 = vpop.permute.xlu0 %1143
        %1145 = vrot.lane.b32.xlu0 %v371, 48
        %v1146 = vpop.permute.xlu0 %1145
        %1147 = vrot.lane.b32.xlu0 %v372, 48
        %v1148 = vpop.permute.xlu0 %1147
        %1149 = vrot.lane.b32.xlu0 %v373, 48
        %v1150 = vpop.permute.xlu0 %1149
        %1151 = vrot.lane.b32.xlu0 %v374, 48
        %v1152 = vpop.permute.xlu0 %1151
        %1153 = vrot.lane.b32.xlu0 %v375, 48
        %v1154 = vpop.permute.xlu0 %1153
        %1155 = vrot.lane.b32.xlu0 %v376, 48
        %v1156 = vpop.permute.xlu0 %1155
        %1157 = vrot.lane.b32.xlu0 %v377, 48
        %v1158 = vpop.permute.xlu0 %1157
        %1159 = vrot.lane.b32.xlu0 %v378, 48
        %v1160 = vpop.permute.xlu0 %1159
        %1161 = vrot.lane.b32.xlu0 %v379, 48
        %v1162 = vpop.permute.xlu0 %1161
        %1163 = vrot.lane.b32.xlu0 %v380, 48
        %v1164 = vpop.permute.xlu0 %1163
        %1165 = vrot.lane.b32.xlu0 %v381, 48
        %v1166 = vpop.permute.xlu0 %1165
        %1167 = vrot.lane.b32.xlu0 %v382, 48
        %v1168 = vpop.permute.xlu0 %1167
        %1169 = vrot.lane.b32.xlu0 %v383, 48
        %v1170 = vpop.permute.xlu0 %1169
        %1171 = vrot.lane.b32.xlu0 %v384, 48
        %v1172 = vpop.permute.xlu0 %1171
        %1173 = vrot.lane.b32.xlu0 %v385, 48
        %v1174 = vpop.permute.xlu0 %1173
        %1175 = vrot.lane.b32.xlu0 %v386, 48
        %v1176 = vpop.permute.xlu0 %1175
        %1177 = vrot.lane.b32.xlu0 %v387, 48
        %v1178 = vpop.permute.xlu0 %1177
        %1179 = vrot.lane.b32.xlu0 %v388, 48
        %v1180 = vpop.permute.xlu0 %1179
        %1181 = vrot.lane.b32.xlu0 %v389, 48
        %v1182 = vpop.permute.xlu0 %1181
        %1183 = vrot.lane.b32.xlu0 %v390, 48
        %v1184 = vpop.permute.xlu0 %1183
        %1185 = vrot.lane.b32.xlu0 %v391, 48
        %v1186 = vpop.permute.xlu0 %1185
        %1187 = vrot.lane.b32.xlu0 %v392, 48
        %v1188 = vpop.permute.xlu0 %1187
        %1189 = vrot.lane.b32.xlu0 %v393, 48
        %v1190 = vpop.permute.xlu0 %1189
        %1191 = vrot.lane.b32.xlu0 %v394, 48
        %v1192 = vpop.permute.xlu0 %1191
        %1193 = vrot.lane.b32.xlu0 %v395, 48
        %v1194 = vpop.permute.xlu0 %1193
        %1195 = vrot.lane.b32.xlu0 %v396, 48
        %v1196 = vpop.permute.xlu0 %1195
        %1261 = vrot.lane.b32.xlu0 %v397, 56
        %v1262 = vpop.permute.xlu0 %1261
        %1263 = vrot.lane.b32.xlu0 %v398, 56
        %v1264 = vpop.permute.xlu0 %1263
        %1265 = vrot.lane.b32.xlu0 %v399, 56
        %v1266 = vpop.permute.xlu0 %1265
        %1267 = vrot.lane.b32.xlu0 %v400, 56
        %v1268 = vpop.permute.xlu0 %1267
        %1269 = vrot.lane.b32.xlu0 %v401, 56
        %v1270 = vpop.permute.xlu0 %1269
        %1271 = vrot.lane.b32.xlu0 %v402, 56
        %v1272 = vpop.permute.xlu0 %1271
        %1273 = vrot.lane.b32.xlu0 %v403, 56
        %v1274 = vpop.permute.xlu0 %1273
        %1275 = vrot.lane.b32.xlu0 %v404, 56
        %v1276 = vpop.permute.xlu0 %1275
        %1277 = vrot.lane.b32.xlu0 %v405, 56
        %v1278 = vpop.permute.xlu0 %1277
        %1279 = vrot.lane.b32.xlu0 %v406, 56
        %v1280 = vpop.permute.xlu0 %1279
        %1281 = vrot.lane.b32.xlu0 %v407, 56
        %v1282 = vpop.permute.xlu0 %1281
        %1283 = vrot.lane.b32.xlu0 %v408, 56
        %v1284 = vpop.permute.xlu0 %1283
        %1285 = vrot.lane.b32.xlu0 %v409, 56
        %v1286 = vpop.permute.xlu0 %1285
        %1287 = vrot.lane.b32.xlu0 %v410, 56
        %v1288 = vpop.permute.xlu0 %1287
        %1289 = vrot.lane.b32.xlu0 %v411, 56
        %v1290 = vpop.permute.xlu0 %1289
        %1291 = vrot.lane.b32.xlu0 %v412, 56
        %v1292 = vpop.permute.xlu0 %1291
        %1293 = vrot.lane.b32.xlu0 %v413, 56
        %v1294 = vpop.permute.xlu0 %1293
        %1295 = vrot.lane.b32.xlu0 %v414, 56
        %v1296 = vpop.permute.xlu0 %1295
        %1297 = vrot.lane.b32.xlu0 %v415, 56
        %v1298 = vpop.permute.xlu0 %1297
        %1299 = vrot.lane.b32.xlu0 %v416, 56
        %v1300 = vpop.permute.xlu0 %1299
        %1301 = vrot.lane.b32.xlu0 %v417, 56
        %v1302 = vpop.permute.xlu0 %1301
        %1303 = vrot.lane.b32.xlu0 %v418, 56
        %v1304 = vpop.permute.xlu0 %1303
        %1305 = vrot.lane.b32.xlu0 %v419, 56
        %v1306 = vpop.permute.xlu0 %1305
        %1307 = vrot.lane.b32.xlu0 %v420, 56
        %v1308 = vpop.permute.xlu0 %1307
        %1309 = vrot.lane.b32.xlu0 %v421, 56
        %v1310 = vpop.permute.xlu0 %1309
        %1311 = vrot.lane.b32.xlu0 %v422, 56
        %v1312 = vpop.permute.xlu0 %1311
        %1313 = vrot.lane.b32.xlu0 %v423, 56
        %v1314 = vpop.permute.xlu0 %1313
        %1315 = vrot.lane.b32.xlu0 %v424, 56
        %v1316 = vpop.permute.xlu0 %1315
        %1317 = vrot.lane.b32.xlu0 %v425, 56
        %v1318 = vpop.permute.xlu0 %1317
        %1319 = vrot.lane.b32.xlu0 %v426, 56
        %v1320 = vpop.permute.xlu0 %1319
        %1321 = vrot.lane.b32.xlu0 %v427, 56
        %v1322 = vpop.permute.xlu0 %1321
        %1323 = vrot.lane.b32.xlu0 %v428, 56
        %v1324 = vpop.permute.xlu0 %1323
        %1389 = vrot.lane.b32.xlu0 %v429, 64
        %v1390 = vpop.permute.xlu0 %1389
        %1391 = vrot.lane.b32.xlu0 %v430, 64
        %v1392 = vpop.permute.xlu0 %1391
        %1393 = vrot.lane.b32.xlu0 %v431, 64
        %v1394 = vpop.permute.xlu0 %1393
        %1395 = vrot.lane.b32.xlu0 %v432, 64
        %v1396 = vpop.permute.xlu0 %1395
        %1397 = vrot.lane.b32.xlu0 %v433, 64
        %v1398 = vpop.permute.xlu0 %1397
        %1399 = vrot.lane.b32.xlu0 %v434, 64
        %v1400 = vpop.permute.xlu0 %1399
        %1401 = vrot.lane.b32.xlu0 %v435, 64
        %v1402 = vpop.permute.xlu0 %1401
        %1403 = vrot.lane.b32.xlu0 %v436, 64
        %v1404 = vpop.permute.xlu0 %1403
        %1405 = vrot.lane.b32.xlu0 %v437, 64
        %v1406 = vpop.permute.xlu0 %1405
        %1407 = vrot.lane.b32.xlu0 %v438, 64
        %v1408 = vpop.permute.xlu0 %1407
        %1409 = vrot.lane.b32.xlu0 %v439, 64
        %v1410 = vpop.permute.xlu0 %1409
        %1411 = vrot.lane.b32.xlu0 %v440, 64
        %v1412 = vpop.permute.xlu0 %1411
        %1413 = vrot.lane.b32.xlu0 %v441, 64
        %v1414 = vpop.permute.xlu0 %1413
        %1415 = vrot.lane.b32.xlu0 %v442, 64
        %v1416 = vpop.permute.xlu0 %1415
        %1417 = vrot.lane.b32.xlu0 %v443, 64
        %v1418 = vpop.permute.xlu0 %1417
        %1419 = vrot.lane.b32.xlu0 %v444, 64
        %v1420 = vpop.permute.xlu0 %1419
        %1421 = vrot.lane.b32.xlu0 %v445, 64
        %v1422 = vpop.permute.xlu0 %1421
        %1423 = vrot.lane.b32.xlu0 %v446, 64
        %v1424 = vpop.permute.xlu0 %1423
        %1425 = vrot.lane.b32.xlu0 %v447, 64
        %v1426 = vpop.permute.xlu0 %1425
        %1427 = vrot.lane.b32.xlu0 %v448, 64
        %v1428 = vpop.permute.xlu0 %1427
        %1429 = vrot.lane.b32.xlu0 %v449, 64
        %v1430 = vpop.permute.xlu0 %1429
        %1431 = vrot.lane.b32.xlu0 %v450, 64
        %v1432 = vpop.permute.xlu0 %1431
        %1433 = vrot.lane.b32.xlu0 %v451, 64
        %v1434 = vpop.permute.xlu0 %1433
        %1435 = vrot.lane.b32.xlu0 %v452, 64
        %v1436 = vpop.permute.xlu0 %1435
        %1437 = vrot.lane.b32.xlu0 %v453, 64
        %v1438 = vpop.permute.xlu0 %1437
        %1439 = vrot.lane.b32.xlu0 %v454, 64
        %v1440 = vpop.permute.xlu0 %1439
        %1441 = vrot.lane.b32.xlu0 %v455, 64
        %v1442 = vpop.permute.xlu0 %1441
        %1443 = vrot.lane.b32.xlu0 %v456, 64
        %v1444 = vpop.permute.xlu0 %1443
        %1445 = vrot.lane.b32.xlu0 %v457, 64
        %v1446 = vpop.permute.xlu0 %1445
        %1447 = vrot.lane.b32.xlu0 %v458, 64
        %v1448 = vpop.permute.xlu0 %1447
        %1449 = vrot.lane.b32.xlu0 %v459, 64
        %v1450 = vpop.permute.xlu0 %1449
        %1451 = vrot.lane.b32.xlu0 %v460, 64
        %v1452 = vpop.permute.xlu0 %1451
        %vm1485 = vcmask 64512
        %v1486 = vsel %vm1485, %v171, %v494
        %v1487 = vsel %vm1485, %v172, %v496
        %v1488 = vsel %vm1485, %v173, %v498
        %v1489 = vsel %vm1485, %v174, %v500
        %v1490 = vsel %vm1485, %v175, %v502
        %v1491 = vsel %vm1485, %v176, %v504
        %v1492 = vsel %vm1485, %v177, %v506
        %v1493 = vsel %vm1485, %v178, %v508
        %v1494 = vsel %vm1485, %v179, %v510
        %v1495 = vsel %vm1485, %v180, %v512
        %v1496 = vsel %vm1485, %v181, %v514
        %v1497 = vsel %vm1485, %v182, %v516
        %v1498 = vsel %vm1485, %v183, %v518
        %v1499 = vsel %vm1485, %v184, %v520
        %v1500 = vsel %vm1485, %v185, %v522
        %v1501 = vsel %vm1485, %v186, %v524
        %v1502 = vsel %vm1485, %v187, %v526
        %v1503 = vsel %vm1485, %v188, %v528
        %v1504 = vsel %vm1485, %v189, %v530
        %v1505 = vsel %vm1485, %v190, %v532
        %v1506 = vsel %vm1485, %v191, %v534
        %v1507 = vsel %vm1485, %v192, %v536
        %v1508 = vsel %vm1485, %v193, %v538
        %v1509 = vsel %vm1485, %v194, %v540
        %v1510 = vsel %vm1485, %v195, %v542
        %v1511 = vsel %vm1485, %v196, %v544
        %v1512 = vsel %vm1485, %v197, %v546
        %v1513 = vsel %vm1485, %v198, %v548
        %v1514 = vsel %vm1485, %v199, %v550
        %v1515 = vsel %vm1485, %v200, %v552
        %v1516 = vsel %vm1485, %v201, %v554
        %v1517 = vsel %vm1485, %v202, %v556
        %vm1518 = vcmask 130048
        %v1519 = vsel %vm1518, %v1486, %v622
        %v1520 = vsel %vm1518, %v1487, %v624
        %v1521 = vsel %vm1518, %v1488, %v626
        %v1522 = vsel %vm1518, %v1489, %v628
        %v1523 = vsel %vm1518, %v1490, %v630
        %v1524 = vsel %vm1518, %v1491, %v632
        %v1525 = vsel %vm1518, %v1492, %v634
        %v1526 = vsel %vm1518, %v1493, %v636
        %v1527 = vsel %vm1518, %v1494, %v638
        %v1528 = vsel %vm1518, %v1495, %v640
        %v1529 = vsel %vm1518, %v1496, %v642
        %v1530 = vsel %vm1518, %v1497, %v644
        %v1531 = vsel %vm1518, %v1498, %v646
        %v1532 = vsel %vm1518, %v1499, %v648
        %v1533 = vsel %vm1518, %v1500, %v650
        %v1534 = vsel %vm1518, %v1501, %v652
        %v1535 = vsel %vm1518, %v1502, %v654
        %v1536 = vsel %vm1518, %v1503, %v656
        %v1537 = vsel %vm1518, %v1504, %v658
        %v1538 = vsel %vm1518, %v1505, %v660
        %v1539 = vsel %vm1518, %v1506, %v662
        %v1540 = vsel %vm1518, %v1507, %v664
        %v1541 = vsel %vm1518, %v1508, %v666
        %v1542 = vsel %vm1518, %v1509, %v668
        %v1543 = vsel %vm1518, %v1510, %v670
        %v1544 = vsel %vm1518, %v1511, %v672
        %v1545 = vsel %vm1518, %v1512, %v674
        %v1546 = vsel %vm1518, %v1513, %v676
        %v1547 = vsel %vm1518, %v1514, %v678
        %v1548 = vsel %vm1518, %v1515, %v680
        %v1549 = vsel %vm1518, %v1516, %v682
        %v1550 = vsel %vm1518, %v1517, %v684
        %vm1551 = vcmask 195584
        %v1552 = vsel %vm1551, %v1519, %v750
        %v1553 = vsel %vm1551, %v1520, %v752
        %v1554 = vsel %vm1551, %v1521, %v754
        %v1555 = vsel %vm1551, %v1522, %v756
        %v1556 = vsel %vm1551, %v1523, %v758
        %v1557 = vsel %vm1551, %v1524, %v760
        %v1558 = vsel %vm1551, %v1525, %v762
        %v1559 = vsel %vm1551, %v1526, %v764
        %v1560 = vsel %vm1551, %v1527, %v766
        %v1561 = vsel %vm1551, %v1528, %v768
        %v1562 = vsel %vm1551, %v1529, %v770
        %v1563 = vsel %vm1551, %v1530, %v772
        %v1564 = vsel %vm1551, %v1531, %v774
        %v1565 = vsel %vm1551, %v1532, %v776
        %v1566 = vsel %vm1551, %v1533, %v778
        %v1567 = vsel %vm1551, %v1534, %v780
        %v1568 = vsel %vm1551, %v1535, %v782
        %v1569 = vsel %vm1551, %v1536, %v784
        %v1570 = vsel %vm1551, %v1537, %v786
        %v1571 = vsel %vm1551, %v1538, %v788
        %v1572 = vsel %vm1551, %v1539, %v790
        %v1573 = vsel %vm1551, %v1540, %v792
        %v1574 = vsel %vm1551, %v1541, %v794
        %v1575 = vsel %vm1551, %v1542, %v796
        %v1576 = vsel %vm1551, %v1543, %v798
        %v1577 = vsel %vm1551, %v1544, %v800
        %v1578 = vsel %vm1551, %v1545, %v802
        %v1579 = vsel %vm1551, %v1546, %v804
        %v1580 = vsel %vm1551, %v1547, %v806
        %v1581 = vsel %vm1551, %v1548, %v808
        %v1582 = vsel %vm1551, %v1549, %v810
        %v1583 = vsel %vm1551, %v1550, %v812
        %vm1584 = vcmask 261120
        %v1585 = vsel %vm1584, %v1552, %v878
        %v1586 = vsel %vm1584, %v1553, %v880
        %v1587 = vsel %vm1584, %v1554, %v882
        %v1588 = vsel %vm1584, %v1555, %v884
        %v1589 = vsel %vm1584, %v1556, %v886
        %v1590 = vsel %vm1584, %v1557, %v888
        %v1591 = vsel %vm1584, %v1558, %v890
        %v1592 = vsel %vm1584, %v1559, %v892
        %v1593 = vsel %vm1584, %v1560, %v894
        %v1594 = vsel %vm1584, %v1561, %v896
        %v1595 = vsel %vm1584, %v1562, %v898
        %v1596 = vsel %vm1584, %v1563, %v900
        %v1597 = vsel %vm1584, %v1564, %v902
        %v1598 = vsel %vm1584, %v1565, %v904
        %v1599 = vsel %vm1584, %v1566, %v906
        %v1600 = vsel %vm1584, %v1567, %v908
        %v1601 = vsel %vm1584, %v1568, %v910
        %v1602 = vsel %vm1584, %v1569, %v912
        %v1603 = vsel %vm1584, %v1570, %v914
        %v1604 = vsel %vm1584, %v1571, %v916
        %v1605 = vsel %vm1584, %v1572, %v918
        %v1606 = vsel %vm1584, %v1573, %v920
        %v1607 = vsel %vm1584, %v1574, %v922
        %v1608 = vsel %vm1584, %v1575, %v924
        %v1609 = vsel %vm1584, %v1576, %v926
        %v1610 = vsel %vm1584, %v1577, %v928
        %v1611 = vsel %vm1584, %v1578, %v930
        %v1612 = vsel %vm1584, %v1579, %v932
        %v1613 = vsel %vm1584, %v1580, %v934
        %v1614 = vsel %vm1584, %v1581, %v936
        %v1615 = vsel %vm1584, %v1582, %v938
        %v1616 = vsel %vm1584, %v1583, %v940
        %vm1617 = vcmask 326656
        %v1618 = vsel %vm1617, %v1585, %v1006
        %v1619 = vsel %vm1617, %v1586, %v1008
        %v1620 = vsel %vm1617, %v1587, %v1010
        %v1621 = vsel %vm1617, %v1588, %v1012
        %v1622 = vsel %vm1617, %v1589, %v1014
        %v1623 = vsel %vm1617, %v1590, %v1016
        %v1624 = vsel %vm1617, %v1591, %v1018
        %v1625 = vsel %vm1617, %v1592, %v1020
        %v1626 = vsel %vm1617, %v1593, %v1022
        %v1627 = vsel %vm1617, %v1594, %v1024
        %v1628 = vsel %vm1617, %v1595, %v1026
        %v1629 = vsel %vm1617, %v1596, %v1028
        %v1630 = vsel %vm1617, %v1597, %v1030
        %v1631 = vsel %vm1617, %v1598, %v1032
        %v1632 = vsel %vm1617, %v1599, %v1034
        %v1633 = vsel %vm1617, %v1600, %v1036
        %v1634 = vsel %vm1617, %v1601, %v1038
        %v1635 = vsel %vm1617, %v1602, %v1040
        %v1636 = vsel %vm1617, %v1603, %v1042
        %v1637 = vsel %vm1617, %v1604, %v1044
        %v1638 = vsel %vm1617, %v1605, %v1046
        %v1639 = vsel %vm1617, %v1606, %v1048
        %v1640 = vsel %vm1617, %v1607, %v1050
        %v1641 = vsel %vm1617, %v1608, %v1052
        %v1642 = vsel %vm1617, %v1609, %v1054
        %v1643 = vsel %vm1617, %v1610, %v1056
        %v1644 = vsel %vm1617, %v1611, %v1058
        %v1645 = vsel %vm1617, %v1612, %v1060
        %v1646 = vsel %vm1617, %v1613, %v1062
        %v1647 = vsel %vm1617, %v1614, %v1064
        %v1648 = vsel %vm1617, %v1615, %v1066
        %v1649 = vsel %vm1617, %v1616, %v1068
        %vm1650 = vcmask 392192
        %v1651 = vsel %vm1650, %v1618, %v1134
        %v1652 = vsel %vm1650, %v1619, %v1136
        %v1653 = vsel %vm1650, %v1620, %v1138
        %v1654 = vsel %vm1650, %v1621, %v1140
        %v1655 = vsel %vm1650, %v1622, %v1142
        %v1656 = vsel %vm1650, %v1623, %v1144
        %v1657 = vsel %vm1650, %v1624, %v1146
        %v1658 = vsel %vm1650, %v1625, %v1148
        %v1659 = vsel %vm1650, %v1626, %v1150
        %v1660 = vsel %vm1650, %v1627, %v1152
        %v1661 = vsel %vm1650, %v1628, %v1154
        %v1662 = vsel %vm1650, %v1629, %v1156
        %v1663 = vsel %vm1650, %v1630, %v1158
        %v1664 = vsel %vm1650, %v1631, %v1160
        %v1665 = vsel %vm1650, %v1632, %v1162
        %v1666 = vsel %vm1650, %v1633, %v1164
        %v1667 = vsel %vm1650, %v1634, %v1166
        %v1668 = vsel %vm1650, %v1635, %v1168
        %v1669 = vsel %vm1650, %v1636, %v1170
        %v1670 = vsel %vm1650, %v1637, %v1172
        %v1671 = vsel %vm1650, %v1638, %v1174
        %v1672 = vsel %vm1650, %v1639, %v1176
        %v1673 = vsel %vm1650, %v1640, %v1178
        %v1674 = vsel %vm1650, %v1641, %v1180
        %v1675 = vsel %vm1650, %v1642, %v1182
        %v1676 = vsel %vm1650, %v1643, %v1184
        %v1677 = vsel %vm1650, %v1644, %v1186
        %v1678 = vsel %vm1650, %v1645, %v1188
        %v1679 = vsel %vm1650, %v1646, %v1190
        %v1680 = vsel %vm1650, %v1647, %v1192
        %v1681 = vsel %vm1650, %v1648, %v1194
        %v1682 = vsel %vm1650, %v1649, %v1196
        %vm1683 = vcmask 457728
        %v1684 = vsel %vm1683, %v1651, %v1262
        %v1685 = vsel %vm1683, %v1652, %v1264
        %v1686 = vsel %vm1683, %v1653, %v1266
        %v1687 = vsel %vm1683, %v1654, %v1268
        %v1688 = vsel %vm1683, %v1655, %v1270
        %v1689 = vsel %vm1683, %v1656, %v1272
        %v1690 = vsel %vm1683, %v1657, %v1274
        %v1691 = vsel %vm1683, %v1658, %v1276
        %v1692 = vsel %vm1683, %v1659, %v1278
        %v1693 = vsel %vm1683, %v1660, %v1280
        %v1694 = vsel %vm1683, %v1661, %v1282
        %v1695 = vsel %vm1683, %v1662, %v1284
        %v1696 = vsel %vm1683, %v1663, %v1286
        %v1697 = vsel %vm1683, %v1664, %v1288
        %v1698 = vsel %vm1683, %v1665, %v1290
        %v1699 = vsel %vm1683, %v1666, %v1292
        %v1700 = vsel %vm1683, %v1667, %v1294
        %v1701 = vsel %vm1683, %v1668, %v1296
        %v1702 = vsel %vm1683, %v1669, %v1298
        %v1703 = vsel %vm1683, %v1670, %v1300
        %v1704 = vsel %vm1683, %v1671, %v1302
        %v1705 = vsel %vm1683, %v1672, %v1304
        %v1706 = vsel %vm1683, %v1673, %v1306
        %v1707 = vsel %vm1683, %v1674, %v1308
        %v1708 = vsel %vm1683, %v1675, %v1310
        %v1709 = vsel %vm1683, %v1676, %v1312
        %v1710 = vsel %vm1683, %v1677, %v1314
        %v1711 = vsel %vm1683, %v1678, %v1316
        %v1712 = vsel %vm1683, %v1679, %v1318
        %v1713 = vsel %vm1683, %v1680, %v1320
        %v1714 = vsel %vm1683, %v1681, %v1322
        %v1715 = vsel %vm1683, %v1682, %v1324
        %vm1716 = vcmask 523264
        %v1717 = vsel %vm1716, %v1684, %v1390
        %v1718 = vsel %vm1716, %v1685, %v1392
        %v1719 = vsel %vm1716, %v1686, %v1394
        %v1720 = vsel %vm1716, %v1687, %v1396
        %v1721 = vsel %vm1716, %v1688, %v1398
        %v1722 = vsel %vm1716, %v1689, %v1400
        %v1723 = vsel %vm1716, %v1690, %v1402
        %v1724 = vsel %vm1716, %v1691, %v1404
        %v1725 = vsel %vm1716, %v1692, %v1406
        %v1726 = vsel %vm1716, %v1693, %v1408
        %v1727 = vsel %vm1716, %v1694, %v1410
        %v1728 = vsel %vm1716, %v1695, %v1412
        %v1729 = vsel %vm1716, %v1696, %v1414
        %v1730 = vsel %vm1716, %v1697, %v1416
        %v1731 = vsel %vm1716, %v1698, %v1418
        %v1732 = vsel %vm1716, %v1699, %v1420
        %v1733 = vsel %vm1716, %v1700, %v1422
        %v1734 = vsel %vm1716, %v1701, %v1424
        %v1735 = vsel %vm1716, %v1702, %v1426
        %v1736 = vsel %vm1716, %v1703, %v1428
        %v1737 = vsel %vm1716, %v1704, %v1430
        %v1738 = vsel %vm1716, %v1705, %v1432
        %v1739 = vsel %vm1716, %v1706, %v1434
        %v1740 = vsel %vm1716, %v1707, %v1436
        %v1741 = vsel %vm1716, %v1708, %v1438
        %v1742 = vsel %vm1716, %v1709, %v1440
        %v1743 = vsel %vm1716, %v1710, %v1442
        %v1744 = vsel %vm1716, %v1711, %v1444
        %v1745 = vsel %vm1716, %v1712, %v1446
        %v1746 = vsel %vm1716, %v1713, %v1448
        %v1747 = vsel %vm1716, %v1714, %v1450
        %v1748 = vsel %vm1716, %v1715, %v1452
        %v1749 = vpack.c.bf16 %v1718, %v1717
        %v1750 = vpack.c.bf16 %v1720, %v1719
        %v1751 = vpack.c.bf16 %v1722, %v1721
        %v1752 = vpack.c.bf16 %v1724, %v1723
        %v1753 = vpack.c.bf16 %v1726, %v1725
        %v1754 = vpack.c.bf16 %v1728, %v1727
        %v1755 = vpack.c.bf16 %v1730, %v1729
        %v1756 = vpack.c.bf16 %v1732, %v1731
        %v1757 = vpack.c.bf16 %v1734, %v1733
        %v1758 = vpack.c.bf16 %v1736, %v1735
        %v1759 = vpack.c.bf16 %v1738, %v1737
        %v1760 = vpack.c.bf16 %v1740, %v1739
        %v1761 = vpack.c.bf16 %v1742, %v1741
        %v1762 = vpack.c.bf16 %v1744, %v1743
        %v1763 = vpack.c.bf16 %v1746, %v1745
        %v1764 = vpack.c.bf16 %v1748, %v1747
        %v1765 = vld [vmem:[%s1] sm:$0xf]
        %v1766 = vld [vmem:[%s1 + $0x4] sm:$0xf]
        %v1767 = vld [vmem:[%s2] sm:$0xff]
        %v1768 = vld [vmem:[%s2 + $0x8] sm:$0xff]
        %1770 = vset.pattern.permute.xlu0 0
        %1771 = vperm.xlu0 %1770, %v1767
        %v1772 = vpop.permute.xlu0 %1771
        %1775 = vset.pattern.permute.xlu0 0
        %1776 = vperm.xlu0 %1775, %v1768
        %v1777 = vpop.permute.xlu0 %1776
        %v1781 = vunpack.c.l.b16 %v1765
        %v1782 = vunpack.c.l.b16 %v1766
        %v1783 = vpack.c.b16 %v1782, %v1781
        %vm1784 = vcmask 588800
        %v1786 = vsel %vm1784, %v1783, 0
        %v1789 = vsel %vm1784, %v1749, 0
        %v1792 = vsel %vm1784, %v1750, 0
        %v1795 = vsel %vm1784, %v1751, 0
        %v1798 = vsel %vm1784, %v1752, 0
        %v1801 = vsel %vm1784, %v1753, 0
        %v1804 = vsel %vm1784, %v1754, 0
        %v1807 = vsel %vm1784, %v1755, 0
        %v1810 = vsel %vm1784, %v1756, 0
        %v1813 = vsel %vm1784, %v1757, 0
        %v1816 = vsel %vm1784, %v1758, 0
        %v1819 = vsel %vm1784, %v1759, 0
        %v1822 = vsel %vm1784, %v1760, 0
        %v1825 = vsel %vm1784, %v1761, 0
        %v1828 = vsel %vm1784, %v1762, 0
        %v1831 = vsel %vm1784, %v1763, 0
        %v1834 = vsel %vm1784, %v1764, 0
        %1836 = vmatprep.subr.bf16.mxu0 0
        %1837 = vmatpush1.bf16.xpose.msra.mxu0 %v1810
        %1838 = vmatprep.subr.bf16.mxu0 0
        %1839 = vmatpush1.bf16.xpose.msra.mxu0 %v1807
        %1840 = vmatprep.subr.bf16.mxu0 0
        %1841 = vmatpush1.bf16.xpose.msra.mxu0 %v1804
        %1842 = vmatprep.subr.bf16.mxu0 0
        %1843 = vmatpush1.bf16.xpose.msra.mxu0 %v1801
        %1844 = vmatprep.subr.bf16.mxu0 0
        %1845 = vmatpush1.bf16.xpose.msra.mxu0 %v1798
        %1846 = vmatprep.subr.bf16.mxu0 0
        %1847 = vmatpush1.bf16.xpose.msra.mxu0 %v1795
        %1848 = vmatprep.subr.bf16.mxu0 0
        %1849 = vmatpush1.bf16.xpose.msra.mxu0 %v1792
        %1850 = vmatprep.subr.bf16.mxu0 0
        %1851 = vmatpush1.bf16.xpose.msra.mxu0 %v1789
        %1852 = vmatprep.subr.bf16.mxu0 0
        %1853 = vmatpush2.bf16.xpose.msra.mxu0 %v1834
        %1854 = vmatprep.subr.bf16.mxu0 0
        %1855 = vmatpush2.bf16.xpose.msra.mxu0 %v1831
        %1856 = vmatprep.subr.bf16.mxu0 0
        %1857 = vmatpush2.bf16.xpose.msra.mxu0 %v1828
        %1858 = vmatprep.subr.bf16.mxu0 0
        %1859 = vmatpush2.bf16.xpose.msra.mxu0 %v1825
        %1860 = vmatprep.subr.bf16.mxu0 0
        %1861 = vmatpush2.bf16.xpose.msra.mxu0 %v1822
        %1862 = vmatprep.subr.bf16.mxu0 0
        %1863 = vmatpush2.bf16.xpose.msra.mxu0 %v1819
        %1864 = vmatprep.subr.bf16.mxu0 0
        %1865 = vmatpush2.bf16.xpose.msra.mxu0 %v1816
        %1866 = vmatprep.subr.bf16.mxu0 0
        %1867 = vmatpush2.bf16.xpose.msra.mxu0 %v1813
        %1868 = vmatprep.mubr.bf16.mxu0 0
        %1869 = vmatmul.mubr.bf16.gmra.mxu0 %v1786
        %v1870 = vpop.f32.mrf.mxu0
        %v1871 = vadd.f32 %v1772, %v1870
        %v1872 = vpop.f32.mrf.mxu0
        %v1873 = vadd.f32 %v1772, %v1872
        %v1874 = vpop.f32.mrf.mxu0
        %v1875 = vadd.f32 %v1777, %v1874
        %v1876 = vpop.f32.mrf.mxu0
        %v1877 = vadd.f32 %v1777, %v1876
        %1878 = vdwg.mxu0
        %1879 = vst [vmem:[%s163] sm:$0xff] %v1871
        %1880 = vst [vmem:[%s163 + $0x8] sm:$0xff] %v1873
        %1881 = vst [vmem:[%s163 + $0x10] sm:$0xff] %v1875
        %1882 = vst [vmem:[%s163 + $0x18] sm:$0xff] %v1877
        %s1883 = scalar_lea.vmem %s168, 672
        %v1884 = vld [vmem:[%s1883 + $0xc] sm:$0xff]
        %v1885 = vld [vmem:[%s1883 + $0x14] sm:$0xff]
        %v1886 = vld [vmem:[%s1883 + $0x44] sm:$0xff]
        %v1887 = vld [vmem:[%s1883 + $0x4c] sm:$0xff]
        %v1888 = vld [vmem:[%s1883 + $0x7c] sm:$0xff]
        %v1889 = vld [vmem:[%s1883 + $0x84] sm:$0xff]
        %v1890 = vld [vmem:[%s1883 + $0xb4] sm:$0xff]
        %v1891 = vld [vmem:[%s1883 + $0xbc] sm:$0xff]
        %v1892 = vld [vmem:[%s1883 + $0xec] sm:$0xff]
        %v1893 = vld [vmem:[%s1883 + $0xf4] sm:$0xff]
        %v1894 = vld [vmem:[%s1883 + $0x124] sm:$0xff]
        %v1895 = vld [vmem:[%s1883 + $0x12c] sm:$0xff]
        %v1896 = vld [vmem:[%s1883 + $0x15c] sm:$0xff]
        %v1897 = vld [vmem:[%s1883 + $0x164] sm:$0xff]
        %v1898 = vld [vmem:[%s1883 + $0x194] sm:$0xff]
        %v1899 = vld [vmem:[%s1883 + $0x19c] sm:$0xff]
        %v1900 = vld [vmem:[%s1883 + $0x1cc] sm:$0xff]
        %v1901 = vld [vmem:[%s1883 + $0x1d4] sm:$0xff]
        %v1902 = vld [vmem:[%s1883 + $0x204] sm:$0xff]
        %v1903 = vld [vmem:[%s1883 + $0x20c] sm:$0xff]
        %v1904 = vld [vmem:[%s1883 + $0x23c] sm:$0xff]
        %v1905 = vld [vmem:[%s1883 + $0x244] sm:$0xff]
        %v1906 = vld [vmem:[%s1883 + $0x274] sm:$0xff]
        %v1907 = vld [vmem:[%s1883 + $0x27c] sm:$0xff]
        %v1908 = vld [vmem:[%s1883 + $0x2ac] sm:$0xff]
        %v1909 = vld [vmem:[%s1883 + $0x2b4] sm:$0xff]
        %v1910 = vld [vmem:[%s1883 + $0x2e4] sm:$0xff]
        %v1911 = vld [vmem:[%s1883 + $0x2ec] sm:$0xff]
        %v1912 = vld [vmem:[%s1883 + $0x31c] sm:$0xff]
        %v1913 = vld [vmem:[%s1883 + $0x324] sm:$0xff]
        %v1914 = vld [vmem:[%s1883 + $0x354] sm:$0xff]
        %v1915 = vld [vmem:[%s1883 + $0x35c] sm:$0xff]
        %v1916 = vld [vmem:[%s1883 + $0x12] sm:$0xff]
        %v1917 = vld [vmem:[%s1883 + $0x1a] sm:$0xff]
        %v1918 = vld [vmem:[%s1883 + $0x4a] sm:$0xff]
        %v1919 = vld [vmem:[%s1883 + $0x52] sm:$0xff]
        %v1920 = vld [vmem:[%s1883 + $0x82] sm:$0xff]
        %v1921 = vld [vmem:[%s1883 + $0x8a] sm:$0xff]
        %v1922 = vld [vmem:[%s1883 + $0xba] sm:$0xff]
        %v1923 = vld [vmem:[%s1883 + $0xc2] sm:$0xff]
        %v1924 = vld [vmem:[%s1883 + $0xf2] sm:$0xff]
        %v1925 = vld [vmem:[%s1883 + $0xfa] sm:$0xff]
        %v1926 = vld [vmem:[%s1883 + $0x12a] sm:$0xff]
        %v1927 = vld [vmem:[%s1883 + $0x132] sm:$0xff]
        %v1928 = vld [vmem:[%s1883 + $0x162] sm:$0xff]
        %v1929 = vld [vmem:[%s1883 + $0x16a] sm:$0xff]
        %v1930 = vld [vmem:[%s1883 + $0x19a] sm:$0xff]
        %v1931 = vld [vmem:[%s1883 + $0x1a2] sm:$0xff]
        %v1932 = vld [vmem:[%s1883 + $0x1d2] sm:$0xff]
        %v1933 = vld [vmem:[%s1883 + $0x1da] sm:$0xff]
        %v1934 = vld [vmem:[%s1883 + $0x20a] sm:$0xff]
        %v1935 = vld [vmem:[%s1883 + $0x212] sm:$0xff]
        %v1936 = vld [vmem:[%s1883 + $0x242] sm:$0xff]
        %v1937 = vld [vmem:[%s1883 + $0x24a] sm:$0xff]
        %v1938 = vld [vmem:[%s1883 + $0x27a] sm:$0xff]
        %v1939 = vld [vmem:[%s1883 + $0x282] sm:$0xff]
        %v1940 = vld [vmem:[%s1883 + $0x2b2] sm:$0xff]
        %v1941 = vld [vmem:[%s1883 + $0x2ba] sm:$0xff]
        %v1942 = vld [vmem:[%s1883 + $0x2ea] sm:$0xff]
        %v1943 = vld [vmem:[%s1883 + $0x2f2] sm:$0xff]
        %v1944 = vld [vmem:[%s1883 + $0x322] sm:$0xff]
        %v1945 = vld [vmem:[%s1883 + $0x32a] sm:$0xff]
        %v1946 = vld [vmem:[%s1883 + $0x35a] sm:$0xff]
        %v1947 = vld [vmem:[%s1883 + $0x362] sm:$0xff]
        %v1948 = vld [vmem:[%s1883 + $0x18] sm:$0xff]
        %v1949 = vld [vmem:[%s1883 + $0x20] sm:$0xff]
        %v1950 = vld [vmem:[%s1883 + $0x50] sm:$0xff]
        %v1951 = vld [vmem:[%s1883 + $0x58] sm:$0xff]
        %v1952 = vld [vmem:[%s1883 + $0x88] sm:$0xff]
        %v1953 = vld [vmem:[%s1883 + $0x90] sm:$0xff]
        %v1954 = vld [vmem:[%s1883 + $0xc0] sm:$0xff]
        %v1955 = vld [vmem:[%s1883 + $0xc8] sm:$0xff]
        %v1956 = vld [vmem:[%s1883 + $0xf8] sm:$0xff]
        %v1957 = vld [vmem:[%s1883 + $0x100] sm:$0xff]
        %v1958 = vld [vmem:[%s1883 + $0x130] sm:$0xff]
        %v1959 = vld [vmem:[%s1883 + $0x138] sm:$0xff]
        %v1960 = vld [vmem:[%s1883 + $0x168] sm:$0xff]
        %v1961 = vld [vmem:[%s1883 + $0x170] sm:$0xff]
        %v1962 = vld [vmem:[%s1883 + $0x1a0] sm:$0xff]
        %v1963 = vld [vmem:[%s1883 + $0x1a8] sm:$0xff]
        %v1964 = vld [vmem:[%s1883 + $0x1d8] sm:$0xff]
        %v1965 = vld [vmem:[%s1883 + $0x1e0] sm:$0xff]
        %v1966 = vld [vmem:[%s1883 + $0x210] sm:$0xff]
        %v1967 = vld [vmem:[%s1883 + $0x218] sm:$0xff]
        %v1968 = vld [vmem:[%s1883 + $0x248] sm:$0xff]
        %v1969 = vld [vmem:[%s1883 + $0x250] sm:$0xff]
        %v1970 = vld [vmem:[%s1883 + $0x280] sm:$0xff]
        %v1971 = vld [vmem:[%s1883 + $0x288] sm:$0xff]
        %v1972 = vld [vmem:[%s1883 + $0x2b8] sm:$0xff]
        %v1973 = vld [vmem:[%s1883 + $0x2c0] sm:$0xff]
        %v1974 = vld [vmem:[%s1883 + $0x2f0] sm:$0xff]
        %v1975 = vld [vmem:[%s1883 + $0x2f8] sm:$0xff]
        %v1976 = vld [vmem:[%s1883 + $0x328] sm:$0xff]
        %v1977 = vld [vmem:[%s1883 + $0x330] sm:$0xff]
        %v1978 = vld [vmem:[%s1883 + $0x360] sm:$0xff]
        %v1979 = vld [vmem:[%s1883 + $0x368] sm:$0xff]
        %v1980 = vld [vmem:[%s267 + $0xc] sm:$0xff]
        %v1981 = vld [vmem:[%s267 + $0x14] sm:$0xff]
        %v1982 = vld [vmem:[%s267 + $0x44] sm:$0xff]
        %v1983 = vld [vmem:[%s267 + $0x4c] sm:$0xff]
        %v1984 = vld [vmem:[%s267 + $0x7c] sm:$0xff]
        %v1985 = vld [vmem:[%s267 + $0x84] sm:$0xff]
        %v1986 = vld [vmem:[%s267 + $0xb4] sm:$0xff]
        %v1987 = vld [vmem:[%s267 + $0xbc] sm:$0xff]
        %v1988 = vld [vmem:[%s267 + $0xec] sm:$0xff]
        %v1989 = vld [vmem:[%s267 + $0xf4] sm:$0xff]
        %v1990 = vld [vmem:[%s267 + $0x124] sm:$0xff]
        %v1991 = vld [vmem:[%s267 + $0x12c] sm:$0xff]
        %v1992 = vld [vmem:[%s267 + $0x15c] sm:$0xff]
        %v1993 = vld [vmem:[%s267 + $0x164] sm:$0xff]
        %v1994 = vld [vmem:[%s267 + $0x194] sm:$0xff]
        %v1995 = vld [vmem:[%s267 + $0x19c] sm:$0xff]
        %v1996 = vld [vmem:[%s267 + $0x1cc] sm:$0xff]
        %v1997 = vld [vmem:[%s267 + $0x1d4] sm:$0xff]
        %v1998 = vld [vmem:[%s267 + $0x204] sm:$0xff]
        %v1999 = vld [vmem:[%s267 + $0x20c] sm:$0xff]
        %v2000 = vld [vmem:[%s267 + $0x23c] sm:$0xff]
        %v2001 = vld [vmem:[%s267 + $0x244] sm:$0xff]
        %v2002 = vld [vmem:[%s267 + $0x274] sm:$0xff]
        %v2003 = vld [vmem:[%s267 + $0x27c] sm:$0xff]
        %v2004 = vld [vmem:[%s267 + $0x2ac] sm:$0xff]
        %v2005 = vld [vmem:[%s267 + $0x2b4] sm:$0xff]
        %v2006 = vld [vmem:[%s267 + $0x2e4] sm:$0xff]
        %v2007 = vld [vmem:[%s267 + $0x2ec] sm:$0xff]
        %v2008 = vld [vmem:[%s267 + $0x31c] sm:$0xff]
        %v2009 = vld [vmem:[%s267 + $0x324] sm:$0xff]
        %v2010 = vld [vmem:[%s267 + $0x354] sm:$0xff]
        %v2011 = vld [vmem:[%s267 + $0x35c] sm:$0xff]
        %v2012 = vld [vmem:[%s267 + $0x12] sm:$0xff]
        %v2013 = vld [vmem:[%s267 + $0x1a] sm:$0xff]
        %v2014 = vld [vmem:[%s267 + $0x4a] sm:$0xff]
        %v2015 = vld [vmem:[%s267 + $0x52] sm:$0xff]
        %v2016 = vld [vmem:[%s267 + $0x82] sm:$0xff]
        %v2017 = vld [vmem:[%s267 + $0x8a] sm:$0xff]
        %v2018 = vld [vmem:[%s267 + $0xba] sm:$0xff]
        %v2019 = vld [vmem:[%s267 + $0xc2] sm:$0xff]
        %v2020 = vld [vmem:[%s267 + $0xf2] sm:$0xff]
        %v2021 = vld [vmem:[%s267 + $0xfa] sm:$0xff]
        %v2022 = vld [vmem:[%s267 + $0x12a] sm:$0xff]
        %v2023 = vld [vmem:[%s267 + $0x132] sm:$0xff]
        %v2024 = vld [vmem:[%s267 + $0x162] sm:$0xff]
        %v2025 = vld [vmem:[%s267 + $0x16a] sm:$0xff]
        %v2026 = vld [vmem:[%s267 + $0x19a] sm:$0xff]
        %v2027 = vld [vmem:[%s267 + $0x1a2] sm:$0xff]
        %v2028 = vld [vmem:[%s267 + $0x1d2] sm:$0xff]
        %v2029 = vld [vmem:[%s267 + $0x1da] sm:$0xff]
        %v2030 = vld [vmem:[%s267 + $0x20a] sm:$0xff]
        %v2031 = vld [vmem:[%s267 + $0x212] sm:$0xff]
        %v2032 = vld [vmem:[%s267 + $0x242] sm:$0xff]
        %v2033 = vld [vmem:[%s267 + $0x24a] sm:$0xff]
        %v2034 = vld [vmem:[%s267 + $0x27a] sm:$0xff]
        %v2035 = vld [vmem:[%s267 + $0x282] sm:$0xff]
        %v2036 = vld [vmem:[%s267 + $0x2b2] sm:$0xff]
        %v2037 = vld [vmem:[%s267 + $0x2ba] sm:$0xff]
        %v2038 = vld [vmem:[%s267 + $0x2ea] sm:$0xff]
        %v2039 = vld [vmem:[%s267 + $0x2f2] sm:$0xff]
        %v2040 = vld [vmem:[%s267 + $0x322] sm:$0xff]
        %v2041 = vld [vmem:[%s267 + $0x32a] sm:$0xff]
        %v2042 = vld [vmem:[%s267 + $0x35a] sm:$0xff]
        %v2043 = vld [vmem:[%s267 + $0x362] sm:$0xff]
        %v2044 = vld [vmem:[%s267 + $0x18] sm:$0xff]
        %v2045 = vld [vmem:[%s267 + $0x20] sm:$0xff]
        %v2046 = vld [vmem:[%s267 + $0x50] sm:$0xff]
        %v2047 = vld [vmem:[%s267 + $0x58] sm:$0xff]
        %v2048 = vld [vmem:[%s267 + $0x88] sm:$0xff]
        %v2049 = vld [vmem:[%s267 + $0x90] sm:$0xff]
        %v2050 = vld [vmem:[%s267 + $0xc0] sm:$0xff]
        %v2051 = vld [vmem:[%s267 + $0xc8] sm:$0xff]
        %v2052 = vld [vmem:[%s267 + $0xf8] sm:$0xff]
        %v2053 = vld [vmem:[%s267 + $0x100] sm:$0xff]
        %v2054 = vld [vmem:[%s267 + $0x130] sm:$0xff]
        %v2055 = vld [vmem:[%s267 + $0x138] sm:$0xff]
        %v2056 = vld [vmem:[%s267 + $0x168] sm:$0xff]
        %v2057 = vld [vmem:[%s267 + $0x170] sm:$0xff]
        %v2058 = vld [vmem:[%s267 + $0x1a0] sm:$0xff]
        %v2059 = vld [vmem:[%s267 + $0x1a8] sm:$0xff]
        %v2060 = vld [vmem:[%s267 + $0x1d8] sm:$0xff]
        %v2061 = vld [vmem:[%s267 + $0x1e0] sm:$0xff]
        %v2062 = vld [vmem:[%s267 + $0x210] sm:$0xff]
        %v2063 = vld [vmem:[%s267 + $0x218] sm:$0xff]
        %v2064 = vld [vmem:[%s267 + $0x248] sm:$0xff]
        %v2065 = vld [vmem:[%s267 + $0x250] sm:$0xff]
        %v2066 = vld [vmem:[%s267 + $0x280] sm:$0xff]
        %v2067 = vld [vmem:[%s267 + $0x288] sm:$0xff]
        %v2068 = vld [vmem:[%s267 + $0x2b8] sm:$0xff]
        %v2069 = vld [vmem:[%s267 + $0x2c0] sm:$0xff]
        %v2070 = vld [vmem:[%s267 + $0x2f0] sm:$0xff]
        %v2071 = vld [vmem:[%s267 + $0x2f8] sm:$0xff]
        %v2072 = vld [vmem:[%s267 + $0x328] sm:$0xff]
        %v2073 = vld [vmem:[%s267 + $0x330] sm:$0xff]
        %v2074 = vld [vmem:[%s267 + $0x360] sm:$0xff]
        %v2075 = vld [vmem:[%s267 + $0x368] sm:$0xff]
        %s2076 = scalar_lea.vmem %s168, 1344
        %v2077 = vld [vmem:[%s2076 + $0xc] sm:$0xff]
        %v2078 = vld [vmem:[%s2076 + $0x14] sm:$0xff]
        %v2079 = vld [vmem:[%s2076 + $0x44] sm:$0xff]
        %v2080 = vld [vmem:[%s2076 + $0x4c] sm:$0xff]
        %v2081 = vld [vmem:[%s2076 + $0x7c] sm:$0xff]
        %v2082 = vld [vmem:[%s2076 + $0x84] sm:$0xff]
        %v2083 = vld [vmem:[%s2076 + $0xb4] sm:$0xff]
        %v2084 = vld [vmem:[%s2076 + $0xbc] sm:$0xff]
        %v2085 = vld [vmem:[%s2076 + $0xec] sm:$0xff]
        %v2086 = vld [vmem:[%s2076 + $0xf4] sm:$0xff]
        %v2087 = vld [vmem:[%s2076 + $0x124] sm:$0xff]
        %v2088 = vld [vmem:[%s2076 + $0x12c] sm:$0xff]
        %v2089 = vld [vmem:[%s2076 + $0x15c] sm:$0xff]
        %v2090 = vld [vmem:[%s2076 + $0x164] sm:$0xff]
        %v2091 = vld [vmem:[%s2076 + $0x194] sm:$0xff]
        %v2092 = vld [vmem:[%s2076 + $0x19c] sm:$0xff]
        %v2093 = vld [vmem:[%s2076 + $0x1cc] sm:$0xff]
        %v2094 = vld [vmem:[%s2076 + $0x1d4] sm:$0xff]
        %v2095 = vld [vmem:[%s2076 + $0x204] sm:$0xff]
        %v2096 = vld [vmem:[%s2076 + $0x20c] sm:$0xff]
        %v2097 = vld [vmem:[%s2076 + $0x23c] sm:$0xff]
        %v2098 = vld [vmem:[%s2076 + $0x244] sm:$0xff]
        %v2099 = vld [vmem:[%s2076 + $0x274] sm:$0xff]
        %v2100 = vld [vmem:[%s2076 + $0x27c] sm:$0xff]
        %v2101 = vld [vmem:[%s2076 + $0x2ac] sm:$0xff]
        %v2102 = vld [vmem:[%s2076 + $0x2b4] sm:$0xff]
        %v2103 = vld [vmem:[%s2076 + $0x2e4] sm:$0xff]
        %v2104 = vld [vmem:[%s2076 + $0x2ec] sm:$0xff]
        %v2105 = vld [vmem:[%s2076 + $0x31c] sm:$0xff]
        %v2106 = vld [vmem:[%s2076 + $0x324] sm:$0xff]
        %v2107 = vld [vmem:[%s2076 + $0x354] sm:$0xff]
        %v2108 = vld [vmem:[%s2076 + $0x35c] sm:$0xff]
        %v2109 = vld [vmem:[%s2076 + $0x12] sm:$0xff]
        %v2110 = vld [vmem:[%s2076 + $0x1a] sm:$0xff]
        %v2111 = vld [vmem:[%s2076 + $0x4a] sm:$0xff]
        %v2112 = vld [vmem:[%s2076 + $0x52] sm:$0xff]
        %v2113 = vld [vmem:[%s2076 + $0x82] sm:$0xff]
        %v2114 = vld [vmem:[%s2076 + $0x8a] sm:$0xff]
        %v2115 = vld [vmem:[%s2076 + $0xba] sm:$0xff]
        %v2116 = vld [vmem:[%s2076 + $0xc2] sm:$0xff]
        %v2117 = vld [vmem:[%s2076 + $0xf2] sm:$0xff]
        %v2118 = vld [vmem:[%s2076 + $0xfa] sm:$0xff]
        %v2119 = vld [vmem:[%s2076 + $0x12a] sm:$0xff]
        %v2120 = vld [vmem:[%s2076 + $0x132] sm:$0xff]
        %v2121 = vld [vmem:[%s2076 + $0x162] sm:$0xff]
        %v2122 = vld [vmem:[%s2076 + $0x16a] sm:$0xff]
        %v2123 = vld [vmem:[%s2076 + $0x19a] sm:$0xff]
        %v2124 = vld [vmem:[%s2076 + $0x1a2] sm:$0xff]
        %v2125 = vld [vmem:[%s2076 + $0x1d2] sm:$0xff]
        %v2126 = vld [vmem:[%s2076 + $0x1da] sm:$0xff]
        %v2127 = vld [vmem:[%s2076 + $0x20a] sm:$0xff]
        %v2128 = vld [vmem:[%s2076 + $0x212] sm:$0xff]
        %v2129 = vld [vmem:[%s2076 + $0x242] sm:$0xff]
        %v2130 = vld [vmem:[%s2076 + $0x24a] sm:$0xff]
        %v2131 = vld [vmem:[%s2076 + $0x27a] sm:$0xff]
        %v2132 = vld [vmem:[%s2076 + $0x282] sm:$0xff]
        %v2133 = vld [vmem:[%s2076 + $0x2b2] sm:$0xff]
        %v2134 = vld [vmem:[%s2076 + $0x2ba] sm:$0xff]
        %v2135 = vld [vmem:[%s2076 + $0x2ea] sm:$0xff]
        %v2136 = vld [vmem:[%s2076 + $0x2f2] sm:$0xff]
        %v2137 = vld [vmem:[%s2076 + $0x322] sm:$0xff]
        %v2138 = vld [vmem:[%s2076 + $0x32a] sm:$0xff]
        %v2139 = vld [vmem:[%s2076 + $0x35a] sm:$0xff]
        %v2140 = vld [vmem:[%s2076 + $0x362] sm:$0xff]
        %v2141 = vld [vmem:[%s2076 + $0x18] sm:$0xff]
        %v2142 = vld [vmem:[%s2076 + $0x20] sm:$0xff]
        %v2143 = vld [vmem:[%s2076 + $0x50] sm:$0xff]
        %v2144 = vld [vmem:[%s2076 + $0x58] sm:$0xff]
        %v2145 = vld [vmem:[%s2076 + $0x88] sm:$0xff]
        %v2146 = vld [vmem:[%s2076 + $0x90] sm:$0xff]
        %v2147 = vld [vmem:[%s2076 + $0xc0] sm:$0xff]
        %v2148 = vld [vmem:[%s2076 + $0xc8] sm:$0xff]
        %v2149 = vld [vmem:[%s2076 + $0xf8] sm:$0xff]
        %v2150 = vld [vmem:[%s2076 + $0x100] sm:$0xff]
        %v2151 = vld [vmem:[%s2076 + $0x130] sm:$0xff]
        %v2152 = vld [vmem:[%s2076 + $0x138] sm:$0xff]
        %v2153 = vld [vmem:[%s2076 + $0x168] sm:$0xff]
        %v2154 = vld [vmem:[%s2076 + $0x170] sm:$0xff]
        %v2155 = vld [vmem:[%s2076 + $0x1a0] sm:$0xff]
        %v2156 = vld [vmem:[%s2076 + $0x1a8] sm:$0xff]
        %v2157 = vld [vmem:[%s2076 + $0x1d8] sm:$0xff]
        %v2158 = vld [vmem:[%s2076 + $0x1e0] sm:$0xff]
        %v2159 = vld [vmem:[%s2076 + $0x210] sm:$0xff]
        %v2160 = vld [vmem:[%s2076 + $0x218] sm:$0xff]
        %v2161 = vld [vmem:[%s2076 + $0x248] sm:$0xff]
        %v2162 = vld [vmem:[%s2076 + $0x250] sm:$0xff]
        %v2163 = vld [vmem:[%s2076 + $0x280] sm:$0xff]
        %v2164 = vld [vmem:[%s2076 + $0x288] sm:$0xff]
        %v2165 = vld [vmem:[%s2076 + $0x2b8] sm:$0xff]
        %v2166 = vld [vmem:[%s2076 + $0x2c0] sm:$0xff]
        %v2167 = vld [vmem:[%s2076 + $0x2f0] sm:$0xff]
        %v2168 = vld [vmem:[%s2076 + $0x2f8] sm:$0xff]
        %v2169 = vld [vmem:[%s2076 + $0x328] sm:$0xff]
        %v2170 = vld [vmem:[%s2076 + $0x330] sm:$0xff]
        %v2171 = vld [vmem:[%s2076 + $0x360] sm:$0xff]
        %v2172 = vld [vmem:[%s2076 + $0x368] sm:$0xff]
        %2205 = vrot.lane.b32.xlu0 %v1916, 8
        %v2206 = vpop.permute.xlu0 %2205
        %2207 = vrot.lane.b32.xlu0 %v1917, 8
        %v2208 = vpop.permute.xlu0 %2207
        %2209 = vrot.lane.b32.xlu0 %v1918, 8
        %v2210 = vpop.permute.xlu0 %2209
        %2211 = vrot.lane.b32.xlu0 %v1919, 8
        %v2212 = vpop.permute.xlu0 %2211
        %2213 = vrot.lane.b32.xlu0 %v1920, 8
        %v2214 = vpop.permute.xlu0 %2213
        %2215 = vrot.lane.b32.xlu0 %v1921, 8
        %v2216 = vpop.permute.xlu0 %2215
        %2217 = vrot.lane.b32.xlu0 %v1922, 8
        %v2218 = vpop.permute.xlu0 %2217
        %2219 = vrot.lane.b32.xlu0 %v1923, 8
        %v2220 = vpop.permute.xlu0 %2219
        %2221 = vrot.lane.b32.xlu0 %v1924, 8
        %v2222 = vpop.permute.xlu0 %2221
        %2223 = vrot.lane.b32.xlu0 %v1925, 8
        %v2224 = vpop.permute.xlu0 %2223
        %2225 = vrot.lane.b32.xlu0 %v1926, 8
        %v2226 = vpop.permute.xlu0 %2225
        %2227 = vrot.lane.b32.xlu0 %v1927, 8
        %v2228 = vpop.permute.xlu0 %2227
        %2229 = vrot.lane.b32.xlu0 %v1928, 8
        %v2230 = vpop.permute.xlu0 %2229
        %2231 = vrot.lane.b32.xlu0 %v1929, 8
        %v2232 = vpop.permute.xlu0 %2231
        %2233 = vrot.lane.b32.xlu0 %v1930, 8
        %v2234 = vpop.permute.xlu0 %2233
        %2235 = vrot.lane.b32.xlu0 %v1931, 8
        %v2236 = vpop.permute.xlu0 %2235
        %2237 = vrot.lane.b32.xlu0 %v1932, 8
        %v2238 = vpop.permute.xlu0 %2237
        %2239 = vrot.lane.b32.xlu0 %v1933, 8
        %v2240 = vpop.permute.xlu0 %2239
        %2241 = vrot.lane.b32.xlu0 %v1934, 8
        %v2242 = vpop.permute.xlu0 %2241
        %2243 = vrot.lane.b32.xlu0 %v1935, 8
        %v2244 = vpop.permute.xlu0 %2243
        %2245 = vrot.lane.b32.xlu0 %v1936, 8
        %v2246 = vpop.permute.xlu0 %2245
        %2247 = vrot.lane.b32.xlu0 %v1937, 8
        %v2248 = vpop.permute.xlu0 %2247
        %2249 = vrot.lane.b32.xlu0 %v1938, 8
        %v2250 = vpop.permute.xlu0 %2249
        %2251 = vrot.lane.b32.xlu0 %v1939, 8
        %v2252 = vpop.permute.xlu0 %2251
        %2253 = vrot.lane.b32.xlu0 %v1940, 8
        %v2254 = vpop.permute.xlu0 %2253
        %2255 = vrot.lane.b32.xlu0 %v1941, 8
        %v2256 = vpop.permute.xlu0 %2255
        %2257 = vrot.lane.b32.xlu0 %v1942, 8
        %v2258 = vpop.permute.xlu0 %2257
        %2259 = vrot.lane.b32.xlu0 %v1943, 8
        %v2260 = vpop.permute.xlu0 %2259
        %2261 = vrot.lane.b32.xlu0 %v1944, 8
        %v2262 = vpop.permute.xlu0 %2261
        %2263 = vrot.lane.b32.xlu0 %v1945, 8
        %v2264 = vpop.permute.xlu0 %2263
        %2265 = vrot.lane.b32.xlu0 %v1946, 8
        %v2266 = vpop.permute.xlu0 %2265
        %2267 = vrot.lane.b32.xlu0 %v1947, 8
        %v2268 = vpop.permute.xlu0 %2267
        %2333 = vrot.lane.b32.xlu0 %v1948, 16
        %v2334 = vpop.permute.xlu0 %2333
        %2335 = vrot.lane.b32.xlu0 %v1949, 16
        %v2336 = vpop.permute.xlu0 %2335
        %2337 = vrot.lane.b32.xlu0 %v1950, 16
        %v2338 = vpop.permute.xlu0 %2337
        %2339 = vrot.lane.b32.xlu0 %v1951, 16
        %v2340 = vpop.permute.xlu0 %2339
        %2341 = vrot.lane.b32.xlu0 %v1952, 16
        %v2342 = vpop.permute.xlu0 %2341
        %2343 = vrot.lane.b32.xlu0 %v1953, 16
        %v2344 = vpop.permute.xlu0 %2343
        %2345 = vrot.lane.b32.xlu0 %v1954, 16
        %v2346 = vpop.permute.xlu0 %2345
        %2347 = vrot.lane.b32.xlu0 %v1955, 16
        %v2348 = vpop.permute.xlu0 %2347
        %2349 = vrot.lane.b32.xlu0 %v1956, 16
        %v2350 = vpop.permute.xlu0 %2349
        %2351 = vrot.lane.b32.xlu0 %v1957, 16
        %v2352 = vpop.permute.xlu0 %2351
        %2353 = vrot.lane.b32.xlu0 %v1958, 16
        %v2354 = vpop.permute.xlu0 %2353
        %2355 = vrot.lane.b32.xlu0 %v1959, 16
        %v2356 = vpop.permute.xlu0 %2355
        %2357 = vrot.lane.b32.xlu0 %v1960, 16
        %v2358 = vpop.permute.xlu0 %2357
        %2359 = vrot.lane.b32.xlu0 %v1961, 16
        %v2360 = vpop.permute.xlu0 %2359
        %2361 = vrot.lane.b32.xlu0 %v1962, 16
        %v2362 = vpop.permute.xlu0 %2361
        %2363 = vrot.lane.b32.xlu0 %v1963, 16
        %v2364 = vpop.permute.xlu0 %2363
        %2365 = vrot.lane.b32.xlu0 %v1964, 16
        %v2366 = vpop.permute.xlu0 %2365
        %2367 = vrot.lane.b32.xlu0 %v1965, 16
        %v2368 = vpop.permute.xlu0 %2367
        %2369 = vrot.lane.b32.xlu0 %v1966, 16
        %v2370 = vpop.permute.xlu0 %2369
        %2371 = vrot.lane.b32.xlu0 %v1967, 16
        %v2372 = vpop.permute.xlu0 %2371
        %2373 = vrot.lane.b32.xlu0 %v1968, 16
        %v2374 = vpop.permute.xlu0 %2373
        %2375 = vrot.lane.b32.xlu0 %v1969, 16
        %v2376 = vpop.permute.xlu0 %2375
        %2377 = vrot.lane.b32.xlu0 %v1970, 16
        %v2378 = vpop.permute.xlu0 %2377
        %2379 = vrot.lane.b32.xlu0 %v1971, 16
        %v2380 = vpop.permute.xlu0 %2379
        %2381 = vrot.lane.b32.xlu0 %v1972, 16
        %v2382 = vpop.permute.xlu0 %2381
        %2383 = vrot.lane.b32.xlu0 %v1973, 16
        %v2384 = vpop.permute.xlu0 %2383
        %2385 = vrot.lane.b32.xlu0 %v1974, 16
        %v2386 = vpop.permute.xlu0 %2385
        %2387 = vrot.lane.b32.xlu0 %v1975, 16
        %v2388 = vpop.permute.xlu0 %2387
        %2389 = vrot.lane.b32.xlu0 %v1976, 16
        %v2390 = vpop.permute.xlu0 %2389
        %2391 = vrot.lane.b32.xlu0 %v1977, 16
        %v2392 = vpop.permute.xlu0 %2391
        %2393 = vrot.lane.b32.xlu0 %v1978, 16
        %v2394 = vpop.permute.xlu0 %2393
        %2395 = vrot.lane.b32.xlu0 %v1979, 16
        %v2396 = vpop.permute.xlu0 %2395
        %2461 = vrot.lane.b32.xlu0 %v1980, 24
        %v2462 = vpop.permute.xlu0 %2461
        %2463 = vrot.lane.b32.xlu0 %v1981, 24
        %v2464 = vpop.permute.xlu0 %2463
        %2465 = vrot.lane.b32.xlu0 %v1982, 24
        %v2466 = vpop.permute.xlu0 %2465
        %2467 = vrot.lane.b32.xlu0 %v1983, 24
        %v2468 = vpop.permute.xlu0 %2467
        %2469 = vrot.lane.b32.xlu0 %v1984, 24
        %v2470 = vpop.permute.xlu0 %2469
        %2471 = vrot.lane.b32.xlu0 %v1985, 24
        %v2472 = vpop.permute.xlu0 %2471
        %2473 = vrot.lane.b32.xlu0 %v1986, 24
        %v2474 = vpop.permute.xlu0 %2473
        %2475 = vrot.lane.b32.xlu0 %v1987, 24
        %v2476 = vpop.permute.xlu0 %2475
        %2477 = vrot.lane.b32.xlu0 %v1988, 24
        %v2478 = vpop.permute.xlu0 %2477
        %2479 = vrot.lane.b32.xlu0 %v1989, 24
        %v2480 = vpop.permute.xlu0 %2479
        %2481 = vrot.lane.b32.xlu0 %v1990, 24
        %v2482 = vpop.permute.xlu0 %2481
        %2483 = vrot.lane.b32.xlu0 %v1991, 24
        %v2484 = vpop.permute.xlu0 %2483
        %2485 = vrot.lane.b32.xlu0 %v1992, 24
        %v2486 = vpop.permute.xlu0 %2485
        %2487 = vrot.lane.b32.xlu0 %v1993, 24
        %v2488 = vpop.permute.xlu0 %2487
        %2489 = vrot.lane.b32.xlu0 %v1994, 24
        %v2490 = vpop.permute.xlu0 %2489
        %2491 = vrot.lane.b32.xlu0 %v1995, 24
        %v2492 = vpop.permute.xlu0 %2491
        %2493 = vrot.lane.b32.xlu0 %v1996, 24
        %v2494 = vpop.permute.xlu0 %2493
        %2495 = vrot.lane.b32.xlu0 %v1997, 24
        %v2496 = vpop.permute.xlu0 %2495
        %2497 = vrot.lane.b32.xlu0 %v1998, 24
        %v2498 = vpop.permute.xlu0 %2497
        %2499 = vrot.lane.b32.xlu0 %v1999, 24
        %v2500 = vpop.permute.xlu0 %2499
        %2501 = vrot.lane.b32.xlu0 %v2000, 24
        %v2502 = vpop.permute.xlu0 %2501
        %2503 = vrot.lane.b32.xlu0 %v2001, 24
        %v2504 = vpop.permute.xlu0 %2503
        %2505 = vrot.lane.b32.xlu0 %v2002, 24
        %v2506 = vpop.permute.xlu0 %2505
        %2507 = vrot.lane.b32.xlu0 %v2003, 24
        %v2508 = vpop.permute.xlu0 %2507
        %2509 = vrot.lane.b32.xlu0 %v2004, 24
        %v2510 = vpop.permute.xlu0 %2509
        %2511 = vrot.lane.b32.xlu0 %v2005, 24
        %v2512 = vpop.permute.xlu0 %2511
        %2513 = vrot.lane.b32.xlu0 %v2006, 24
        %v2514 = vpop.permute.xlu0 %2513
        %2515 = vrot.lane.b32.xlu0 %v2007, 24
        %v2516 = vpop.permute.xlu0 %2515
        %2517 = vrot.lane.b32.xlu0 %v2008, 24
        %v2518 = vpop.permute.xlu0 %2517
        %2519 = vrot.lane.b32.xlu0 %v2009, 24
        %v2520 = vpop.permute.xlu0 %2519
        %2521 = vrot.lane.b32.xlu0 %v2010, 24
        %v2522 = vpop.permute.xlu0 %2521
        %2523 = vrot.lane.b32.xlu0 %v2011, 24
        %v2524 = vpop.permute.xlu0 %2523
        %2589 = vrot.lane.b32.xlu0 %v2012, 32
        %v2590 = vpop.permute.xlu0 %2589
        %2591 = vrot.lane.b32.xlu0 %v2013, 32
        %v2592 = vpop.permute.xlu0 %2591
        %2593 = vrot.lane.b32.xlu0 %v2014, 32
        %v2594 = vpop.permute.xlu0 %2593
        %2595 = vrot.lane.b32.xlu0 %v2015, 32
        %v2596 = vpop.permute.xlu0 %2595
        %2597 = vrot.lane.b32.xlu0 %v2016, 32
        %v2598 = vpop.permute.xlu0 %2597
        %2599 = vrot.lane.b32.xlu0 %v2017, 32
        %v2600 = vpop.permute.xlu0 %2599
        %2601 = vrot.lane.b32.xlu0 %v2018, 32
        %v2602 = vpop.permute.xlu0 %2601
        %2603 = vrot.lane.b32.xlu0 %v2019, 32
        %v2604 = vpop.permute.xlu0 %2603
        %2605 = vrot.lane.b32.xlu0 %v2020, 32
        %v2606 = vpop.permute.xlu0 %2605
        %2607 = vrot.lane.b32.xlu0 %v2021, 32
        %v2608 = vpop.permute.xlu0 %2607
        %2609 = vrot.lane.b32.xlu0 %v2022, 32
        %v2610 = vpop.permute.xlu0 %2609
        %2611 = vrot.lane.b32.xlu0 %v2023, 32
        %v2612 = vpop.permute.xlu0 %2611
        %2613 = vrot.lane.b32.xlu0 %v2024, 32
        %v2614 = vpop.permute.xlu0 %2613
        %2615 = vrot.lane.b32.xlu0 %v2025, 32
        %v2616 = vpop.permute.xlu0 %2615
        %2617 = vrot.lane.b32.xlu0 %v2026, 32
        %v2618 = vpop.permute.xlu0 %2617
        %2619 = vrot.lane.b32.xlu0 %v2027, 32
        %v2620 = vpop.permute.xlu0 %2619
        %2621 = vrot.lane.b32.xlu0 %v2028, 32
        %v2622 = vpop.permute.xlu0 %2621
        %2623 = vrot.lane.b32.xlu0 %v2029, 32
        %v2624 = vpop.permute.xlu0 %2623
        %2625 = vrot.lane.b32.xlu0 %v2030, 32
        %v2626 = vpop.permute.xlu0 %2625
        %2627 = vrot.lane.b32.xlu0 %v2031, 32
        %v2628 = vpop.permute.xlu0 %2627
        %2629 = vrot.lane.b32.xlu0 %v2032, 32
        %v2630 = vpop.permute.xlu0 %2629
        %2631 = vrot.lane.b32.xlu0 %v2033, 32
        %v2632 = vpop.permute.xlu0 %2631
        %2633 = vrot.lane.b32.xlu0 %v2034, 32
        %v2634 = vpop.permute.xlu0 %2633
        %2635 = vrot.lane.b32.xlu0 %v2035, 32
        %v2636 = vpop.permute.xlu0 %2635
        %2637 = vrot.lane.b32.xlu0 %v2036, 32
        %v2638 = vpop.permute.xlu0 %2637
        %2639 = vrot.lane.b32.xlu0 %v2037, 32
        %v2640 = vpop.permute.xlu0 %2639
        %2641 = vrot.lane.b32.xlu0 %v2038, 32
        %v2642 = vpop.permute.xlu0 %2641
        %2643 = vrot.lane.b32.xlu0 %v2039, 32
        %v2644 = vpop.permute.xlu0 %2643
        %2645 = vrot.lane.b32.xlu0 %v2040, 32
        %v2646 = vpop.permute.xlu0 %2645
        %2647 = vrot.lane.b32.xlu0 %v2041, 32
        %v2648 = vpop.permute.xlu0 %2647
        %2649 = vrot.lane.b32.xlu0 %v2042, 32
        %v2650 = vpop.permute.xlu0 %2649
        %2651 = vrot.lane.b32.xlu0 %v2043, 32
        %v2652 = vpop.permute.xlu0 %2651
        %2717 = vrot.lane.b32.xlu0 %v2044, 40
        %v2718 = vpop.permute.xlu0 %2717
        %2719 = vrot.lane.b32.xlu0 %v2045, 40
        %v2720 = vpop.permute.xlu0 %2719
        %2721 = vrot.lane.b32.xlu0 %v2046, 40
        %v2722 = vpop.permute.xlu0 %2721
        %2723 = vrot.lane.b32.xlu0 %v2047, 40
        %v2724 = vpop.permute.xlu0 %2723
        %2725 = vrot.lane.b32.xlu0 %v2048, 40
        %v2726 = vpop.permute.xlu0 %2725
        %2727 = vrot.lane.b32.xlu0 %v2049, 40
        %v2728 = vpop.permute.xlu0 %2727
        %2729 = vrot.lane.b32.xlu0 %v2050, 40
        %v2730 = vpop.permute.xlu0 %2729
        %2731 = vrot.lane.b32.xlu0 %v2051, 40
        %v2732 = vpop.permute.xlu0 %2731
        %2733 = vrot.lane.b32.xlu0 %v2052, 40
        %v2734 = vpop.permute.xlu0 %2733
        %2735 = vrot.lane.b32.xlu0 %v2053, 40
        %v2736 = vpop.permute.xlu0 %2735
        %2737 = vrot.lane.b32.xlu0 %v2054, 40
        %v2738 = vpop.permute.xlu0 %2737
        %2739 = vrot.lane.b32.xlu0 %v2055, 40
        %v2740 = vpop.permute.xlu0 %2739
        %2741 = vrot.lane.b32.xlu0 %v2056, 40
        %v2742 = vpop.permute.xlu0 %2741
        %2743 = vrot.lane.b32.xlu0 %v2057, 40
        %v2744 = vpop.permute.xlu0 %2743
        %2745 = vrot.lane.b32.xlu0 %v2058, 40
        %v2746 = vpop.permute.xlu0 %2745
        %2747 = vrot.lane.b32.xlu0 %v2059, 40
        %v2748 = vpop.permute.xlu0 %2747
        %2749 = vrot.lane.b32.xlu0 %v2060, 40
        %v2750 = vpop.permute.xlu0 %2749
        %2751 = vrot.lane.b32.xlu0 %v2061, 40
        %v2752 = vpop.permute.xlu0 %2751
        %2753 = vrot.lane.b32.xlu0 %v2062, 40
        %v2754 = vpop.permute.xlu0 %2753
        %2755 = vrot.lane.b32.xlu0 %v2063, 40
        %v2756 = vpop.permute.xlu0 %2755
        %2757 = vrot.lane.b32.xlu0 %v2064, 40
        %v2758 = vpop.permute.xlu0 %2757
        %2759 = vrot.lane.b32.xlu0 %v2065, 40
        %v2760 = vpop.permute.xlu0 %2759
        %2761 = vrot.lane.b32.xlu0 %v2066, 40
        %v2762 = vpop.permute.xlu0 %2761
        %2763 = vrot.lane.b32.xlu0 %v2067, 40
        %v2764 = vpop.permute.xlu0 %2763
        %2765 = vrot.lane.b32.xlu0 %v2068, 40
        %v2766 = vpop.permute.xlu0 %2765
        %2767 = vrot.lane.b32.xlu0 %v2069, 40
        %v2768 = vpop.permute.xlu0 %2767
        %2769 = vrot.lane.b32.xlu0 %v2070, 40
        %v2770 = vpop.permute.xlu0 %2769
        %2771 = vrot.lane.b32.xlu0 %v2071, 40
        %v2772 = vpop.permute.xlu0 %2771
        %2773 = vrot.lane.b32.xlu0 %v2072, 40
        %v2774 = vpop.permute.xlu0 %2773
        %2775 = vrot.lane.b32.xlu0 %v2073, 40
        %v2776 = vpop.permute.xlu0 %2775
        %2777 = vrot.lane.b32.xlu0 %v2074, 40
        %v2778 = vpop.permute.xlu0 %2777
        %2779 = vrot.lane.b32.xlu0 %v2075, 40
        %v2780 = vpop.permute.xlu0 %2779
        %2845 = vrot.lane.b32.xlu0 %v2077, 48
        %v2846 = vpop.permute.xlu0 %2845
        %2847 = vrot.lane.b32.xlu0 %v2078, 48
        %v2848 = vpop.permute.xlu0 %2847
        %2849 = vrot.lane.b32.xlu0 %v2079, 48
        %v2850 = vpop.permute.xlu0 %2849
        %2851 = vrot.lane.b32.xlu0 %v2080, 48
        %v2852 = vpop.permute.xlu0 %2851
        %2853 = vrot.lane.b32.xlu0 %v2081, 48
        %v2854 = vpop.permute.xlu0 %2853
        %2855 = vrot.lane.b32.xlu0 %v2082, 48
        %v2856 = vpop.permute.xlu0 %2855
        %2857 = vrot.lane.b32.xlu0 %v2083, 48
        %v2858 = vpop.permute.xlu0 %2857
        %2859 = vrot.lane.b32.xlu0 %v2084, 48
        %v2860 = vpop.permute.xlu0 %2859
        %2861 = vrot.lane.b32.xlu0 %v2085, 48
        %v2862 = vpop.permute.xlu0 %2861
        %2863 = vrot.lane.b32.xlu0 %v2086, 48
        %v2864 = vpop.permute.xlu0 %2863
        %2865 = vrot.lane.b32.xlu0 %v2087, 48
        %v2866 = vpop.permute.xlu0 %2865
        %2867 = vrot.lane.b32.xlu0 %v2088, 48
        %v2868 = vpop.permute.xlu0 %2867
        %2869 = vrot.lane.b32.xlu0 %v2089, 48
        %v2870 = vpop.permute.xlu0 %2869
        %2871 = vrot.lane.b32.xlu0 %v2090, 48
        %v2872 = vpop.permute.xlu0 %2871
        %2873 = vrot.lane.b32.xlu0 %v2091, 48
        %v2874 = vpop.permute.xlu0 %2873
        %2875 = vrot.lane.b32.xlu0 %v2092, 48
        %v2876 = vpop.permute.xlu0 %2875
        %2877 = vrot.lane.b32.xlu0 %v2093, 48
        %v2878 = vpop.permute.xlu0 %2877
        %2879 = vrot.lane.b32.xlu0 %v2094, 48
        %v2880 = vpop.permute.xlu0 %2879
        %2881 = vrot.lane.b32.xlu0 %v2095, 48
        %v2882 = vpop.permute.xlu0 %2881
        %2883 = vrot.lane.b32.xlu0 %v2096, 48
        %v2884 = vpop.permute.xlu0 %2883
        %2885 = vrot.lane.b32.xlu0 %v2097, 48
        %v2886 = vpop.permute.xlu0 %2885
        %2887 = vrot.lane.b32.xlu0 %v2098, 48
        %v2888 = vpop.permute.xlu0 %2887
        %2889 = vrot.lane.b32.xlu0 %v2099, 48
        %v2890 = vpop.permute.xlu0 %2889
        %2891 = vrot.lane.b32.xlu0 %v2100, 48
        %v2892 = vpop.permute.xlu0 %2891
        %2893 = vrot.lane.b32.xlu0 %v2101, 48
        %v2894 = vpop.permute.xlu0 %2893
        %2895 = vrot.lane.b32.xlu0 %v2102, 48
        %v2896 = vpop.permute.xlu0 %2895
        %2897 = vrot.lane.b32.xlu0 %v2103, 48
        %v2898 = vpop.permute.xlu0 %2897
        %2899 = vrot.lane.b32.xlu0 %v2104, 48
        %v2900 = vpop.permute.xlu0 %2899
        %2901 = vrot.lane.b32.xlu0 %v2105, 48
        %v2902 = vpop.permute.xlu0 %2901
        %2903 = vrot.lane.b32.xlu0 %v2106, 48
        %v2904 = vpop.permute.xlu0 %2903
        %2905 = vrot.lane.b32.xlu0 %v2107, 48
        %v2906 = vpop.permute.xlu0 %2905
        %2907 = vrot.lane.b32.xlu0 %v2108, 48
        %v2908 = vpop.permute.xlu0 %2907
        %2973 = vrot.lane.b32.xlu0 %v2109, 56
        %v2974 = vpop.permute.xlu0 %2973
        %2975 = vrot.lane.b32.xlu0 %v2110, 56
        %v2976 = vpop.permute.xlu0 %2975
        %2977 = vrot.lane.b32.xlu0 %v2111, 56
        %v2978 = vpop.permute.xlu0 %2977
        %2979 = vrot.lane.b32.xlu0 %v2112, 56
        %v2980 = vpop.permute.xlu0 %2979
        %2981 = vrot.lane.b32.xlu0 %v2113, 56
        %v2982 = vpop.permute.xlu0 %2981
        %2983 = vrot.lane.b32.xlu0 %v2114, 56
        %v2984 = vpop.permute.xlu0 %2983
        %2985 = vrot.lane.b32.xlu0 %v2115, 56
        %v2986 = vpop.permute.xlu0 %2985
        %2987 = vrot.lane.b32.xlu0 %v2116, 56
        %v2988 = vpop.permute.xlu0 %2987
        %2989 = vrot.lane.b32.xlu0 %v2117, 56
        %v2990 = vpop.permute.xlu0 %2989
        %2991 = vrot.lane.b32.xlu0 %v2118, 56
        %v2992 = vpop.permute.xlu0 %2991
        %2993 = vrot.lane.b32.xlu0 %v2119, 56
        %v2994 = vpop.permute.xlu0 %2993
        %2995 = vrot.lane.b32.xlu0 %v2120, 56
        %v2996 = vpop.permute.xlu0 %2995
        %2997 = vrot.lane.b32.xlu0 %v2121, 56
        %v2998 = vpop.permute.xlu0 %2997
        %2999 = vrot.lane.b32.xlu0 %v2122, 56
        %v3000 = vpop.permute.xlu0 %2999
        %3001 = vrot.lane.b32.xlu0 %v2123, 56
        %v3002 = vpop.permute.xlu0 %3001
        %3003 = vrot.lane.b32.xlu0 %v2124, 56
        %v3004 = vpop.permute.xlu0 %3003
        %3005 = vrot.lane.b32.xlu0 %v2125, 56
        %v3006 = vpop.permute.xlu0 %3005
        %3007 = vrot.lane.b32.xlu0 %v2126, 56
        %v3008 = vpop.permute.xlu0 %3007
        %3009 = vrot.lane.b32.xlu0 %v2127, 56
        %v3010 = vpop.permute.xlu0 %3009
        %3011 = vrot.lane.b32.xlu0 %v2128, 56
        %v3012 = vpop.permute.xlu0 %3011
        %3013 = vrot.lane.b32.xlu0 %v2129, 56
        %v3014 = vpop.permute.xlu0 %3013
        %3015 = vrot.lane.b32.xlu0 %v2130, 56
        %v3016 = vpop.permute.xlu0 %3015
        %3017 = vrot.lane.b32.xlu0 %v2131, 56
        %v3018 = vpop.permute.xlu0 %3017
        %3019 = vrot.lane.b32.xlu0 %v2132, 56
        %v3020 = vpop.permute.xlu0 %3019
        %3021 = vrot.lane.b32.xlu0 %v2133, 56
        %v3022 = vpop.permute.xlu0 %3021
        %3023 = vrot.lane.b32.xlu0 %v2134, 56
        %v3024 = vpop.permute.xlu0 %3023
        %3025 = vrot.lane.b32.xlu0 %v2135, 56
        %v3026 = vpop.permute.xlu0 %3025
        %3027 = vrot.lane.b32.xlu0 %v2136, 56
        %v3028 = vpop.permute.xlu0 %3027
        %3029 = vrot.lane.b32.xlu0 %v2137, 56
        %v3030 = vpop.permute.xlu0 %3029
        %3031 = vrot.lane.b32.xlu0 %v2138, 56
        %v3032 = vpop.permute.xlu0 %3031
        %3033 = vrot.lane.b32.xlu0 %v2139, 56
        %v3034 = vpop.permute.xlu0 %3033
        %3035 = vrot.lane.b32.xlu0 %v2140, 56
        %v3036 = vpop.permute.xlu0 %3035
        %3101 = vrot.lane.b32.xlu0 %v2141, 64
        %v3102 = vpop.permute.xlu0 %3101
        %3103 = vrot.lane.b32.xlu0 %v2142, 64
        %v3104 = vpop.permute.xlu0 %3103
        %3105 = vrot.lane.b32.xlu0 %v2143, 64
        %v3106 = vpop.permute.xlu0 %3105
        %3107 = vrot.lane.b32.xlu0 %v2144, 64
        %v3108 = vpop.permute.xlu0 %3107
        %3109 = vrot.lane.b32.xlu0 %v2145, 64
        %v3110 = vpop.permute.xlu0 %3109
        %3111 = vrot.lane.b32.xlu0 %v2146, 64
        %v3112 = vpop.permute.xlu0 %3111
        %3113 = vrot.lane.b32.xlu0 %v2147, 64
        %v3114 = vpop.permute.xlu0 %3113
        %3115 = vrot.lane.b32.xlu0 %v2148, 64
        %v3116 = vpop.permute.xlu0 %3115
        %3117 = vrot.lane.b32.xlu0 %v2149, 64
        %v3118 = vpop.permute.xlu0 %3117
        %3119 = vrot.lane.b32.xlu0 %v2150, 64
        %v3120 = vpop.permute.xlu0 %3119
        %3121 = vrot.lane.b32.xlu0 %v2151, 64
        %v3122 = vpop.permute.xlu0 %3121
        %3123 = vrot.lane.b32.xlu0 %v2152, 64
        %v3124 = vpop.permute.xlu0 %3123
        %3125 = vrot.lane.b32.xlu0 %v2153, 64
        %v3126 = vpop.permute.xlu0 %3125
        %3127 = vrot.lane.b32.xlu0 %v2154, 64
        %v3128 = vpop.permute.xlu0 %3127
        %3129 = vrot.lane.b32.xlu0 %v2155, 64
        %v3130 = vpop.permute.xlu0 %3129
        %3131 = vrot.lane.b32.xlu0 %v2156, 64
        %v3132 = vpop.permute.xlu0 %3131
        %3133 = vrot.lane.b32.xlu0 %v2157, 64
        %v3134 = vpop.permute.xlu0 %3133
        %3135 = vrot.lane.b32.xlu0 %v2158, 64
        %v3136 = vpop.permute.xlu0 %3135
        %3137 = vrot.lane.b32.xlu0 %v2159, 64
        %v3138 = vpop.permute.xlu0 %3137
        %3139 = vrot.lane.b32.xlu0 %v2160, 64
        %v3140 = vpop.permute.xlu0 %3139
        %3141 = vrot.lane.b32.xlu0 %v2161, 64
        %v3142 = vpop.permute.xlu0 %3141
        %3143 = vrot.lane.b32.xlu0 %v2162, 64
        %v3144 = vpop.permute.xlu0 %3143
        %3145 = vrot.lane.b32.xlu0 %v2163, 64
        %v3146 = vpop.permute.xlu0 %3145
        %3147 = vrot.lane.b32.xlu0 %v2164, 64
        %v3148 = vpop.permute.xlu0 %3147
        %3149 = vrot.lane.b32.xlu0 %v2165, 64
        %v3150 = vpop.permute.xlu0 %3149
        %3151 = vrot.lane.b32.xlu0 %v2166, 64
        %v3152 = vpop.permute.xlu0 %3151
        %3153 = vrot.lane.b32.xlu0 %v2167, 64
        %v3154 = vpop.permute.xlu0 %3153
        %3155 = vrot.lane.b32.xlu0 %v2168, 64
        %v3156 = vpop.permute.xlu0 %3155
        %3157 = vrot.lane.b32.xlu0 %v2169, 64
        %v3158 = vpop.permute.xlu0 %3157
        %3159 = vrot.lane.b32.xlu0 %v2170, 64
        %v3160 = vpop.permute.xlu0 %3159
        %3161 = vrot.lane.b32.xlu0 %v2171, 64
        %v3162 = vpop.permute.xlu0 %3161
        %3163 = vrot.lane.b32.xlu0 %v2172, 64
        %v3164 = vpop.permute.xlu0 %3163
        %v3197 = vsel %vm1485, %v1884, %v2206
        %v3198 = vsel %vm1485, %v1885, %v2208
        %v3199 = vsel %vm1485, %v1886, %v2210
        %v3200 = vsel %vm1485, %v1887, %v2212
        %v3201 = vsel %vm1485, %v1888, %v2214
        %v3202 = vsel %vm1485, %v1889, %v2216
        %v3203 = vsel %vm1485, %v1890, %v2218
        %v3204 = vsel %vm1485, %v1891, %v2220
        %v3205 = vsel %vm1485, %v1892, %v2222
        %v3206 = vsel %vm1485, %v1893, %v2224
        %v3207 = vsel %vm1485, %v1894, %v2226
        %v3208 = vsel %vm1485, %v1895, %v2228
        %v3209 = vsel %vm1485, %v1896, %v2230
        %v3210 = vsel %vm1485, %v1897, %v2232
        %v3211 = vsel %vm1485, %v1898, %v2234
        %v3212 = vsel %vm1485, %v1899, %v2236
        %v3213 = vsel %vm1485, %v1900, %v2238
        %v3214 = vsel %vm1485, %v1901, %v2240
        %v3215 = vsel %vm1485, %v1902, %v2242
        %v3216 = vsel %vm1485, %v1903, %v2244
        %v3217 = vsel %vm1485, %v1904, %v2246
        %v3218 = vsel %vm1485, %v1905, %v2248
        %v3219 = vsel %vm1485, %v1906, %v2250
        %v3220 = vsel %vm1485, %v1907, %v2252
        %v3221 = vsel %vm1485, %v1908, %v2254
        %v3222 = vsel %vm1485, %v1909, %v2256
        %v3223 = vsel %vm1485, %v1910, %v2258
        %v3224 = vsel %vm1485, %v1911, %v2260
        %v3225 = vsel %vm1485, %v1912, %v2262
        %v3226 = vsel %vm1485, %v1913, %v2264
        %v3227 = vsel %vm1485, %v1914, %v2266
        %v3228 = vsel %vm1485, %v1915, %v2268
        %v3229 = vsel %vm1518, %v3197, %v2334
        %v3230 = vsel %vm1518, %v3198, %v2336
        %v3231 = vsel %vm1518, %v3199, %v2338
        %v3232 = vsel %vm1518, %v3200, %v2340
        %v3233 = vsel %vm1518, %v3201, %v2342
        %v3234 = vsel %vm1518, %v3202, %v2344
        %v3235 = vsel %vm1518, %v3203, %v2346
        %v3236 = vsel %vm1518, %v3204, %v2348
        %v3237 = vsel %vm1518, %v3205, %v2350
        %v3238 = vsel %vm1518, %v3206, %v2352
        %v3239 = vsel %vm1518, %v3207, %v2354
        %v3240 = vsel %vm1518, %v3208, %v2356
        %v3241 = vsel %vm1518, %v3209, %v2358
        %v3242 = vsel %vm1518, %v3210, %v2360
        %v3243 = vsel %vm1518, %v3211, %v2362
        %v3244 = vsel %vm1518, %v3212, %v2364
        %v3245 = vsel %vm1518, %v3213, %v2366
        %v3246 = vsel %vm1518, %v3214, %v2368
        %v3247 = vsel %vm1518, %v3215, %v2370
        %v3248 = vsel %vm1518, %v3216, %v2372
        %v3249 = vsel %vm1518, %v3217, %v2374
        %v3250 = vsel %vm1518, %v3218, %v2376
        %v3251 = vsel %vm1518, %v3219, %v2378
        %v3252 = vsel %vm1518, %v3220, %v2380
        %v3253 = vsel %vm1518, %v3221, %v2382
        %v3254 = vsel %vm1518, %v3222, %v2384
        %v3255 = vsel %vm1518, %v3223, %v2386
        %v3256 = vsel %vm1518, %v3224, %v2388
        %v3257 = vsel %vm1518, %v3225, %v2390
        %v3258 = vsel %vm1518, %v3226, %v2392
        %v3259 = vsel %vm1518, %v3227, %v2394
        %v3260 = vsel %vm1518, %v3228, %v2396
        %v3261 = vsel %vm1551, %v3229, %v2462
        %v3262 = vsel %vm1551, %v3230, %v2464
        %v3263 = vsel %vm1551, %v3231, %v2466
        %v3264 = vsel %vm1551, %v3232, %v2468
        %v3265 = vsel %vm1551, %v3233, %v2470
        %v3266 = vsel %vm1551, %v3234, %v2472
        %v3267 = vsel %vm1551, %v3235, %v2474
        %v3268 = vsel %vm1551, %v3236, %v2476
        %v3269 = vsel %vm1551, %v3237, %v2478
        %v3270 = vsel %vm1551, %v3238, %v2480
        %v3271 = vsel %vm1551, %v3239, %v2482
        %v3272 = vsel %vm1551, %v3240, %v2484
        %v3273 = vsel %vm1551, %v3241, %v2486
        %v3274 = vsel %vm1551, %v3242, %v2488
        %v3275 = vsel %vm1551, %v3243, %v2490
        %v3276 = vsel %vm1551, %v3244, %v2492
        %v3277 = vsel %vm1551, %v3245, %v2494
        %v3278 = vsel %vm1551, %v3246, %v2496
        %v3279 = vsel %vm1551, %v3247, %v2498
        %v3280 = vsel %vm1551, %v3248, %v2500
        %v3281 = vsel %vm1551, %v3249, %v2502
        %v3282 = vsel %vm1551, %v3250, %v2504
        %v3283 = vsel %vm1551, %v3251, %v2506
        %v3284 = vsel %vm1551, %v3252, %v2508
        %v3285 = vsel %vm1551, %v3253, %v2510
        %v3286 = vsel %vm1551, %v3254, %v2512
        %v3287 = vsel %vm1551, %v3255, %v2514
        %v3288 = vsel %vm1551, %v3256, %v2516
        %v3289 = vsel %vm1551, %v3257, %v2518
        %v3290 = vsel %vm1551, %v3258, %v2520
        %v3291 = vsel %vm1551, %v3259, %v2522
        %v3292 = vsel %vm1551, %v3260, %v2524
        %v3293 = vsel %vm1584, %v3261, %v2590
        %v3294 = vsel %vm1584, %v3262, %v2592
        %v3295 = vsel %vm1584, %v3263, %v2594
        %v3296 = vsel %vm1584, %v3264, %v2596
        %v3297 = vsel %vm1584, %v3265, %v2598
        %v3298 = vsel %vm1584, %v3266, %v2600
        %v3299 = vsel %vm1584, %v3267, %v2602
        %v3300 = vsel %vm1584, %v3268, %v2604
        %v3301 = vsel %vm1584, %v3269, %v2606
        %v3302 = vsel %vm1584, %v3270, %v2608
        %v3303 = vsel %vm1584, %v3271, %v2610
        %v3304 = vsel %vm1584, %v3272, %v2612
        %v3305 = vsel %vm1584, %v3273, %v2614
        %v3306 = vsel %vm1584, %v3274, %v2616
        %v3307 = vsel %vm1584, %v3275, %v2618
        %v3308 = vsel %vm1584, %v3276, %v2620
        %v3309 = vsel %vm1584, %v3277, %v2622
        %v3310 = vsel %vm1584, %v3278, %v2624
        %v3311 = vsel %vm1584, %v3279, %v2626
        %v3312 = vsel %vm1584, %v3280, %v2628
        %v3313 = vsel %vm1584, %v3281, %v2630
        %v3314 = vsel %vm1584, %v3282, %v2632
        %v3315 = vsel %vm1584, %v3283, %v2634
        %v3316 = vsel %vm1584, %v3284, %v2636
        %v3317 = vsel %vm1584, %v3285, %v2638
        %v3318 = vsel %vm1584, %v3286, %v2640
        %v3319 = vsel %vm1584, %v3287, %v2642
        %v3320 = vsel %vm1584, %v3288, %v2644
        %v3321 = vsel %vm1584, %v3289, %v2646
        %v3322 = vsel %vm1584, %v3290, %v2648
        %v3323 = vsel %vm1584, %v3291, %v2650
        %v3324 = vsel %vm1584, %v3292, %v2652
        %v3325 = vsel %vm1617, %v3293, %v2718
        %v3326 = vsel %vm1617, %v3294, %v2720
        %v3327 = vsel %vm1617, %v3295, %v2722
        %v3328 = vsel %vm1617, %v3296, %v2724
        %v3329 = vsel %vm1617, %v3297, %v2726
        %v3330 = vsel %vm1617, %v3298, %v2728
        %v3331 = vsel %vm1617, %v3299, %v2730
        %v3332 = vsel %vm1617, %v3300, %v2732
        %v3333 = vsel %vm1617, %v3301, %v2734
        %v3334 = vsel %vm1617, %v3302, %v2736
        %v3335 = vsel %vm1617, %v3303, %v2738
        %v3336 = vsel %vm1617, %v3304, %v2740
        %v3337 = vsel %vm1617, %v3305, %v2742
        %v3338 = vsel %vm1617, %v3306, %v2744
        %v3339 = vsel %vm1617, %v3307, %v2746
        %v3340 = vsel %vm1617, %v3308, %v2748
        %v3341 = vsel %vm1617, %v3309, %v2750
        %v3342 = vsel %vm1617, %v3310, %v2752
        %v3343 = vsel %vm1617, %v3311, %v2754
        %v3344 = vsel %vm1617, %v3312, %v2756
        %v3345 = vsel %vm1617, %v3313, %v2758
        %v3346 = vsel %vm1617, %v3314, %v2760
        %v3347 = vsel %vm1617, %v3315, %v2762
        %v3348 = vsel %vm1617, %v3316, %v2764
        %v3349 = vsel %vm1617, %v3317, %v2766
        %v3350 = vsel %vm1617, %v3318, %v2768
        %v3351 = vsel %vm1617, %v3319, %v2770
        %v3352 = vsel %vm1617, %v3320, %v2772
        %v3353 = vsel %vm1617, %v3321, %v2774
        %v3354 = vsel %vm1617, %v3322, %v2776
        %v3355 = vsel %vm1617, %v3323, %v2778
        %v3356 = vsel %vm1617, %v3324, %v2780
        %v3357 = vsel %vm1650, %v3325, %v2846
        %v3358 = vsel %vm1650, %v3326, %v2848
        %v3359 = vsel %vm1650, %v3327, %v2850
        %v3360 = vsel %vm1650, %v3328, %v2852
        %v3361 = vsel %vm1650, %v3329, %v2854
        %v3362 = vsel %vm1650, %v3330, %v2856
        %v3363 = vsel %vm1650, %v3331, %v2858
        %v3364 = vsel %vm1650, %v3332, %v2860
        %v3365 = vsel %vm1650, %v3333, %v2862
        %v3366 = vsel %vm1650, %v3334, %v2864
        %v3367 = vsel %vm1650, %v3335, %v2866
        %v3368 = vsel %vm1650, %v3336, %v2868
        %v3369 = vsel %vm1650, %v3337, %v2870
        %v3370 = vsel %vm1650, %v3338, %v2872
        %v3371 = vsel %vm1650, %v3339, %v2874
        %v3372 = vsel %vm1650, %v3340, %v2876
        %v3373 = vsel %vm1650, %v3341, %v2878
        %v3374 = vsel %vm1650, %v3342, %v2880
        %v3375 = vsel %vm1650, %v3343, %v2882
        %v3376 = vsel %vm1650, %v3344, %v2884
        %v3377 = vsel %vm1650, %v3345, %v2886
        %v3378 = vsel %vm1650, %v3346, %v2888
        %v3379 = vsel %vm1650, %v3347, %v2890
        %v3380 = vsel %vm1650, %v3348, %v2892
        %v3381 = vsel %vm1650, %v3349, %v2894
        %v3382 = vsel %vm1650, %v3350, %v2896
        %v3383 = vsel %vm1650, %v3351, %v2898
        %v3384 = vsel %vm1650, %v3352, %v2900
        %v3385 = vsel %vm1650, %v3353, %v2902
        %v3386 = vsel %vm1650, %v3354, %v2904
        %v3387 = vsel %vm1650, %v3355, %v2906
        %v3388 = vsel %vm1650, %v3356, %v2908
        %v3389 = vsel %vm1683, %v3357, %v2974
        %v3390 = vsel %vm1683, %v3358, %v2976
        %v3391 = vsel %vm1683, %v3359, %v2978
        %v3392 = vsel %vm1683, %v3360, %v2980
        %v3393 = vsel %vm1683, %v3361, %v2982
        %v3394 = vsel %vm1683, %v3362, %v2984
        %v3395 = vsel %vm1683, %v3363, %v2986
        %v3396 = vsel %vm1683, %v3364, %v2988
        %v3397 = vsel %vm1683, %v3365, %v2990
        %v3398 = vsel %vm1683, %v3366, %v2992
        %v3399 = vsel %vm1683, %v3367, %v2994
        %v3400 = vsel %vm1683, %v3368, %v2996
        %v3401 = vsel %vm1683, %v3369, %v2998
        %v3402 = vsel %vm1683, %v3370, %v3000
        %v3403 = vsel %vm1683, %v3371, %v3002
        %v3404 = vsel %vm1683, %v3372, %v3004
        %v3405 = vsel %vm1683, %v3373, %v3006
        %v3406 = vsel %vm1683, %v3374, %v3008
        %v3407 = vsel %vm1683, %v3375, %v3010
        %v3408 = vsel %vm1683, %v3376, %v3012
        %v3409 = vsel %vm1683, %v3377, %v3014
        %v3410 = vsel %vm1683, %v3378, %v3016
        %v3411 = vsel %vm1683, %v3379, %v3018
        %v3412 = vsel %vm1683, %v3380, %v3020
        %v3413 = vsel %vm1683, %v3381, %v3022
        %v3414 = vsel %vm1683, %v3382, %v3024
        %v3415 = vsel %vm1683, %v3383, %v3026
        %v3416 = vsel %vm1683, %v3384, %v3028
        %v3417 = vsel %vm1683, %v3385, %v3030
        %v3418 = vsel %vm1683, %v3386, %v3032
        %v3419 = vsel %vm1683, %v3387, %v3034
        %v3420 = vsel %vm1683, %v3388, %v3036
        %v3421 = vsel %vm1716, %v3389, %v3102
        %v3422 = vsel %vm1716, %v3390, %v3104
        %v3423 = vsel %vm1716, %v3391, %v3106
        %v3424 = vsel %vm1716, %v3392, %v3108
        %v3425 = vsel %vm1716, %v3393, %v3110
        %v3426 = vsel %vm1716, %v3394, %v3112
        %v3427 = vsel %vm1716, %v3395, %v3114
        %v3428 = vsel %vm1716, %v3396, %v3116
        %v3429 = vsel %vm1716, %v3397, %v3118
        %v3430 = vsel %vm1716, %v3398, %v3120
        %v3431 = vsel %vm1716, %v3399, %v3122
        %v3432 = vsel %vm1716, %v3400, %v3124
        %v3433 = vsel %vm1716, %v3401, %v3126
        %v3434 = vsel %vm1716, %v3402, %v3128
        %v3435 = vsel %vm1716, %v3403, %v3130
        %v3436 = vsel %vm1716, %v3404, %v3132
        %v3437 = vsel %vm1716, %v3405, %v3134
        %v3438 = vsel %vm1716, %v3406, %v3136
        %v3439 = vsel %vm1716, %v3407, %v3138
        %v3440 = vsel %vm1716, %v3408, %v3140
        %v3441 = vsel %vm1716, %v3409, %v3142
        %v3442 = vsel %vm1716, %v3410, %v3144
        %v3443 = vsel %vm1716, %v3411, %v3146
        %v3444 = vsel %vm1716, %v3412, %v3148
        %v3445 = vsel %vm1716, %v3413, %v3150
        %v3446 = vsel %vm1716, %v3414, %v3152
        %v3447 = vsel %vm1716, %v3415, %v3154
        %v3448 = vsel %vm1716, %v3416, %v3156
        %v3449 = vsel %vm1716, %v3417, %v3158
        %v3450 = vsel %vm1716, %v3418, %v3160
        %v3451 = vsel %vm1716, %v3419, %v3162
        %v3452 = vsel %vm1716, %v3420, %v3164
        %v3453 = vpack.c.bf16 %v3422, %v3421
        %v3454 = vpack.c.bf16 %v3424, %v3423
        %v3455 = vpack.c.bf16 %v3426, %v3425
        %v3456 = vpack.c.bf16 %v3428, %v3427
        %v3457 = vpack.c.bf16 %v3430, %v3429
        %v3458 = vpack.c.bf16 %v3432, %v3431
        %v3459 = vpack.c.bf16 %v3434, %v3433
        %v3460 = vpack.c.bf16 %v3436, %v3435
        %v3461 = vpack.c.bf16 %v3438, %v3437
        %v3462 = vpack.c.bf16 %v3440, %v3439
        %v3463 = vpack.c.bf16 %v3442, %v3441
        %v3464 = vpack.c.bf16 %v3444, %v3443
        %v3465 = vpack.c.bf16 %v3446, %v3445
        %v3466 = vpack.c.bf16 %v3448, %v3447
        %v3467 = vpack.c.bf16 %v3450, %v3449
        %v3468 = vpack.c.bf16 %v3452, %v3451
        %s3469 = scalar_lea.vmem %s1, 8
        %v3470 = vld [vmem:[%s3469] sm:$0xf]
        %v3471 = vld [vmem:[%s3469 + $0x4] sm:$0xf]
        %s3472 = scalar_lea.vmem %s2, 16
        %v3473 = vld [vmem:[%s3472] sm:$0xff]
        %v3474 = vld [vmem:[%s3472 + $0x8] sm:$0xff]
        %3476 = vset.pattern.permute.xlu0 0
        %3477 = vperm.xlu0 %3476, %v3473
        %v3478 = vpop.permute.xlu0 %3477
        %3481 = vset.pattern.permute.xlu0 0
        %3482 = vperm.xlu0 %3481, %v3474
        %v3483 = vpop.permute.xlu0 %3482
        %v3487 = vunpack.c.l.b16 %v3470
        %v3488 = vunpack.c.l.b16 %v3471
        %v3489 = vpack.c.b16 %v3488, %v3487
        %v3491 = vsel %vm1784, %v3489, 0
        %v3494 = vsel %vm1784, %v3453, 0
        %v3497 = vsel %vm1784, %v3454, 0
        %v3500 = vsel %vm1784, %v3455, 0
        %v3503 = vsel %vm1784, %v3456, 0
        %v3506 = vsel %vm1784, %v3457, 0
        %v3509 = vsel %vm1784, %v3458, 0
        %v3512 = vsel %vm1784, %v3459, 0
        %v3515 = vsel %vm1784, %v3460, 0
        %v3518 = vsel %vm1784, %v3461, 0
        %v3521 = vsel %vm1784, %v3462, 0
        %v3524 = vsel %vm1784, %v3463, 0
        %v3527 = vsel %vm1784, %v3464, 0
        %v3530 = vsel %vm1784, %v3465, 0
        %v3533 = vsel %vm1784, %v3466, 0
        %v3536 = vsel %vm1784, %v3467, 0
        %v3539 = vsel %vm1784, %v3468, 0
        %3541 = vmatprep.subr.bf16.mxu0 0
        %3542 = vmatpush1.bf16.xpose.msra.mxu0 %v3515
        %3543 = vmatprep.subr.bf16.mxu0 0
        %3544 = vmatpush1.bf16.xpose.msra.mxu0 %v3512
        %3545 = vmatprep.subr.bf16.mxu0 0
        %3546 = vmatpush1.bf16.xpose.msra.mxu0 %v3509
        %3547 = vmatprep.subr.bf16.mxu0 0
        %3548 = vmatpush1.bf16.xpose.msra.mxu0 %v3506
        %3549 = vmatprep.subr.bf16.mxu0 0
        %3550 = vmatpush1.bf16.xpose.msra.mxu0 %v3503
        %3551 = vmatprep.subr.bf16.mxu0 0
        %3552 = vmatpush1.bf16.xpose.msra.mxu0 %v3500
        %3553 = vmatprep.subr.bf16.mxu0 0
        %3554 = vmatpush1.bf16.xpose.msra.mxu0 %v3497
        %3555 = vmatprep.subr.bf16.mxu0 0
        %3556 = vmatpush1.bf16.xpose.msra.mxu0 %v3494
        %3557 = vmatprep.subr.bf16.mxu0 0
        %3558 = vmatpush2.bf16.xpose.msra.mxu0 %v3539
        %3559 = vmatprep.subr.bf16.mxu0 0
        %3560 = vmatpush2.bf16.xpose.msra.mxu0 %v3536
        %3561 = vmatprep.subr.bf16.mxu0 0
        %3562 = vmatpush2.bf16.xpose.msra.mxu0 %v3533
        %3563 = vmatprep.subr.bf16.mxu0 0
        %3564 = vmatpush2.bf16.xpose.msra.mxu0 %v3530
        %3565 = vmatprep.subr.bf16.mxu0 0
        %3566 = vmatpush2.bf16.xpose.msra.mxu0 %v3527
        %3567 = vmatprep.subr.bf16.mxu0 0
        %3568 = vmatpush2.bf16.xpose.msra.mxu0 %v3524
        %3569 = vmatprep.subr.bf16.mxu0 0
        %3570 = vmatpush2.bf16.xpose.msra.mxu0 %v3521
        %3571 = vmatprep.subr.bf16.mxu0 0
        %3572 = vmatpush2.bf16.xpose.msra.mxu0 %v3518
        %3573 = vmatprep.mubr.bf16.mxu0 0
        %3574 = vmatmul.mubr.bf16.gmra.mxu0 %v3491
        %v3575 = vpop.f32.mrf.mxu0
        %v3576 = vadd.f32 %v3478, %v3575
        %v3577 = vpop.f32.mrf.mxu0
        %v3578 = vadd.f32 %v3478, %v3577
        %v3579 = vpop.f32.mrf.mxu0
        %v3580 = vadd.f32 %v3483, %v3579
        %v3581 = vpop.f32.mrf.mxu0
        %v3582 = vadd.f32 %v3483, %v3581
        %3583 = vdwg.mxu0
        %s3584 = scalar_lea.vmem %s163, 32 [#allocation2]
        %3585 = vst [vmem:[%s3584] sm:$0xff] %v3576
        %3586 = vst [vmem:[%s3584 + $0x8] sm:$0xff] %v3578
        %3587 = vst [vmem:[%s3584 + $0x10] sm:$0xff] %v3580
        %3588 = vst [vmem:[%s3584 + $0x18] sm:$0xff] %v3582
        %s3589 = scalar_lea.vmem %s168, 504
        %v3590 = vld [vmem:[%s3589 + $0x9] sm:$0xff]
        %v3591 = vld [vmem:[%s3589 + $0x11] sm:$0xff]
        %v3592 = vld [vmem:[%s3589 + $0x41] sm:$0xff]
        %v3593 = vld [vmem:[%s3589 + $0x49] sm:$0xff]
        %v3594 = vld [vmem:[%s3589 + $0x79] sm:$0xff]
        %v3595 = vld [vmem:[%s3589 + $0x81] sm:$0xff]
        %v3596 = vld [vmem:[%s3589 + $0xb1] sm:$0xff]
        %v3597 = vld [vmem:[%s3589 + $0xb9] sm:$0xff]
        %v3598 = vld [vmem:[%s3589 + $0xe9] sm:$0xff]
        %v3599 = vld [vmem:[%s3589 + $0xf1] sm:$0xff]
        %v3600 = vld [vmem:[%s3589 + $0x121] sm:$0xff]
        %v3601 = vld [vmem:[%s3589 + $0x129] sm:$0xff]
        %v3602 = vld [vmem:[%s3589 + $0x159] sm:$0xff]
        %v3603 = vld [vmem:[%s3589 + $0x161] sm:$0xff]
        %v3604 = vld [vmem:[%s3589 + $0x191] sm:$0xff]
        %v3605 = vld [vmem:[%s3589 + $0x199] sm:$0xff]
        %v3606 = vld [vmem:[%s3589 + $0x1c9] sm:$0xff]
        %v3607 = vld [vmem:[%s3589 + $0x1d1] sm:$0xff]
        %v3608 = vld [vmem:[%s3589 + $0x201] sm:$0xff]
        %v3609 = vld [vmem:[%s3589 + $0x209] sm:$0xff]
        %v3610 = vld [vmem:[%s3589 + $0x239] sm:$0xff]
        %v3611 = vld [vmem:[%s3589 + $0x241] sm:$0xff]
        %v3612 = vld [vmem:[%s3589 + $0x271] sm:$0xff]
        %v3613 = vld [vmem:[%s3589 + $0x279] sm:$0xff]
        %v3614 = vld [vmem:[%s3589 + $0x2a9] sm:$0xff]
        %v3615 = vld [vmem:[%s3589 + $0x2b1] sm:$0xff]
        %v3616 = vld [vmem:[%s3589 + $0x2e1] sm:$0xff]
        %v3617 = vld [vmem:[%s3589 + $0x2e9] sm:$0xff]
        %v3618 = vld [vmem:[%s3589 + $0x319] sm:$0xff]
        %v3619 = vld [vmem:[%s3589 + $0x321] sm:$0xff]
        %v3620 = vld [vmem:[%s3589 + $0x351] sm:$0xff]
        %v3621 = vld [vmem:[%s3589 + $0x359] sm:$0xff]
        %v3622 = vld [vmem:[%s3589 + $0x12] sm:$0xff]
        %v3623 = vld [vmem:[%s3589 + $0x1a] sm:$0xff]
        %v3624 = vld [vmem:[%s3589 + $0x4a] sm:$0xff]
        %v3625 = vld [vmem:[%s3589 + $0x52] sm:$0xff]
        %v3626 = vld [vmem:[%s3589 + $0x82] sm:$0xff]
        %v3627 = vld [vmem:[%s3589 + $0x8a] sm:$0xff]
        %v3628 = vld [vmem:[%s3589 + $0xba] sm:$0xff]
        %v3629 = vld [vmem:[%s3589 + $0xc2] sm:$0xff]
        %v3630 = vld [vmem:[%s3589 + $0xf2] sm:$0xff]
        %v3631 = vld [vmem:[%s3589 + $0xfa] sm:$0xff]
        %v3632 = vld [vmem:[%s3589 + $0x12a] sm:$0xff]
        %v3633 = vld [vmem:[%s3589 + $0x132] sm:$0xff]
        %v3634 = vld [vmem:[%s3589 + $0x162] sm:$0xff]
        %v3635 = vld [vmem:[%s3589 + $0x16a] sm:$0xff]
        %v3636 = vld [vmem:[%s3589 + $0x19a] sm:$0xff]
        %v3637 = vld [vmem:[%s3589 + $0x1a2] sm:$0xff]
        %v3638 = vld [vmem:[%s3589 + $0x1d2] sm:$0xff]
        %v3639 = vld [vmem:[%s3589 + $0x1da] sm:$0xff]
        %v3640 = vld [vmem:[%s3589 + $0x20a] sm:$0xff]
        %v3641 = vld [vmem:[%s3589 + $0x212] sm:$0xff]
        %v3642 = vld [vmem:[%s3589 + $0x242] sm:$0xff]
        %v3643 = vld [vmem:[%s3589 + $0x24a] sm:$0xff]
        %v3644 = vld [vmem:[%s3589 + $0x27a] sm:$0xff]
        %v3645 = vld [vmem:[%s3589 + $0x282] sm:$0xff]
        %v3646 = vld [vmem:[%s3589 + $0x2b2] sm:$0xff]
        %v3647 = vld [vmem:[%s3589 + $0x2ba] sm:$0xff]
        %v3648 = vld [vmem:[%s3589 + $0x2ea] sm:$0xff]
        %v3649 = vld [vmem:[%s3589 + $0x2f2] sm:$0xff]
        %v3650 = vld [vmem:[%s3589 + $0x322] sm:$0xff]
        %v3651 = vld [vmem:[%s3589 + $0x32a] sm:$0xff]
        %v3652 = vld [vmem:[%s3589 + $0x35a] sm:$0xff]
        %v3653 = vld [vmem:[%s3589 + $0x362] sm:$0xff]
        %v3654 = vld [vmem:[%s3589 + $0x1b] sm:$0xff]
        %v3655 = vld [vmem:[%s3589 + $0x23] sm:$0xff]
        %v3656 = vld [vmem:[%s3589 + $0x53] sm:$0xff]
        %v3657 = vld [vmem:[%s3589 + $0x5b] sm:$0xff]
        %v3658 = vld [vmem:[%s3589 + $0x8b] sm:$0xff]
        %v3659 = vld [vmem:[%s3589 + $0x93] sm:$0xff]
        %v3660 = vld [vmem:[%s3589 + $0xc3] sm:$0xff]
        %v3661 = vld [vmem:[%s3589 + $0xcb] sm:$0xff]
        %v3662 = vld [vmem:[%s3589 + $0xfb] sm:$0xff]
        %v3663 = vld [vmem:[%s3589 + $0x103] sm:$0xff]
        %v3664 = vld [vmem:[%s3589 + $0x133] sm:$0xff]
        %v3665 = vld [vmem:[%s3589 + $0x13b] sm:$0xff]
        %v3666 = vld [vmem:[%s3589 + $0x16b] sm:$0xff]
        %v3667 = vld [vmem:[%s3589 + $0x173] sm:$0xff]
        %v3668 = vld [vmem:[%s3589 + $0x1a3] sm:$0xff]
        %v3669 = vld [vmem:[%s3589 + $0x1ab] sm:$0xff]
        %v3670 = vld [vmem:[%s3589 + $0x1db] sm:$0xff]
        %v3671 = vld [vmem:[%s3589 + $0x1e3] sm:$0xff]
        %v3672 = vld [vmem:[%s3589 + $0x213] sm:$0xff]
        %v3673 = vld [vmem:[%s3589 + $0x21b] sm:$0xff]
        %v3674 = vld [vmem:[%s3589 + $0x24b] sm:$0xff]
        %v3675 = vld [vmem:[%s3589 + $0x253] sm:$0xff]
        %v3676 = vld [vmem:[%s3589 + $0x283] sm:$0xff]
        %v3677 = vld [vmem:[%s3589 + $0x28b] sm:$0xff]
        %v3678 = vld [vmem:[%s3589 + $0x2bb] sm:$0xff]
        %v3679 = vld [vmem:[%s3589 + $0x2c3] sm:$0xff]
        %v3680 = vld [vmem:[%s3589 + $0x2f3] sm:$0xff]
        %v3681 = vld [vmem:[%s3589 + $0x2fb] sm:$0xff]
        %v3682 = vld [vmem:[%s3589 + $0x32b] sm:$0xff]
        %v3683 = vld [vmem:[%s3589 + $0x333] sm:$0xff]
        %v3684 = vld [vmem:[%s3589 + $0x363] sm:$0xff]
        %v3685 = vld [vmem:[%s3589 + $0x36b] sm:$0xff]
        %v3686 = vld [vmem:[%s267 + $0x9] sm:$0xff]
        %v3687 = vld [vmem:[%s267 + $0x11] sm:$0xff]
        %v3688 = vld [vmem:[%s267 + $0x41] sm:$0xff]
        %v3689 = vld [vmem:[%s267 + $0x49] sm:$0xff]
        %v3690 = vld [vmem:[%s267 + $0x79] sm:$0xff]
        %v3691 = vld [vmem:[%s267 + $0x81] sm:$0xff]
        %v3692 = vld [vmem:[%s267 + $0xb1] sm:$0xff]
        %v3693 = vld [vmem:[%s267 + $0xb9] sm:$0xff]
        %v3694 = vld [vmem:[%s267 + $0xe9] sm:$0xff]
        %v3695 = vld [vmem:[%s267 + $0xf1] sm:$0xff]
        %v3696 = vld [vmem:[%s267 + $0x121] sm:$0xff]
        %v3697 = vld [vmem:[%s267 + $0x129] sm:$0xff]
        %v3698 = vld [vmem:[%s267 + $0x159] sm:$0xff]
        %v3699 = vld [vmem:[%s267 + $0x161] sm:$0xff]
        %v3700 = vld [vmem:[%s267 + $0x191] sm:$0xff]
        %v3701 = vld [vmem:[%s267 + $0x199] sm:$0xff]
        %v3702 = vld [vmem:[%s267 + $0x1c9] sm:$0xff]
        %v3703 = vld [vmem:[%s267 + $0x1d1] sm:$0xff]
        %v3704 = vld [vmem:[%s267 + $0x201] sm:$0xff]
        %v3705 = vld [vmem:[%s267 + $0x209] sm:$0xff]
        %v3706 = vld [vmem:[%s267 + $0x239] sm:$0xff]
        %v3707 = vld [vmem:[%s267 + $0x241] sm:$0xff]
        %v3708 = vld [vmem:[%s267 + $0x271] sm:$0xff]
        %v3709 = vld [vmem:[%s267 + $0x279] sm:$0xff]
        %v3710 = vld [vmem:[%s267 + $0x2a9] sm:$0xff]
        %v3711 = vld [vmem:[%s267 + $0x2b1] sm:$0xff]
        %v3712 = vld [vmem:[%s267 + $0x2e1] sm:$0xff]
        %v3713 = vld [vmem:[%s267 + $0x2e9] sm:$0xff]
        %v3714 = vld [vmem:[%s267 + $0x319] sm:$0xff]
        %v3715 = vld [vmem:[%s267 + $0x321] sm:$0xff]
        %v3716 = vld [vmem:[%s267 + $0x351] sm:$0xff]
        %v3717 = vld [vmem:[%s267 + $0x359] sm:$0xff]
        %v3718 = vld [vmem:[%s267 + $0x12] sm:$0xff]
        %v3719 = vld [vmem:[%s267 + $0x1a] sm:$0xff]
        %v3720 = vld [vmem:[%s267 + $0x4a] sm:$0xff]
        %v3721 = vld [vmem:[%s267 + $0x52] sm:$0xff]
        %v3722 = vld [vmem:[%s267 + $0x82] sm:$0xff]
        %v3723 = vld [vmem:[%s267 + $0x8a] sm:$0xff]
        %v3724 = vld [vmem:[%s267 + $0xba] sm:$0xff]
        %v3725 = vld [vmem:[%s267 + $0xc2] sm:$0xff]
        %v3726 = vld [vmem:[%s267 + $0xf2] sm:$0xff]
        %v3727 = vld [vmem:[%s267 + $0xfa] sm:$0xff]
        %v3728 = vld [vmem:[%s267 + $0x12a] sm:$0xff]
        %v3729 = vld [vmem:[%s267 + $0x132] sm:$0xff]
        %v3730 = vld [vmem:[%s267 + $0x162] sm:$0xff]
        %v3731 = vld [vmem:[%s267 + $0x16a] sm:$0xff]
        %v3732 = vld [vmem:[%s267 + $0x19a] sm:$0xff]
        %v3733 = vld [vmem:[%s267 + $0x1a2] sm:$0xff]
        %v3734 = vld [vmem:[%s267 + $0x1d2] sm:$0xff]
        %v3735 = vld [vmem:[%s267 + $0x1da] sm:$0xff]
        %v3736 = vld [vmem:[%s267 + $0x20a] sm:$0xff]
        %v3737 = vld [vmem:[%s267 + $0x212] sm:$0xff]
        %v3738 = vld [vmem:[%s267 + $0x242] sm:$0xff]
        %v3739 = vld [vmem:[%s267 + $0x24a] sm:$0xff]
        %v3740 = vld [vmem:[%s267 + $0x27a] sm:$0xff]
        %v3741 = vld [vmem:[%s267 + $0x282] sm:$0xff]
        %v3742 = vld [vmem:[%s267 + $0x2b2] sm:$0xff]
        %v3743 = vld [vmem:[%s267 + $0x2ba] sm:$0xff]
        %v3744 = vld [vmem:[%s267 + $0x2ea] sm:$0xff]
        %v3745 = vld [vmem:[%s267 + $0x2f2] sm:$0xff]
        %v3746 = vld [vmem:[%s267 + $0x322] sm:$0xff]
        %v3747 = vld [vmem:[%s267 + $0x32a] sm:$0xff]
        %v3748 = vld [vmem:[%s267 + $0x35a] sm:$0xff]
        %v3749 = vld [vmem:[%s267 + $0x362] sm:$0xff]
        %v3750 = vld [vmem:[%s267 + $0x1b] sm:$0xff]
        %v3751 = vld [vmem:[%s267 + $0x23] sm:$0xff]
        %v3752 = vld [vmem:[%s267 + $0x53] sm:$0xff]
        %v3753 = vld [vmem:[%s267 + $0x5b] sm:$0xff]
        %v3754 = vld [vmem:[%s267 + $0x8b] sm:$0xff]
        %v3755 = vld [vmem:[%s267 + $0x93] sm:$0xff]
        %v3756 = vld [vmem:[%s267 + $0xc3] sm:$0xff]
        %v3757 = vld [vmem:[%s267 + $0xcb] sm:$0xff]
        %v3758 = vld [vmem:[%s267 + $0xfb] sm:$0xff]
        %v3759 = vld [vmem:[%s267 + $0x103] sm:$0xff]
        %v3760 = vld [vmem:[%s267 + $0x133] sm:$0xff]
        %v3761 = vld [vmem:[%s267 + $0x13b] sm:$0xff]
        %v3762 = vld [vmem:[%s267 + $0x16b] sm:$0xff]
        %v3763 = vld [vmem:[%s267 + $0x173] sm:$0xff]
        %v3764 = vld [vmem:[%s267 + $0x1a3] sm:$0xff]
        %v3765 = vld [vmem:[%s267 + $0x1ab] sm:$0xff]
        %v3766 = vld [vmem:[%s267 + $0x1db] sm:$0xff]
        %v3767 = vld [vmem:[%s267 + $0x1e3] sm:$0xff]
        %v3768 = vld [vmem:[%s267 + $0x213] sm:$0xff]
        %v3769 = vld [vmem:[%s267 + $0x21b] sm:$0xff]
        %v3770 = vld [vmem:[%s267 + $0x24b] sm:$0xff]
        %v3771 = vld [vmem:[%s267 + $0x253] sm:$0xff]
        %v3772 = vld [vmem:[%s267 + $0x283] sm:$0xff]
        %v3773 = vld [vmem:[%s267 + $0x28b] sm:$0xff]
        %v3774 = vld [vmem:[%s267 + $0x2bb] sm:$0xff]
        %v3775 = vld [vmem:[%s267 + $0x2c3] sm:$0xff]
        %v3776 = vld [vmem:[%s267 + $0x2f3] sm:$0xff]
        %v3777 = vld [vmem:[%s267 + $0x2fb] sm:$0xff]
        %v3778 = vld [vmem:[%s267 + $0x32b] sm:$0xff]
        %v3779 = vld [vmem:[%s267 + $0x333] sm:$0xff]
        %v3780 = vld [vmem:[%s267 + $0x363] sm:$0xff]
        %v3781 = vld [vmem:[%s267 + $0x36b] sm:$0xff]
        %s3782 = scalar_lea.vmem %s168, 1512
        %v3783 = vld [vmem:[%s3782 + $0x9] sm:$0xff]
        %v3784 = vld [vmem:[%s3782 + $0x11] sm:$0xff]
        %v3785 = vld [vmem:[%s3782 + $0x41] sm:$0xff]
        %v3786 = vld [vmem:[%s3782 + $0x49] sm:$0xff]
        %v3787 = vld [vmem:[%s3782 + $0x79] sm:$0xff]
        %v3788 = vld [vmem:[%s3782 + $0x81] sm:$0xff]
        %v3789 = vld [vmem:[%s3782 + $0xb1] sm:$0xff]
        %v3790 = vld [vmem:[%s3782 + $0xb9] sm:$0xff]
        %v3791 = vld [vmem:[%s3782 + $0xe9] sm:$0xff]
        %v3792 = vld [vmem:[%s3782 + $0xf1] sm:$0xff]
        %v3793 = vld [vmem:[%s3782 + $0x121] sm:$0xff]
        %v3794 = vld [vmem:[%s3782 + $0x129] sm:$0xff]
        %v3795 = vld [vmem:[%s3782 + $0x159] sm:$0xff]
        %v3796 = vld [vmem:[%s3782 + $0x161] sm:$0xff]
        %v3797 = vld [vmem:[%s3782 + $0x191] sm:$0xff]
        %v3798 = vld [vmem:[%s3782 + $0x199] sm:$0xff]
        %v3799 = vld [vmem:[%s3782 + $0x1c9] sm:$0xff]
        %v3800 = vld [vmem:[%s3782 + $0x1d1] sm:$0xff]
        %v3801 = vld [vmem:[%s3782 + $0x201] sm:$0xff]
        %v3802 = vld [vmem:[%s3782 + $0x209] sm:$0xff]
        %v3803 = vld [vmem:[%s3782 + $0x239] sm:$0xff]
        %v3804 = vld [vmem:[%s3782 + $0x241] sm:$0xff]
        %v3805 = vld [vmem:[%s3782 + $0x271] sm:$0xff]
        %v3806 = vld [vmem:[%s3782 + $0x279] sm:$0xff]
        %v3807 = vld [vmem:[%s3782 + $0x2a9] sm:$0xff]
        %v3808 = vld [vmem:[%s3782 + $0x2b1] sm:$0xff]
        %v3809 = vld [vmem:[%s3782 + $0x2e1] sm:$0xff]
        %v3810 = vld [vmem:[%s3782 + $0x2e9] sm:$0xff]
        %v3811 = vld [vmem:[%s3782 + $0x319] sm:$0xff]
        %v3812 = vld [vmem:[%s3782 + $0x321] sm:$0xff]
        %v3813 = vld [vmem:[%s3782 + $0x351] sm:$0xff]
        %v3814 = vld [vmem:[%s3782 + $0x359] sm:$0xff]
        %v3815 = vld [vmem:[%s3782 + $0x12] sm:$0xff]
        %v3816 = vld [vmem:[%s3782 + $0x1a] sm:$0xff]
        %v3817 = vld [vmem:[%s3782 + $0x4a] sm:$0xff]
        %v3818 = vld [vmem:[%s3782 + $0x52] sm:$0xff]
        %v3819 = vld [vmem:[%s3782 + $0x82] sm:$0xff]
        %v3820 = vld [vmem:[%s3782 + $0x8a] sm:$0xff]
        %v3821 = vld [vmem:[%s3782 + $0xba] sm:$0xff]
        %v3822 = vld [vmem:[%s3782 + $0xc2] sm:$0xff]
        %v3823 = vld [vmem:[%s3782 + $0xf2] sm:$0xff]
        %v3824 = vld [vmem:[%s3782 + $0xfa] sm:$0xff]
        %v3825 = vld [vmem:[%s3782 + $0x12a] sm:$0xff]
        %v3826 = vld [vmem:[%s3782 + $0x132] sm:$0xff]
        %v3827 = vld [vmem:[%s3782 + $0x162] sm:$0xff]
        %v3828 = vld [vmem:[%s3782 + $0x16a] sm:$0xff]
        %v3829 = vld [vmem:[%s3782 + $0x19a] sm:$0xff]
        %v3830 = vld [vmem:[%s3782 + $0x1a2] sm:$0xff]
        %v3831 = vld [vmem:[%s3782 + $0x1d2] sm:$0xff]
        %v3832 = vld [vmem:[%s3782 + $0x1da] sm:$0xff]
        %v3833 = vld [vmem:[%s3782 + $0x20a] sm:$0xff]
        %v3834 = vld [vmem:[%s3782 + $0x212] sm:$0xff]
        %v3835 = vld [vmem:[%s3782 + $0x242] sm:$0xff]
        %v3836 = vld [vmem:[%s3782 + $0x24a] sm:$0xff]
        %v3837 = vld [vmem:[%s3782 + $0x27a] sm:$0xff]
        %v3838 = vld [vmem:[%s3782 + $0x282] sm:$0xff]
        %v3839 = vld [vmem:[%s3782 + $0x2b2] sm:$0xff]
        %v3840 = vld [vmem:[%s3782 + $0x2ba] sm:$0xff]
        %v3841 = vld [vmem:[%s3782 + $0x2ea] sm:$0xff]
        %v3842 = vld [vmem:[%s3782 + $0x2f2] sm:$0xff]
        %v3843 = vld [vmem:[%s3782 + $0x322] sm:$0xff]
        %v3844 = vld [vmem:[%s3782 + $0x32a] sm:$0xff]
        %v3845 = vld [vmem:[%s3782 + $0x35a] sm:$0xff]
        %v3846 = vld [vmem:[%s3782 + $0x362] sm:$0xff]
        %v3847 = vld [vmem:[%s3782 + $0x1b] sm:$0xff]
        %v3848 = vld [vmem:[%s3782 + $0x23] sm:$0xff]
        %v3849 = vld [vmem:[%s3782 + $0x53] sm:$0xff]
        %v3850 = vld [vmem:[%s3782 + $0x5b] sm:$0xff]
        %v3851 = vld [vmem:[%s3782 + $0x8b] sm:$0xff]
        %v3852 = vld [vmem:[%s3782 + $0x93] sm:$0xff]
        %v3853 = vld [vmem:[%s3782 + $0xc3] sm:$0xff]
        %v3854 = vld [vmem:[%s3782 + $0xcb] sm:$0xff]
        %v3855 = vld [vmem:[%s3782 + $0xfb] sm:$0xff]
        %v3856 = vld [vmem:[%s3782 + $0x103] sm:$0xff]
        %v3857 = vld [vmem:[%s3782 + $0x133] sm:$0xff]
        %v3858 = vld [vmem:[%s3782 + $0x13b] sm:$0xff]
        %v3859 = vld [vmem:[%s3782 + $0x16b] sm:$0xff]
        %v3860 = vld [vmem:[%s3782 + $0x173] sm:$0xff]
        %v3861 = vld [vmem:[%s3782 + $0x1a3] sm:$0xff]
        %v3862 = vld [vmem:[%s3782 + $0x1ab] sm:$0xff]
        %v3863 = vld [vmem:[%s3782 + $0x1db] sm:$0xff]
        %v3864 = vld [vmem:[%s3782 + $0x1e3] sm:$0xff]
        %v3865 = vld [vmem:[%s3782 + $0x213] sm:$0xff]
        %v3866 = vld [vmem:[%s3782 + $0x21b] sm:$0xff]
        %v3867 = vld [vmem:[%s3782 + $0x24b] sm:$0xff]
        %v3868 = vld [vmem:[%s3782 + $0x253] sm:$0xff]
        %v3869 = vld [vmem:[%s3782 + $0x283] sm:$0xff]
        %v3870 = vld [vmem:[%s3782 + $0x28b] sm:$0xff]
        %v3871 = vld [vmem:[%s3782 + $0x2bb] sm:$0xff]
        %v3872 = vld [vmem:[%s3782 + $0x2c3] sm:$0xff]
        %v3873 = vld [vmem:[%s3782 + $0x2f3] sm:$0xff]
        %v3874 = vld [vmem:[%s3782 + $0x2fb] sm:$0xff]
        %v3875 = vld [vmem:[%s3782 + $0x32b] sm:$0xff]
        %v3876 = vld [vmem:[%s3782 + $0x333] sm:$0xff]
        %v3877 = vld [vmem:[%s3782 + $0x363] sm:$0xff]
        %v3878 = vld [vmem:[%s3782 + $0x36b] sm:$0xff]
        %3911 = vrot.lane.b32.xlu0 %v3622, 8
        %v3912 = vpop.permute.xlu0 %3911
        %3913 = vrot.lane.b32.xlu0 %v3623, 8
        %v3914 = vpop.permute.xlu0 %3913
        %3915 = vrot.lane.b32.xlu0 %v3624, 8
        %v3916 = vpop.permute.xlu0 %3915
        %3917 = vrot.lane.b32.xlu0 %v3625, 8
        %v3918 = vpop.permute.xlu0 %3917
        %3919 = vrot.lane.b32.xlu0 %v3626, 8
        %v3920 = vpop.permute.xlu0 %3919
        %3921 = vrot.lane.b32.xlu0 %v3627, 8
        %v3922 = vpop.permute.xlu0 %3921
        %3923 = vrot.lane.b32.xlu0 %v3628, 8
        %v3924 = vpop.permute.xlu0 %3923
        %3925 = vrot.lane.b32.xlu0 %v3629, 8
        %v3926 = vpop.permute.xlu0 %3925
        %3927 = vrot.lane.b32.xlu0 %v3630, 8
        %v3928 = vpop.permute.xlu0 %3927
        %3929 = vrot.lane.b32.xlu0 %v3631, 8
        %v3930 = vpop.permute.xlu0 %3929
        %3931 = vrot.lane.b32.xlu0 %v3632, 8
        %v3932 = vpop.permute.xlu0 %3931
        %3933 = vrot.lane.b32.xlu0 %v3633, 8
        %v3934 = vpop.permute.xlu0 %3933
        %3935 = vrot.lane.b32.xlu0 %v3634, 8
        %v3936 = vpop.permute.xlu0 %3935
        %3937 = vrot.lane.b32.xlu0 %v3635, 8
        %v3938 = vpop.permute.xlu0 %3937
        %3939 = vrot.lane.b32.xlu0 %v3636, 8
        %v3940 = vpop.permute.xlu0 %3939
        %3941 = vrot.lane.b32.xlu0 %v3637, 8
        %v3942 = vpop.permute.xlu0 %3941
        %3943 = vrot.lane.b32.xlu0 %v3638, 8
        %v3944 = vpop.permute.xlu0 %3943
        %3945 = vrot.lane.b32.xlu0 %v3639, 8
        %v3946 = vpop.permute.xlu0 %3945
        %3947 = vrot.lane.b32.xlu0 %v3640, 8
        %v3948 = vpop.permute.xlu0 %3947
        %3949 = vrot.lane.b32.xlu0 %v3641, 8
        %v3950 = vpop.permute.xlu0 %3949
        %3951 = vrot.lane.b32.xlu0 %v3642, 8
        %v3952 = vpop.permute.xlu0 %3951
        %3953 = vrot.lane.b32.xlu0 %v3643, 8
        %v3954 = vpop.permute.xlu0 %3953
        %3955 = vrot.lane.b32.xlu0 %v3644, 8
        %v3956 = vpop.permute.xlu0 %3955
        %3957 = vrot.lane.b32.xlu0 %v3645, 8
        %v3958 = vpop.permute.xlu0 %3957
        %3959 = vrot.lane.b32.xlu0 %v3646, 8
        %v3960 = vpop.permute.xlu0 %3959
        %3961 = vrot.lane.b32.xlu0 %v3647, 8
        %v3962 = vpop.permute.xlu0 %3961
        %3963 = vrot.lane.b32.xlu0 %v3648, 8
        %v3964 = vpop.permute.xlu0 %3963
        %3965 = vrot.lane.b32.xlu0 %v3649, 8
        %v3966 = vpop.permute.xlu0 %3965
        %3967 = vrot.lane.b32.xlu0 %v3650, 8
        %v3968 = vpop.permute.xlu0 %3967
        %3969 = vrot.lane.b32.xlu0 %v3651, 8
        %v3970 = vpop.permute.xlu0 %3969
        %3971 = vrot.lane.b32.xlu0 %v3652, 8
        %v3972 = vpop.permute.xlu0 %3971
        %3973 = vrot.lane.b32.xlu0 %v3653, 8
        %v3974 = vpop.permute.xlu0 %3973
        %4039 = vrot.lane.b32.xlu0 %v3654, 16
        %v4040 = vpop.permute.xlu0 %4039
        %4041 = vrot.lane.b32.xlu0 %v3655, 16
        %v4042 = vpop.permute.xlu0 %4041
        %4043 = vrot.lane.b32.xlu0 %v3656, 16
        %v4044 = vpop.permute.xlu0 %4043
        %4045 = vrot.lane.b32.xlu0 %v3657, 16
        %v4046 = vpop.permute.xlu0 %4045
        %4047 = vrot.lane.b32.xlu0 %v3658, 16
        %v4048 = vpop.permute.xlu0 %4047
        %4049 = vrot.lane.b32.xlu0 %v3659, 16
        %v4050 = vpop.permute.xlu0 %4049
        %4051 = vrot.lane.b32.xlu0 %v3660, 16
        %v4052 = vpop.permute.xlu0 %4051
        %4053 = vrot.lane.b32.xlu0 %v3661, 16
        %v4054 = vpop.permute.xlu0 %4053
        %4055 = vrot.lane.b32.xlu0 %v3662, 16
        %v4056 = vpop.permute.xlu0 %4055
        %4057 = vrot.lane.b32.xlu0 %v3663, 16
        %v4058 = vpop.permute.xlu0 %4057
        %4059 = vrot.lane.b32.xlu0 %v3664, 16
        %v4060 = vpop.permute.xlu0 %4059
        %4061 = vrot.lane.b32.xlu0 %v3665, 16
        %v4062 = vpop.permute.xlu0 %4061
        %4063 = vrot.lane.b32.xlu0 %v3666, 16
        %v4064 = vpop.permute.xlu0 %4063
        %4065 = vrot.lane.b32.xlu0 %v3667, 16
        %v4066 = vpop.permute.xlu0 %4065
        %4067 = vrot.lane.b32.xlu0 %v3668, 16
        %v4068 = vpop.permute.xlu0 %4067
        %4069 = vrot.lane.b32.xlu0 %v3669, 16
        %v4070 = vpop.permute.xlu0 %4069
        %4071 = vrot.lane.b32.xlu0 %v3670, 16
        %v4072 = vpop.permute.xlu0 %4071
        %4073 = vrot.lane.b32.xlu0 %v3671, 16
        %v4074 = vpop.permute.xlu0 %4073
        %4075 = vrot.lane.b32.xlu0 %v3672, 16
        %v4076 = vpop.permute.xlu0 %4075
        %4077 = vrot.lane.b32.xlu0 %v3673, 16
        %v4078 = vpop.permute.xlu0 %4077
        %4079 = vrot.lane.b32.xlu0 %v3674, 16
        %v4080 = vpop.permute.xlu0 %4079
        %4081 = vrot.lane.b32.xlu0 %v3675, 16
        %v4082 = vpop.permute.xlu0 %4081
        %4083 = vrot.lane.b32.xlu0 %v3676, 16
        %v4084 = vpop.permute.xlu0 %4083
        %4085 = vrot.lane.b32.xlu0 %v3677, 16
        %v4086 = vpop.permute.xlu0 %4085
        %4087 = vrot.lane.b32.xlu0 %v3678, 16
        %v4088 = vpop.permute.xlu0 %4087
        %4089 = vrot.lane.b32.xlu0 %v3679, 16
        %v4090 = vpop.permute.xlu0 %4089
        %4091 = vrot.lane.b32.xlu0 %v3680, 16
        %v4092 = vpop.permute.xlu0 %4091
        %4093 = vrot.lane.b32.xlu0 %v3681, 16
        %v4094 = vpop.permute.xlu0 %4093
        %4095 = vrot.lane.b32.xlu0 %v3682, 16
        %v4096 = vpop.permute.xlu0 %4095
        %4097 = vrot.lane.b32.xlu0 %v3683, 16
        %v4098 = vpop.permute.xlu0 %4097
        %4099 = vrot.lane.b32.xlu0 %v3684, 16
        %v4100 = vpop.permute.xlu0 %4099
        %4101 = vrot.lane.b32.xlu0 %v3685, 16
        %v4102 = vpop.permute.xlu0 %4101
        %4167 = vrot.lane.b32.xlu0 %v3686, 24
        %v4168 = vpop.permute.xlu0 %4167
        %4169 = vrot.lane.b32.xlu0 %v3687, 24
        %v4170 = vpop.permute.xlu0 %4169
        %4171 = vrot.lane.b32.xlu0 %v3688, 24
        %v4172 = vpop.permute.xlu0 %4171
        %4173 = vrot.lane.b32.xlu0 %v3689, 24
        %v4174 = vpop.permute.xlu0 %4173
        %4175 = vrot.lane.b32.xlu0 %v3690, 24
        %v4176 = vpop.permute.xlu0 %4175
        %4177 = vrot.lane.b32.xlu0 %v3691, 24
        %v4178 = vpop.permute.xlu0 %4177
        %4179 = vrot.lane.b32.xlu0 %v3692, 24
        %v4180 = vpop.permute.xlu0 %4179
        %4181 = vrot.lane.b32.xlu0 %v3693, 24
        %v4182 = vpop.permute.xlu0 %4181
        %4183 = vrot.lane.b32.xlu0 %v3694, 24
        %v4184 = vpop.permute.xlu0 %4183
        %4185 = vrot.lane.b32.xlu0 %v3695, 24
        %v4186 = vpop.permute.xlu0 %4185
        %4187 = vrot.lane.b32.xlu0 %v3696, 24
        %v4188 = vpop.permute.xlu0 %4187
        %4189 = vrot.lane.b32.xlu0 %v3697, 24
        %v4190 = vpop.permute.xlu0 %4189
        %4191 = vrot.lane.b32.xlu0 %v3698, 24
        %v4192 = vpop.permute.xlu0 %4191
        %4193 = vrot.lane.b32.xlu0 %v3699, 24
        %v4194 = vpop.permute.xlu0 %4193
        %4195 = vrot.lane.b32.xlu0 %v3700, 24
        %v4196 = vpop.permute.xlu0 %4195
        %4197 = vrot.lane.b32.xlu0 %v3701, 24
        %v4198 = vpop.permute.xlu0 %4197
        %4199 = vrot.lane.b32.xlu0 %v3702, 24
        %v4200 = vpop.permute.xlu0 %4199
        %4201 = vrot.lane.b32.xlu0 %v3703, 24
        %v4202 = vpop.permute.xlu0 %4201
        %4203 = vrot.lane.b32.xlu0 %v3704, 24
        %v4204 = vpop.permute.xlu0 %4203
        %4205 = vrot.lane.b32.xlu0 %v3705, 24
        %v4206 = vpop.permute.xlu0 %4205
        %4207 = vrot.lane.b32.xlu0 %v3706, 24
        %v4208 = vpop.permute.xlu0 %4207
        %4209 = vrot.lane.b32.xlu0 %v3707, 24
        %v4210 = vpop.permute.xlu0 %4209
        %4211 = vrot.lane.b32.xlu0 %v3708, 24
        %v4212 = vpop.permute.xlu0 %4211
        %4213 = vrot.lane.b32.xlu0 %v3709, 24
        %v4214 = vpop.permute.xlu0 %4213
        %4215 = vrot.lane.b32.xlu0 %v3710, 24
        %v4216 = vpop.permute.xlu0 %4215
        %4217 = vrot.lane.b32.xlu0 %v3711, 24
        %v4218 = vpop.permute.xlu0 %4217
        %4219 = vrot.lane.b32.xlu0 %v3712, 24
        %v4220 = vpop.permute.xlu0 %4219
        %4221 = vrot.lane.b32.xlu0 %v3713, 24
        %v4222 = vpop.permute.xlu0 %4221
        %4223 = vrot.lane.b32.xlu0 %v3714, 24
        %v4224 = vpop.permute.xlu0 %4223
        %4225 = vrot.lane.b32.xlu0 %v3715, 24
        %v4226 = vpop.permute.xlu0 %4225
        %4227 = vrot.lane.b32.xlu0 %v3716, 24
        %v4228 = vpop.permute.xlu0 %4227
        %4229 = vrot.lane.b32.xlu0 %v3717, 24
        %v4230 = vpop.permute.xlu0 %4229
        %4295 = vrot.lane.b32.xlu0 %v3718, 32
        %v4296 = vpop.permute.xlu0 %4295
        %4297 = vrot.lane.b32.xlu0 %v3719, 32
        %v4298 = vpop.permute.xlu0 %4297
        %4299 = vrot.lane.b32.xlu0 %v3720, 32
        %v4300 = vpop.permute.xlu0 %4299
        %4301 = vrot.lane.b32.xlu0 %v3721, 32
        %v4302 = vpop.permute.xlu0 %4301
        %4303 = vrot.lane.b32.xlu0 %v3722, 32
        %v4304 = vpop.permute.xlu0 %4303
        %4305 = vrot.lane.b32.xlu0 %v3723, 32
        %v4306 = vpop.permute.xlu0 %4305
        %4307 = vrot.lane.b32.xlu0 %v3724, 32
        %v4308 = vpop.permute.xlu0 %4307
        %4309 = vrot.lane.b32.xlu0 %v3725, 32
        %v4310 = vpop.permute.xlu0 %4309
        %4311 = vrot.lane.b32.xlu0 %v3726, 32
        %v4312 = vpop.permute.xlu0 %4311
        %4313 = vrot.lane.b32.xlu0 %v3727, 32
        %v4314 = vpop.permute.xlu0 %4313
        %4315 = vrot.lane.b32.xlu0 %v3728, 32
        %v4316 = vpop.permute.xlu0 %4315
        %4317 = vrot.lane.b32.xlu0 %v3729, 32
        %v4318 = vpop.permute.xlu0 %4317
        %4319 = vrot.lane.b32.xlu0 %v3730, 32
        %v4320 = vpop.permute.xlu0 %4319
        %4321 = vrot.lane.b32.xlu0 %v3731, 32
        %v4322 = vpop.permute.xlu0 %4321
        %4323 = vrot.lane.b32.xlu0 %v3732, 32
        %v4324 = vpop.permute.xlu0 %4323
        %4325 = vrot.lane.b32.xlu0 %v3733, 32
        %v4326 = vpop.permute.xlu0 %4325
        %4327 = vrot.lane.b32.xlu0 %v3734, 32
        %v4328 = vpop.permute.xlu0 %4327
        %4329 = vrot.lane.b32.xlu0 %v3735, 32
        %v4330 = vpop.permute.xlu0 %4329
        %4331 = vrot.lane.b32.xlu0 %v3736, 32
        %v4332 = vpop.permute.xlu0 %4331
        %4333 = vrot.lane.b32.xlu0 %v3737, 32
        %v4334 = vpop.permute.xlu0 %4333
        %4335 = vrot.lane.b32.xlu0 %v3738, 32
        %v4336 = vpop.permute.xlu0 %4335
        %4337 = vrot.lane.b32.xlu0 %v3739, 32
        %v4338 = vpop.permute.xlu0 %4337
        %4339 = vrot.lane.b32.xlu0 %v3740, 32
        %v4340 = vpop.permute.xlu0 %4339
        %4341 = vrot.lane.b32.xlu0 %v3741, 32
        %v4342 = vpop.permute.xlu0 %4341
        %4343 = vrot.lane.b32.xlu0 %v3742, 32
        %v4344 = vpop.permute.xlu0 %4343
        %4345 = vrot.lane.b32.xlu0 %v3743, 32
        %v4346 = vpop.permute.xlu0 %4345
        %4347 = vrot.lane.b32.xlu0 %v3744, 32
        %v4348 = vpop.permute.xlu0 %4347
        %4349 = vrot.lane.b32.xlu0 %v3745, 32
        %v4350 = vpop.permute.xlu0 %4349
        %4351 = vrot.lane.b32.xlu0 %v3746, 32
        %v4352 = vpop.permute.xlu0 %4351
        %4353 = vrot.lane.b32.xlu0 %v3747, 32
        %v4354 = vpop.permute.xlu0 %4353
        %4355 = vrot.lane.b32.xlu0 %v3748, 32
        %v4356 = vpop.permute.xlu0 %4355
        %4357 = vrot.lane.b32.xlu0 %v3749, 32
        %v4358 = vpop.permute.xlu0 %4357
        %4423 = vrot.lane.b32.xlu0 %v3750, 40
        %v4424 = vpop.permute.xlu0 %4423
        %4425 = vrot.lane.b32.xlu0 %v3751, 40
        %v4426 = vpop.permute.xlu0 %4425
        %4427 = vrot.lane.b32.xlu0 %v3752, 40
        %v4428 = vpop.permute.xlu0 %4427
        %4429 = vrot.lane.b32.xlu0 %v3753, 40
        %v4430 = vpop.permute.xlu0 %4429
        %4431 = vrot.lane.b32.xlu0 %v3754, 40
        %v4432 = vpop.permute.xlu0 %4431
        %4433 = vrot.lane.b32.xlu0 %v3755, 40
        %v4434 = vpop.permute.xlu0 %4433
        %4435 = vrot.lane.b32.xlu0 %v3756, 40
        %v4436 = vpop.permute.xlu0 %4435
        %4437 = vrot.lane.b32.xlu0 %v3757, 40
        %v4438 = vpop.permute.xlu0 %4437
        %4439 = vrot.lane.b32.xlu0 %v3758, 40
        %v4440 = vpop.permute.xlu0 %4439
        %4441 = vrot.lane.b32.xlu0 %v3759, 40
        %v4442 = vpop.permute.xlu0 %4441
        %4443 = vrot.lane.b32.xlu0 %v3760, 40
        %v4444 = vpop.permute.xlu0 %4443
        %4445 = vrot.lane.b32.xlu0 %v3761, 40
        %v4446 = vpop.permute.xlu0 %4445
        %4447 = vrot.lane.b32.xlu0 %v3762, 40
        %v4448 = vpop.permute.xlu0 %4447
        %4449 = vrot.lane.b32.xlu0 %v3763, 40
        %v4450 = vpop.permute.xlu0 %4449
        %4451 = vrot.lane.b32.xlu0 %v3764, 40
        %v4452 = vpop.permute.xlu0 %4451
        %4453 = vrot.lane.b32.xlu0 %v3765, 40
        %v4454 = vpop.permute.xlu0 %4453
        %4455 = vrot.lane.b32.xlu0 %v3766, 40
        %v4456 = vpop.permute.xlu0 %4455
        %4457 = vrot.lane.b32.xlu0 %v3767, 40
        %v4458 = vpop.permute.xlu0 %4457
        %4459 = vrot.lane.b32.xlu0 %v3768, 40
        %v4460 = vpop.permute.xlu0 %4459
        %4461 = vrot.lane.b32.xlu0 %v3769, 40
        %v4462 = vpop.permute.xlu0 %4461
        %4463 = vrot.lane.b32.xlu0 %v3770, 40
        %v4464 = vpop.permute.xlu0 %4463
        %4465 = vrot.lane.b32.xlu0 %v3771, 40
        %v4466 = vpop.permute.xlu0 %4465
        %4467 = vrot.lane.b32.xlu0 %v3772, 40
        %v4468 = vpop.permute.xlu0 %4467
        %4469 = vrot.lane.b32.xlu0 %v3773, 40
        %v4470 = vpop.permute.xlu0 %4469
        %4471 = vrot.lane.b32.xlu0 %v3774, 40
        %v4472 = vpop.permute.xlu0 %4471
        %4473 = vrot.lane.b32.xlu0 %v3775, 40
        %v4474 = vpop.permute.xlu0 %4473
        %4475 = vrot.lane.b32.xlu0 %v3776, 40
        %v4476 = vpop.permute.xlu0 %4475
        %4477 = vrot.lane.b32.xlu0 %v3777, 40
        %v4478 = vpop.permute.xlu0 %4477
        %4479 = vrot.lane.b32.xlu0 %v3778, 40
        %v4480 = vpop.permute.xlu0 %4479
        %4481 = vrot.lane.b32.xlu0 %v3779, 40
        %v4482 = vpop.permute.xlu0 %4481
        %4483 = vrot.lane.b32.xlu0 %v3780, 40
        %v4484 = vpop.permute.xlu0 %4483
        %4485 = vrot.lane.b32.xlu0 %v3781, 40
        %v4486 = vpop.permute.xlu0 %4485
        %4551 = vrot.lane.b32.xlu0 %v3783, 48
        %v4552 = vpop.permute.xlu0 %4551
        %4553 = vrot.lane.b32.xlu0 %v3784, 48
        %v4554 = vpop.permute.xlu0 %4553
        %4555 = vrot.lane.b32.xlu0 %v3785, 48
        %v4556 = vpop.permute.xlu0 %4555
        %4557 = vrot.lane.b32.xlu0 %v3786, 48
        %v4558 = vpop.permute.xlu0 %4557
        %4559 = vrot.lane.b32.xlu0 %v3787, 48
        %v4560 = vpop.permute.xlu0 %4559
        %4561 = vrot.lane.b32.xlu0 %v3788, 48
        %v4562 = vpop.permute.xlu0 %4561
        %4563 = vrot.lane.b32.xlu0 %v3789, 48
        %v4564 = vpop.permute.xlu0 %4563
        %4565 = vrot.lane.b32.xlu0 %v3790, 48
        %v4566 = vpop.permute.xlu0 %4565
        %4567 = vrot.lane.b32.xlu0 %v3791, 48
        %v4568 = vpop.permute.xlu0 %4567
        %4569 = vrot.lane.b32.xlu0 %v3792, 48
        %v4570 = vpop.permute.xlu0 %4569
        %4571 = vrot.lane.b32.xlu0 %v3793, 48
        %v4572 = vpop.permute.xlu0 %4571
        %4573 = vrot.lane.b32.xlu0 %v3794, 48
        %v4574 = vpop.permute.xlu0 %4573
        %4575 = vrot.lane.b32.xlu0 %v3795, 48
        %v4576 = vpop.permute.xlu0 %4575
        %4577 = vrot.lane.b32.xlu0 %v3796, 48
        %v4578 = vpop.permute.xlu0 %4577
        %4579 = vrot.lane.b32.xlu0 %v3797, 48
        %v4580 = vpop.permute.xlu0 %4579
        %4581 = vrot.lane.b32.xlu0 %v3798, 48
        %v4582 = vpop.permute.xlu0 %4581
        %4583 = vrot.lane.b32.xlu0 %v3799, 48
        %v4584 = vpop.permute.xlu0 %4583
        %4585 = vrot.lane.b32.xlu0 %v3800, 48
        %v4586 = vpop.permute.xlu0 %4585
        %4587 = vrot.lane.b32.xlu0 %v3801, 48
        %v4588 = vpop.permute.xlu0 %4587
        %4589 = vrot.lane.b32.xlu0 %v3802, 48
        %v4590 = vpop.permute.xlu0 %4589
        %4591 = vrot.lane.b32.xlu0 %v3803, 48
        %v4592 = vpop.permute.xlu0 %4591
        %4593 = vrot.lane.b32.xlu0 %v3804, 48
        %v4594 = vpop.permute.xlu0 %4593
        %4595 = vrot.lane.b32.xlu0 %v3805, 48
        %v4596 = vpop.permute.xlu0 %4595
        %4597 = vrot.lane.b32.xlu0 %v3806, 48
        %v4598 = vpop.permute.xlu0 %4597
        %4599 = vrot.lane.b32.xlu0 %v3807, 48
        %v4600 = vpop.permute.xlu0 %4599
        %4601 = vrot.lane.b32.xlu0 %v3808, 48
        %v4602 = vpop.permute.xlu0 %4601
        %4603 = vrot.lane.b32.xlu0 %v3809, 48
        %v4604 = vpop.permute.xlu0 %4603
        %4605 = vrot.lane.b32.xlu0 %v3810, 48
        %v4606 = vpop.permute.xlu0 %4605
        %4607 = vrot.lane.b32.xlu0 %v3811, 48
        %v4608 = vpop.permute.xlu0 %4607
        %4609 = vrot.lane.b32.xlu0 %v3812, 48
        %v4610 = vpop.permute.xlu0 %4609
        %4611 = vrot.lane.b32.xlu0 %v3813, 48
        %v4612 = vpop.permute.xlu0 %4611
        %4613 = vrot.lane.b32.xlu0 %v3814, 48
        %v4614 = vpop.permute.xlu0 %4613
        %4679 = vrot.lane.b32.xlu0 %v3815, 56
        %v4680 = vpop.permute.xlu0 %4679
        %4681 = vrot.lane.b32.xlu0 %v3816, 56
        %v4682 = vpop.permute.xlu0 %4681
        %4683 = vrot.lane.b32.xlu0 %v3817, 56
        %v4684 = vpop.permute.xlu0 %4683
        %4685 = vrot.lane.b32.xlu0 %v3818, 56
        %v4686 = vpop.permute.xlu0 %4685
        %4687 = vrot.lane.b32.xlu0 %v3819, 56
        %v4688 = vpop.permute.xlu0 %4687
        %4689 = vrot.lane.b32.xlu0 %v3820, 56
        %v4690 = vpop.permute.xlu0 %4689
        %4691 = vrot.lane.b32.xlu0 %v3821, 56
        %v4692 = vpop.permute.xlu0 %4691
        %4693 = vrot.lane.b32.xlu0 %v3822, 56
        %v4694 = vpop.permute.xlu0 %4693
        %4695 = vrot.lane.b32.xlu0 %v3823, 56
        %v4696 = vpop.permute.xlu0 %4695
        %4697 = vrot.lane.b32.xlu0 %v3824, 56
        %v4698 = vpop.permute.xlu0 %4697
        %4699 = vrot.lane.b32.xlu0 %v3825, 56
        %v4700 = vpop.permute.xlu0 %4699
        %4701 = vrot.lane.b32.xlu0 %v3826, 56
        %v4702 = vpop.permute.xlu0 %4701
        %4703 = vrot.lane.b32.xlu0 %v3827, 56
        %v4704 = vpop.permute.xlu0 %4703
        %4705 = vrot.lane.b32.xlu0 %v3828, 56
        %v4706 = vpop.permute.xlu0 %4705
        %4707 = vrot.lane.b32.xlu0 %v3829, 56
        %v4708 = vpop.permute.xlu0 %4707
        %4709 = vrot.lane.b32.xlu0 %v3830, 56
        %v4710 = vpop.permute.xlu0 %4709
        %4711 = vrot.lane.b32.xlu0 %v3831, 56
        %v4712 = vpop.permute.xlu0 %4711
        %4713 = vrot.lane.b32.xlu0 %v3832, 56
        %v4714 = vpop.permute.xlu0 %4713
        %4715 = vrot.lane.b32.xlu0 %v3833, 56
        %v4716 = vpop.permute.xlu0 %4715
        %4717 = vrot.lane.b32.xlu0 %v3834, 56
        %v4718 = vpop.permute.xlu0 %4717
        %4719 = vrot.lane.b32.xlu0 %v3835, 56
        %v4720 = vpop.permute.xlu0 %4719
        %4721 = vrot.lane.b32.xlu0 %v3836, 56
        %v4722 = vpop.permute.xlu0 %4721
        %4723 = vrot.lane.b32.xlu0 %v3837, 56
        %v4724 = vpop.permute.xlu0 %4723
        %4725 = vrot.lane.b32.xlu0 %v3838, 56
        %v4726 = vpop.permute.xlu0 %4725
        %4727 = vrot.lane.b32.xlu0 %v3839, 56
        %v4728 = vpop.permute.xlu0 %4727
        %4729 = vrot.lane.b32.xlu0 %v3840, 56
        %v4730 = vpop.permute.xlu0 %4729
        %4731 = vrot.lane.b32.xlu0 %v3841, 56
        %v4732 = vpop.permute.xlu0 %4731
        %4733 = vrot.lane.b32.xlu0 %v3842, 56
        %v4734 = vpop.permute.xlu0 %4733
        %4735 = vrot.lane.b32.xlu0 %v3843, 56
        %v4736 = vpop.permute.xlu0 %4735
        %4737 = vrot.lane.b32.xlu0 %v3844, 56
        %v4738 = vpop.permute.xlu0 %4737
        %4739 = vrot.lane.b32.xlu0 %v3845, 56
        %v4740 = vpop.permute.xlu0 %4739
        %4741 = vrot.lane.b32.xlu0 %v3846, 56
        %v4742 = vpop.permute.xlu0 %4741
        %4807 = vrot.lane.b32.xlu0 %v3847, 64
        %v4808 = vpop.permute.xlu0 %4807
        %4809 = vrot.lane.b32.xlu0 %v3848, 64
        %v4810 = vpop.permute.xlu0 %4809
        %4811 = vrot.lane.b32.xlu0 %v3849, 64
        %v4812 = vpop.permute.xlu0 %4811
        %4813 = vrot.lane.b32.xlu0 %v3850, 64
        %v4814 = vpop.permute.xlu0 %4813
        %4815 = vrot.lane.b32.xlu0 %v3851, 64
        %v4816 = vpop.permute.xlu0 %4815
        %4817 = vrot.lane.b32.xlu0 %v3852, 64
        %v4818 = vpop.permute.xlu0 %4817
        %4819 = vrot.lane.b32.xlu0 %v3853, 64
        %v4820 = vpop.permute.xlu0 %4819
        %4821 = vrot.lane.b32.xlu0 %v3854, 64
        %v4822 = vpop.permute.xlu0 %4821
        %4823 = vrot.lane.b32.xlu0 %v3855, 64
        %v4824 = vpop.permute.xlu0 %4823
        %4825 = vrot.lane.b32.xlu0 %v3856, 64
        %v4826 = vpop.permute.xlu0 %4825
        %4827 = vrot.lane.b32.xlu0 %v3857, 64
        %v4828 = vpop.permute.xlu0 %4827
        %4829 = vrot.lane.b32.xlu0 %v3858, 64
        %v4830 = vpop.permute.xlu0 %4829
        %4831 = vrot.lane.b32.xlu0 %v3859, 64
        %v4832 = vpop.permute.xlu0 %4831
        %4833 = vrot.lane.b32.xlu0 %v3860, 64
        %v4834 = vpop.permute.xlu0 %4833
        %4835 = vrot.lane.b32.xlu0 %v3861, 64
        %v4836 = vpop.permute.xlu0 %4835
        %4837 = vrot.lane.b32.xlu0 %v3862, 64
        %v4838 = vpop.permute.xlu0 %4837
        %4839 = vrot.lane.b32.xlu0 %v3863, 64
        %v4840 = vpop.permute.xlu0 %4839
        %4841 = vrot.lane.b32.xlu0 %v3864, 64
        %v4842 = vpop.permute.xlu0 %4841
        %4843 = vrot.lane.b32.xlu0 %v3865, 64
        %v4844 = vpop.permute.xlu0 %4843
        %4845 = vrot.lane.b32.xlu0 %v3866, 64
        %v4846 = vpop.permute.xlu0 %4845
        %4847 = vrot.lane.b32.xlu0 %v3867, 64
        %v4848 = vpop.permute.xlu0 %4847
        %4849 = vrot.lane.b32.xlu0 %v3868, 64
        %v4850 = vpop.permute.xlu0 %4849
        %4851 = vrot.lane.b32.xlu0 %v3869, 64
        %v4852 = vpop.permute.xlu0 %4851
        %4853 = vrot.lane.b32.xlu0 %v3870, 64
        %v4854 = vpop.permute.xlu0 %4853
        %4855 = vrot.lane.b32.xlu0 %v3871, 64
        %v4856 = vpop.permute.xlu0 %4855
        %4857 = vrot.lane.b32.xlu0 %v3872, 64
        %v4858 = vpop.permute.xlu0 %4857
        %4859 = vrot.lane.b32.xlu0 %v3873, 64
        %v4860 = vpop.permute.xlu0 %4859
        %4861 = vrot.lane.b32.xlu0 %v3874, 64
        %v4862 = vpop.permute.xlu0 %4861
        %4863 = vrot.lane.b32.xlu0 %v3875, 64
        %v4864 = vpop.permute.xlu0 %4863
        %4865 = vrot.lane.b32.xlu0 %v3876, 64
        %v4866 = vpop.permute.xlu0 %4865
        %4867 = vrot.lane.b32.xlu0 %v3877, 64
        %v4868 = vpop.permute.xlu0 %4867
        %4869 = vrot.lane.b32.xlu0 %v3878, 64
        %v4870 = vpop.permute.xlu0 %4869
        %v4903 = vsel %vm1485, %v3590, %v3912
        %v4904 = vsel %vm1485, %v3591, %v3914
        %v4905 = vsel %vm1485, %v3592, %v3916
        %v4906 = vsel %vm1485, %v3593, %v3918
        %v4907 = vsel %vm1485, %v3594, %v3920
        %v4908 = vsel %vm1485, %v3595, %v3922
        %v4909 = vsel %vm1485, %v3596, %v3924
        %v4910 = vsel %vm1485, %v3597, %v3926
        %v4911 = vsel %vm1485, %v3598, %v3928
        %v4912 = vsel %vm1485, %v3599, %v3930
        %v4913 = vsel %vm1485, %v3600, %v3932
        %v4914 = vsel %vm1485, %v3601, %v3934
        %v4915 = vsel %vm1485, %v3602, %v3936
        %v4916 = vsel %vm1485, %v3603, %v3938
        %v4917 = vsel %vm1485, %v3604, %v3940
        %v4918 = vsel %vm1485, %v3605, %v3942
        %v4919 = vsel %vm1485, %v3606, %v3944
        %v4920 = vsel %vm1485, %v3607, %v3946
        %v4921 = vsel %vm1485, %v3608, %v3948
        %v4922 = vsel %vm1485, %v3609, %v3950
        %v4923 = vsel %vm1485, %v3610, %v3952
        %v4924 = vsel %vm1485, %v3611, %v3954
        %v4925 = vsel %vm1485, %v3612, %v3956
        %v4926 = vsel %vm1485, %v3613, %v3958
        %v4927 = vsel %vm1485, %v3614, %v3960
        %v4928 = vsel %vm1485, %v3615, %v3962
        %v4929 = vsel %vm1485, %v3616, %v3964
        %v4930 = vsel %vm1485, %v3617, %v3966
        %v4931 = vsel %vm1485, %v3618, %v3968
        %v4932 = vsel %vm1485, %v3619, %v3970
        %v4933 = vsel %vm1485, %v3620, %v3972
        %v4934 = vsel %vm1485, %v3621, %v3974
        %v4935 = vsel %vm1518, %v4903, %v4040
        %v4936 = vsel %vm1518, %v4904, %v4042
        %v4937 = vsel %vm1518, %v4905, %v4044
        %v4938 = vsel %vm1518, %v4906, %v4046
        %v4939 = vsel %vm1518, %v4907, %v4048
        %v4940 = vsel %vm1518, %v4908, %v4050
        %v4941 = vsel %vm1518, %v4909, %v4052
        %v4942 = vsel %vm1518, %v4910, %v4054
        %v4943 = vsel %vm1518, %v4911, %v4056
        %v4944 = vsel %vm1518, %v4912, %v4058
        %v4945 = vsel %vm1518, %v4913, %v4060
        %v4946 = vsel %vm1518, %v4914, %v4062
        %v4947 = vsel %vm1518, %v4915, %v4064
        %v4948 = vsel %vm1518, %v4916, %v4066
        %v4949 = vsel %vm1518, %v4917, %v4068
        %v4950 = vsel %vm1518, %v4918, %v4070
        %v4951 = vsel %vm1518, %v4919, %v4072
        %v4952 = vsel %vm1518, %v4920, %v4074
        %v4953 = vsel %vm1518, %v4921, %v4076
        %v4954 = vsel %vm1518, %v4922, %v4078
        %v4955 = vsel %vm1518, %v4923, %v4080
        %v4956 = vsel %vm1518, %v4924, %v4082
        %v4957 = vsel %vm1518, %v4925, %v4084
        %v4958 = vsel %vm1518, %v4926, %v4086
        %v4959 = vsel %vm1518, %v4927, %v4088
        %v4960 = vsel %vm1518, %v4928, %v4090
        %v4961 = vsel %vm1518, %v4929, %v4092
        %v4962 = vsel %vm1518, %v4930, %v4094
        %v4963 = vsel %vm1518, %v4931, %v4096
        %v4964 = vsel %vm1518, %v4932, %v4098
        %v4965 = vsel %vm1518, %v4933, %v4100
        %v4966 = vsel %vm1518, %v4934, %v4102
        %v4967 = vsel %vm1551, %v4935, %v4168
        %v4968 = vsel %vm1551, %v4936, %v4170
        %v4969 = vsel %vm1551, %v4937, %v4172
        %v4970 = vsel %vm1551, %v4938, %v4174
        %v4971 = vsel %vm1551, %v4939, %v4176
        %v4972 = vsel %vm1551, %v4940, %v4178
        %v4973 = vsel %vm1551, %v4941, %v4180
        %v4974 = vsel %vm1551, %v4942, %v4182
        %v4975 = vsel %vm1551, %v4943, %v4184
        %v4976 = vsel %vm1551, %v4944, %v4186
        %v4977 = vsel %vm1551, %v4945, %v4188
        %v4978 = vsel %vm1551, %v4946, %v4190
        %v4979 = vsel %vm1551, %v4947, %v4192
        %v4980 = vsel %vm1551, %v4948, %v4194
        %v4981 = vsel %vm1551, %v4949, %v4196
        %v4982 = vsel %vm1551, %v4950, %v4198
        %v4983 = vsel %vm1551, %v4951, %v4200
        %v4984 = vsel %vm1551, %v4952, %v4202
        %v4985 = vsel %vm1551, %v4953, %v4204
        %v4986 = vsel %vm1551, %v4954, %v4206
        %v4987 = vsel %vm1551, %v4955, %v4208
        %v4988 = vsel %vm1551, %v4956, %v4210
        %v4989 = vsel %vm1551, %v4957, %v4212
        %v4990 = vsel %vm1551, %v4958, %v4214
        %v4991 = vsel %vm1551, %v4959, %v4216
        %v4992 = vsel %vm1551, %v4960, %v4218
        %v4993 = vsel %vm1551, %v4961, %v4220
        %v4994 = vsel %vm1551, %v4962, %v4222
        %v4995 = vsel %vm1551, %v4963, %v4224
        %v4996 = vsel %vm1551, %v4964, %v4226
        %v4997 = vsel %vm1551, %v4965, %v4228
        %v4998 = vsel %vm1551, %v4966, %v4230
        %v4999 = vsel %vm1584, %v4967, %v4296
        %v5000 = vsel %vm1584, %v4968, %v4298
        %v5001 = vsel %vm1584, %v4969, %v4300
        %v5002 = vsel %vm1584, %v4970, %v4302
        %v5003 = vsel %vm1584, %v4971, %v4304
        %v5004 = vsel %vm1584, %v4972, %v4306
        %v5005 = vsel %vm1584, %v4973, %v4308
        %v5006 = vsel %vm1584, %v4974, %v4310
        %v5007 = vsel %vm1584, %v4975, %v4312
        %v5008 = vsel %vm1584, %v4976, %v4314
        %v5009 = vsel %vm1584, %v4977, %v4316
        %v5010 = vsel %vm1584, %v4978, %v4318
        %v5011 = vsel %vm1584, %v4979, %v4320
        %v5012 = vsel %vm1584, %v4980, %v4322
        %v5013 = vsel %vm1584, %v4981, %v4324
        %v5014 = vsel %vm1584, %v4982, %v4326
        %v5015 = vsel %vm1584, %v4983, %v4328
        %v5016 = vsel %vm1584, %v4984, %v4330
        %v5017 = vsel %vm1584, %v4985, %v4332
        %v5018 = vsel %vm1584, %v4986, %v4334
        %v5019 = vsel %vm1584, %v4987, %v4336
        %v5020 = vsel %vm1584, %v4988, %v4338
        %v5021 = vsel %vm1584, %v4989, %v4340
        %v5022 = vsel %vm1584, %v4990, %v4342
        %v5023 = vsel %vm1584, %v4991, %v4344
        %v5024 = vsel %vm1584, %v4992, %v4346
        %v5025 = vsel %vm1584, %v4993, %v4348
        %v5026 = vsel %vm1584, %v4994, %v4350
        %v5027 = vsel %vm1584, %v4995, %v4352
        %v5028 = vsel %vm1584, %v4996, %v4354
        %v5029 = vsel %vm1584, %v4997, %v4356
        %v5030 = vsel %vm1584, %v4998, %v4358
        %v5031 = vsel %vm1617, %v4999, %v4424
        %v5032 = vsel %vm1617, %v5000, %v4426
        %v5033 = vsel %vm1617, %v5001, %v4428
        %v5034 = vsel %vm1617, %v5002, %v4430
        %v5035 = vsel %vm1617, %v5003, %v4432
        %v5036 = vsel %vm1617, %v5004, %v4434
        %v5037 = vsel %vm1617, %v5005, %v4436
        %v5038 = vsel %vm1617, %v5006, %v4438
        %v5039 = vsel %vm1617, %v5007, %v4440
        %v5040 = vsel %vm1617, %v5008, %v4442
        %v5041 = vsel %vm1617, %v5009, %v4444
        %v5042 = vsel %vm1617, %v5010, %v4446
        %v5043 = vsel %vm1617, %v5011, %v4448
        %v5044 = vsel %vm1617, %v5012, %v4450
        %v5045 = vsel %vm1617, %v5013, %v4452
        %v5046 = vsel %vm1617, %v5014, %v4454
        %v5047 = vsel %vm1617, %v5015, %v4456
        %v5048 = vsel %vm1617, %v5016, %v4458
        %v5049 = vsel %vm1617, %v5017, %v4460
        %v5050 = vsel %vm1617, %v5018, %v4462
        %v5051 = vsel %vm1617, %v5019, %v4464
        %v5052 = vsel %vm1617, %v5020, %v4466
        %v5053 = vsel %vm1617, %v5021, %v4468
        %v5054 = vsel %vm1617, %v5022, %v4470
        %v5055 = vsel %vm1617, %v5023, %v4472
        %v5056 = vsel %vm1617, %v5024, %v4474
        %v5057 = vsel %vm1617, %v5025, %v4476
        %v5058 = vsel %vm1617, %v5026, %v4478
        %v5059 = vsel %vm1617, %v5027, %v4480
        %v5060 = vsel %vm1617, %v5028, %v4482
        %v5061 = vsel %vm1617, %v5029, %v4484
        %v5062 = vsel %vm1617, %v5030, %v4486
        %v5063 = vsel %vm1650, %v5031, %v4552
        %v5064 = vsel %vm1650, %v5032, %v4554
        %v5065 = vsel %vm1650, %v5033, %v4556
        %v5066 = vsel %vm1650, %v5034, %v4558
        %v5067 = vsel %vm1650, %v5035, %v4560
        %v5068 = vsel %vm1650, %v5036, %v4562
        %v5069 = vsel %vm1650, %v5037, %v4564
        %v5070 = vsel %vm1650, %v5038, %v4566
        %v5071 = vsel %vm1650, %v5039, %v4568
        %v5072 = vsel %vm1650, %v5040, %v4570
        %v5073 = vsel %vm1650, %v5041, %v4572
        %v5074 = vsel %vm1650, %v5042, %v4574
        %v5075 = vsel %vm1650, %v5043, %v4576
        %v5076 = vsel %vm1650, %v5044, %v4578
        %v5077 = vsel %vm1650, %v5045, %v4580
        %v5078 = vsel %vm1650, %v5046, %v4582
        %v5079 = vsel %vm1650, %v5047, %v4584
        %v5080 = vsel %vm1650, %v5048, %v4586
        %v5081 = vsel %vm1650, %v5049, %v4588
        %v5082 = vsel %vm1650, %v5050, %v4590
        %v5083 = vsel %vm1650, %v5051, %v4592
        %v5084 = vsel %vm1650, %v5052, %v4594
        %v5085 = vsel %vm1650, %v5053, %v4596
        %v5086 = vsel %vm1650, %v5054, %v4598
        %v5087 = vsel %vm1650, %v5055, %v4600
        %v5088 = vsel %vm1650, %v5056, %v4602
        %v5089 = vsel %vm1650, %v5057, %v4604
        %v5090 = vsel %vm1650, %v5058, %v4606
        %v5091 = vsel %vm1650, %v5059, %v4608
        %v5092 = vsel %vm1650, %v5060, %v4610
        %v5093 = vsel %vm1650, %v5061, %v4612
        %v5094 = vsel %vm1650, %v5062, %v4614
        %v5095 = vsel %vm1683, %v5063, %v4680
        %v5096 = vsel %vm1683, %v5064, %v4682
        %v5097 = vsel %vm1683, %v5065, %v4684
        %v5098 = vsel %vm1683, %v5066, %v4686
        %v5099 = vsel %vm1683, %v5067, %v4688
        %v5100 = vsel %vm1683, %v5068, %v4690
        %v5101 = vsel %vm1683, %v5069, %v4692
        %v5102 = vsel %vm1683, %v5070, %v4694
        %v5103 = vsel %vm1683, %v5071, %v4696
        %v5104 = vsel %vm1683, %v5072, %v4698
        %v5105 = vsel %vm1683, %v5073, %v4700
        %v5106 = vsel %vm1683, %v5074, %v4702
        %v5107 = vsel %vm1683, %v5075, %v4704
        %v5108 = vsel %vm1683, %v5076, %v4706
        %v5109 = vsel %vm1683, %v5077, %v4708
        %v5110 = vsel %vm1683, %v5078, %v4710
        %v5111 = vsel %vm1683, %v5079, %v4712
        %v5112 = vsel %vm1683, %v5080, %v4714
        %v5113 = vsel %vm1683, %v5081, %v4716
        %v5114 = vsel %vm1683, %v5082, %v4718
        %v5115 = vsel %vm1683, %v5083, %v4720
        %v5116 = vsel %vm1683, %v5084, %v4722
        %v5117 = vsel %vm1683, %v5085, %v4724
        %v5118 = vsel %vm1683, %v5086, %v4726
        %v5119 = vsel %vm1683, %v5087, %v4728
        %v5120 = vsel %vm1683, %v5088, %v4730
        %v5121 = vsel %vm1683, %v5089, %v4732
        %v5122 = vsel %vm1683, %v5090, %v4734
        %v5123 = vsel %vm1683, %v5091, %v4736
        %v5124 = vsel %vm1683, %v5092, %v4738
        %v5125 = vsel %vm1683, %v5093, %v4740
        %v5126 = vsel %vm1683, %v5094, %v4742
        %v5127 = vsel %vm1716, %v5095, %v4808
        %v5128 = vsel %vm1716, %v5096, %v4810
        %v5129 = vsel %vm1716, %v5097, %v4812
        %v5130 = vsel %vm1716, %v5098, %v4814
        %v5131 = vsel %vm1716, %v5099, %v4816
        %v5132 = vsel %vm1716, %v5100, %v4818
        %v5133 = vsel %vm1716, %v5101, %v4820
        %v5134 = vsel %vm1716, %v5102, %v4822
        %v5135 = vsel %vm1716, %v5103, %v4824
        %v5136 = vsel %vm1716, %v5104, %v4826
        %v5137 = vsel %vm1716, %v5105, %v4828
        %v5138 = vsel %vm1716, %v5106, %v4830
        %v5139 = vsel %vm1716, %v5107, %v4832
        %v5140 = vsel %vm1716, %v5108, %v4834
        %v5141 = vsel %vm1716, %v5109, %v4836
        %v5142 = vsel %vm1716, %v5110, %v4838
        %v5143 = vsel %vm1716, %v5111, %v4840
        %v5144 = vsel %vm1716, %v5112, %v4842
        %v5145 = vsel %vm1716, %v5113, %v4844
        %v5146 = vsel %vm1716, %v5114, %v4846
        %v5147 = vsel %vm1716, %v5115, %v4848
        %v5148 = vsel %vm1716, %v5116, %v4850
        %v5149 = vsel %vm1716, %v5117, %v4852
        %v5150 = vsel %vm1716, %v5118, %v4854
        %v5151 = vsel %vm1716, %v5119, %v4856
        %v5152 = vsel %vm1716, %v5120, %v4858
        %v5153 = vsel %vm1716, %v5121, %v4860
        %v5154 = vsel %vm1716, %v5122, %v4862
        %v5155 = vsel %vm1716, %v5123, %v4864
        %v5156 = vsel %vm1716, %v5124, %v4866
        %v5157 = vsel %vm1716, %v5125, %v4868
        %v5158 = vsel %vm1716, %v5126, %v4870
        %v5159 = vpack.c.bf16 %v5128, %v5127
        %v5160 = vpack.c.bf16 %v5130, %v5129
        %v5161 = vpack.c.bf16 %v5132, %v5131
        %v5162 = vpack.c.bf16 %v5134, %v5133
        %v5163 = vpack.c.bf16 %v5136, %v5135
        %v5164 = vpack.c.bf16 %v5138, %v5137
        %v5165 = vpack.c.bf16 %v5140, %v5139
        %v5166 = vpack.c.bf16 %v5142, %v5141
        %v5167 = vpack.c.bf16 %v5144, %v5143
        %v5168 = vpack.c.bf16 %v5146, %v5145
        %v5169 = vpack.c.bf16 %v5148, %v5147
        %v5170 = vpack.c.bf16 %v5150, %v5149
        %v5171 = vpack.c.bf16 %v5152, %v5151
        %v5172 = vpack.c.bf16 %v5154, %v5153
        %v5173 = vpack.c.bf16 %v5156, %v5155
        %v5174 = vpack.c.bf16 %v5158, %v5157
        %s5175 = scalar_lea.vmem %s1, 16
        %v5176 = vld [vmem:[%s5175] sm:$0xf]
        %v5177 = vld [vmem:[%s5175 + $0x4] sm:$0xf]
        %s5178 = scalar_lea.vmem %s2, 32
        %v5179 = vld [vmem:[%s5178] sm:$0xff]
        %v5180 = vld [vmem:[%s5178 + $0x8] sm:$0xff]
        %5182 = vset.pattern.permute.xlu0 0
        %5183 = vperm.xlu0 %5182, %v5179
        %v5184 = vpop.permute.xlu0 %5183
        %5187 = vset.pattern.permute.xlu0 0
        %5188 = vperm.xlu0 %5187, %v5180
        %v5189 = vpop.permute.xlu0 %5188
        %v5193 = vunpack.c.l.b16 %v5176
        %v5194 = vunpack.c.l.b16 %v5177
        %v5195 = vpack.c.b16 %v5194, %v5193
        %v5197 = vsel %vm1784, %v5195, 0
        %v5200 = vsel %vm1784, %v5159, 0
        %v5203 = vsel %vm1784, %v5160, 0
        %v5206 = vsel %vm1784, %v5161, 0
        %v5209 = vsel %vm1784, %v5162, 0
        %v5212 = vsel %vm1784, %v5163, 0
        %v5215 = vsel %vm1784, %v5164, 0
        %v5218 = vsel %vm1784, %v5165, 0
        %v5221 = vsel %vm1784, %v5166, 0
        %v5224 = vsel %vm1784, %v5167, 0
        %v5227 = vsel %vm1784, %v5168, 0
        %v5230 = vsel %vm1784, %v5169, 0
        %v5233 = vsel %vm1784, %v5170, 0
        %v5236 = vsel %vm1784, %v5171, 0
        %v5239 = vsel %vm1784, %v5172, 0
        %v5242 = vsel %vm1784, %v5173, 0
        %v5245 = vsel %vm1784, %v5174, 0
        %5247 = vmatprep.subr.bf16.mxu0 0
        %5248 = vmatpush1.bf16.xpose.msra.mxu0 %v5221
        %5249 = vmatprep.subr.bf16.mxu0 0
        %5250 = vmatpush1.bf16.xpose.msra.mxu0 %v5218
        %5251 = vmatprep.subr.bf16.mxu0 0
        %5252 = vmatpush1.bf16.xpose.msra.mxu0 %v5215
        %5253 = vmatprep.subr.bf16.mxu0 0
        %5254 = vmatpush1.bf16.xpose.msra.mxu0 %v5212
        %5255 = vmatprep.subr.bf16.mxu0 0
        %5256 = vmatpush1.bf16.xpose.msra.mxu0 %v5209
        %5257 = vmatprep.subr.bf16.mxu0 0
        %5258 = vmatpush1.bf16.xpose.msra.mxu0 %v5206
        %5259 = vmatprep.subr.bf16.mxu0 0
        %5260 = vmatpush1.bf16.xpose.msra.mxu0 %v5203
        %5261 = vmatprep.subr.bf16.mxu0 0
        %5262 = vmatpush1.bf16.xpose.msra.mxu0 %v5200
        %5263 = vmatprep.subr.bf16.mxu0 0
        %5264 = vmatpush2.bf16.xpose.msra.mxu0 %v5245
        %5265 = vmatprep.subr.bf16.mxu0 0
        %5266 = vmatpush2.bf16.xpose.msra.mxu0 %v5242
        %5267 = vmatprep.subr.bf16.mxu0 0
        %5268 = vmatpush2.bf16.xpose.msra.mxu0 %v5239
        %5269 = vmatprep.subr.bf16.mxu0 0
        %5270 = vmatpush2.bf16.xpose.msra.mxu0 %v5236
        %5271 = vmatprep.subr.bf16.mxu0 0
        %5272 = vmatpush2.bf16.xpose.msra.mxu0 %v5233
        %5273 = vmatprep.subr.bf16.mxu0 0
        %5274 = vmatpush2.bf16.xpose.msra.mxu0 %v5230
        %5275 = vmatprep.subr.bf16.mxu0 0
        %5276 = vmatpush2.bf16.xpose.msra.mxu0 %v5227
        %5277 = vmatprep.subr.bf16.mxu0 0
        %5278 = vmatpush2.bf16.xpose.msra.mxu0 %v5224
        %5279 = vmatprep.mubr.bf16.mxu0 0
        %5280 = vmatmul.mubr.bf16.gmra.mxu0 %v5197
        %v5281 = vpop.f32.mrf.mxu0
        %v5282 = vadd.f32 %v5184, %v5281
        %v5283 = vpop.f32.mrf.mxu0
        %v5284 = vadd.f32 %v5184, %v5283
        %v5285 = vpop.f32.mrf.mxu0
        %v5286 = vadd.f32 %v5189, %v5285
        %v5287 = vpop.f32.mrf.mxu0
        %v5288 = vadd.f32 %v5189, %v5287
        %5289 = vdwg.mxu0
        %s5290 = scalar_lea.vmem %s163, 64 [#allocation2]
        %5291 = vst [vmem:[%s5290] sm:$0xff] %v5282
        %5292 = vst [vmem:[%s5290 + $0x8] sm:$0xff] %v5284
        %5293 = vst [vmem:[%s5290 + $0x10] sm:$0xff] %v5286
        %5294 = vst [vmem:[%s5290 + $0x18] sm:$0xff] %v5288
        %s5295 = scalar_lea.vmem %s168, 336
        %v5296 = vld [vmem:[%s5295 + $0x6] sm:$0xff]
        %v5297 = vld [vmem:[%s5295 + $0xe] sm:$0xff]
        %v5298 = vld [vmem:[%s5295 + $0x3e] sm:$0xff]
        %v5299 = vld [vmem:[%s5295 + $0x46] sm:$0xff]
        %v5300 = vld [vmem:[%s5295 + $0x76] sm:$0xff]
        %v5301 = vld [vmem:[%s5295 + $0x7e] sm:$0xff]
        %v5302 = vld [vmem:[%s5295 + $0xae] sm:$0xff]
        %v5303 = vld [vmem:[%s5295 + $0xb6] sm:$0xff]
        %v5304 = vld [vmem:[%s5295 + $0xe6] sm:$0xff]
        %v5305 = vld [vmem:[%s5295 + $0xee] sm:$0xff]
        %v5306 = vld [vmem:[%s5295 + $0x11e] sm:$0xff]
        %v5307 = vld [vmem:[%s5295 + $0x126] sm:$0xff]
        %v5308 = vld [vmem:[%s5295 + $0x156] sm:$0xff]
        %v5309 = vld [vmem:[%s5295 + $0x15e] sm:$0xff]
        %v5310 = vld [vmem:[%s5295 + $0x18e] sm:$0xff]
        %v5311 = vld [vmem:[%s5295 + $0x196] sm:$0xff]
        %v5312 = vld [vmem:[%s5295 + $0x1c6] sm:$0xff]
        %v5313 = vld [vmem:[%s5295 + $0x1ce] sm:$0xff]
        %v5314 = vld [vmem:[%s5295 + $0x1fe] sm:$0xff]
        %v5315 = vld [vmem:[%s5295 + $0x206] sm:$0xff]
        %v5316 = vld [vmem:[%s5295 + $0x236] sm:$0xff]
        %v5317 = vld [vmem:[%s5295 + $0x23e] sm:$0xff]
        %v5318 = vld [vmem:[%s5295 + $0x26e] sm:$0xff]
        %v5319 = vld [vmem:[%s5295 + $0x276] sm:$0xff]
        %v5320 = vld [vmem:[%s5295 + $0x2a6] sm:$0xff]
        %v5321 = vld [vmem:[%s5295 + $0x2ae] sm:$0xff]
        %v5322 = vld [vmem:[%s5295 + $0x2de] sm:$0xff]
        %v5323 = vld [vmem:[%s5295 + $0x2e6] sm:$0xff]
        %v5324 = vld [vmem:[%s5295 + $0x316] sm:$0xff]
        %v5325 = vld [vmem:[%s5295 + $0x31e] sm:$0xff]
        %v5326 = vld [vmem:[%s5295 + $0x34e] sm:$0xff]
        %v5327 = vld [vmem:[%s5295 + $0x356] sm:$0xff]
        %v5328 = vld [vmem:[%s5295 + $0x12] sm:$0xff]
        %v5329 = vld [vmem:[%s5295 + $0x1a] sm:$0xff]
        %v5330 = vld [vmem:[%s5295 + $0x4a] sm:$0xff]
        %v5331 = vld [vmem:[%s5295 + $0x52] sm:$0xff]
        %v5332 = vld [vmem:[%s5295 + $0x82] sm:$0xff]
        %v5333 = vld [vmem:[%s5295 + $0x8a] sm:$0xff]
        %v5334 = vld [vmem:[%s5295 + $0xba] sm:$0xff]
        %v5335 = vld [vmem:[%s5295 + $0xc2] sm:$0xff]
        %v5336 = vld [vmem:[%s5295 + $0xf2] sm:$0xff]
        %v5337 = vld [vmem:[%s5295 + $0xfa] sm:$0xff]
        %v5338 = vld [vmem:[%s5295 + $0x12a] sm:$0xff]
        %v5339 = vld [vmem:[%s5295 + $0x132] sm:$0xff]
        %v5340 = vld [vmem:[%s5295 + $0x162] sm:$0xff]
        %v5341 = vld [vmem:[%s5295 + $0x16a] sm:$0xff]
        %v5342 = vld [vmem:[%s5295 + $0x19a] sm:$0xff]
        %v5343 = vld [vmem:[%s5295 + $0x1a2] sm:$0xff]
        %v5344 = vld [vmem:[%s5295 + $0x1d2] sm:$0xff]
        %v5345 = vld [vmem:[%s5295 + $0x1da] sm:$0xff]
        %v5346 = vld [vmem:[%s5295 + $0x20a] sm:$0xff]
        %v5347 = vld [vmem:[%s5295 + $0x212] sm:$0xff]
        %v5348 = vld [vmem:[%s5295 + $0x242] sm:$0xff]
        %v5349 = vld [vmem:[%s5295 + $0x24a] sm:$0xff]
        %v5350 = vld [vmem:[%s5295 + $0x27a] sm:$0xff]
        %v5351 = vld [vmem:[%s5295 + $0x282] sm:$0xff]
        %v5352 = vld [vmem:[%s5295 + $0x2b2] sm:$0xff]
        %v5353 = vld [vmem:[%s5295 + $0x2ba] sm:$0xff]
        %v5354 = vld [vmem:[%s5295 + $0x2ea] sm:$0xff]
        %v5355 = vld [vmem:[%s5295 + $0x2f2] sm:$0xff]
        %v5356 = vld [vmem:[%s5295 + $0x322] sm:$0xff]
        %v5357 = vld [vmem:[%s5295 + $0x32a] sm:$0xff]
        %v5358 = vld [vmem:[%s5295 + $0x35a] sm:$0xff]
        %v5359 = vld [vmem:[%s5295 + $0x362] sm:$0xff]
        %v5360 = vld [vmem:[%s5295 + $0x1e] sm:$0xff]
        %v5361 = vld [vmem:[%s5295 + $0x26] sm:$0xff]
        %v5362 = vld [vmem:[%s5295 + $0x56] sm:$0xff]
        %v5363 = vld [vmem:[%s5295 + $0x5e] sm:$0xff]
        %v5364 = vld [vmem:[%s5295 + $0x8e] sm:$0xff]
        %v5365 = vld [vmem:[%s5295 + $0x96] sm:$0xff]
        %v5366 = vld [vmem:[%s5295 + $0xc6] sm:$0xff]
        %v5367 = vld [vmem:[%s5295 + $0xce] sm:$0xff]
        %v5368 = vld [vmem:[%s5295 + $0xfe] sm:$0xff]
        %v5369 = vld [vmem:[%s5295 + $0x106] sm:$0xff]
        %v5370 = vld [vmem:[%s5295 + $0x136] sm:$0xff]
        %v5371 = vld [vmem:[%s5295 + $0x13e] sm:$0xff]
        %v5372 = vld [vmem:[%s5295 + $0x16e] sm:$0xff]
        %v5373 = vld [vmem:[%s5295 + $0x176] sm:$0xff]
        %v5374 = vld [vmem:[%s5295 + $0x1a6] sm:$0xff]
        %v5375 = vld [vmem:[%s5295 + $0x1ae] sm:$0xff]
        %v5376 = vld [vmem:[%s5295 + $0x1de] sm:$0xff]
        %v5377 = vld [vmem:[%s5295 + $0x1e6] sm:$0xff]
        %v5378 = vld [vmem:[%s5295 + $0x216] sm:$0xff]
        %v5379 = vld [vmem:[%s5295 + $0x21e] sm:$0xff]
        %v5380 = vld [vmem:[%s5295 + $0x24e] sm:$0xff]
        %v5381 = vld [vmem:[%s5295 + $0x256] sm:$0xff]
        %v5382 = vld [vmem:[%s5295 + $0x286] sm:$0xff]
        %v5383 = vld [vmem:[%s5295 + $0x28e] sm:$0xff]
        %v5384 = vld [vmem:[%s5295 + $0x2be] sm:$0xff]
        %v5385 = vld [vmem:[%s5295 + $0x2c6] sm:$0xff]
        %v5386 = vld [vmem:[%s5295 + $0x2f6] sm:$0xff]
        %v5387 = vld [vmem:[%s5295 + $0x2fe] sm:$0xff]
        %v5388 = vld [vmem:[%s5295 + $0x32e] sm:$0xff]
        %v5389 = vld [vmem:[%s5295 + $0x336] sm:$0xff]
        %v5390 = vld [vmem:[%s5295 + $0x366] sm:$0xff]
        %v5391 = vld [vmem:[%s5295 + $0x36e] sm:$0xff]
        %v5392 = vld [vmem:[%s267 + $0x6] sm:$0xff]
        %v5393 = vld [vmem:[%s267 + $0xe] sm:$0xff]
        %v5394 = vld [vmem:[%s267 + $0x3e] sm:$0xff]
        %v5395 = vld [vmem:[%s267 + $0x46] sm:$0xff]
        %v5396 = vld [vmem:[%s267 + $0x76] sm:$0xff]
        %v5397 = vld [vmem:[%s267 + $0x7e] sm:$0xff]
        %v5398 = vld [vmem:[%s267 + $0xae] sm:$0xff]
        %v5399 = vld [vmem:[%s267 + $0xb6] sm:$0xff]
        %v5400 = vld [vmem:[%s267 + $0xe6] sm:$0xff]
        %v5401 = vld [vmem:[%s267 + $0xee] sm:$0xff]
        %v5402 = vld [vmem:[%s267 + $0x11e] sm:$0xff]
        %v5403 = vld [vmem:[%s267 + $0x126] sm:$0xff]
        %v5404 = vld [vmem:[%s267 + $0x156] sm:$0xff]
        %v5405 = vld [vmem:[%s267 + $0x15e] sm:$0xff]
        %v5406 = vld [vmem:[%s267 + $0x18e] sm:$0xff]
        %v5407 = vld [vmem:[%s267 + $0x196] sm:$0xff]
        %v5408 = vld [vmem:[%s267 + $0x1c6] sm:$0xff]
        %v5409 = vld [vmem:[%s267 + $0x1ce] sm:$0xff]
        %v5410 = vld [vmem:[%s267 + $0x1fe] sm:$0xff]
        %v5411 = vld [vmem:[%s267 + $0x206] sm:$0xff]
        %v5412 = vld [vmem:[%s267 + $0x236] sm:$0xff]
        %v5413 = vld [vmem:[%s267 + $0x23e] sm:$0xff]
        %v5414 = vld [vmem:[%s267 + $0x26e] sm:$0xff]
        %v5415 = vld [vmem:[%s267 + $0x276] sm:$0xff]
        %v5416 = vld [vmem:[%s267 + $0x2a6] sm:$0xff]
        %v5417 = vld [vmem:[%s267 + $0x2ae] sm:$0xff]
        %v5418 = vld [vmem:[%s267 + $0x2de] sm:$0xff]
        %v5419 = vld [vmem:[%s267 + $0x2e6] sm:$0xff]
        %v5420 = vld [vmem:[%s267 + $0x316] sm:$0xff]
        %v5421 = vld [vmem:[%s267 + $0x31e] sm:$0xff]
        %v5422 = vld [vmem:[%s267 + $0x34e] sm:$0xff]
        %v5423 = vld [vmem:[%s267 + $0x356] sm:$0xff]
        %v5424 = vld [vmem:[%s267 + $0x12] sm:$0xff]
        %v5425 = vld [vmem:[%s267 + $0x1a] sm:$0xff]
        %v5426 = vld [vmem:[%s267 + $0x4a] sm:$0xff]
        %v5427 = vld [vmem:[%s267 + $0x52] sm:$0xff]
        %v5428 = vld [vmem:[%s267 + $0x82] sm:$0xff]
        %v5429 = vld [vmem:[%s267 + $0x8a] sm:$0xff]
        %v5430 = vld [vmem:[%s267 + $0xba] sm:$0xff]
        %v5431 = vld [vmem:[%s267 + $0xc2] sm:$0xff]
        %v5432 = vld [vmem:[%s267 + $0xf2] sm:$0xff]
        %v5433 = vld [vmem:[%s267 + $0xfa] sm:$0xff]
        %v5434 = vld [vmem:[%s267 + $0x12a] sm:$0xff]
        %v5435 = vld [vmem:[%s267 + $0x132] sm:$0xff]
        %v5436 = vld [vmem:[%s267 + $0x162] sm:$0xff]
        %v5437 = vld [vmem:[%s267 + $0x16a] sm:$0xff]
        %v5438 = vld [vmem:[%s267 + $0x19a] sm:$0xff]
        %v5439 = vld [vmem:[%s267 + $0x1a2] sm:$0xff]
        %v5440 = vld [vmem:[%s267 + $0x1d2] sm:$0xff]
        %v5441 = vld [vmem:[%s267 + $0x1da] sm:$0xff]
        %v5442 = vld [vmem:[%s267 + $0x20a] sm:$0xff]
        %v5443 = vld [vmem:[%s267 + $0x212] sm:$0xff]
        %v5444 = vld [vmem:[%s267 + $0x242] sm:$0xff]
        %v5445 = vld [vmem:[%s267 + $0x24a] sm:$0xff]
        %v5446 = vld [vmem:[%s267 + $0x27a] sm:$0xff]
        %v5447 = vld [vmem:[%s267 + $0x282] sm:$0xff]
        %v5448 = vld [vmem:[%s267 + $0x2b2] sm:$0xff]
        %v5449 = vld [vmem:[%s267 + $0x2ba] sm:$0xff]
        %v5450 = vld [vmem:[%s267 + $0x2ea] sm:$0xff]
        %v5451 = vld [vmem:[%s267 + $0x2f2] sm:$0xff]
        %v5452 = vld [vmem:[%s267 + $0x322] sm:$0xff]
        %v5453 = vld [vmem:[%s267 + $0x32a] sm:$0xff]
        %v5454 = vld [vmem:[%s267 + $0x35a] sm:$0xff]
        %v5455 = vld [vmem:[%s267 + $0x362] sm:$0xff]
        %v5456 = vld [vmem:[%s267 + $0x1e] sm:$0xff]
        %v5457 = vld [vmem:[%s267 + $0x26] sm:$0xff]
        %v5458 = vld [vmem:[%s267 + $0x56] sm:$0xff]
        %v5459 = vld [vmem:[%s267 + $0x5e] sm:$0xff]
        %v5460 = vld [vmem:[%s267 + $0x8e] sm:$0xff]
        %v5461 = vld [vmem:[%s267 + $0x96] sm:$0xff]
        %v5462 = vld [vmem:[%s267 + $0xc6] sm:$0xff]
        %v5463 = vld [vmem:[%s267 + $0xce] sm:$0xff]
        %v5464 = vld [vmem:[%s267 + $0xfe] sm:$0xff]
        %v5465 = vld [vmem:[%s267 + $0x106] sm:$0xff]
        %v5466 = vld [vmem:[%s267 + $0x136] sm:$0xff]
        %v5467 = vld [vmem:[%s267 + $0x13e] sm:$0xff]
        %v5468 = vld [vmem:[%s267 + $0x16e] sm:$0xff]
        %v5469 = vld [vmem:[%s267 + $0x176] sm:$0xff]
        %v5470 = vld [vmem:[%s267 + $0x1a6] sm:$0xff]
        %v5471 = vld [vmem:[%s267 + $0x1ae] sm:$0xff]
        %v5472 = vld [vmem:[%s267 + $0x1de] sm:$0xff]
        %v5473 = vld [vmem:[%s267 + $0x1e6] sm:$0xff]
        %v5474 = vld [vmem:[%s267 + $0x216] sm:$0xff]
        %v5475 = vld [vmem:[%s267 + $0x21e] sm:$0xff]
        %v5476 = vld [vmem:[%s267 + $0x24e] sm:$0xff]
        %v5477 = vld [vmem:[%s267 + $0x256] sm:$0xff]
        %v5478 = vld [vmem:[%s267 + $0x286] sm:$0xff]
        %v5479 = vld [vmem:[%s267 + $0x28e] sm:$0xff]
        %v5480 = vld [vmem:[%s267 + $0x2be] sm:$0xff]
        %v5481 = vld [vmem:[%s267 + $0x2c6] sm:$0xff]
        %v5482 = vld [vmem:[%s267 + $0x2f6] sm:$0xff]
        %v5483 = vld [vmem:[%s267 + $0x2fe] sm:$0xff]
        %v5484 = vld [vmem:[%s267 + $0x32e] sm:$0xff]
        %v5485 = vld [vmem:[%s267 + $0x336] sm:$0xff]
        %v5486 = vld [vmem:[%s267 + $0x366] sm:$0xff]
        %v5487 = vld [vmem:[%s267 + $0x36e] sm:$0xff]
        %s5488 = scalar_lea.vmem %s168, 1680
        %v5489 = vld [vmem:[%s5488 + $0x6] sm:$0xff]
        %v5490 = vld [vmem:[%s5488 + $0xe] sm:$0xff]
        %v5491 = vld [vmem:[%s5488 + $0x3e] sm:$0xff]
        %v5492 = vld [vmem:[%s5488 + $0x46] sm:$0xff]
        %v5493 = vld [vmem:[%s5488 + $0x76] sm:$0xff]
        %v5494 = vld [vmem:[%s5488 + $0x7e] sm:$0xff]
        %v5495 = vld [vmem:[%s5488 + $0xae] sm:$0xff]
        %v5496 = vld [vmem:[%s5488 + $0xb6] sm:$0xff]
        %v5497 = vld [vmem:[%s5488 + $0xe6] sm:$0xff]
        %v5498 = vld [vmem:[%s5488 + $0xee] sm:$0xff]
        %v5499 = vld [vmem:[%s5488 + $0x11e] sm:$0xff]
        %v5500 = vld [vmem:[%s5488 + $0x126] sm:$0xff]
        %v5501 = vld [vmem:[%s5488 + $0x156] sm:$0xff]
        %v5502 = vld [vmem:[%s5488 + $0x15e] sm:$0xff]
        %v5503 = vld [vmem:[%s5488 + $0x18e] sm:$0xff]
        %v5504 = vld [vmem:[%s5488 + $0x196] sm:$0xff]
        %v5505 = vld [vmem:[%s5488 + $0x1c6] sm:$0xff]
        %v5506 = vld [vmem:[%s5488 + $0x1ce] sm:$0xff]
        %v5507 = vld [vmem:[%s5488 + $0x1fe] sm:$0xff]
        %v5508 = vld [vmem:[%s5488 + $0x206] sm:$0xff]
        %v5509 = vld [vmem:[%s5488 + $0x236] sm:$0xff]
        %v5510 = vld [vmem:[%s5488 + $0x23e] sm:$0xff]
        %v5511 = vld [vmem:[%s5488 + $0x26e] sm:$0xff]
        %v5512 = vld [vmem:[%s5488 + $0x276] sm:$0xff]
        %v5513 = vld [vmem:[%s5488 + $0x2a6] sm:$0xff]
        %v5514 = vld [vmem:[%s5488 + $0x2ae] sm:$0xff]
        %v5515 = vld [vmem:[%s5488 + $0x2de] sm:$0xff]
        %v5516 = vld [vmem:[%s5488 + $0x2e6] sm:$0xff]
        %v5517 = vld [vmem:[%s5488 + $0x316] sm:$0xff]
        %v5518 = vld [vmem:[%s5488 + $0x31e] sm:$0xff]
        %v5519 = vld [vmem:[%s5488 + $0x34e] sm:$0xff]
        %v5520 = vld [vmem:[%s5488 + $0x356] sm:$0xff]
        %v5521 = vld [vmem:[%s5488 + $0x12] sm:$0xff]
        %v5522 = vld [vmem:[%s5488 + $0x1a] sm:$0xff]
        %v5523 = vld [vmem:[%s5488 + $0x4a] sm:$0xff]
        %v5524 = vld [vmem:[%s5488 + $0x52] sm:$0xff]
        %v5525 = vld [vmem:[%s5488 + $0x82] sm:$0xff]
        %v5526 = vld [vmem:[%s5488 + $0x8a] sm:$0xff]
        %v5527 = vld [vmem:[%s5488 + $0xba] sm:$0xff]
        %v5528 = vld [vmem:[%s5488 + $0xc2] sm:$0xff]
        %v5529 = vld [vmem:[%s5488 + $0xf2] sm:$0xff]
        %v5530 = vld [vmem:[%s5488 + $0xfa] sm:$0xff]
        %v5531 = vld [vmem:[%s5488 + $0x12a] sm:$0xff]
        %v5532 = vld [vmem:[%s5488 + $0x132] sm:$0xff]
        %v5533 = vld [vmem:[%s5488 + $0x162] sm:$0xff]
        %v5534 = vld [vmem:[%s5488 + $0x16a] sm:$0xff]
        %v5535 = vld [vmem:[%s5488 + $0x19a] sm:$0xff]
        %v5536 = vld [vmem:[%s5488 + $0x1a2] sm:$0xff]
        %v5537 = vld [vmem:[%s5488 + $0x1d2] sm:$0xff]
        %v5538 = vld [vmem:[%s5488 + $0x1da] sm:$0xff]
        %v5539 = vld [vmem:[%s5488 + $0x20a] sm:$0xff]
        %v5540 = vld [vmem:[%s5488 + $0x212] sm:$0xff]
        %v5541 = vld [vmem:[%s5488 + $0x242] sm:$0xff]
        %v5542 = vld [vmem:[%s5488 + $0x24a] sm:$0xff]
        %v5543 = vld [vmem:[%s5488 + $0x27a] sm:$0xff]
        %v5544 = vld [vmem:[%s5488 + $0x282] sm:$0xff]
        %v5545 = vld [vmem:[%s5488 + $0x2b2] sm:$0xff]
        %v5546 = vld [vmem:[%s5488 + $0x2ba] sm:$0xff]
        %v5547 = vld [vmem:[%s5488 + $0x2ea] sm:$0xff]
        %v5548 = vld [vmem:[%s5488 + $0x2f2] sm:$0xff]
        %v5549 = vld [vmem:[%s5488 + $0x322] sm:$0xff]
        %v5550 = vld [vmem:[%s5488 + $0x32a] sm:$0xff]
        %v5551 = vld [vmem:[%s5488 + $0x35a] sm:$0xff]
        %v5552 = vld [vmem:[%s5488 + $0x362] sm:$0xff]
        %v5553 = vld [vmem:[%s5488 + $0x1e] sm:$0xff]
        %v5554 = vld [vmem:[%s5488 + $0x26] sm:$0xff]
        %v5555 = vld [vmem:[%s5488 + $0x56] sm:$0xff]
        %v5556 = vld [vmem:[%s5488 + $0x5e] sm:$0xff]
        %v5557 = vld [vmem:[%s5488 + $0x8e] sm:$0xff]
        %v5558 = vld [vmem:[%s5488 + $0x96] sm:$0xff]
        %v5559 = vld [vmem:[%s5488 + $0xc6] sm:$0xff]
        %v5560 = vld [vmem:[%s5488 + $0xce] sm:$0xff]
        %v5561 = vld [vmem:[%s5488 + $0xfe] sm:$0xff]
        %v5562 = vld [vmem:[%s5488 + $0x106] sm:$0xff]
        %v5563 = vld [vmem:[%s5488 + $0x136] sm:$0xff]
        %v5564 = vld [vmem:[%s5488 + $0x13e] sm:$0xff]
        %v5565 = vld [vmem:[%s5488 + $0x16e] sm:$0xff]
        %v5566 = vld [vmem:[%s5488 + $0x176] sm:$0xff]
        %v5567 = vld [vmem:[%s5488 + $0x1a6] sm:$0xff]
        %v5568 = vld [vmem:[%s5488 + $0x1ae] sm:$0xff]
        %v5569 = vld [vmem:[%s5488 + $0x1de] sm:$0xff]
        %v5570 = vld [vmem:[%s5488 + $0x1e6] sm:$0xff]
        %v5571 = vld [vmem:[%s5488 + $0x216] sm:$0xff]
        %v5572 = vld [vmem:[%s5488 + $0x21e] sm:$0xff]
        %v5573 = vld [vmem:[%s5488 + $0x24e] sm:$0xff]
        %v5574 = vld [vmem:[%s5488 + $0x256] sm:$0xff]
        %v5575 = vld [vmem:[%s5488 + $0x286] sm:$0xff]
        %v5576 = vld [vmem:[%s5488 + $0x28e] sm:$0xff]
        %v5577 = vld [vmem:[%s5488 + $0x2be] sm:$0xff]
        %v5578 = vld [vmem:[%s5488 + $0x2c6] sm:$0xff]
        %v5579 = vld [vmem:[%s5488 + $0x2f6] sm:$0xff]
        %v5580 = vld [vmem:[%s5488 + $0x2fe] sm:$0xff]
        %v5581 = vld [vmem:[%s5488 + $0x32e] sm:$0xff]
        %v5582 = vld [vmem:[%s5488 + $0x336] sm:$0xff]
        %v5583 = vld [vmem:[%s5488 + $0x366] sm:$0xff]
        %v5584 = vld [vmem:[%s5488 + $0x36e] sm:$0xff]
        %5617 = vrot.lane.b32.xlu0 %v5328, 8
        %v5618 = vpop.permute.xlu0 %5617
        %5619 = vrot.lane.b32.xlu0 %v5329, 8
        %v5620 = vpop.permute.xlu0 %5619
        %5621 = vrot.lane.b32.xlu0 %v5330, 8
        %v5622 = vpop.permute.xlu0 %5621
        %5623 = vrot.lane.b32.xlu0 %v5331, 8
        %v5624 = vpop.permute.xlu0 %5623
        %5625 = vrot.lane.b32.xlu0 %v5332, 8
        %v5626 = vpop.permute.xlu0 %5625
        %5627 = vrot.lane.b32.xlu0 %v5333, 8
        %v5628 = vpop.permute.xlu0 %5627
        %5629 = vrot.lane.b32.xlu0 %v5334, 8
        %v5630 = vpop.permute.xlu0 %5629
        %5631 = vrot.lane.b32.xlu0 %v5335, 8
        %v5632 = vpop.permute.xlu0 %5631
        %5633 = vrot.lane.b32.xlu0 %v5336, 8
        %v5634 = vpop.permute.xlu0 %5633
        %5635 = vrot.lane.b32.xlu0 %v5337, 8
        %v5636 = vpop.permute.xlu0 %5635
        %5637 = vrot.lane.b32.xlu0 %v5338, 8
        %v5638 = vpop.permute.xlu0 %5637
        %5639 = vrot.lane.b32.xlu0 %v5339, 8
        %v5640 = vpop.permute.xlu0 %5639
        %5641 = vrot.lane.b32.xlu0 %v5340, 8
        %v5642 = vpop.permute.xlu0 %5641
        %5643 = vrot.lane.b32.xlu0 %v5341, 8
        %v5644 = vpop.permute.xlu0 %5643
        %5645 = vrot.lane.b32.xlu0 %v5342, 8
        %v5646 = vpop.permute.xlu0 %5645
        %5647 = vrot.lane.b32.xlu0 %v5343, 8
        %v5648 = vpop.permute.xlu0 %5647
        %5649 = vrot.lane.b32.xlu0 %v5344, 8
        %v5650 = vpop.permute.xlu0 %5649
        %5651 = vrot.lane.b32.xlu0 %v5345, 8
        %v5652 = vpop.permute.xlu0 %5651
        %5653 = vrot.lane.b32.xlu0 %v5346, 8
        %v5654 = vpop.permute.xlu0 %5653
        %5655 = vrot.lane.b32.xlu0 %v5347, 8
        %v5656 = vpop.permute.xlu0 %5655
        %5657 = vrot.lane.b32.xlu0 %v5348, 8
        %v5658 = vpop.permute.xlu0 %5657
        %5659 = vrot.lane.b32.xlu0 %v5349, 8
        %v5660 = vpop.permute.xlu0 %5659
        %5661 = vrot.lane.b32.xlu0 %v5350, 8
        %v5662 = vpop.permute.xlu0 %5661
        %5663 = vrot.lane.b32.xlu0 %v5351, 8
        %v5664 = vpop.permute.xlu0 %5663
        %5665 = vrot.lane.b32.xlu0 %v5352, 8
        %v5666 = vpop.permute.xlu0 %5665
        %5667 = vrot.lane.b32.xlu0 %v5353, 8
        %v5668 = vpop.permute.xlu0 %5667
        %5669 = vrot.lane.b32.xlu0 %v5354, 8
        %v5670 = vpop.permute.xlu0 %5669
        %5671 = vrot.lane.b32.xlu0 %v5355, 8
        %v5672 = vpop.permute.xlu0 %5671
        %5673 = vrot.lane.b32.xlu0 %v5356, 8
        %v5674 = vpop.permute.xlu0 %5673
        %5675 = vrot.lane.b32.xlu0 %v5357, 8
        %v5676 = vpop.permute.xlu0 %5675
        %5677 = vrot.lane.b32.xlu0 %v5358, 8
        %v5678 = vpop.permute.xlu0 %5677
        %5679 = vrot.lane.b32.xlu0 %v5359, 8
        %v5680 = vpop.permute.xlu0 %5679
        %5745 = vrot.lane.b32.xlu0 %v5360, 16
        %v5746 = vpop.permute.xlu0 %5745
        %5747 = vrot.lane.b32.xlu0 %v5361, 16
        %v5748 = vpop.permute.xlu0 %5747
        %5749 = vrot.lane.b32.xlu0 %v5362, 16
        %v5750 = vpop.permute.xlu0 %5749
        %5751 = vrot.lane.b32.xlu0 %v5363, 16
        %v5752 = vpop.permute.xlu0 %5751
        %5753 = vrot.lane.b32.xlu0 %v5364, 16
        %v5754 = vpop.permute.xlu0 %5753
        %5755 = vrot.lane.b32.xlu0 %v5365, 16
        %v5756 = vpop.permute.xlu0 %5755
        %5757 = vrot.lane.b32.xlu0 %v5366, 16
        %v5758 = vpop.permute.xlu0 %5757
        %5759 = vrot.lane.b32.xlu0 %v5367, 16
        %v5760 = vpop.permute.xlu0 %5759
        %5761 = vrot.lane.b32.xlu0 %v5368, 16
        %v5762 = vpop.permute.xlu0 %5761
        %5763 = vrot.lane.b32.xlu0 %v5369, 16
        %v5764 = vpop.permute.xlu0 %5763
        %5765 = vrot.lane.b32.xlu0 %v5370, 16
        %v5766 = vpop.permute.xlu0 %5765
        %5767 = vrot.lane.b32.xlu0 %v5371, 16
        %v5768 = vpop.permute.xlu0 %5767
        %5769 = vrot.lane.b32.xlu0 %v5372, 16
        %v5770 = vpop.permute.xlu0 %5769
        %5771 = vrot.lane.b32.xlu0 %v5373, 16
        %v5772 = vpop.permute.xlu0 %5771
        %5773 = vrot.lane.b32.xlu0 %v5374, 16
        %v5774 = vpop.permute.xlu0 %5773
        %5775 = vrot.lane.b32.xlu0 %v5375, 16
        %v5776 = vpop.permute.xlu0 %5775
        %5777 = vrot.lane.b32.xlu0 %v5376, 16
        %v5778 = vpop.permute.xlu0 %5777
        %5779 = vrot.lane.b32.xlu0 %v5377, 16
        %v5780 = vpop.permute.xlu0 %5779
        %5781 = vrot.lane.b32.xlu0 %v5378, 16
        %v5782 = vpop.permute.xlu0 %5781
        %5783 = vrot.lane.b32.xlu0 %v5379, 16
        %v5784 = vpop.permute.xlu0 %5783
        %5785 = vrot.lane.b32.xlu0 %v5380, 16
        %v5786 = vpop.permute.xlu0 %5785
        %5787 = vrot.lane.b32.xlu0 %v5381, 16
        %v5788 = vpop.permute.xlu0 %5787
        %5789 = vrot.lane.b32.xlu0 %v5382, 16
        %v5790 = vpop.permute.xlu0 %5789
        %5791 = vrot.lane.b32.xlu0 %v5383, 16
        %v5792 = vpop.permute.xlu0 %5791
        %5793 = vrot.lane.b32.xlu0 %v5384, 16
        %v5794 = vpop.permute.xlu0 %5793
        %5795 = vrot.lane.b32.xlu0 %v5385, 16
        %v5796 = vpop.permute.xlu0 %5795
        %5797 = vrot.lane.b32.xlu0 %v5386, 16
        %v5798 = vpop.permute.xlu0 %5797
        %5799 = vrot.lane.b32.xlu0 %v5387, 16
        %v5800 = vpop.permute.xlu0 %5799
        %5801 = vrot.lane.b32.xlu0 %v5388, 16
        %v5802 = vpop.permute.xlu0 %5801
        %5803 = vrot.lane.b32.xlu0 %v5389, 16
        %v5804 = vpop.permute.xlu0 %5803
        %5805 = vrot.lane.b32.xlu0 %v5390, 16
        %v5806 = vpop.permute.xlu0 %5805
        %5807 = vrot.lane.b32.xlu0 %v5391, 16
        %v5808 = vpop.permute.xlu0 %5807
        %5873 = vrot.lane.b32.xlu0 %v5392, 24
        %v5874 = vpop.permute.xlu0 %5873
        %5875 = vrot.lane.b32.xlu0 %v5393, 24
        %v5876 = vpop.permute.xlu0 %5875
        %5877 = vrot.lane.b32.xlu0 %v5394, 24
        %v5878 = vpop.permute.xlu0 %5877
        %5879 = vrot.lane.b32.xlu0 %v5395, 24
        %v5880 = vpop.permute.xlu0 %5879
        %5881 = vrot.lane.b32.xlu0 %v5396, 24
        %v5882 = vpop.permute.xlu0 %5881
        %5883 = vrot.lane.b32.xlu0 %v5397, 24
        %v5884 = vpop.permute.xlu0 %5883
        %5885 = vrot.lane.b32.xlu0 %v5398, 24
        %v5886 = vpop.permute.xlu0 %5885
        %5887 = vrot.lane.b32.xlu0 %v5399, 24
        %v5888 = vpop.permute.xlu0 %5887
        %5889 = vrot.lane.b32.xlu0 %v5400, 24
        %v5890 = vpop.permute.xlu0 %5889
        %5891 = vrot.lane.b32.xlu0 %v5401, 24
        %v5892 = vpop.permute.xlu0 %5891
        %5893 = vrot.lane.b32.xlu0 %v5402, 24
        %v5894 = vpop.permute.xlu0 %5893
        %5895 = vrot.lane.b32.xlu0 %v5403, 24
        %v5896 = vpop.permute.xlu0 %5895
        %5897 = vrot.lane.b32.xlu0 %v5404, 24
        %v5898 = vpop.permute.xlu0 %5897
        %5899 = vrot.lane.b32.xlu0 %v5405, 24
        %v5900 = vpop.permute.xlu0 %5899
        %5901 = vrot.lane.b32.xlu0 %v5406, 24
        %v5902 = vpop.permute.xlu0 %5901
        %5903 = vrot.lane.b32.xlu0 %v5407, 24
        %v5904 = vpop.permute.xlu0 %5903
        %5905 = vrot.lane.b32.xlu0 %v5408, 24
        %v5906 = vpop.permute.xlu0 %5905
        %5907 = vrot.lane.b32.xlu0 %v5409, 24
        %v5908 = vpop.permute.xlu0 %5907
        %5909 = vrot.lane.b32.xlu0 %v5410, 24
        %v5910 = vpop.permute.xlu0 %5909
        %5911 = vrot.lane.b32.xlu0 %v5411, 24
        %v5912 = vpop.permute.xlu0 %5911
        %5913 = vrot.lane.b32.xlu0 %v5412, 24
        %v5914 = vpop.permute.xlu0 %5913
        %5915 = vrot.lane.b32.xlu0 %v5413, 24
        %v5916 = vpop.permute.xlu0 %5915
        %5917 = vrot.lane.b32.xlu0 %v5414, 24
        %v5918 = vpop.permute.xlu0 %5917
        %5919 = vrot.lane.b32.xlu0 %v5415, 24
        %v5920 = vpop.permute.xlu0 %5919
        %5921 = vrot.lane.b32.xlu0 %v5416, 24
        %v5922 = vpop.permute.xlu0 %5921
        %5923 = vrot.lane.b32.xlu0 %v5417, 24
        %v5924 = vpop.permute.xlu0 %5923
        %5925 = vrot.lane.b32.xlu0 %v5418, 24
        %v5926 = vpop.permute.xlu0 %5925
        %5927 = vrot.lane.b32.xlu0 %v5419, 24
        %v5928 = vpop.permute.xlu0 %5927
        %5929 = vrot.lane.b32.xlu0 %v5420, 24
        %v5930 = vpop.permute.xlu0 %5929
        %5931 = vrot.lane.b32.xlu0 %v5421, 24
        %v5932 = vpop.permute.xlu0 %5931
        %5933 = vrot.lane.b32.xlu0 %v5422, 24
        %v5934 = vpop.permute.xlu0 %5933
        %5935 = vrot.lane.b32.xlu0 %v5423, 24
        %v5936 = vpop.permute.xlu0 %5935
        %6001 = vrot.lane.b32.xlu0 %v5424, 32
        %v6002 = vpop.permute.xlu0 %6001
        %6003 = vrot.lane.b32.xlu0 %v5425, 32
        %v6004 = vpop.permute.xlu0 %6003
        %6005 = vrot.lane.b32.xlu0 %v5426, 32
        %v6006 = vpop.permute.xlu0 %6005
        %6007 = vrot.lane.b32.xlu0 %v5427, 32
        %v6008 = vpop.permute.xlu0 %6007
        %6009 = vrot.lane.b32.xlu0 %v5428, 32
        %v6010 = vpop.permute.xlu0 %6009
        %6011 = vrot.lane.b32.xlu0 %v5429, 32
        %v6012 = vpop.permute.xlu0 %6011
        %6013 = vrot.lane.b32.xlu0 %v5430, 32
        %v6014 = vpop.permute.xlu0 %6013
        %6015 = vrot.lane.b32.xlu0 %v5431, 32
        %v6016 = vpop.permute.xlu0 %6015
        %6017 = vrot.lane.b32.xlu0 %v5432, 32
        %v6018 = vpop.permute.xlu0 %6017
        %6019 = vrot.lane.b32.xlu0 %v5433, 32
        %v6020 = vpop.permute.xlu0 %6019
        %6021 = vrot.lane.b32.xlu0 %v5434, 32
        %v6022 = vpop.permute.xlu0 %6021
        %6023 = vrot.lane.b32.xlu0 %v5435, 32
        %v6024 = vpop.permute.xlu0 %6023
        %6025 = vrot.lane.b32.xlu0 %v5436, 32
        %v6026 = vpop.permute.xlu0 %6025
        %6027 = vrot.lane.b32.xlu0 %v5437, 32
        %v6028 = vpop.permute.xlu0 %6027
        %6029 = vrot.lane.b32.xlu0 %v5438, 32
        %v6030 = vpop.permute.xlu0 %6029
        %6031 = vrot.lane.b32.xlu0 %v5439, 32
        %v6032 = vpop.permute.xlu0 %6031
        %6033 = vrot.lane.b32.xlu0 %v5440, 32
        %v6034 = vpop.permute.xlu0 %6033
        %6035 = vrot.lane.b32.xlu0 %v5441, 32
        %v6036 = vpop.permute.xlu0 %6035
        %6037 = vrot.lane.b32.xlu0 %v5442, 32
        %v6038 = vpop.permute.xlu0 %6037
        %6039 = vrot.lane.b32.xlu0 %v5443, 32
        %v6040 = vpop.permute.xlu0 %6039
        %6041 = vrot.lane.b32.xlu0 %v5444, 32
        %v6042 = vpop.permute.xlu0 %6041
        %6043 = vrot.lane.b32.xlu0 %v5445, 32
        %v6044 = vpop.permute.xlu0 %6043
        %6045 = vrot.lane.b32.xlu0 %v5446, 32
        %v6046 = vpop.permute.xlu0 %6045
        %6047 = vrot.lane.b32.xlu0 %v5447, 32
        %v6048 = vpop.permute.xlu0 %6047
        %6049 = vrot.lane.b32.xlu0 %v5448, 32
        %v6050 = vpop.permute.xlu0 %6049
        %6051 = vrot.lane.b32.xlu0 %v5449, 32
        %v6052 = vpop.permute.xlu0 %6051
        %6053 = vrot.lane.b32.xlu0 %v5450, 32
        %v6054 = vpop.permute.xlu0 %6053
        %6055 = vrot.lane.b32.xlu0 %v5451, 32
        %v6056 = vpop.permute.xlu0 %6055
        %6057 = vrot.lane.b32.xlu0 %v5452, 32
        %v6058 = vpop.permute.xlu0 %6057
        %6059 = vrot.lane.b32.xlu0 %v5453, 32
        %v6060 = vpop.permute.xlu0 %6059
        %6061 = vrot.lane.b32.xlu0 %v5454, 32
        %v6062 = vpop.permute.xlu0 %6061
        %6063 = vrot.lane.b32.xlu0 %v5455, 32
        %v6064 = vpop.permute.xlu0 %6063
        %6129 = vrot.lane.b32.xlu0 %v5456, 40
        %v6130 = vpop.permute.xlu0 %6129
        %6131 = vrot.lane.b32.xlu0 %v5457, 40
        %v6132 = vpop.permute.xlu0 %6131
        %6133 = vrot.lane.b32.xlu0 %v5458, 40
        %v6134 = vpop.permute.xlu0 %6133
        %6135 = vrot.lane.b32.xlu0 %v5459, 40
        %v6136 = vpop.permute.xlu0 %6135
        %6137 = vrot.lane.b32.xlu0 %v5460, 40
        %v6138 = vpop.permute.xlu0 %6137
        %6139 = vrot.lane.b32.xlu0 %v5461, 40
        %v6140 = vpop.permute.xlu0 %6139
        %6141 = vrot.lane.b32.xlu0 %v5462, 40
        %v6142 = vpop.permute.xlu0 %6141
        %6143 = vrot.lane.b32.xlu0 %v5463, 40
        %v6144 = vpop.permute.xlu0 %6143
        %6145 = vrot.lane.b32.xlu0 %v5464, 40
        %v6146 = vpop.permute.xlu0 %6145
        %6147 = vrot.lane.b32.xlu0 %v5465, 40
        %v6148 = vpop.permute.xlu0 %6147
        %6149 = vrot.lane.b32.xlu0 %v5466, 40
        %v6150 = vpop.permute.xlu0 %6149
        %6151 = vrot.lane.b32.xlu0 %v5467, 40
        %v6152 = vpop.permute.xlu0 %6151
        %6153 = vrot.lane.b32.xlu0 %v5468, 40
        %v6154 = vpop.permute.xlu0 %6153
        %6155 = vrot.lane.b32.xlu0 %v5469, 40
        %v6156 = vpop.permute.xlu0 %6155
        %6157 = vrot.lane.b32.xlu0 %v5470, 40
        %v6158 = vpop.permute.xlu0 %6157
        %6159 = vrot.lane.b32.xlu0 %v5471, 40
        %v6160 = vpop.permute.xlu0 %6159
        %6161 = vrot.lane.b32.xlu0 %v5472, 40
        %v6162 = vpop.permute.xlu0 %6161
        %6163 = vrot.lane.b32.xlu0 %v5473, 40
        %v6164 = vpop.permute.xlu0 %6163
        %6165 = vrot.lane.b32.xlu0 %v5474, 40
        %v6166 = vpop.permute.xlu0 %6165
        %6167 = vrot.lane.b32.xlu0 %v5475, 40
        %v6168 = vpop.permute.xlu0 %6167
        %6169 = vrot.lane.b32.xlu0 %v5476, 40
        %v6170 = vpop.permute.xlu0 %6169
        %6171 = vrot.lane.b32.xlu0 %v5477, 40
        %v6172 = vpop.permute.xlu0 %6171
        %6173 = vrot.lane.b32.xlu0 %v5478, 40
        %v6174 = vpop.permute.xlu0 %6173
        %6175 = vrot.lane.b32.xlu0 %v5479, 40
        %v6176 = vpop.permute.xlu0 %6175
        %6177 = vrot.lane.b32.xlu0 %v5480, 40
        %v6178 = vpop.permute.xlu0 %6177
        %6179 = vrot.lane.b32.xlu0 %v5481, 40
        %v6180 = vpop.permute.xlu0 %6179
        %6181 = vrot.lane.b32.xlu0 %v5482, 40
        %v6182 = vpop.permute.xlu0 %6181
        %6183 = vrot.lane.b32.xlu0 %v5483, 40
        %v6184 = vpop.permute.xlu0 %6183
        %6185 = vrot.lane.b32.xlu0 %v5484, 40
        %v6186 = vpop.permute.xlu0 %6185
        %6187 = vrot.lane.b32.xlu0 %v5485, 40
        %v6188 = vpop.permute.xlu0 %6187
        %6189 = vrot.lane.b32.xlu0 %v5486, 40
        %v6190 = vpop.permute.xlu0 %6189
        %6191 = vrot.lane.b32.xlu0 %v5487, 40
        %v6192 = vpop.permute.xlu0 %6191
        %6257 = vrot.lane.b32.xlu0 %v5489, 48
        %v6258 = vpop.permute.xlu0 %6257
        %6259 = vrot.lane.b32.xlu0 %v5490, 48
        %v6260 = vpop.permute.xlu0 %6259
        %6261 = vrot.lane.b32.xlu0 %v5491, 48
        %v6262 = vpop.permute.xlu0 %6261
        %6263 = vrot.lane.b32.xlu0 %v5492, 48
        %v6264 = vpop.permute.xlu0 %6263
        %6265 = vrot.lane.b32.xlu0 %v5493, 48
        %v6266 = vpop.permute.xlu0 %6265
        %6267 = vrot.lane.b32.xlu0 %v5494, 48
        %v6268 = vpop.permute.xlu0 %6267
        %6269 = vrot.lane.b32.xlu0 %v5495, 48
        %v6270 = vpop.permute.xlu0 %6269
        %6271 = vrot.lane.b32.xlu0 %v5496, 48
        %v6272 = vpop.permute.xlu0 %6271
        %6273 = vrot.lane.b32.xlu0 %v5497, 48
        %v6274 = vpop.permute.xlu0 %6273
        %6275 = vrot.lane.b32.xlu0 %v5498, 48
        %v6276 = vpop.permute.xlu0 %6275
        %6277 = vrot.lane.b32.xlu0 %v5499, 48
        %v6278 = vpop.permute.xlu0 %6277
        %6279 = vrot.lane.b32.xlu0 %v5500, 48
        %v6280 = vpop.permute.xlu0 %6279
        %6281 = vrot.lane.b32.xlu0 %v5501, 48
        %v6282 = vpop.permute.xlu0 %6281
        %6283 = vrot.lane.b32.xlu0 %v5502, 48
        %v6284 = vpop.permute.xlu0 %6283
        %6285 = vrot.lane.b32.xlu0 %v5503, 48
        %v6286 = vpop.permute.xlu0 %6285
        %6287 = vrot.lane.b32.xlu0 %v5504, 48
        %v6288 = vpop.permute.xlu0 %6287
        %6289 = vrot.lane.b32.xlu0 %v5505, 48
        %v6290 = vpop.permute.xlu0 %6289
        %6291 = vrot.lane.b32.xlu0 %v5506, 48
        %v6292 = vpop.permute.xlu0 %6291
        %6293 = vrot.lane.b32.xlu0 %v5507, 48
        %v6294 = vpop.permute.xlu0 %6293
        %6295 = vrot.lane.b32.xlu0 %v5508, 48
        %v6296 = vpop.permute.xlu0 %6295
        %6297 = vrot.lane.b32.xlu0 %v5509, 48
        %v6298 = vpop.permute.xlu0 %6297
        %6299 = vrot.lane.b32.xlu0 %v5510, 48
        %v6300 = vpop.permute.xlu0 %6299
        %6301 = vrot.lane.b32.xlu0 %v5511, 48
        %v6302 = vpop.permute.xlu0 %6301
        %6303 = vrot.lane.b32.xlu0 %v5512, 48
        %v6304 = vpop.permute.xlu0 %6303
        %6305 = vrot.lane.b32.xlu0 %v5513, 48
        %v6306 = vpop.permute.xlu0 %6305
        %6307 = vrot.lane.b32.xlu0 %v5514, 48
        %v6308 = vpop.permute.xlu0 %6307
        %6309 = vrot.lane.b32.xlu0 %v5515, 48
        %v6310 = vpop.permute.xlu0 %6309
        %6311 = vrot.lane.b32.xlu0 %v5516, 48
        %v6312 = vpop.permute.xlu0 %6311
        %6313 = vrot.lane.b32.xlu0 %v5517, 48
        %v6314 = vpop.permute.xlu0 %6313
        %6315 = vrot.lane.b32.xlu0 %v5518, 48
        %v6316 = vpop.permute.xlu0 %6315
        %6317 = vrot.lane.b32.xlu0 %v5519, 48
        %v6318 = vpop.permute.xlu0 %6317
        %6319 = vrot.lane.b32.xlu0 %v5520, 48
        %v6320 = vpop.permute.xlu0 %6319
        %6385 = vrot.lane.b32.xlu0 %v5521, 56
        %v6386 = vpop.permute.xlu0 %6385
        %6387 = vrot.lane.b32.xlu0 %v5522, 56
        %v6388 = vpop.permute.xlu0 %6387
        %6389 = vrot.lane.b32.xlu0 %v5523, 56
        %v6390 = vpop.permute.xlu0 %6389
        %6391 = vrot.lane.b32.xlu0 %v5524, 56
        %v6392 = vpop.permute.xlu0 %6391
        %6393 = vrot.lane.b32.xlu0 %v5525, 56
        %v6394 = vpop.permute.xlu0 %6393
        %6395 = vrot.lane.b32.xlu0 %v5526, 56
        %v6396 = vpop.permute.xlu0 %6395
        %6397 = vrot.lane.b32.xlu0 %v5527, 56
        %v6398 = vpop.permute.xlu0 %6397
        %6399 = vrot.lane.b32.xlu0 %v5528, 56
        %v6400 = vpop.permute.xlu0 %6399
        %6401 = vrot.lane.b32.xlu0 %v5529, 56
        %v6402 = vpop.permute.xlu0 %6401
        %6403 = vrot.lane.b32.xlu0 %v5530, 56
        %v6404 = vpop.permute.xlu0 %6403
        %6405 = vrot.lane.b32.xlu0 %v5531, 56
        %v6406 = vpop.permute.xlu0 %6405
        %6407 = vrot.lane.b32.xlu0 %v5532, 56
        %v6408 = vpop.permute.xlu0 %6407
        %6409 = vrot.lane.b32.xlu0 %v5533, 56
        %v6410 = vpop.permute.xlu0 %6409
        %6411 = vrot.lane.b32.xlu0 %v5534, 56
        %v6412 = vpop.permute.xlu0 %6411
        %6413 = vrot.lane.b32.xlu0 %v5535, 56
        %v6414 = vpop.permute.xlu0 %6413
        %6415 = vrot.lane.b32.xlu0 %v5536, 56
        %v6416 = vpop.permute.xlu0 %6415
        %6417 = vrot.lane.b32.xlu0 %v5537, 56
        %v6418 = vpop.permute.xlu0 %6417
        %6419 = vrot.lane.b32.xlu0 %v5538, 56
        %v6420 = vpop.permute.xlu0 %6419
        %6421 = vrot.lane.b32.xlu0 %v5539, 56
        %v6422 = vpop.permute.xlu0 %6421
        %6423 = vrot.lane.b32.xlu0 %v5540, 56
        %v6424 = vpop.permute.xlu0 %6423
        %6425 = vrot.lane.b32.xlu0 %v5541, 56
        %v6426 = vpop.permute.xlu0 %6425
        %6427 = vrot.lane.b32.xlu0 %v5542, 56
        %v6428 = vpop.permute.xlu0 %6427
        %6429 = vrot.lane.b32.xlu0 %v5543, 56
        %v6430 = vpop.permute.xlu0 %6429
        %6431 = vrot.lane.b32.xlu0 %v5544, 56
        %v6432 = vpop.permute.xlu0 %6431
        %6433 = vrot.lane.b32.xlu0 %v5545, 56
        %v6434 = vpop.permute.xlu0 %6433
        %6435 = vrot.lane.b32.xlu0 %v5546, 56
        %v6436 = vpop.permute.xlu0 %6435
        %6437 = vrot.lane.b32.xlu0 %v5547, 56
        %v6438 = vpop.permute.xlu0 %6437
        %6439 = vrot.lane.b32.xlu0 %v5548, 56
        %v6440 = vpop.permute.xlu0 %6439
        %6441 = vrot.lane.b32.xlu0 %v5549, 56
        %v6442 = vpop.permute.xlu0 %6441
        %6443 = vrot.lane.b32.xlu0 %v5550, 56
        %v6444 = vpop.permute.xlu0 %6443
        %6445 = vrot.lane.b32.xlu0 %v5551, 56
        %v6446 = vpop.permute.xlu0 %6445
        %6447 = vrot.lane.b32.xlu0 %v5552, 56
        %v6448 = vpop.permute.xlu0 %6447
        %6513 = vrot.lane.b32.xlu0 %v5553, 64
        %v6514 = vpop.permute.xlu0 %6513
        %6515 = vrot.lane.b32.xlu0 %v5554, 64
        %v6516 = vpop.permute.xlu0 %6515
        %6517 = vrot.lane.b32.xlu0 %v5555, 64
        %v6518 = vpop.permute.xlu0 %6517
        %6519 = vrot.lane.b32.xlu0 %v5556, 64
        %v6520 = vpop.permute.xlu0 %6519
        %6521 = vrot.lane.b32.xlu0 %v5557, 64
        %v6522 = vpop.permute.xlu0 %6521
        %6523 = vrot.lane.b32.xlu0 %v5558, 64
        %v6524 = vpop.permute.xlu0 %6523
        %6525 = vrot.lane.b32.xlu0 %v5559, 64
        %v6526 = vpop.permute.xlu0 %6525
        %6527 = vrot.lane.b32.xlu0 %v5560, 64
        %v6528 = vpop.permute.xlu0 %6527
        %6529 = vrot.lane.b32.xlu0 %v5561, 64
        %v6530 = vpop.permute.xlu0 %6529
        %6531 = vrot.lane.b32.xlu0 %v5562, 64
        %v6532 = vpop.permute.xlu0 %6531
        %6533 = vrot.lane.b32.xlu0 %v5563, 64
        %v6534 = vpop.permute.xlu0 %6533
        %6535 = vrot.lane.b32.xlu0 %v5564, 64
        %v6536 = vpop.permute.xlu0 %6535
        %6537 = vrot.lane.b32.xlu0 %v5565, 64
        %v6538 = vpop.permute.xlu0 %6537
        %6539 = vrot.lane.b32.xlu0 %v5566, 64
        %v6540 = vpop.permute.xlu0 %6539
        %6541 = vrot.lane.b32.xlu0 %v5567, 64
        %v6542 = vpop.permute.xlu0 %6541
        %6543 = vrot.lane.b32.xlu0 %v5568, 64
        %v6544 = vpop.permute.xlu0 %6543
        %6545 = vrot.lane.b32.xlu0 %v5569, 64
        %v6546 = vpop.permute.xlu0 %6545
        %6547 = vrot.lane.b32.xlu0 %v5570, 64
        %v6548 = vpop.permute.xlu0 %6547
        %6549 = vrot.lane.b32.xlu0 %v5571, 64
        %v6550 = vpop.permute.xlu0 %6549
        %6551 = vrot.lane.b32.xlu0 %v5572, 64
        %v6552 = vpop.permute.xlu0 %6551
        %6553 = vrot.lane.b32.xlu0 %v5573, 64
        %v6554 = vpop.permute.xlu0 %6553
        %6555 = vrot.lane.b32.xlu0 %v5574, 64
        %v6556 = vpop.permute.xlu0 %6555
        %6557 = vrot.lane.b32.xlu0 %v5575, 64
        %v6558 = vpop.permute.xlu0 %6557
        %6559 = vrot.lane.b32.xlu0 %v5576, 64
        %v6560 = vpop.permute.xlu0 %6559
        %6561 = vrot.lane.b32.xlu0 %v5577, 64
        %v6562 = vpop.permute.xlu0 %6561
        %6563 = vrot.lane.b32.xlu0 %v5578, 64
        %v6564 = vpop.permute.xlu0 %6563
        %6565 = vrot.lane.b32.xlu0 %v5579, 64
        %v6566 = vpop.permute.xlu0 %6565
        %6567 = vrot.lane.b32.xlu0 %v5580, 64
        %v6568 = vpop.permute.xlu0 %6567
        %6569 = vrot.lane.b32.xlu0 %v5581, 64
        %v6570 = vpop.permute.xlu0 %6569
        %6571 = vrot.lane.b32.xlu0 %v5582, 64
        %v6572 = vpop.permute.xlu0 %6571
        %6573 = vrot.lane.b32.xlu0 %v5583, 64
        %v6574 = vpop.permute.xlu0 %6573
        %6575 = vrot.lane.b32.xlu0 %v5584, 64
        %v6576 = vpop.permute.xlu0 %6575
        %v6609 = vsel %vm1485, %v5296, %v5618
        %v6610 = vsel %vm1485, %v5297, %v5620
        %v6611 = vsel %vm1485, %v5298, %v5622
        %v6612 = vsel %vm1485, %v5299, %v5624
        %v6613 = vsel %vm1485, %v5300, %v5626
        %v6614 = vsel %vm1485, %v5301, %v5628
        %v6615 = vsel %vm1485, %v5302, %v5630
        %v6616 = vsel %vm1485, %v5303, %v5632
        %v6617 = vsel %vm1485, %v5304, %v5634
        %v6618 = vsel %vm1485, %v5305, %v5636
        %v6619 = vsel %vm1485, %v5306, %v5638
        %v6620 = vsel %vm1485, %v5307, %v5640
        %v6621 = vsel %vm1485, %v5308, %v5642
        %v6622 = vsel %vm1485, %v5309, %v5644
        %v6623 = vsel %vm1485, %v5310, %v5646
        %v6624 = vsel %vm1485, %v5311, %v5648
        %v6625 = vsel %vm1485, %v5312, %v5650
        %v6626 = vsel %vm1485, %v5313, %v5652
        %v6627 = vsel %vm1485, %v5314, %v5654
        %v6628 = vsel %vm1485, %v5315, %v5656
        %v6629 = vsel %vm1485, %v5316, %v5658
        %v6630 = vsel %vm1485, %v5317, %v5660
        %v6631 = vsel %vm1485, %v5318, %v5662
        %v6632 = vsel %vm1485, %v5319, %v5664
        %v6633 = vsel %vm1485, %v5320, %v5666
        %v6634 = vsel %vm1485, %v5321, %v5668
        %v6635 = vsel %vm1485, %v5322, %v5670
        %v6636 = vsel %vm1485, %v5323, %v5672
        %v6637 = vsel %vm1485, %v5324, %v5674
        %v6638 = vsel %vm1485, %v5325, %v5676
        %v6639 = vsel %vm1485, %v5326, %v5678
        %v6640 = vsel %vm1485, %v5327, %v5680
        %v6641 = vsel %vm1518, %v6609, %v5746
        %v6642 = vsel %vm1518, %v6610, %v5748
        %v6643 = vsel %vm1518, %v6611, %v5750
        %v6644 = vsel %vm1518, %v6612, %v5752
        %v6645 = vsel %vm1518, %v6613, %v5754
        %v6646 = vsel %vm1518, %v6614, %v5756
        %v6647 = vsel %vm1518, %v6615, %v5758
        %v6648 = vsel %vm1518, %v6616, %v5760
        %v6649 = vsel %vm1518, %v6617, %v5762
        %v6650 = vsel %vm1518, %v6618, %v5764
        %v6651 = vsel %vm1518, %v6619, %v5766
        %v6652 = vsel %vm1518, %v6620, %v5768
        %v6653 = vsel %vm1518, %v6621, %v5770
        %v6654 = vsel %vm1518, %v6622, %v5772
        %v6655 = vsel %vm1518, %v6623, %v5774
        %v6656 = vsel %vm1518, %v6624, %v5776
        %v6657 = vsel %vm1518, %v6625, %v5778
        %v6658 = vsel %vm1518, %v6626, %v5780
        %v6659 = vsel %vm1518, %v6627, %v5782
        %v6660 = vsel %vm1518, %v6628, %v5784
        %v6661 = vsel %vm1518, %v6629, %v5786
        %v6662 = vsel %vm1518, %v6630, %v5788
        %v6663 = vsel %vm1518, %v6631, %v5790
        %v6664 = vsel %vm1518, %v6632, %v5792
        %v6665 = vsel %vm1518, %v6633, %v5794
        %v6666 = vsel %vm1518, %v6634, %v5796
        %v6667 = vsel %vm1518, %v6635, %v5798
        %v6668 = vsel %vm1518, %v6636, %v5800
        %v6669 = vsel %vm1518, %v6637, %v5802
        %v6670 = vsel %vm1518, %v6638, %v5804
        %v6671 = vsel %vm1518, %v6639, %v5806
        %v6672 = vsel %vm1518, %v6640, %v5808
        %v6673 = vsel %vm1551, %v6641, %v5874
        %v6674 = vsel %vm1551, %v6642, %v5876
        %v6675 = vsel %vm1551, %v6643, %v5878
        %v6676 = vsel %vm1551, %v6644, %v5880
        %v6677 = vsel %vm1551, %v6645, %v5882
        %v6678 = vsel %vm1551, %v6646, %v5884
        %v6679 = vsel %vm1551, %v6647, %v5886
        %v6680 = vsel %vm1551, %v6648, %v5888
        %v6681 = vsel %vm1551, %v6649, %v5890
        %v6682 = vsel %vm1551, %v6650, %v5892
        %v6683 = vsel %vm1551, %v6651, %v5894
        %v6684 = vsel %vm1551, %v6652, %v5896
        %v6685 = vsel %vm1551, %v6653, %v5898
        %v6686 = vsel %vm1551, %v6654, %v5900
        %v6687 = vsel %vm1551, %v6655, %v5902
        %v6688 = vsel %vm1551, %v6656, %v5904
        %v6689 = vsel %vm1551, %v6657, %v5906
        %v6690 = vsel %vm1551, %v6658, %v5908
        %v6691 = vsel %vm1551, %v6659, %v5910
        %v6692 = vsel %vm1551, %v6660, %v5912
        %v6693 = vsel %vm1551, %v6661, %v5914
        %v6694 = vsel %vm1551, %v6662, %v5916
        %v6695 = vsel %vm1551, %v6663, %v5918
        %v6696 = vsel %vm1551, %v6664, %v5920
        %v6697 = vsel %vm1551, %v6665, %v5922
        %v6698 = vsel %vm1551, %v6666, %v5924
        %v6699 = vsel %vm1551, %v6667, %v5926
        %v6700 = vsel %vm1551, %v6668, %v5928
        %v6701 = vsel %vm1551, %v6669, %v5930
        %v6702 = vsel %vm1551, %v6670, %v5932
        %v6703 = vsel %vm1551, %v6671, %v5934
        %v6704 = vsel %vm1551, %v6672, %v5936
        %v6705 = vsel %vm1584, %v6673, %v6002
        %v6706 = vsel %vm1584, %v6674, %v6004
        %v6707 = vsel %vm1584, %v6675, %v6006
        %v6708 = vsel %vm1584, %v6676, %v6008
        %v6709 = vsel %vm1584, %v6677, %v6010
        %v6710 = vsel %vm1584, %v6678, %v6012
        %v6711 = vsel %vm1584, %v6679, %v6014
        %v6712 = vsel %vm1584, %v6680, %v6016
        %v6713 = vsel %vm1584, %v6681, %v6018
        %v6714 = vsel %vm1584, %v6682, %v6020
        %v6715 = vsel %vm1584, %v6683, %v6022
        %v6716 = vsel %vm1584, %v6684, %v6024
        %v6717 = vsel %vm1584, %v6685, %v6026
        %v6718 = vsel %vm1584, %v6686, %v6028
        %v6719 = vsel %vm1584, %v6687, %v6030
        %v6720 = vsel %vm1584, %v6688, %v6032
        %v6721 = vsel %vm1584, %v6689, %v6034
        %v6722 = vsel %vm1584, %v6690, %v6036
        %v6723 = vsel %vm1584, %v6691, %v6038
        %v6724 = vsel %vm1584, %v6692, %v6040
        %v6725 = vsel %vm1584, %v6693, %v6042
        %v6726 = vsel %vm1584, %v6694, %v6044
        %v6727 = vsel %vm1584, %v6695, %v6046
        %v6728 = vsel %vm1584, %v6696, %v6048
        %v6729 = vsel %vm1584, %v6697, %v6050
        %v6730 = vsel %vm1584, %v6698, %v6052
        %v6731 = vsel %vm1584, %v6699, %v6054
        %v6732 = vsel %vm1584, %v6700, %v6056
        %v6733 = vsel %vm1584, %v6701, %v6058
        %v6734 = vsel %vm1584, %v6702, %v6060
        %v6735 = vsel %vm1584, %v6703, %v6062
        %v6736 = vsel %vm1584, %v6704, %v6064
        %v6737 = vsel %vm1617, %v6705, %v6130
        %v6738 = vsel %vm1617, %v6706, %v6132
        %v6739 = vsel %vm1617, %v6707, %v6134
        %v6740 = vsel %vm1617, %v6708, %v6136
        %v6741 = vsel %vm1617, %v6709, %v6138
        %v6742 = vsel %vm1617, %v6710, %v6140
        %v6743 = vsel %vm1617, %v6711, %v6142
        %v6744 = vsel %vm1617, %v6712, %v6144
        %v6745 = vsel %vm1617, %v6713, %v6146
        %v6746 = vsel %vm1617, %v6714, %v6148
        %v6747 = vsel %vm1617, %v6715, %v6150
        %v6748 = vsel %vm1617, %v6716, %v6152
        %v6749 = vsel %vm1617, %v6717, %v6154
        %v6750 = vsel %vm1617, %v6718, %v6156
        %v6751 = vsel %vm1617, %v6719, %v6158
        %v6752 = vsel %vm1617, %v6720, %v6160
        %v6753 = vsel %vm1617, %v6721, %v6162
        %v6754 = vsel %vm1617, %v6722, %v6164
        %v6755 = vsel %vm1617, %v6723, %v6166
        %v6756 = vsel %vm1617, %v6724, %v6168
        %v6757 = vsel %vm1617, %v6725, %v6170
        %v6758 = vsel %vm1617, %v6726, %v6172
        %v6759 = vsel %vm1617, %v6727, %v6174
        %v6760 = vsel %vm1617, %v6728, %v6176
        %v6761 = vsel %vm1617, %v6729, %v6178
        %v6762 = vsel %vm1617, %v6730, %v6180
        %v6763 = vsel %vm1617, %v6731, %v6182
        %v6764 = vsel %vm1617, %v6732, %v6184
        %v6765 = vsel %vm1617, %v6733, %v6186
        %v6766 = vsel %vm1617, %v6734, %v6188
        %v6767 = vsel %vm1617, %v6735, %v6190
        %v6768 = vsel %vm1617, %v6736, %v6192
        %v6769 = vsel %vm1650, %v6737, %v6258
        %v6770 = vsel %vm1650, %v6738, %v6260
        %v6771 = vsel %vm1650, %v6739, %v6262
        %v6772 = vsel %vm1650, %v6740, %v6264
        %v6773 = vsel %vm1650, %v6741, %v6266
        %v6774 = vsel %vm1650, %v6742, %v6268
        %v6775 = vsel %vm1650, %v6743, %v6270
        %v6776 = vsel %vm1650, %v6744, %v6272
        %v6777 = vsel %vm1650, %v6745, %v6274
        %v6778 = vsel %vm1650, %v6746, %v6276
        %v6779 = vsel %vm1650, %v6747, %v6278
        %v6780 = vsel %vm1650, %v6748, %v6280
        %v6781 = vsel %vm1650, %v6749, %v6282
        %v6782 = vsel %vm1650, %v6750, %v6284
        %v6783 = vsel %vm1650, %v6751, %v6286
        %v6784 = vsel %vm1650, %v6752, %v6288
        %v6785 = vsel %vm1650, %v6753, %v6290
        %v6786 = vsel %vm1650, %v6754, %v6292
        %v6787 = vsel %vm1650, %v6755, %v6294
        %v6788 = vsel %vm1650, %v6756, %v6296
        %v6789 = vsel %vm1650, %v6757, %v6298
        %v6790 = vsel %vm1650, %v6758, %v6300
        %v6791 = vsel %vm1650, %v6759, %v6302
        %v6792 = vsel %vm1650, %v6760, %v6304
        %v6793 = vsel %vm1650, %v6761, %v6306
        %v6794 = vsel %vm1650, %v6762, %v6308
        %v6795 = vsel %vm1650, %v6763, %v6310
        %v6796 = vsel %vm1650, %v6764, %v6312
        %v6797 = vsel %vm1650, %v6765, %v6314
        %v6798 = vsel %vm1650, %v6766, %v6316
        %v6799 = vsel %vm1650, %v6767, %v6318
        %v6800 = vsel %vm1650, %v6768, %v6320
        %v6801 = vsel %vm1683, %v6769, %v6386
        %v6802 = vsel %vm1683, %v6770, %v6388
        %v6803 = vsel %vm1683, %v6771, %v6390
        %v6804 = vsel %vm1683, %v6772, %v6392
        %v6805 = vsel %vm1683, %v6773, %v6394
        %v6806 = vsel %vm1683, %v6774, %v6396
        %v6807 = vsel %vm1683, %v6775, %v6398
        %v6808 = vsel %vm1683, %v6776, %v6400
        %v6809 = vsel %vm1683, %v6777, %v6402
        %v6810 = vsel %vm1683, %v6778, %v6404
        %v6811 = vsel %vm1683, %v6779, %v6406
        %v6812 = vsel %vm1683, %v6780, %v6408
        %v6813 = vsel %vm1683, %v6781, %v6410
        %v6814 = vsel %vm1683, %v6782, %v6412
        %v6815 = vsel %vm1683, %v6783, %v6414
        %v6816 = vsel %vm1683, %v6784, %v6416
        %v6817 = vsel %vm1683, %v6785, %v6418
        %v6818 = vsel %vm1683, %v6786, %v6420
        %v6819 = vsel %vm1683, %v6787, %v6422
        %v6820 = vsel %vm1683, %v6788, %v6424
        %v6821 = vsel %vm1683, %v6789, %v6426
        %v6822 = vsel %vm1683, %v6790, %v6428
        %v6823 = vsel %vm1683, %v6791, %v6430
        %v6824 = vsel %vm1683, %v6792, %v6432
        %v6825 = vsel %vm1683, %v6793, %v6434
        %v6826 = vsel %vm1683, %v6794, %v6436
        %v6827 = vsel %vm1683, %v6795, %v6438
        %v6828 = vsel %vm1683, %v6796, %v6440
        %v6829 = vsel %vm1683, %v6797, %v6442
        %v6830 = vsel %vm1683, %v6798, %v6444
        %v6831 = vsel %vm1683, %v6799, %v6446
        %v6832 = vsel %vm1683, %v6800, %v6448
        %v6833 = vsel %vm1716, %v6801, %v6514
        %v6834 = vsel %vm1716, %v6802, %v6516
        %v6835 = vsel %vm1716, %v6803, %v6518
        %v6836 = vsel %vm1716, %v6804, %v6520
        %v6837 = vsel %vm1716, %v6805, %v6522
        %v6838 = vsel %vm1716, %v6806, %v6524
        %v6839 = vsel %vm1716, %v6807, %v6526
        %v6840 = vsel %vm1716, %v6808, %v6528
        %v6841 = vsel %vm1716, %v6809, %v6530
        %v6842 = vsel %vm1716, %v6810, %v6532
        %v6843 = vsel %vm1716, %v6811, %v6534
        %v6844 = vsel %vm1716, %v6812, %v6536
        %v6845 = vsel %vm1716, %v6813, %v6538
        %v6846 = vsel %vm1716, %v6814, %v6540
        %v6847 = vsel %vm1716, %v6815, %v6542
        %v6848 = vsel %vm1716, %v6816, %v6544
        %v6849 = vsel %vm1716, %v6817, %v6546
        %v6850 = vsel %vm1716, %v6818, %v6548
        %v6851 = vsel %vm1716, %v6819, %v6550
        %v6852 = vsel %vm1716, %v6820, %v6552
        %v6853 = vsel %vm1716, %v6821, %v6554
        %v6854 = vsel %vm1716, %v6822, %v6556
        %v6855 = vsel %vm1716, %v6823, %v6558
        %v6856 = vsel %vm1716, %v6824, %v6560
        %v6857 = vsel %vm1716, %v6825, %v6562
        %v6858 = vsel %vm1716, %v6826, %v6564
        %v6859 = vsel %vm1716, %v6827, %v6566
        %v6860 = vsel %vm1716, %v6828, %v6568
        %v6861 = vsel %vm1716, %v6829, %v6570
        %v6862 = vsel %vm1716, %v6830, %v6572
        %v6863 = vsel %vm1716, %v6831, %v6574
        %v6864 = vsel %vm1716, %v6832, %v6576
        %v6865 = vpack.c.bf16 %v6834, %v6833
        %v6866 = vpack.c.bf16 %v6836, %v6835
        %v6867 = vpack.c.bf16 %v6838, %v6837
        %v6868 = vpack.c.bf16 %v6840, %v6839
        %v6869 = vpack.c.bf16 %v6842, %v6841
        %v6870 = vpack.c.bf16 %v6844, %v6843
        %v6871 = vpack.c.bf16 %v6846, %v6845
        %v6872 = vpack.c.bf16 %v6848, %v6847
        %v6873 = vpack.c.bf16 %v6850, %v6849
        %v6874 = vpack.c.bf16 %v6852, %v6851
        %v6875 = vpack.c.bf16 %v6854, %v6853
        %v6876 = vpack.c.bf16 %v6856, %v6855
        %v6877 = vpack.c.bf16 %v6858, %v6857
        %v6878 = vpack.c.bf16 %v6860, %v6859
        %v6879 = vpack.c.bf16 %v6862, %v6861
        %v6880 = vpack.c.bf16 %v6864, %v6863
        %s6881 = scalar_lea.vmem %s1, 24
        %v6882 = vld [vmem:[%s6881] sm:$0xf]
        %v6883 = vld [vmem:[%s6881 + $0x4] sm:$0xf]
        %s6884 = scalar_lea.vmem %s2, 48
        %v6885 = vld [vmem:[%s6884] sm:$0xff]
        %v6886 = vld [vmem:[%s6884 + $0x8] sm:$0xff]
        %6888 = vset.pattern.permute.xlu0 0
        %6889 = vperm.xlu0 %6888, %v6885
        %v6890 = vpop.permute.xlu0 %6889
        %6893 = vset.pattern.permute.xlu0 0
        %6894 = vperm.xlu0 %6893, %v6886
        %v6895 = vpop.permute.xlu0 %6894
        %v6899 = vunpack.c.l.b16 %v6882
        %v6900 = vunpack.c.l.b16 %v6883
        %v6901 = vpack.c.b16 %v6900, %v6899
        %v6903 = vsel %vm1784, %v6901, 0
        %v6906 = vsel %vm1784, %v6865, 0
        %v6909 = vsel %vm1784, %v6866, 0
        %v6912 = vsel %vm1784, %v6867, 0
        %v6915 = vsel %vm1784, %v6868, 0
        %v6918 = vsel %vm1784, %v6869, 0
        %v6921 = vsel %vm1784, %v6870, 0
        %v6924 = vsel %vm1784, %v6871, 0
        %v6927 = vsel %vm1784, %v6872, 0
        %v6930 = vsel %vm1784, %v6873, 0
        %v6933 = vsel %vm1784, %v6874, 0
        %v6936 = vsel %vm1784, %v6875, 0
        %v6939 = vsel %vm1784, %v6876, 0
        %v6942 = vsel %vm1784, %v6877, 0
        %v6945 = vsel %vm1784, %v6878, 0
        %v6948 = vsel %vm1784, %v6879, 0
        %v6951 = vsel %vm1784, %v6880, 0
        %6953 = vmatprep.subr.bf16.mxu0 0
        %6954 = vmatpush1.bf16.xpose.msra.mxu0 %v6927
        %6955 = vmatprep.subr.bf16.mxu0 0
        %6956 = vmatpush1.bf16.xpose.msra.mxu0 %v6924
        %6957 = vmatprep.subr.bf16.mxu0 0
        %6958 = vmatpush1.bf16.xpose.msra.mxu0 %v6921
        %6959 = vmatprep.subr.bf16.mxu0 0
        %6960 = vmatpush1.bf16.xpose.msra.mxu0 %v6918
        %6961 = vmatprep.subr.bf16.mxu0 0
        %6962 = vmatpush1.bf16.xpose.msra.mxu0 %v6915
        %6963 = vmatprep.subr.bf16.mxu0 0
        %6964 = vmatpush1.bf16.xpose.msra.mxu0 %v6912
        %6965 = vmatprep.subr.bf16.mxu0 0
        %6966 = vmatpush1.bf16.xpose.msra.mxu0 %v6909
        %6967 = vmatprep.subr.bf16.mxu0 0
        %6968 = vmatpush1.bf16.xpose.msra.mxu0 %v6906
        %6969 = vmatprep.subr.bf16.mxu0 0
        %6970 = vmatpush2.bf16.xpose.msra.mxu0 %v6951
        %6971 = vmatprep.subr.bf16.mxu0 0
        %6972 = vmatpush2.bf16.xpose.msra.mxu0 %v6948
        %6973 = vmatprep.subr.bf16.mxu0 0
        %6974 = vmatpush2.bf16.xpose.msra.mxu0 %v6945
        %6975 = vmatprep.subr.bf16.mxu0 0
        %6976 = vmatpush2.bf16.xpose.msra.mxu0 %v6942
        %6977 = vmatprep.subr.bf16.mxu0 0
        %6978 = vmatpush2.bf16.xpose.msra.mxu0 %v6939
        %6979 = vmatprep.subr.bf16.mxu0 0
        %6980 = vmatpush2.bf16.xpose.msra.mxu0 %v6936
        %6981 = vmatprep.subr.bf16.mxu0 0
        %6982 = vmatpush2.bf16.xpose.msra.mxu0 %v6933
        %6983 = vmatprep.subr.bf16.mxu0 0
        %6984 = vmatpush2.bf16.xpose.msra.mxu0 %v6930
        %6985 = vmatprep.mubr.bf16.mxu0 0
        %6986 = vmatmul.mubr.bf16.gmra.mxu0 %v6903
        %v6987 = vpop.f32.mrf.mxu0
        %v6988 = vadd.f32 %v6890, %v6987
        %v6989 = vpop.f32.mrf.mxu0
        %v6990 = vadd.f32 %v6890, %v6989
        %v6991 = vpop.f32.mrf.mxu0
        %v6992 = vadd.f32 %v6895, %v6991
        %v6993 = vpop.f32.mrf.mxu0
        %v6994 = vadd.f32 %v6895, %v6993
        %6995 = vdwg.mxu0
        %s6996 = scalar_lea.vmem %s163, 96 [#allocation2]
        %6997 = vst [vmem:[%s6996] sm:$0xff] %v6988
        %6998 = vst [vmem:[%s6996 + $0x8] sm:$0xff] %v6990
        %6999 = vst [vmem:[%s6996 + $0x10] sm:$0xff] %v6992
        %7000 = vst [vmem:[%s6996 + $0x18] sm:$0xff] %v6994
        %s7001 = scalar_lea.vmem %s168, 168
        %v7002 = vld [vmem:[%s7001 + $0x3] sm:$0xff]
        %v7003 = vld [vmem:[%s7001 + $0xb] sm:$0xff]
        %v7004 = vld [vmem:[%s7001 + $0x3b] sm:$0xff]
        %v7005 = vld [vmem:[%s7001 + $0x43] sm:$0xff]
        %v7006 = vld [vmem:[%s7001 + $0x73] sm:$0xff]
        %v7007 = vld [vmem:[%s7001 + $0x7b] sm:$0xff]
        %v7008 = vld [vmem:[%s7001 + $0xab] sm:$0xff]
        %v7009 = vld [vmem:[%s7001 + $0xb3] sm:$0xff]
        %v7010 = vld [vmem:[%s7001 + $0xe3] sm:$0xff]
        %v7011 = vld [vmem:[%s7001 + $0xeb] sm:$0xff]
        %v7012 = vld [vmem:[%s7001 + $0x11b] sm:$0xff]
        %v7013 = vld [vmem:[%s7001 + $0x123] sm:$0xff]
        %v7014 = vld [vmem:[%s7001 + $0x153] sm:$0xff]
        %v7015 = vld [vmem:[%s7001 + $0x15b] sm:$0xff]
        %v7016 = vld [vmem:[%s7001 + $0x18b] sm:$0xff]
        %v7017 = vld [vmem:[%s7001 + $0x193] sm:$0xff]
        %v7018 = vld [vmem:[%s7001 + $0x1c3] sm:$0xff]
        %v7019 = vld [vmem:[%s7001 + $0x1cb] sm:$0xff]
        %v7020 = vld [vmem:[%s7001 + $0x1fb] sm:$0xff]
        %v7021 = vld [vmem:[%s7001 + $0x203] sm:$0xff]
        %v7022 = vld [vmem:[%s7001 + $0x233] sm:$0xff]
        %v7023 = vld [vmem:[%s7001 + $0x23b] sm:$0xff]
        %v7024 = vld [vmem:[%s7001 + $0x26b] sm:$0xff]
        %v7025 = vld [vmem:[%s7001 + $0x273] sm:$0xff]
        %v7026 = vld [vmem:[%s7001 + $0x2a3] sm:$0xff]
        %v7027 = vld [vmem:[%s7001 + $0x2ab] sm:$0xff]
        %v7028 = vld [vmem:[%s7001 + $0x2db] sm:$0xff]
        %v7029 = vld [vmem:[%s7001 + $0x2e3] sm:$0xff]
        %v7030 = vld [vmem:[%s7001 + $0x313] sm:$0xff]
        %v7031 = vld [vmem:[%s7001 + $0x31b] sm:$0xff]
        %v7032 = vld [vmem:[%s7001 + $0x34b] sm:$0xff]
        %v7033 = vld [vmem:[%s7001 + $0x353] sm:$0xff]
        %v7034 = vld [vmem:[%s7001 + $0x12] sm:$0xff]
        %v7035 = vld [vmem:[%s7001 + $0x1a] sm:$0xff]
        %v7036 = vld [vmem:[%s7001 + $0x4a] sm:$0xff]
        %v7037 = vld [vmem:[%s7001 + $0x52] sm:$0xff]
        %v7038 = vld [vmem:[%s7001 + $0x82] sm:$0xff]
        %v7039 = vld [vmem:[%s7001 + $0x8a] sm:$0xff]
        %v7040 = vld [vmem:[%s7001 + $0xba] sm:$0xff]
        %v7041 = vld [vmem:[%s7001 + $0xc2] sm:$0xff]
        %v7042 = vld [vmem:[%s7001 + $0xf2] sm:$0xff]
        %v7043 = vld [vmem:[%s7001 + $0xfa] sm:$0xff]
        %v7044 = vld [vmem:[%s7001 + $0x12a] sm:$0xff]
        %v7045 = vld [vmem:[%s7001 + $0x132] sm:$0xff]
        %v7046 = vld [vmem:[%s7001 + $0x162] sm:$0xff]
        %v7047 = vld [vmem:[%s7001 + $0x16a] sm:$0xff]
        %v7048 = vld [vmem:[%s7001 + $0x19a] sm:$0xff]
        %v7049 = vld [vmem:[%s7001 + $0x1a2] sm:$0xff]
        %v7050 = vld [vmem:[%s7001 + $0x1d2] sm:$0xff]
        %v7051 = vld [vmem:[%s7001 + $0x1da] sm:$0xff]
        %v7052 = vld [vmem:[%s7001 + $0x20a] sm:$0xff]
        %v7053 = vld [vmem:[%s7001 + $0x212] sm:$0xff]
        %v7054 = vld [vmem:[%s7001 + $0x242] sm:$0xff]
        %v7055 = vld [vmem:[%s7001 + $0x24a] sm:$0xff]
        %v7056 = vld [vmem:[%s7001 + $0x27a] sm:$0xff]
        %v7057 = vld [vmem:[%s7001 + $0x282] sm:$0xff]
        %v7058 = vld [vmem:[%s7001 + $0x2b2] sm:$0xff]
        %v7059 = vld [vmem:[%s7001 + $0x2ba] sm:$0xff]
        %v7060 = vld [vmem:[%s7001 + $0x2ea] sm:$0xff]
        %v7061 = vld [vmem:[%s7001 + $0x2f2] sm:$0xff]
        %v7062 = vld [vmem:[%s7001 + $0x322] sm:$0xff]
        %v7063 = vld [vmem:[%s7001 + $0x32a] sm:$0xff]
        %v7064 = vld [vmem:[%s7001 + $0x35a] sm:$0xff]
        %v7065 = vld [vmem:[%s7001 + $0x362] sm:$0xff]
        %v7066 = vld [vmem:[%s7001 + $0x21] sm:$0xff]
        %v7067 = vld [vmem:[%s7001 + $0x29] sm:$0xff]
        %v7068 = vld [vmem:[%s7001 + $0x59] sm:$0xff]
        %v7069 = vld [vmem:[%s7001 + $0x61] sm:$0xff]
        %v7070 = vld [vmem:[%s7001 + $0x91] sm:$0xff]
        %v7071 = vld [vmem:[%s7001 + $0x99] sm:$0xff]
        %v7072 = vld [vmem:[%s7001 + $0xc9] sm:$0xff]
        %v7073 = vld [vmem:[%s7001 + $0xd1] sm:$0xff]
        %v7074 = vld [vmem:[%s7001 + $0x101] sm:$0xff]
        %v7075 = vld [vmem:[%s7001 + $0x109] sm:$0xff]
        %v7076 = vld [vmem:[%s7001 + $0x139] sm:$0xff]
        %v7077 = vld [vmem:[%s7001 + $0x141] sm:$0xff]
        %v7078 = vld [vmem:[%s7001 + $0x171] sm:$0xff]
        %v7079 = vld [vmem:[%s7001 + $0x179] sm:$0xff]
        %v7080 = vld [vmem:[%s7001 + $0x1a9] sm:$0xff]
        %v7081 = vld [vmem:[%s7001 + $0x1b1] sm:$0xff]
        %v7082 = vld [vmem:[%s7001 + $0x1e1] sm:$0xff]
        %v7083 = vld [vmem:[%s7001 + $0x1e9] sm:$0xff]
        %v7084 = vld [vmem:[%s7001 + $0x219] sm:$0xff]
        %v7085 = vld [vmem:[%s7001 + $0x221] sm:$0xff]
        %v7086 = vld [vmem:[%s7001 + $0x251] sm:$0xff]
        %v7087 = vld [vmem:[%s7001 + $0x259] sm:$0xff]
        %v7088 = vld [vmem:[%s7001 + $0x289] sm:$0xff]
        %v7089 = vld [vmem:[%s7001 + $0x291] sm:$0xff]
        %v7090 = vld [vmem:[%s7001 + $0x2c1] sm:$0xff]
        %v7091 = vld [vmem:[%s7001 + $0x2c9] sm:$0xff]
        %v7092 = vld [vmem:[%s7001 + $0x2f9] sm:$0xff]
        %v7093 = vld [vmem:[%s7001 + $0x301] sm:$0xff]
        %v7094 = vld [vmem:[%s7001 + $0x331] sm:$0xff]
        %v7095 = vld [vmem:[%s7001 + $0x339] sm:$0xff]
        %v7096 = vld [vmem:[%s7001 + $0x369] sm:$0xff]
        %v7097 = vld [vmem:[%s7001 + $0x371] sm:$0xff]
        %v7098 = vld [vmem:[%s267 + $0x3] sm:$0xff]
        %v7099 = vld [vmem:[%s267 + $0xb] sm:$0xff]
        %v7100 = vld [vmem:[%s267 + $0x3b] sm:$0xff]
        %v7101 = vld [vmem:[%s267 + $0x43] sm:$0xff]
        %v7102 = vld [vmem:[%s267 + $0x73] sm:$0xff]
        %v7103 = vld [vmem:[%s267 + $0x7b] sm:$0xff]
        %v7104 = vld [vmem:[%s267 + $0xab] sm:$0xff]
        %v7105 = vld [vmem:[%s267 + $0xb3] sm:$0xff]
        %v7106 = vld [vmem:[%s267 + $0xe3] sm:$0xff]
        %v7107 = vld [vmem:[%s267 + $0xeb] sm:$0xff]
        %v7108 = vld [vmem:[%s267 + $0x11b] sm:$0xff]
        %v7109 = vld [vmem:[%s267 + $0x123] sm:$0xff]
        %v7110 = vld [vmem:[%s267 + $0x153] sm:$0xff]
        %v7111 = vld [vmem:[%s267 + $0x15b] sm:$0xff]
        %v7112 = vld [vmem:[%s267 + $0x18b] sm:$0xff]
        %v7113 = vld [vmem:[%s267 + $0x193] sm:$0xff]
        %v7114 = vld [vmem:[%s267 + $0x1c3] sm:$0xff]
        %v7115 = vld [vmem:[%s267 + $0x1cb] sm:$0xff]
        %v7116 = vld [vmem:[%s267 + $0x1fb] sm:$0xff]
        %v7117 = vld [vmem:[%s267 + $0x203] sm:$0xff]
        %v7118 = vld [vmem:[%s267 + $0x233] sm:$0xff]
        %v7119 = vld [vmem:[%s267 + $0x23b] sm:$0xff]
        %v7120 = vld [vmem:[%s267 + $0x26b] sm:$0xff]
        %v7121 = vld [vmem:[%s267 + $0x273] sm:$0xff]
        %v7122 = vld [vmem:[%s267 + $0x2a3] sm:$0xff]
        %v7123 = vld [vmem:[%s267 + $0x2ab] sm:$0xff]
        %v7124 = vld [vmem:[%s267 + $0x2db] sm:$0xff]
        %v7125 = vld [vmem:[%s267 + $0x2e3] sm:$0xff]
        %v7126 = vld [vmem:[%s267 + $0x313] sm:$0xff]
        %v7127 = vld [vmem:[%s267 + $0x31b] sm:$0xff]
        %v7128 = vld [vmem:[%s267 + $0x34b] sm:$0xff]
        %v7129 = vld [vmem:[%s267 + $0x353] sm:$0xff]
        %v7130 = vld [vmem:[%s267 + $0x12] sm:$0xff]
        %v7131 = vld [vmem:[%s267 + $0x1a] sm:$0xff]
        %v7132 = vld [vmem:[%s267 + $0x4a] sm:$0xff]
        %v7133 = vld [vmem:[%s267 + $0x52] sm:$0xff]
        %v7134 = vld [vmem:[%s267 + $0x82] sm:$0xff]
        %v7135 = vld [vmem:[%s267 + $0x8a] sm:$0xff]
        %v7136 = vld [vmem:[%s267 + $0xba] sm:$0xff]
        %v7137 = vld [vmem:[%s267 + $0xc2] sm:$0xff]
        %v7138 = vld [vmem:[%s267 + $0xf2] sm:$0xff]
        %v7139 = vld [vmem:[%s267 + $0xfa] sm:$0xff]
        %v7140 = vld [vmem:[%s267 + $0x12a] sm:$0xff]
        %v7141 = vld [vmem:[%s267 + $0x132] sm:$0xff]
        %v7142 = vld [vmem:[%s267 + $0x162] sm:$0xff]
        %v7143 = vld [vmem:[%s267 + $0x16a] sm:$0xff]
        %v7144 = vld [vmem:[%s267 + $0x19a] sm:$0xff]
        %v7145 = vld [vmem:[%s267 + $0x1a2] sm:$0xff]
        %v7146 = vld [vmem:[%s267 + $0x1d2] sm:$0xff]
        %v7147 = vld [vmem:[%s267 + $0x1da] sm:$0xff]
        %v7148 = vld [vmem:[%s267 + $0x20a] sm:$0xff]
        %v7149 = vld [vmem:[%s267 + $0x212] sm:$0xff]
        %v7150 = vld [vmem:[%s267 + $0x242] sm:$0xff]
        %v7151 = vld [vmem:[%s267 + $0x24a] sm:$0xff]
        %v7152 = vld [vmem:[%s267 + $0x27a] sm:$0xff]
        %v7153 = vld [vmem:[%s267 + $0x282] sm:$0xff]
        %v7154 = vld [vmem:[%s267 + $0x2b2] sm:$0xff]
        %v7155 = vld [vmem:[%s267 + $0x2ba] sm:$0xff]
        %v7156 = vld [vmem:[%s267 + $0x2ea] sm:$0xff]
        %v7157 = vld [vmem:[%s267 + $0x2f2] sm:$0xff]
        %v7158 = vld [vmem:[%s267 + $0x322] sm:$0xff]
        %v7159 = vld [vmem:[%s267 + $0x32a] sm:$0xff]
        %v7160 = vld [vmem:[%s267 + $0x35a] sm:$0xff]
        %v7161 = vld [vmem:[%s267 + $0x362] sm:$0xff]
        %v7162 = vld [vmem:[%s267 + $0x21] sm:$0xff]
        %v7163 = vld [vmem:[%s267 + $0x29] sm:$0xff]
        %v7164 = vld [vmem:[%s267 + $0x59] sm:$0xff]
        %v7165 = vld [vmem:[%s267 + $0x61] sm:$0xff]
        %v7166 = vld [vmem:[%s267 + $0x91] sm:$0xff]
        %v7167 = vld [vmem:[%s267 + $0x99] sm:$0xff]
        %v7168 = vld [vmem:[%s267 + $0xc9] sm:$0xff]
        %v7169 = vld [vmem:[%s267 + $0xd1] sm:$0xff]
        %v7170 = vld [vmem:[%s267 + $0x101] sm:$0xff]
        %v7171 = vld [vmem:[%s267 + $0x109] sm:$0xff]
        %v7172 = vld [vmem:[%s267 + $0x139] sm:$0xff]
        %v7173 = vld [vmem:[%s267 + $0x141] sm:$0xff]
        %v7174 = vld [vmem:[%s267 + $0x171] sm:$0xff]
        %v7175 = vld [vmem:[%s267 + $0x179] sm:$0xff]
        %v7176 = vld [vmem:[%s267 + $0x1a9] sm:$0xff]
        %v7177 = vld [vmem:[%s267 + $0x1b1] sm:$0xff]
        %v7178 = vld [vmem:[%s267 + $0x1e1] sm:$0xff]
        %v7179 = vld [vmem:[%s267 + $0x1e9] sm:$0xff]
        %v7180 = vld [vmem:[%s267 + $0x219] sm:$0xff]
        %v7181 = vld [vmem:[%s267 + $0x221] sm:$0xff]
        %v7182 = vld [vmem:[%s267 + $0x251] sm:$0xff]
        %v7183 = vld [vmem:[%s267 + $0x259] sm:$0xff]
        %v7184 = vld [vmem:[%s267 + $0x289] sm:$0xff]
        %v7185 = vld [vmem:[%s267 + $0x291] sm:$0xff]
        %v7186 = vld [vmem:[%s267 + $0x2c1] sm:$0xff]
        %v7187 = vld [vmem:[%s267 + $0x2c9] sm:$0xff]
        %v7188 = vld [vmem:[%s267 + $0x2f9] sm:$0xff]
        %v7189 = vld [vmem:[%s267 + $0x301] sm:$0xff]
        %v7190 = vld [vmem:[%s267 + $0x331] sm:$0xff]
        %v7191 = vld [vmem:[%s267 + $0x339] sm:$0xff]
        %v7192 = vld [vmem:[%s267 + $0x369] sm:$0xff]
        %v7193 = vld [vmem:[%s267 + $0x371] sm:$0xff]
        %s7194 = scalar_lea.vmem %s168, 1848
        %v7195 = vld [vmem:[%s7194 + $0x3] sm:$0xff]
        %v7196 = vld [vmem:[%s7194 + $0xb] sm:$0xff]
        %v7197 = vld [vmem:[%s7194 + $0x3b] sm:$0xff]
        %v7198 = vld [vmem:[%s7194 + $0x43] sm:$0xff]
        %v7199 = vld [vmem:[%s7194 + $0x73] sm:$0xff]
        %v7200 = vld [vmem:[%s7194 + $0x7b] sm:$0xff]
        %v7201 = vld [vmem:[%s7194 + $0xab] sm:$0xff]
        %v7202 = vld [vmem:[%s7194 + $0xb3] sm:$0xff]
        %v7203 = vld [vmem:[%s7194 + $0xe3] sm:$0xff]
        %v7204 = vld [vmem:[%s7194 + $0xeb] sm:$0xff]
        %v7205 = vld [vmem:[%s7194 + $0x11b] sm:$0xff]
        %v7206 = vld [vmem:[%s7194 + $0x123] sm:$0xff]
        %v7207 = vld [vmem:[%s7194 + $0x153] sm:$0xff]
        %v7208 = vld [vmem:[%s7194 + $0x15b] sm:$0xff]
        %v7209 = vld [vmem:[%s7194 + $0x18b] sm:$0xff]
        %v7210 = vld [vmem:[%s7194 + $0x193] sm:$0xff]
        %v7211 = vld [vmem:[%s7194 + $0x1c3] sm:$0xff]
        %v7212 = vld [vmem:[%s7194 + $0x1cb] sm:$0xff]
        %v7213 = vld [vmem:[%s7194 + $0x1fb] sm:$0xff]
        %v7214 = vld [vmem:[%s7194 + $0x203] sm:$0xff]
        %v7215 = vld [vmem:[%s7194 + $0x233] sm:$0xff]
        %v7216 = vld [vmem:[%s7194 + $0x23b] sm:$0xff]
        %v7217 = vld [vmem:[%s7194 + $0x26b] sm:$0xff]
        %v7218 = vld [vmem:[%s7194 + $0x273] sm:$0xff]
        %v7219 = vld [vmem:[%s7194 + $0x2a3] sm:$0xff]
        %v7220 = vld [vmem:[%s7194 + $0x2ab] sm:$0xff]
        %v7221 = vld [vmem:[%s7194 + $0x2db] sm:$0xff]
        %v7222 = vld [vmem:[%s7194 + $0x2e3] sm:$0xff]
        %v7223 = vld [vmem:[%s7194 + $0x313] sm:$0xff]
        %v7224 = vld [vmem:[%s7194 + $0x31b] sm:$0xff]
        %v7225 = vld [vmem:[%s7194 + $0x34b] sm:$0xff]
        %v7226 = vld [vmem:[%s7194 + $0x353] sm:$0xff]
        %v7227 = vld [vmem:[%s7194 + $0x12] sm:$0xff]
        %v7228 = vld [vmem:[%s7194 + $0x1a] sm:$0xff]
        %v7229 = vld [vmem:[%s7194 + $0x4a] sm:$0xff]
        %v7230 = vld [vmem:[%s7194 + $0x52] sm:$0xff]
        %v7231 = vld [vmem:[%s7194 + $0x82] sm:$0xff]
        %v7232 = vld [vmem:[%s7194 + $0x8a] sm:$0xff]
        %v7233 = vld [vmem:[%s7194 + $0xba] sm:$0xff]
        %v7234 = vld [vmem:[%s7194 + $0xc2] sm:$0xff]
        %v7235 = vld [vmem:[%s7194 + $0xf2] sm:$0xff]
        %v7236 = vld [vmem:[%s7194 + $0xfa] sm:$0xff]
        %v7237 = vld [vmem:[%s7194 + $0x12a] sm:$0xff]
        %v7238 = vld [vmem:[%s7194 + $0x132] sm:$0xff]
        %v7239 = vld [vmem:[%s7194 + $0x162] sm:$0xff]
        %v7240 = vld [vmem:[%s7194 + $0x16a] sm:$0xff]
        %v7241 = vld [vmem:[%s7194 + $0x19a] sm:$0xff]
        %v7242 = vld [vmem:[%s7194 + $0x1a2] sm:$0xff]
        %v7243 = vld [vmem:[%s7194 + $0x1d2] sm:$0xff]
        %v7244 = vld [vmem:[%s7194 + $0x1da] sm:$0xff]
        %v7245 = vld [vmem:[%s7194 + $0x20a] sm:$0xff]
        %v7246 = vld [vmem:[%s7194 + $0x212] sm:$0xff]
        %v7247 = vld [vmem:[%s7194 + $0x242] sm:$0xff]
        %v7248 = vld [vmem:[%s7194 + $0x24a] sm:$0xff]
        %v7249 = vld [vmem:[%s7194 + $0x27a] sm:$0xff]
        %v7250 = vld [vmem:[%s7194 + $0x282] sm:$0xff]
        %v7251 = vld [vmem:[%s7194 + $0x2b2] sm:$0xff]
        %v7252 = vld [vmem:[%s7194 + $0x2ba] sm:$0xff]
        %v7253 = vld [vmem:[%s7194 + $0x2ea] sm:$0xff]
        %v7254 = vld [vmem:[%s7194 + $0x2f2] sm:$0xff]
        %v7255 = vld [vmem:[%s7194 + $0x322] sm:$0xff]
        %v7256 = vld [vmem:[%s7194 + $0x32a] sm:$0xff]
        %v7257 = vld [vmem:[%s7194 + $0x35a] sm:$0xff]
        %v7258 = vld [vmem:[%s7194 + $0x362] sm:$0xff]
        %v7259 = vld [vmem:[%s7194 + $0x21] sm:$0xff]
        %v7260 = vld [vmem:[%s7194 + $0x29] sm:$0xff]
        %v7261 = vld [vmem:[%s7194 + $0x59] sm:$0xff]
        %v7262 = vld [vmem:[%s7194 + $0x61] sm:$0xff]
        %v7263 = vld [vmem:[%s7194 + $0x91] sm:$0xff]
        %v7264 = vld [vmem:[%s7194 + $0x99] sm:$0xff]
        %v7265 = vld [vmem:[%s7194 + $0xc9] sm:$0xff]
        %v7266 = vld [vmem:[%s7194 + $0xd1] sm:$0xff]
        %v7267 = vld [vmem:[%s7194 + $0x101] sm:$0xff]
        %v7268 = vld [vmem:[%s7194 + $0x109] sm:$0xff]
        %v7269 = vld [vmem:[%s7194 + $0x139] sm:$0xff]
        %v7270 = vld [vmem:[%s7194 + $0x141] sm:$0xff]
        %v7271 = vld [vmem:[%s7194 + $0x171] sm:$0xff]
        %v7272 = vld [vmem:[%s7194 + $0x179] sm:$0xff]
        %v7273 = vld [vmem:[%s7194 + $0x1a9] sm:$0xff]
        %v7274 = vld [vmem:[%s7194 + $0x1b1] sm:$0xff]
        %v7275 = vld [vmem:[%s7194 + $0x1e1] sm:$0xff]
        %v7276 = vld [vmem:[%s7194 + $0x1e9] sm:$0xff]
        %v7277 = vld [vmem:[%s7194 + $0x219] sm:$0xff]
        %v7278 = vld [vmem:[%s7194 + $0x221] sm:$0xff]
        %v7279 = vld [vmem:[%s7194 + $0x251] sm:$0xff]
        %v7280 = vld [vmem:[%s7194 + $0x259] sm:$0xff]
        %v7281 = vld [vmem:[%s7194 + $0x289] sm:$0xff]
        %v7282 = vld [vmem:[%s7194 + $0x291] sm:$0xff]
        %v7283 = vld [vmem:[%s7194 + $0x2c1] sm:$0xff]
        %v7284 = vld [vmem:[%s7194 + $0x2c9] sm:$0xff]
        %v7285 = vld [vmem:[%s7194 + $0x2f9] sm:$0xff]
        %v7286 = vld [vmem:[%s7194 + $0x301] sm:$0xff]
        %v7287 = vld [vmem:[%s7194 + $0x331] sm:$0xff]
        %v7288 = vld [vmem:[%s7194 + $0x339] sm:$0xff]
        %v7289 = vld [vmem:[%s7194 + $0x369] sm:$0xff]
        %v7290 = vld [vmem:[%s7194 + $0x371] sm:$0xff]
        %7323 = vrot.lane.b32.xlu0 %v7034, 8
        %v7324 = vpop.permute.xlu0 %7323
        %7325 = vrot.lane.b32.xlu0 %v7035, 8
        %v7326 = vpop.permute.xlu0 %7325
        %7327 = vrot.lane.b32.xlu0 %v7036, 8
        %v7328 = vpop.permute.xlu0 %7327
        %7329 = vrot.lane.b32.xlu0 %v7037, 8
        %v7330 = vpop.permute.xlu0 %7329
        %7331 = vrot.lane.b32.xlu0 %v7038, 8
        %v7332 = vpop.permute.xlu0 %7331
        %7333 = vrot.lane.b32.xlu0 %v7039, 8
        %v7334 = vpop.permute.xlu0 %7333
        %7335 = vrot.lane.b32.xlu0 %v7040, 8
        %v7336 = vpop.permute.xlu0 %7335
        %7337 = vrot.lane.b32.xlu0 %v7041, 8
        %v7338 = vpop.permute.xlu0 %7337
        %7339 = vrot.lane.b32.xlu0 %v7042, 8
        %v7340 = vpop.permute.xlu0 %7339
        %7341 = vrot.lane.b32.xlu0 %v7043, 8
        %v7342 = vpop.permute.xlu0 %7341
        %7343 = vrot.lane.b32.xlu0 %v7044, 8
        %v7344 = vpop.permute.xlu0 %7343
        %7345 = vrot.lane.b32.xlu0 %v7045, 8
        %v7346 = vpop.permute.xlu0 %7345
        %7347 = vrot.lane.b32.xlu0 %v7046, 8
        %v7348 = vpop.permute.xlu0 %7347
        %7349 = vrot.lane.b32.xlu0 %v7047, 8
        %v7350 = vpop.permute.xlu0 %7349
        %7351 = vrot.lane.b32.xlu0 %v7048, 8
        %v7352 = vpop.permute.xlu0 %7351
        %7353 = vrot.lane.b32.xlu0 %v7049, 8
        %v7354 = vpop.permute.xlu0 %7353
        %7355 = vrot.lane.b32.xlu0 %v7050, 8
        %v7356 = vpop.permute.xlu0 %7355
        %7357 = vrot.lane.b32.xlu0 %v7051, 8
        %v7358 = vpop.permute.xlu0 %7357
        %7359 = vrot.lane.b32.xlu0 %v7052, 8
        %v7360 = vpop.permute.xlu0 %7359
        %7361 = vrot.lane.b32.xlu0 %v7053, 8
        %v7362 = vpop.permute.xlu0 %7361
        %7363 = vrot.lane.b32.xlu0 %v7054, 8
        %v7364 = vpop.permute.xlu0 %7363
        %7365 = vrot.lane.b32.xlu0 %v7055, 8
        %v7366 = vpop.permute.xlu0 %7365
        %7367 = vrot.lane.b32.xlu0 %v7056, 8
        %v7368 = vpop.permute.xlu0 %7367
        %7369 = vrot.lane.b32.xlu0 %v7057, 8
        %v7370 = vpop.permute.xlu0 %7369
        %7371 = vrot.lane.b32.xlu0 %v7058, 8
        %v7372 = vpop.permute.xlu0 %7371
        %7373 = vrot.lane.b32.xlu0 %v7059, 8
        %v7374 = vpop.permute.xlu0 %7373
        %7375 = vrot.lane.b32.xlu0 %v7060, 8
        %v7376 = vpop.permute.xlu0 %7375
        %7377 = vrot.lane.b32.xlu0 %v7061, 8
        %v7378 = vpop.permute.xlu0 %7377
        %7379 = vrot.lane.b32.xlu0 %v7062, 8
        %v7380 = vpop.permute.xlu0 %7379
        %7381 = vrot.lane.b32.xlu0 %v7063, 8
        %v7382 = vpop.permute.xlu0 %7381
        %7383 = vrot.lane.b32.xlu0 %v7064, 8
        %v7384 = vpop.permute.xlu0 %7383
        %7385 = vrot.lane.b32.xlu0 %v7065, 8
        %v7386 = vpop.permute.xlu0 %7385
        %7451 = vrot.lane.b32.xlu0 %v7066, 16
        %v7452 = vpop.permute.xlu0 %7451
        %7453 = vrot.lane.b32.xlu0 %v7067, 16
        %v7454 = vpop.permute.xlu0 %7453
        %7455 = vrot.lane.b32.xlu0 %v7068, 16
        %v7456 = vpop.permute.xlu0 %7455
        %7457 = vrot.lane.b32.xlu0 %v7069, 16
        %v7458 = vpop.permute.xlu0 %7457
        %7459 = vrot.lane.b32.xlu0 %v7070, 16
        %v7460 = vpop.permute.xlu0 %7459
        %7461 = vrot.lane.b32.xlu0 %v7071, 16
        %v7462 = vpop.permute.xlu0 %7461
        %7463 = vrot.lane.b32.xlu0 %v7072, 16
        %v7464 = vpop.permute.xlu0 %7463
        %7465 = vrot.lane.b32.xlu0 %v7073, 16
        %v7466 = vpop.permute.xlu0 %7465
        %7467 = vrot.lane.b32.xlu0 %v7074, 16
        %v7468 = vpop.permute.xlu0 %7467
        %7469 = vrot.lane.b32.xlu0 %v7075, 16
        %v7470 = vpop.permute.xlu0 %7469
        %7471 = vrot.lane.b32.xlu0 %v7076, 16
        %v7472 = vpop.permute.xlu0 %7471
        %7473 = vrot.lane.b32.xlu0 %v7077, 16
        %v7474 = vpop.permute.xlu0 %7473
        %7475 = vrot.lane.b32.xlu0 %v7078, 16
        %v7476 = vpop.permute.xlu0 %7475
        %7477 = vrot.lane.b32.xlu0 %v7079, 16
        %v7478 = vpop.permute.xlu0 %7477
        %7479 = vrot.lane.b32.xlu0 %v7080, 16
        %v7480 = vpop.permute.xlu0 %7479
        %7481 = vrot.lane.b32.xlu0 %v7081, 16
        %v7482 = vpop.permute.xlu0 %7481
        %7483 = vrot.lane.b32.xlu0 %v7082, 16
        %v7484 = vpop.permute.xlu0 %7483
        %7485 = vrot.lane.b32.xlu0 %v7083, 16
        %v7486 = vpop.permute.xlu0 %7485
        %7487 = vrot.lane.b32.xlu0 %v7084, 16
        %v7488 = vpop.permute.xlu0 %7487
        %7489 = vrot.lane.b32.xlu0 %v7085, 16
        %v7490 = vpop.permute.xlu0 %7489
        %7491 = vrot.lane.b32.xlu0 %v7086, 16
        %v7492 = vpop.permute.xlu0 %7491
        %7493 = vrot.lane.b32.xlu0 %v7087, 16
        %v7494 = vpop.permute.xlu0 %7493
        %7495 = vrot.lane.b32.xlu0 %v7088, 16
        %v7496 = vpop.permute.xlu0 %7495
        %7497 = vrot.lane.b32.xlu0 %v7089, 16
        %v7498 = vpop.permute.xlu0 %7497
        %7499 = vrot.lane.b32.xlu0 %v7090, 16
        %v7500 = vpop.permute.xlu0 %7499
        %7501 = vrot.lane.b32.xlu0 %v7091, 16
        %v7502 = vpop.permute.xlu0 %7501
        %7503 = vrot.lane.b32.xlu0 %v7092, 16
        %v7504 = vpop.permute.xlu0 %7503
        %7505 = vrot.lane.b32.xlu0 %v7093, 16
        %v7506 = vpop.permute.xlu0 %7505
        %7507 = vrot.lane.b32.xlu0 %v7094, 16
        %v7508 = vpop.permute.xlu0 %7507
        %7509 = vrot.lane.b32.xlu0 %v7095, 16
        %v7510 = vpop.permute.xlu0 %7509
        %7511 = vrot.lane.b32.xlu0 %v7096, 16
        %v7512 = vpop.permute.xlu0 %7511
        %7513 = vrot.lane.b32.xlu0 %v7097, 16
        %v7514 = vpop.permute.xlu0 %7513
        %7579 = vrot.lane.b32.xlu0 %v7098, 24
        %v7580 = vpop.permute.xlu0 %7579
        %7581 = vrot.lane.b32.xlu0 %v7099, 24
        %v7582 = vpop.permute.xlu0 %7581
        %7583 = vrot.lane.b32.xlu0 %v7100, 24
        %v7584 = vpop.permute.xlu0 %7583
        %7585 = vrot.lane.b32.xlu0 %v7101, 24
        %v7586 = vpop.permute.xlu0 %7585
        %7587 = vrot.lane.b32.xlu0 %v7102, 24
        %v7588 = vpop.permute.xlu0 %7587
        %7589 = vrot.lane.b32.xlu0 %v7103, 24
        %v7590 = vpop.permute.xlu0 %7589
        %7591 = vrot.lane.b32.xlu0 %v7104, 24
        %v7592 = vpop.permute.xlu0 %7591
        %7593 = vrot.lane.b32.xlu0 %v7105, 24
        %v7594 = vpop.permute.xlu0 %7593
        %7595 = vrot.lane.b32.xlu0 %v7106, 24
        %v7596 = vpop.permute.xlu0 %7595
        %7597 = vrot.lane.b32.xlu0 %v7107, 24
        %v7598 = vpop.permute.xlu0 %7597
        %7599 = vrot.lane.b32.xlu0 %v7108, 24
        %v7600 = vpop.permute.xlu0 %7599
        %7601 = vrot.lane.b32.xlu0 %v7109, 24
        %v7602 = vpop.permute.xlu0 %7601
        %7603 = vrot.lane.b32.xlu0 %v7110, 24
        %v7604 = vpop.permute.xlu0 %7603
        %7605 = vrot.lane.b32.xlu0 %v7111, 24
        %v7606 = vpop.permute.xlu0 %7605
        %7607 = vrot.lane.b32.xlu0 %v7112, 24
        %v7608 = vpop.permute.xlu0 %7607
        %7609 = vrot.lane.b32.xlu0 %v7113, 24
        %v7610 = vpop.permute.xlu0 %7609
        %7611 = vrot.lane.b32.xlu0 %v7114, 24
        %v7612 = vpop.permute.xlu0 %7611
        %7613 = vrot.lane.b32.xlu0 %v7115, 24
        %v7614 = vpop.permute.xlu0 %7613
        %7615 = vrot.lane.b32.xlu0 %v7116, 24
        %v7616 = vpop.permute.xlu0 %7615
        %7617 = vrot.lane.b32.xlu0 %v7117, 24
        %v7618 = vpop.permute.xlu0 %7617
        %7619 = vrot.lane.b32.xlu0 %v7118, 24
        %v7620 = vpop.permute.xlu0 %7619
        %7621 = vrot.lane.b32.xlu0 %v7119, 24
        %v7622 = vpop.permute.xlu0 %7621
        %7623 = vrot.lane.b32.xlu0 %v7120, 24
        %v7624 = vpop.permute.xlu0 %7623
        %7625 = vrot.lane.b32.xlu0 %v7121, 24
        %v7626 = vpop.permute.xlu0 %7625
        %7627 = vrot.lane.b32.xlu0 %v7122, 24
        %v7628 = vpop.permute.xlu0 %7627
        %7629 = vrot.lane.b32.xlu0 %v7123, 24
        %v7630 = vpop.permute.xlu0 %7629
        %7631 = vrot.lane.b32.xlu0 %v7124, 24
        %v7632 = vpop.permute.xlu0 %7631
        %7633 = vrot.lane.b32.xlu0 %v7125, 24
        %v7634 = vpop.permute.xlu0 %7633
        %7635 = vrot.lane.b32.xlu0 %v7126, 24
        %v7636 = vpop.permute.xlu0 %7635
        %7637 = vrot.lane.b32.xlu0 %v7127, 24
        %v7638 = vpop.permute.xlu0 %7637
        %7639 = vrot.lane.b32.xlu0 %v7128, 24
        %v7640 = vpop.permute.xlu0 %7639
        %7641 = vrot.lane.b32.xlu0 %v7129, 24
        %v7642 = vpop.permute.xlu0 %7641
        %7707 = vrot.lane.b32.xlu0 %v7130, 32
        %v7708 = vpop.permute.xlu0 %7707
        %7709 = vrot.lane.b32.xlu0 %v7131, 32
        %v7710 = vpop.permute.xlu0 %7709
        %7711 = vrot.lane.b32.xlu0 %v7132, 32
        %v7712 = vpop.permute.xlu0 %7711
        %7713 = vrot.lane.b32.xlu0 %v7133, 32
        %v7714 = vpop.permute.xlu0 %7713
        %7715 = vrot.lane.b32.xlu0 %v7134, 32
        %v7716 = vpop.permute.xlu0 %7715
        %7717 = vrot.lane.b32.xlu0 %v7135, 32
        %v7718 = vpop.permute.xlu0 %7717
        %7719 = vrot.lane.b32.xlu0 %v7136, 32
        %v7720 = vpop.permute.xlu0 %7719
        %7721 = vrot.lane.b32.xlu0 %v7137, 32
        %v7722 = vpop.permute.xlu0 %7721
        %7723 = vrot.lane.b32.xlu0 %v7138, 32
        %v7724 = vpop.permute.xlu0 %7723
        %7725 = vrot.lane.b32.xlu0 %v7139, 32
        %v7726 = vpop.permute.xlu0 %7725
        %7727 = vrot.lane.b32.xlu0 %v7140, 32
        %v7728 = vpop.permute.xlu0 %7727
        %7729 = vrot.lane.b32.xlu0 %v7141, 32
        %v7730 = vpop.permute.xlu0 %7729
        %7731 = vrot.lane.b32.xlu0 %v7142, 32
        %v7732 = vpop.permute.xlu0 %7731
        %7733 = vrot.lane.b32.xlu0 %v7143, 32
        %v7734 = vpop.permute.xlu0 %7733
        %7735 = vrot.lane.b32.xlu0 %v7144, 32
        %v7736 = vpop.permute.xlu0 %7735
        %7737 = vrot.lane.b32.xlu0 %v7145, 32
        %v7738 = vpop.permute.xlu0 %7737
        %7739 = vrot.lane.b32.xlu0 %v7146, 32
        %v7740 = vpop.permute.xlu0 %7739
        %7741 = vrot.lane.b32.xlu0 %v7147, 32
        %v7742 = vpop.permute.xlu0 %7741
        %7743 = vrot.lane.b32.xlu0 %v7148, 32
        %v7744 = vpop.permute.xlu0 %7743
        %7745 = vrot.lane.b32.xlu0 %v7149, 32
        %v7746 = vpop.permute.xlu0 %7745
        %7747 = vrot.lane.b32.xlu0 %v7150, 32
        %v7748 = vpop.permute.xlu0 %7747
        %7749 = vrot.lane.b32.xlu0 %v7151, 32
        %v7750 = vpop.permute.xlu0 %7749
        %7751 = vrot.lane.b32.xlu0 %v7152, 32
        %v7752 = vpop.permute.xlu0 %7751
        %7753 = vrot.lane.b32.xlu0 %v7153, 32
        %v7754 = vpop.permute.xlu0 %7753
        %7755 = vrot.lane.b32.xlu0 %v7154, 32
        %v7756 = vpop.permute.xlu0 %7755
        %7757 = vrot.lane.b32.xlu0 %v7155, 32
        %v7758 = vpop.permute.xlu0 %7757
        %7759 = vrot.lane.b32.xlu0 %v7156, 32
        %v7760 = vpop.permute.xlu0 %7759
        %7761 = vrot.lane.b32.xlu0 %v7157, 32
        %v7762 = vpop.permute.xlu0 %7761
        %7763 = vrot.lane.b32.xlu0 %v7158, 32
        %v7764 = vpop.permute.xlu0 %7763
        %7765 = vrot.lane.b32.xlu0 %v7159, 32
        %v7766 = vpop.permute.xlu0 %7765
        %7767 = vrot.lane.b32.xlu0 %v7160, 32
        %v7768 = vpop.permute.xlu0 %7767
        %7769 = vrot.lane.b32.xlu0 %v7161, 32
        %v7770 = vpop.permute.xlu0 %7769
        %7835 = vrot.lane.b32.xlu0 %v7162, 40
        %v7836 = vpop.permute.xlu0 %7835
        %7837 = vrot.lane.b32.xlu0 %v7163, 40
        %v7838 = vpop.permute.xlu0 %7837
        %7839 = vrot.lane.b32.xlu0 %v7164, 40
        %v7840 = vpop.permute.xlu0 %7839
        %7841 = vrot.lane.b32.xlu0 %v7165, 40
        %v7842 = vpop.permute.xlu0 %7841
        %7843 = vrot.lane.b32.xlu0 %v7166, 40
        %v7844 = vpop.permute.xlu0 %7843
        %7845 = vrot.lane.b32.xlu0 %v7167, 40
        %v7846 = vpop.permute.xlu0 %7845
        %7847 = vrot.lane.b32.xlu0 %v7168, 40
        %v7848 = vpop.permute.xlu0 %7847
        %7849 = vrot.lane.b32.xlu0 %v7169, 40
        %v7850 = vpop.permute.xlu0 %7849
        %7851 = vrot.lane.b32.xlu0 %v7170, 40
        %v7852 = vpop.permute.xlu0 %7851
        %7853 = vrot.lane.b32.xlu0 %v7171, 40
        %v7854 = vpop.permute.xlu0 %7853
        %7855 = vrot.lane.b32.xlu0 %v7172, 40
        %v7856 = vpop.permute.xlu0 %7855
        %7857 = vrot.lane.b32.xlu0 %v7173, 40
        %v7858 = vpop.permute.xlu0 %7857
        %7859 = vrot.lane.b32.xlu0 %v7174, 40
        %v7860 = vpop.permute.xlu0 %7859
        %7861 = vrot.lane.b32.xlu0 %v7175, 40
        %v7862 = vpop.permute.xlu0 %7861
        %7863 = vrot.lane.b32.xlu0 %v7176, 40
        %v7864 = vpop.permute.xlu0 %7863
        %7865 = vrot.lane.b32.xlu0 %v7177, 40
        %v7866 = vpop.permute.xlu0 %7865
        %7867 = vrot.lane.b32.xlu0 %v7178, 40
        %v7868 = vpop.permute.xlu0 %7867
        %7869 = vrot.lane.b32.xlu0 %v7179, 40
        %v7870 = vpop.permute.xlu0 %7869
        %7871 = vrot.lane.b32.xlu0 %v7180, 40
        %v7872 = vpop.permute.xlu0 %7871
        %7873 = vrot.lane.b32.xlu0 %v7181, 40
        %v7874 = vpop.permute.xlu0 %7873
        %7875 = vrot.lane.b32.xlu0 %v7182, 40
        %v7876 = vpop.permute.xlu0 %7875
        %7877 = vrot.lane.b32.xlu0 %v7183, 40
        %v7878 = vpop.permute.xlu0 %7877
        %7879 = vrot.lane.b32.xlu0 %v7184, 40
        %v7880 = vpop.permute.xlu0 %7879
        %7881 = vrot.lane.b32.xlu0 %v7185, 40
        %v7882 = vpop.permute.xlu0 %7881
        %7883 = vrot.lane.b32.xlu0 %v7186, 40
        %v7884 = vpop.permute.xlu0 %7883
        %7885 = vrot.lane.b32.xlu0 %v7187, 40
        %v7886 = vpop.permute.xlu0 %7885
        %7887 = vrot.lane.b32.xlu0 %v7188, 40
        %v7888 = vpop.permute.xlu0 %7887
        %7889 = vrot.lane.b32.xlu0 %v7189, 40
        %v7890 = vpop.permute.xlu0 %7889
        %7891 = vrot.lane.b32.xlu0 %v7190, 40
        %v7892 = vpop.permute.xlu0 %7891
        %7893 = vrot.lane.b32.xlu0 %v7191, 40
        %v7894 = vpop.permute.xlu0 %7893
        %7895 = vrot.lane.b32.xlu0 %v7192, 40
        %v7896 = vpop.permute.xlu0 %7895
        %7897 = vrot.lane.b32.xlu0 %v7193, 40
        %v7898 = vpop.permute.xlu0 %7897
        %7963 = vrot.lane.b32.xlu0 %v7195, 48
        %v7964 = vpop.permute.xlu0 %7963
        %7965 = vrot.lane.b32.xlu0 %v7196, 48
        %v7966 = vpop.permute.xlu0 %7965
        %7967 = vrot.lane.b32.xlu0 %v7197, 48
        %v7968 = vpop.permute.xlu0 %7967
        %7969 = vrot.lane.b32.xlu0 %v7198, 48
        %v7970 = vpop.permute.xlu0 %7969
        %7971 = vrot.lane.b32.xlu0 %v7199, 48
        %v7972 = vpop.permute.xlu0 %7971
        %7973 = vrot.lane.b32.xlu0 %v7200, 48
        %v7974 = vpop.permute.xlu0 %7973
        %7975 = vrot.lane.b32.xlu0 %v7201, 48
        %v7976 = vpop.permute.xlu0 %7975
        %7977 = vrot.lane.b32.xlu0 %v7202, 48
        %v7978 = vpop.permute.xlu0 %7977
        %7979 = vrot.lane.b32.xlu0 %v7203, 48
        %v7980 = vpop.permute.xlu0 %7979
        %7981 = vrot.lane.b32.xlu0 %v7204, 48
        %v7982 = vpop.permute.xlu0 %7981
        %7983 = vrot.lane.b32.xlu0 %v7205, 48
        %v7984 = vpop.permute.xlu0 %7983
        %7985 = vrot.lane.b32.xlu0 %v7206, 48
        %v7986 = vpop.permute.xlu0 %7985
        %7987 = vrot.lane.b32.xlu0 %v7207, 48
        %v7988 = vpop.permute.xlu0 %7987
        %7989 = vrot.lane.b32.xlu0 %v7208, 48
        %v7990 = vpop.permute.xlu0 %7989
        %7991 = vrot.lane.b32.xlu0 %v7209, 48
        %v7992 = vpop.permute.xlu0 %7991
        %7993 = vrot.lane.b32.xlu0 %v7210, 48
        %v7994 = vpop.permute.xlu0 %7993
        %7995 = vrot.lane.b32.xlu0 %v7211, 48
        %v7996 = vpop.permute.xlu0 %7995
        %7997 = vrot.lane.b32.xlu0 %v7212, 48
        %v7998 = vpop.permute.xlu0 %7997
        %7999 = vrot.lane.b32.xlu0 %v7213, 48
        %v8000 = vpop.permute.xlu0 %7999
        %8001 = vrot.lane.b32.xlu0 %v7214, 48
        %v8002 = vpop.permute.xlu0 %8001
        %8003 = vrot.lane.b32.xlu0 %v7215, 48
        %v8004 = vpop.permute.xlu0 %8003
        %8005 = vrot.lane.b32.xlu0 %v7216, 48
        %v8006 = vpop.permute.xlu0 %8005
        %8007 = vrot.lane.b32.xlu0 %v7217, 48
        %v8008 = vpop.permute.xlu0 %8007
        %8009 = vrot.lane.b32.xlu0 %v7218, 48
        %v8010 = vpop.permute.xlu0 %8009
        %8011 = vrot.lane.b32.xlu0 %v7219, 48
        %v8012 = vpop.permute.xlu0 %8011
        %8013 = vrot.lane.b32.xlu0 %v7220, 48
        %v8014 = vpop.permute.xlu0 %8013
        %8015 = vrot.lane.b32.xlu0 %v7221, 48
        %v8016 = vpop.permute.xlu0 %8015
        %8017 = vrot.lane.b32.xlu0 %v7222, 48
        %v8018 = vpop.permute.xlu0 %8017
        %8019 = vrot.lane.b32.xlu0 %v7223, 48
        %v8020 = vpop.permute.xlu0 %8019
        %8021 = vrot.lane.b32.xlu0 %v7224, 48
        %v8022 = vpop.permute.xlu0 %8021
        %8023 = vrot.lane.b32.xlu0 %v7225, 48
        %v8024 = vpop.permute.xlu0 %8023
        %8025 = vrot.lane.b32.xlu0 %v7226, 48
        %v8026 = vpop.permute.xlu0 %8025
        %8091 = vrot.lane.b32.xlu0 %v7227, 56
        %v8092 = vpop.permute.xlu0 %8091
        %8093 = vrot.lane.b32.xlu0 %v7228, 56
        %v8094 = vpop.permute.xlu0 %8093
        %8095 = vrot.lane.b32.xlu0 %v7229, 56
        %v8096 = vpop.permute.xlu0 %8095
        %8097 = vrot.lane.b32.xlu0 %v7230, 56
        %v8098 = vpop.permute.xlu0 %8097
        %8099 = vrot.lane.b32.xlu0 %v7231, 56
        %v8100 = vpop.permute.xlu0 %8099
        %8101 = vrot.lane.b32.xlu0 %v7232, 56
        %v8102 = vpop.permute.xlu0 %8101
        %8103 = vrot.lane.b32.xlu0 %v7233, 56
        %v8104 = vpop.permute.xlu0 %8103
        %8105 = vrot.lane.b32.xlu0 %v7234, 56
        %v8106 = vpop.permute.xlu0 %8105
        %8107 = vrot.lane.b32.xlu0 %v7235, 56
        %v8108 = vpop.permute.xlu0 %8107
        %8109 = vrot.lane.b32.xlu0 %v7236, 56
        %v8110 = vpop.permute.xlu0 %8109
        %8111 = vrot.lane.b32.xlu0 %v7237, 56
        %v8112 = vpop.permute.xlu0 %8111
        %8113 = vrot.lane.b32.xlu0 %v7238, 56
        %v8114 = vpop.permute.xlu0 %8113
        %8115 = vrot.lane.b32.xlu0 %v7239, 56
        %v8116 = vpop.permute.xlu0 %8115
        %8117 = vrot.lane.b32.xlu0 %v7240, 56
        %v8118 = vpop.permute.xlu0 %8117
        %8119 = vrot.lane.b32.xlu0 %v7241, 56
        %v8120 = vpop.permute.xlu0 %8119
        %8121 = vrot.lane.b32.xlu0 %v7242, 56
        %v8122 = vpop.permute.xlu0 %8121
        %8123 = vrot.lane.b32.xlu0 %v7243, 56
        %v8124 = vpop.permute.xlu0 %8123
        %8125 = vrot.lane.b32.xlu0 %v7244, 56
        %v8126 = vpop.permute.xlu0 %8125
        %8127 = vrot.lane.b32.xlu0 %v7245, 56
        %v8128 = vpop.permute.xlu0 %8127
        %8129 = vrot.lane.b32.xlu0 %v7246, 56
        %v8130 = vpop.permute.xlu0 %8129
        %8131 = vrot.lane.b32.xlu0 %v7247, 56
        %v8132 = vpop.permute.xlu0 %8131
        %8133 = vrot.lane.b32.xlu0 %v7248, 56
        %v8134 = vpop.permute.xlu0 %8133
        %8135 = vrot.lane.b32.xlu0 %v7249, 56
        %v8136 = vpop.permute.xlu0 %8135
        %8137 = vrot.lane.b32.xlu0 %v7250, 56
        %v8138 = vpop.permute.xlu0 %8137
        %8139 = vrot.lane.b32.xlu0 %v7251, 56
        %v8140 = vpop.permute.xlu0 %8139
        %8141 = vrot.lane.b32.xlu0 %v7252, 56
        %v8142 = vpop.permute.xlu0 %8141
        %8143 = vrot.lane.b32.xlu0 %v7253, 56
        %v8144 = vpop.permute.xlu0 %8143
        %8145 = vrot.lane.b32.xlu0 %v7254, 56
        %v8146 = vpop.permute.xlu0 %8145
        %8147 = vrot.lane.b32.xlu0 %v7255, 56
        %v8148 = vpop.permute.xlu0 %8147
        %8149 = vrot.lane.b32.xlu0 %v7256, 56
        %v8150 = vpop.permute.xlu0 %8149
        %8151 = vrot.lane.b32.xlu0 %v7257, 56
        %v8152 = vpop.permute.xlu0 %8151
        %8153 = vrot.lane.b32.xlu0 %v7258, 56
        %v8154 = vpop.permute.xlu0 %8153
        %8219 = vrot.lane.b32.xlu0 %v7259, 64
        %v8220 = vpop.permute.xlu0 %8219
        %8221 = vrot.lane.b32.xlu0 %v7260, 64
        %v8222 = vpop.permute.xlu0 %8221
        %8223 = vrot.lane.b32.xlu0 %v7261, 64
        %v8224 = vpop.permute.xlu0 %8223
        %8225 = vrot.lane.b32.xlu0 %v7262, 64
        %v8226 = vpop.permute.xlu0 %8225
        %8227 = vrot.lane.b32.xlu0 %v7263, 64
        %v8228 = vpop.permute.xlu0 %8227
        %8229 = vrot.lane.b32.xlu0 %v7264, 64
        %v8230 = vpop.permute.xlu0 %8229
        %8231 = vrot.lane.b32.xlu0 %v7265, 64
        %v8232 = vpop.permute.xlu0 %8231
        %8233 = vrot.lane.b32.xlu0 %v7266, 64
        %v8234 = vpop.permute.xlu0 %8233
        %8235 = vrot.lane.b32.xlu0 %v7267, 64
        %v8236 = vpop.permute.xlu0 %8235
        %8237 = vrot.lane.b32.xlu0 %v7268, 64
        %v8238 = vpop.permute.xlu0 %8237
        %8239 = vrot.lane.b32.xlu0 %v7269, 64
        %v8240 = vpop.permute.xlu0 %8239
        %8241 = vrot.lane.b32.xlu0 %v7270, 64
        %v8242 = vpop.permute.xlu0 %8241
        %8243 = vrot.lane.b32.xlu0 %v7271, 64
        %v8244 = vpop.permute.xlu0 %8243
        %8245 = vrot.lane.b32.xlu0 %v7272, 64
        %v8246 = vpop.permute.xlu0 %8245
        %8247 = vrot.lane.b32.xlu0 %v7273, 64
        %v8248 = vpop.permute.xlu0 %8247
        %8249 = vrot.lane.b32.xlu0 %v7274, 64
        %v8250 = vpop.permute.xlu0 %8249
        %8251 = vrot.lane.b32.xlu0 %v7275, 64
        %v8252 = vpop.permute.xlu0 %8251
        %8253 = vrot.lane.b32.xlu0 %v7276, 64
        %v8254 = vpop.permute.xlu0 %8253
        %8255 = vrot.lane.b32.xlu0 %v7277, 64
        %v8256 = vpop.permute.xlu0 %8255
        %8257 = vrot.lane.b32.xlu0 %v7278, 64
        %v8258 = vpop.permute.xlu0 %8257
        %8259 = vrot.lane.b32.xlu0 %v7279, 64
        %v8260 = vpop.permute.xlu0 %8259
        %8261 = vrot.lane.b32.xlu0 %v7280, 64
        %v8262 = vpop.permute.xlu0 %8261
        %8263 = vrot.lane.b32.xlu0 %v7281, 64
        %v8264 = vpop.permute.xlu0 %8263
        %8265 = vrot.lane.b32.xlu0 %v7282, 64
        %v8266 = vpop.permute.xlu0 %8265
        %8267 = vrot.lane.b32.xlu0 %v7283, 64
        %v8268 = vpop.permute.xlu0 %8267
        %8269 = vrot.lane.b32.xlu0 %v7284, 64
        %v8270 = vpop.permute.xlu0 %8269
        %8271 = vrot.lane.b32.xlu0 %v7285, 64
        %v8272 = vpop.permute.xlu0 %8271
        %8273 = vrot.lane.b32.xlu0 %v7286, 64
        %v8274 = vpop.permute.xlu0 %8273
        %8275 = vrot.lane.b32.xlu0 %v7287, 64
        %v8276 = vpop.permute.xlu0 %8275
        %8277 = vrot.lane.b32.xlu0 %v7288, 64
        %v8278 = vpop.permute.xlu0 %8277
        %8279 = vrot.lane.b32.xlu0 %v7289, 64
        %v8280 = vpop.permute.xlu0 %8279
        %8281 = vrot.lane.b32.xlu0 %v7290, 64
        %v8282 = vpop.permute.xlu0 %8281
        %v8315 = vsel %vm1485, %v7002, %v7324
        %v8316 = vsel %vm1485, %v7003, %v7326
        %v8317 = vsel %vm1485, %v7004, %v7328
        %v8318 = vsel %vm1485, %v7005, %v7330
        %v8319 = vsel %vm1485, %v7006, %v7332
        %v8320 = vsel %vm1485, %v7007, %v7334
        %v8321 = vsel %vm1485, %v7008, %v7336
        %v8322 = vsel %vm1485, %v7009, %v7338
        %v8323 = vsel %vm1485, %v7010, %v7340
        %v8324 = vsel %vm1485, %v7011, %v7342
        %v8325 = vsel %vm1485, %v7012, %v7344
        %v8326 = vsel %vm1485, %v7013, %v7346
        %v8327 = vsel %vm1485, %v7014, %v7348
        %v8328 = vsel %vm1485, %v7015, %v7350
        %v8329 = vsel %vm1485, %v7016, %v7352
        %v8330 = vsel %vm1485, %v7017, %v7354
        %v8331 = vsel %vm1485, %v7018, %v7356
        %v8332 = vsel %vm1485, %v7019, %v7358
        %v8333 = vsel %vm1485, %v7020, %v7360
        %v8334 = vsel %vm1485, %v7021, %v7362
        %v8335 = vsel %vm1485, %v7022, %v7364
        %v8336 = vsel %vm1485, %v7023, %v7366
        %v8337 = vsel %vm1485, %v7024, %v7368
        %v8338 = vsel %vm1485, %v7025, %v7370
        %v8339 = vsel %vm1485, %v7026, %v7372
        %v8340 = vsel %vm1485, %v7027, %v7374
        %v8341 = vsel %vm1485, %v7028, %v7376
        %v8342 = vsel %vm1485, %v7029, %v7378
        %v8343 = vsel %vm1485, %v7030, %v7380
        %v8344 = vsel %vm1485, %v7031, %v7382
        %v8345 = vsel %vm1485, %v7032, %v7384
        %v8346 = vsel %vm1485, %v7033, %v7386
        %v8347 = vsel %vm1518, %v8315, %v7452
        %v8348 = vsel %vm1518, %v8316, %v7454
        %v8349 = vsel %vm1518, %v8317, %v7456
        %v8350 = vsel %vm1518, %v8318, %v7458
        %v8351 = vsel %vm1518, %v8319, %v7460
        %v8352 = vsel %vm1518, %v8320, %v7462
        %v8353 = vsel %vm1518, %v8321, %v7464
        %v8354 = vsel %vm1518, %v8322, %v7466
        %v8355 = vsel %vm1518, %v8323, %v7468
        %v8356 = vsel %vm1518, %v8324, %v7470
        %v8357 = vsel %vm1518, %v8325, %v7472
        %v8358 = vsel %vm1518, %v8326, %v7474
        %v8359 = vsel %vm1518, %v8327, %v7476
        %v8360 = vsel %vm1518, %v8328, %v7478
        %v8361 = vsel %vm1518, %v8329, %v7480
        %v8362 = vsel %vm1518, %v8330, %v7482
        %v8363 = vsel %vm1518, %v8331, %v7484
        %v8364 = vsel %vm1518, %v8332, %v7486
        %v8365 = vsel %vm1518, %v8333, %v7488
        %v8366 = vsel %vm1518, %v8334, %v7490
        %v8367 = vsel %vm1518, %v8335, %v7492
        %v8368 = vsel %vm1518, %v8336, %v7494
        %v8369 = vsel %vm1518, %v8337, %v7496
        %v8370 = vsel %vm1518, %v8338, %v7498
        %v8371 = vsel %vm1518, %v8339, %v7500
        %v8372 = vsel %vm1518, %v8340, %v7502
        %v8373 = vsel %vm1518, %v8341, %v7504
        %v8374 = vsel %vm1518, %v8342, %v7506
        %v8375 = vsel %vm1518, %v8343, %v7508
        %v8376 = vsel %vm1518, %v8344, %v7510
        %v8377 = vsel %vm1518, %v8345, %v7512
        %v8378 = vsel %vm1518, %v8346, %v7514
        %v8379 = vsel %vm1551, %v8347, %v7580
        %v8380 = vsel %vm1551, %v8348, %v7582
        %v8381 = vsel %vm1551, %v8349, %v7584
        %v8382 = vsel %vm1551, %v8350, %v7586
        %v8383 = vsel %vm1551, %v8351, %v7588
        %v8384 = vsel %vm1551, %v8352, %v7590
        %v8385 = vsel %vm1551, %v8353, %v7592
        %v8386 = vsel %vm1551, %v8354, %v7594
        %v8387 = vsel %vm1551, %v8355, %v7596
        %v8388 = vsel %vm1551, %v8356, %v7598
        %v8389 = vsel %vm1551, %v8357, %v7600
        %v8390 = vsel %vm1551, %v8358, %v7602
        %v8391 = vsel %vm1551, %v8359, %v7604
        %v8392 = vsel %vm1551, %v8360, %v7606
        %v8393 = vsel %vm1551, %v8361, %v7608
        %v8394 = vsel %vm1551, %v8362, %v7610
        %v8395 = vsel %vm1551, %v8363, %v7612
        %v8396 = vsel %vm1551, %v8364, %v7614
        %v8397 = vsel %vm1551, %v8365, %v7616
        %v8398 = vsel %vm1551, %v8366, %v7618
        %v8399 = vsel %vm1551, %v8367, %v7620
        %v8400 = vsel %vm1551, %v8368, %v7622
        %v8401 = vsel %vm1551, %v8369, %v7624
        %v8402 = vsel %vm1551, %v8370, %v7626
        %v8403 = vsel %vm1551, %v8371, %v7628
        %v8404 = vsel %vm1551, %v8372, %v7630
        %v8405 = vsel %vm1551, %v8373, %v7632
        %v8406 = vsel %vm1551, %v8374, %v7634
        %v8407 = vsel %vm1551, %v8375, %v7636
        %v8408 = vsel %vm1551, %v8376, %v7638
        %v8409 = vsel %vm1551, %v8377, %v7640
        %v8410 = vsel %vm1551, %v8378, %v7642
        %v8411 = vsel %vm1584, %v8379, %v7708
        %v8412 = vsel %vm1584, %v8380, %v7710
        %v8413 = vsel %vm1584, %v8381, %v7712
        %v8414 = vsel %vm1584, %v8382, %v7714
        %v8415 = vsel %vm1584, %v8383, %v7716
        %v8416 = vsel %vm1584, %v8384, %v7718
        %v8417 = vsel %vm1584, %v8385, %v7720
        %v8418 = vsel %vm1584, %v8386, %v7722
        %v8419 = vsel %vm1584, %v8387, %v7724
        %v8420 = vsel %vm1584, %v8388, %v7726
        %v8421 = vsel %vm1584, %v8389, %v7728
        %v8422 = vsel %vm1584, %v8390, %v7730
        %v8423 = vsel %vm1584, %v8391, %v7732
        %v8424 = vsel %vm1584, %v8392, %v7734
        %v8425 = vsel %vm1584, %v8393, %v7736
        %v8426 = vsel %vm1584, %v8394, %v7738
        %v8427 = vsel %vm1584, %v8395, %v7740
        %v8428 = vsel %vm1584, %v8396, %v7742
        %v8429 = vsel %vm1584, %v8397, %v7744
        %v8430 = vsel %vm1584, %v8398, %v7746
        %v8431 = vsel %vm1584, %v8399, %v7748
        %v8432 = vsel %vm1584, %v8400, %v7750
        %v8433 = vsel %vm1584, %v8401, %v7752
        %v8434 = vsel %vm1584, %v8402, %v7754
        %v8435 = vsel %vm1584, %v8403, %v7756
        %v8436 = vsel %vm1584, %v8404, %v7758
        %v8437 = vsel %vm1584, %v8405, %v7760
        %v8438 = vsel %vm1584, %v8406, %v7762
        %v8439 = vsel %vm1584, %v8407, %v7764
        %v8440 = vsel %vm1584, %v8408, %v7766
        %v8441 = vsel %vm1584, %v8409, %v7768
        %v8442 = vsel %vm1584, %v8410, %v7770
        %v8443 = vsel %vm1617, %v8411, %v7836
        %v8444 = vsel %vm1617, %v8412, %v7838
        %v8445 = vsel %vm1617, %v8413, %v7840
        %v8446 = vsel %vm1617, %v8414, %v7842
        %v8447 = vsel %vm1617, %v8415, %v7844
        %v8448 = vsel %vm1617, %v8416, %v7846
        %v8449 = vsel %vm1617, %v8417, %v7848
        %v8450 = vsel %vm1617, %v8418, %v7850
        %v8451 = vsel %vm1617, %v8419, %v7852
        %v8452 = vsel %vm1617, %v8420, %v7854
        %v8453 = vsel %vm1617, %v8421, %v7856
        %v8454 = vsel %vm1617, %v8422, %v7858
        %v8455 = vsel %vm1617, %v8423, %v7860
        %v8456 = vsel %vm1617, %v8424, %v7862
        %v8457 = vsel %vm1617, %v8425, %v7864
        %v8458 = vsel %vm1617, %v8426, %v7866
        %v8459 = vsel %vm1617, %v8427, %v7868
        %v8460 = vsel %vm1617, %v8428, %v7870
        %v8461 = vsel %vm1617, %v8429, %v7872
        %v8462 = vsel %vm1617, %v8430, %v7874
        %v8463 = vsel %vm1617, %v8431, %v7876
        %v8464 = vsel %vm1617, %v8432, %v7878
        %v8465 = vsel %vm1617, %v8433, %v7880
        %v8466 = vsel %vm1617, %v8434, %v7882
        %v8467 = vsel %vm1617, %v8435, %v7884
        %v8468 = vsel %vm1617, %v8436, %v7886
        %v8469 = vsel %vm1617, %v8437, %v7888
        %v8470 = vsel %vm1617, %v8438, %v7890
        %v8471 = vsel %vm1617, %v8439, %v7892
        %v8472 = vsel %vm1617, %v8440, %v7894
        %v8473 = vsel %vm1617, %v8441, %v7896
        %v8474 = vsel %vm1617, %v8442, %v7898
        %v8475 = vsel %vm1650, %v8443, %v7964
        %v8476 = vsel %vm1650, %v8444, %v7966
        %v8477 = vsel %vm1650, %v8445, %v7968
        %v8478 = vsel %vm1650, %v8446, %v7970
        %v8479 = vsel %vm1650, %v8447, %v7972
        %v8480 = vsel %vm1650, %v8448, %v7974
        %v8481 = vsel %vm1650, %v8449, %v7976
        %v8482 = vsel %vm1650, %v8450, %v7978
        %v8483 = vsel %vm1650, %v8451, %v7980
        %v8484 = vsel %vm1650, %v8452, %v7982
        %v8485 = vsel %vm1650, %v8453, %v7984
        %v8486 = vsel %vm1650, %v8454, %v7986
        %v8487 = vsel %vm1650, %v8455, %v7988
        %v8488 = vsel %vm1650, %v8456, %v7990
        %v8489 = vsel %vm1650, %v8457, %v7992
        %v8490 = vsel %vm1650, %v8458, %v7994
        %v8491 = vsel %vm1650, %v8459, %v7996
        %v8492 = vsel %vm1650, %v8460, %v7998
        %v8493 = vsel %vm1650, %v8461, %v8000
        %v8494 = vsel %vm1650, %v8462, %v8002
        %v8495 = vsel %vm1650, %v8463, %v8004
        %v8496 = vsel %vm1650, %v8464, %v8006
        %v8497 = vsel %vm1650, %v8465, %v8008
        %v8498 = vsel %vm1650, %v8466, %v8010
        %v8499 = vsel %vm1650, %v8467, %v8012
        %v8500 = vsel %vm1650, %v8468, %v8014
        %v8501 = vsel %vm1650, %v8469, %v8016
        %v8502 = vsel %vm1650, %v8470, %v8018
        %v8503 = vsel %vm1650, %v8471, %v8020
        %v8504 = vsel %vm1650, %v8472, %v8022
        %v8505 = vsel %vm1650, %v8473, %v8024
        %v8506 = vsel %vm1650, %v8474, %v8026
        %v8507 = vsel %vm1683, %v8475, %v8092
        %v8508 = vsel %vm1683, %v8476, %v8094
        %v8509 = vsel %vm1683, %v8477, %v8096
        %v8510 = vsel %vm1683, %v8478, %v8098
        %v8511 = vsel %vm1683, %v8479, %v8100
        %v8512 = vsel %vm1683, %v8480, %v8102
        %v8513 = vsel %vm1683, %v8481, %v8104
        %v8514 = vsel %vm1683, %v8482, %v8106
        %v8515 = vsel %vm1683, %v8483, %v8108
        %v8516 = vsel %vm1683, %v8484, %v8110
        %v8517 = vsel %vm1683, %v8485, %v8112
        %v8518 = vsel %vm1683, %v8486, %v8114
        %v8519 = vsel %vm1683, %v8487, %v8116
        %v8520 = vsel %vm1683, %v8488, %v8118
        %v8521 = vsel %vm1683, %v8489, %v8120
        %v8522 = vsel %vm1683, %v8490, %v8122
        %v8523 = vsel %vm1683, %v8491, %v8124
        %v8524 = vsel %vm1683, %v8492, %v8126
        %v8525 = vsel %vm1683, %v8493, %v8128
        %v8526 = vsel %vm1683, %v8494, %v8130
        %v8527 = vsel %vm1683, %v8495, %v8132
        %v8528 = vsel %vm1683, %v8496, %v8134
        %v8529 = vsel %vm1683, %v8497, %v8136
        %v8530 = vsel %vm1683, %v8498, %v8138
        %v8531 = vsel %vm1683, %v8499, %v8140
        %v8532 = vsel %vm1683, %v8500, %v8142
        %v8533 = vsel %vm1683, %v8501, %v8144
        %v8534 = vsel %vm1683, %v8502, %v8146
        %v8535 = vsel %vm1683, %v8503, %v8148
        %v8536 = vsel %vm1683, %v8504, %v8150
        %v8537 = vsel %vm1683, %v8505, %v8152
        %v8538 = vsel %vm1683, %v8506, %v8154
        %v8539 = vsel %vm1716, %v8507, %v8220
        %v8540 = vsel %vm1716, %v8508, %v8222
        %v8541 = vsel %vm1716, %v8509, %v8224
        %v8542 = vsel %vm1716, %v8510, %v8226
        %v8543 = vsel %vm1716, %v8511, %v8228
        %v8544 = vsel %vm1716, %v8512, %v8230
        %v8545 = vsel %vm1716, %v8513, %v8232
        %v8546 = vsel %vm1716, %v8514, %v8234
        %v8547 = vsel %vm1716, %v8515, %v8236
        %v8548 = vsel %vm1716, %v8516, %v8238
        %v8549 = vsel %vm1716, %v8517, %v8240
        %v8550 = vsel %vm1716, %v8518, %v8242
        %v8551 = vsel %vm1716, %v8519, %v8244
        %v8552 = vsel %vm1716, %v8520, %v8246
        %v8553 = vsel %vm1716, %v8521, %v8248
        %v8554 = vsel %vm1716, %v8522, %v8250
        %v8555 = vsel %vm1716, %v8523, %v8252
        %v8556 = vsel %vm1716, %v8524, %v8254
        %v8557 = vsel %vm1716, %v8525, %v8256
        %v8558 = vsel %vm1716, %v8526, %v8258
        %v8559 = vsel %vm1716, %v8527, %v8260
        %v8560 = vsel %vm1716, %v8528, %v8262
        %v8561 = vsel %vm1716, %v8529, %v8264
        %v8562 = vsel %vm1716, %v8530, %v8266
        %v8563 = vsel %vm1716, %v8531, %v8268
        %v8564 = vsel %vm1716, %v8532, %v8270
        %v8565 = vsel %vm1716, %v8533, %v8272
        %v8566 = vsel %vm1716, %v8534, %v8274
        %v8567 = vsel %vm1716, %v8535, %v8276
        %v8568 = vsel %vm1716, %v8536, %v8278
        %v8569 = vsel %vm1716, %v8537, %v8280
        %v8570 = vsel %vm1716, %v8538, %v8282
        %v8571 = vpack.c.bf16 %v8540, %v8539
        %v8572 = vpack.c.bf16 %v8542, %v8541
        %v8573 = vpack.c.bf16 %v8544, %v8543
        %v8574 = vpack.c.bf16 %v8546, %v8545
        %v8575 = vpack.c.bf16 %v8548, %v8547
        %v8576 = vpack.c.bf16 %v8550, %v8549
        %v8577 = vpack.c.bf16 %v8552, %v8551
        %v8578 = vpack.c.bf16 %v8554, %v8553
        %v8579 = vpack.c.bf16 %v8556, %v8555
        %v8580 = vpack.c.bf16 %v8558, %v8557
        %v8581 = vpack.c.bf16 %v8560, %v8559
        %v8582 = vpack.c.bf16 %v8562, %v8561
        %v8583 = vpack.c.bf16 %v8564, %v8563
        %v8584 = vpack.c.bf16 %v8566, %v8565
        %v8585 = vpack.c.bf16 %v8568, %v8567
        %v8586 = vpack.c.bf16 %v8570, %v8569
        %s8587 = scalar_lea.vmem %s1, 32
        %v8588 = vld [vmem:[%s8587] sm:$0xf]
        %v8589 = vld [vmem:[%s8587 + $0x4] sm:$0xf]
        %s8590 = scalar_lea.vmem %s2, 64
        %v8591 = vld [vmem:[%s8590] sm:$0xff]
        %v8592 = vld [vmem:[%s8590 + $0x8] sm:$0xff]
        %8594 = vset.pattern.permute.xlu0 0
        %8595 = vperm.xlu0 %8594, %v8591
        %v8596 = vpop.permute.xlu0 %8595
        %8599 = vset.pattern.permute.xlu0 0
        %8600 = vperm.xlu0 %8599, %v8592
        %v8601 = vpop.permute.xlu0 %8600
        %v8605 = vunpack.c.l.b16 %v8588
        %v8606 = vunpack.c.l.b16 %v8589
        %v8607 = vpack.c.b16 %v8606, %v8605
        %v8609 = vsel %vm1784, %v8607, 0
        %v8612 = vsel %vm1784, %v8571, 0
        %v8615 = vsel %vm1784, %v8572, 0
        %v8618 = vsel %vm1784, %v8573, 0
        %v8621 = vsel %vm1784, %v8574, 0
        %v8624 = vsel %vm1784, %v8575, 0
        %v8627 = vsel %vm1784, %v8576, 0
        %v8630 = vsel %vm1784, %v8577, 0
        %v8633 = vsel %vm1784, %v8578, 0
        %v8636 = vsel %vm1784, %v8579, 0
        %v8639 = vsel %vm1784, %v8580, 0
        %v8642 = vsel %vm1784, %v8581, 0
        %v8645 = vsel %vm1784, %v8582, 0
        %v8648 = vsel %vm1784, %v8583, 0
        %v8651 = vsel %vm1784, %v8584, 0
        %v8654 = vsel %vm1784, %v8585, 0
        %v8657 = vsel %vm1784, %v8586, 0
        %8659 = vmatprep.subr.bf16.mxu0 0
        %8660 = vmatpush1.bf16.xpose.msra.mxu0 %v8633
        %8661 = vmatprep.subr.bf16.mxu0 0
        %8662 = vmatpush1.bf16.xpose.msra.mxu0 %v8630
        %8663 = vmatprep.subr.bf16.mxu0 0
        %8664 = vmatpush1.bf16.xpose.msra.mxu0 %v8627
        %8665 = vmatprep.subr.bf16.mxu0 0
        %8666 = vmatpush1.bf16.xpose.msra.mxu0 %v8624
        %8667 = vmatprep.subr.bf16.mxu0 0
        %8668 = vmatpush1.bf16.xpose.msra.mxu0 %v8621
        %8669 = vmatprep.subr.bf16.mxu0 0
        %8670 = vmatpush1.bf16.xpose.msra.mxu0 %v8618
        %8671 = vmatprep.subr.bf16.mxu0 0
        %8672 = vmatpush1.bf16.xpose.msra.mxu0 %v8615
        %8673 = vmatprep.subr.bf16.mxu0 0
        %8674 = vmatpush1.bf16.xpose.msra.mxu0 %v8612
        %8675 = vmatprep.subr.bf16.mxu0 0
        %8676 = vmatpush2.bf16.xpose.msra.mxu0 %v8657
        %8677 = vmatprep.subr.bf16.mxu0 0
        %8678 = vmatpush2.bf16.xpose.msra.mxu0 %v8654
        %8679 = vmatprep.subr.bf16.mxu0 0
        %8680 = vmatpush2.bf16.xpose.msra.mxu0 %v8651
        %8681 = vmatprep.subr.bf16.mxu0 0
        %8682 = vmatpush2.bf16.xpose.msra.mxu0 %v8648
        %8683 = vmatprep.subr.bf16.mxu0 0
        %8684 = vmatpush2.bf16.xpose.msra.mxu0 %v8645
        %8685 = vmatprep.subr.bf16.mxu0 0
        %8686 = vmatpush2.bf16.xpose.msra.mxu0 %v8642
        %8687 = vmatprep.subr.bf16.mxu0 0
        %8688 = vmatpush2.bf16.xpose.msra.mxu0 %v8639
        %8689 = vmatprep.subr.bf16.mxu0 0
        %8690 = vmatpush2.bf16.xpose.msra.mxu0 %v8636
        %8691 = vmatprep.mubr.bf16.mxu0 0
        %8692 = vmatmul.mubr.bf16.gmra.mxu0 %v8609
        %v8693 = vpop.f32.mrf.mxu0
        %v8694 = vadd.f32 %v8596, %v8693
        %v8695 = vpop.f32.mrf.mxu0
        %v8696 = vadd.f32 %v8596, %v8695
        %v8697 = vpop.f32.mrf.mxu0
        %v8698 = vadd.f32 %v8601, %v8697
        %v8699 = vpop.f32.mrf.mxu0
        %v8700 = vadd.f32 %v8601, %v8699
        %8701 = vdwg.mxu0
        %s8702 = scalar_lea.vmem %s163, 128 [#allocation2]
        %8703 = vst [vmem:[%s8702] sm:$0xff] %v8694
        %8704 = vst [vmem:[%s8702 + $0x8] sm:$0xff] %v8696
        %8705 = vst [vmem:[%s8702 + $0x10] sm:$0xff] %v8698
        %8706 = vst [vmem:[%s8702 + $0x18] sm:$0xff] %v8700
        %v8707 = vld [vmem:[%s168] sm:$0xff]
        %v8708 = vld [vmem:[%s168 + $0x8] sm:$0xff]
        %v8709 = vld [vmem:[%s168 + $0x38] sm:$0xff]
        %v8710 = vld [vmem:[%s168 + $0x40] sm:$0xff]
        %v8711 = vld [vmem:[%s168 + $0x70] sm:$0xff]
        %v8712 = vld [vmem:[%s168 + $0x78] sm:$0xff]
        %v8713 = vld [vmem:[%s168 + $0xa8] sm:$0xff]
        %v8714 = vld [vmem:[%s168 + $0xb0] sm:$0xff]
        %v8715 = vld [vmem:[%s168 + $0xe0] sm:$0xff]
        %v8716 = vld [vmem:[%s168 + $0xe8] sm:$0xff]
        %v8717 = vld [vmem:[%s168 + $0x118] sm:$0xff]
        %v8718 = vld [vmem:[%s168 + $0x120] sm:$0xff]
        %v8719 = vld [vmem:[%s168 + $0x150] sm:$0xff]
        %v8720 = vld [vmem:[%s168 + $0x158] sm:$0xff]
        %v8721 = vld [vmem:[%s168 + $0x188] sm:$0xff]
        %v8722 = vld [vmem:[%s168 + $0x190] sm:$0xff]
        %v8723 = vld [vmem:[%s168 + $0x1c0] sm:$0xff]
        %v8724 = vld [vmem:[%s168 + $0x1c8] sm:$0xff]
        %v8725 = vld [vmem:[%s168 + $0x1f8] sm:$0xff]
        %v8726 = vld [vmem:[%s168 + $0x200] sm:$0xff]
        %v8727 = vld [vmem:[%s168 + $0x230] sm:$0xff]
        %v8728 = vld [vmem:[%s168 + $0x238] sm:$0xff]
        %v8729 = vld [vmem:[%s168 + $0x268] sm:$0xff]
        %v8730 = vld [vmem:[%s168 + $0x270] sm:$0xff]
        %v8731 = vld [vmem:[%s168 + $0x2a0] sm:$0xff]
        %v8732 = vld [vmem:[%s168 + $0x2a8] sm:$0xff]
        %v8733 = vld [vmem:[%s168 + $0x2d8] sm:$0xff]
        %v8734 = vld [vmem:[%s168 + $0x2e0] sm:$0xff]
        %v8735 = vld [vmem:[%s168 + $0x310] sm:$0xff]
        %v8736 = vld [vmem:[%s168 + $0x318] sm:$0xff]
        %v8737 = vld [vmem:[%s168 + $0x348] sm:$0xff]
        %v8738 = vld [vmem:[%s168 + $0x350] sm:$0xff]
        %v8739 = vld [vmem:[%s168 + $0x12] sm:$0xff]
        %v8740 = vld [vmem:[%s168 + $0x1a] sm:$0xff]
        %v8741 = vld [vmem:[%s168 + $0x4a] sm:$0xff]
        %v8742 = vld [vmem:[%s168 + $0x52] sm:$0xff]
        %v8743 = vld [vmem:[%s168 + $0x82] sm:$0xff]
        %v8744 = vld [vmem:[%s168 + $0x8a] sm:$0xff]
        %v8745 = vld [vmem:[%s168 + $0xba] sm:$0xff]
        %v8746 = vld [vmem:[%s168 + $0xc2] sm:$0xff]
        %v8747 = vld [vmem:[%s168 + $0xf2] sm:$0xff]
        %v8748 = vld [vmem:[%s168 + $0xfa] sm:$0xff]
        %v8749 = vld [vmem:[%s168 + $0x12a] sm:$0xff]
        %v8750 = vld [vmem:[%s168 + $0x132] sm:$0xff]
        %v8751 = vld [vmem:[%s168 + $0x162] sm:$0xff]
        %v8752 = vld [vmem:[%s168 + $0x16a] sm:$0xff]
        %v8753 = vld [vmem:[%s168 + $0x19a] sm:$0xff]
        %v8754 = vld [vmem:[%s168 + $0x1a2] sm:$0xff]
        %v8755 = vld [vmem:[%s168 + $0x1d2] sm:$0xff]
        %v8756 = vld [vmem:[%s168 + $0x1da] sm:$0xff]
        %v8757 = vld [vmem:[%s168 + $0x20a] sm:$0xff]
        %v8758 = vld [vmem:[%s168 + $0x212] sm:$0xff]
        %v8759 = vld [vmem:[%s168 + $0x242] sm:$0xff]
        %v8760 = vld [vmem:[%s168 + $0x24a] sm:$0xff]
        %v8761 = vld [vmem:[%s168 + $0x27a] sm:$0xff]
        %v8762 = vld [vmem:[%s168 + $0x282] sm:$0xff]
        %v8763 = vld [vmem:[%s168 + $0x2b2] sm:$0xff]
        %v8764 = vld [vmem:[%s168 + $0x2ba] sm:$0xff]
        %v8765 = vld [vmem:[%s168 + $0x2ea] sm:$0xff]
        %v8766 = vld [vmem:[%s168 + $0x2f2] sm:$0xff]
        %v8767 = vld [vmem:[%s168 + $0x322] sm:$0xff]
        %v8768 = vld [vmem:[%s168 + $0x32a] sm:$0xff]
        %v8769 = vld [vmem:[%s168 + $0x35a] sm:$0xff]
        %v8770 = vld [vmem:[%s168 + $0x362] sm:$0xff]
        %v8771 = vld [vmem:[%s168 + $0x24] sm:$0xff]
        %v8772 = vld [vmem:[%s168 + $0x2c] sm:$0xff]
        %v8773 = vld [vmem:[%s168 + $0x5c] sm:$0xff]
        %v8774 = vld [vmem:[%s168 + $0x64] sm:$0xff]
        %v8775 = vld [vmem:[%s168 + $0x94] sm:$0xff]
        %v8776 = vld [vmem:[%s168 + $0x9c] sm:$0xff]
        %v8777 = vld [vmem:[%s168 + $0xcc] sm:$0xff]
        %v8778 = vld [vmem:[%s168 + $0xd4] sm:$0xff]
        %v8779 = vld [vmem:[%s168 + $0x104] sm:$0xff]
        %v8780 = vld [vmem:[%s168 + $0x10c] sm:$0xff]
        %v8781 = vld [vmem:[%s168 + $0x13c] sm:$0xff]
        %v8782 = vld [vmem:[%s168 + $0x144] sm:$0xff]
        %v8783 = vld [vmem:[%s168 + $0x174] sm:$0xff]
        %v8784 = vld [vmem:[%s168 + $0x17c] sm:$0xff]
        %v8785 = vld [vmem:[%s168 + $0x1ac] sm:$0xff]
        %v8786 = vld [vmem:[%s168 + $0x1b4] sm:$0xff]
        %v8787 = vld [vmem:[%s168 + $0x1e4] sm:$0xff]
        %v8788 = vld [vmem:[%s168 + $0x1ec] sm:$0xff]
        %v8789 = vld [vmem:[%s168 + $0x21c] sm:$0xff]
        %v8790 = vld [vmem:[%s168 + $0x224] sm:$0xff]
        %v8791 = vld [vmem:[%s168 + $0x254] sm:$0xff]
        %v8792 = vld [vmem:[%s168 + $0x25c] sm:$0xff]
        %v8793 = vld [vmem:[%s168 + $0x28c] sm:$0xff]
        %v8794 = vld [vmem:[%s168 + $0x294] sm:$0xff]
        %v8795 = vld [vmem:[%s168 + $0x2c4] sm:$0xff]
        %v8796 = vld [vmem:[%s168 + $0x2cc] sm:$0xff]
        %v8797 = vld [vmem:[%s168 + $0x2fc] sm:$0xff]
        %v8798 = vld [vmem:[%s168 + $0x304] sm:$0xff]
        %v8799 = vld [vmem:[%s168 + $0x334] sm:$0xff]
        %v8800 = vld [vmem:[%s168 + $0x33c] sm:$0xff]
        %v8801 = vld [vmem:[%s168 + $0x36c] sm:$0xff]
        %v8802 = vld [vmem:[%s168 + $0x374] sm:$0xff]
        %v8803 = vld [vmem:[%s267] sm:$0xff]
        %v8804 = vld [vmem:[%s267 + $0x8] sm:$0xff]
        %v8805 = vld [vmem:[%s267 + $0x38] sm:$0xff]
        %v8806 = vld [vmem:[%s267 + $0x40] sm:$0xff]
        %v8807 = vld [vmem:[%s267 + $0x70] sm:$0xff]
        %v8808 = vld [vmem:[%s267 + $0x78] sm:$0xff]
        %v8809 = vld [vmem:[%s267 + $0xa8] sm:$0xff]
        %v8810 = vld [vmem:[%s267 + $0xb0] sm:$0xff]
        %v8811 = vld [vmem:[%s267 + $0xe0] sm:$0xff]
        %v8812 = vld [vmem:[%s267 + $0xe8] sm:$0xff]
        %v8813 = vld [vmem:[%s267 + $0x118] sm:$0xff]
        %v8814 = vld [vmem:[%s267 + $0x120] sm:$0xff]
        %v8815 = vld [vmem:[%s267 + $0x150] sm:$0xff]
        %v8816 = vld [vmem:[%s267 + $0x158] sm:$0xff]
        %v8817 = vld [vmem:[%s267 + $0x188] sm:$0xff]
        %v8818 = vld [vmem:[%s267 + $0x190] sm:$0xff]
        %v8819 = vld [vmem:[%s267 + $0x1c0] sm:$0xff]
        %v8820 = vld [vmem:[%s267 + $0x1c8] sm:$0xff]
        %v8821 = vld [vmem:[%s267 + $0x1f8] sm:$0xff]
        %v8822 = vld [vmem:[%s267 + $0x200] sm:$0xff]
        %v8823 = vld [vmem:[%s267 + $0x230] sm:$0xff]
        %v8824 = vld [vmem:[%s267 + $0x238] sm:$0xff]
        %v8825 = vld [vmem:[%s267 + $0x268] sm:$0xff]
        %v8826 = vld [vmem:[%s267 + $0x270] sm:$0xff]
        %v8827 = vld [vmem:[%s267 + $0x2a0] sm:$0xff]
        %v8828 = vld [vmem:[%s267 + $0x2a8] sm:$0xff]
        %v8829 = vld [vmem:[%s267 + $0x2d8] sm:$0xff]
        %v8830 = vld [vmem:[%s267 + $0x2e0] sm:$0xff]
        %v8831 = vld [vmem:[%s267 + $0x310] sm:$0xff]
        %v8832 = vld [vmem:[%s267 + $0x318] sm:$0xff]
        %v8833 = vld [vmem:[%s267 + $0x348] sm:$0xff]
        %v8834 = vld [vmem:[%s267 + $0x350] sm:$0xff]
        %v8835 = vld [vmem:[%s267 + $0x12] sm:$0xff]
        %v8836 = vld [vmem:[%s267 + $0x1a] sm:$0xff]
        %v8837 = vld [vmem:[%s267 + $0x4a] sm:$0xff]
        %v8838 = vld [vmem:[%s267 + $0x52] sm:$0xff]
        %v8839 = vld [vmem:[%s267 + $0x82] sm:$0xff]
        %v8840 = vld [vmem:[%s267 + $0x8a] sm:$0xff]
        %v8841 = vld [vmem:[%s267 + $0xba] sm:$0xff]
        %v8842 = vld [vmem:[%s267 + $0xc2] sm:$0xff]
        %v8843 = vld [vmem:[%s267 + $0xf2] sm:$0xff]
        %v8844 = vld [vmem:[%s267 + $0xfa] sm:$0xff]
        %v8845 = vld [vmem:[%s267 + $0x12a] sm:$0xff]
        %v8846 = vld [vmem:[%s267 + $0x132] sm:$0xff]
        %v8847 = vld [vmem:[%s267 + $0x162] sm:$0xff]
        %v8848 = vld [vmem:[%s267 + $0x16a] sm:$0xff]
        %v8849 = vld [vmem:[%s267 + $0x19a] sm:$0xff]
        %v8850 = vld [vmem:[%s267 + $0x1a2] sm:$0xff]
        %v8851 = vld [vmem:[%s267 + $0x1d2] sm:$0xff]
        %v8852 = vld [vmem:[%s267 + $0x1da] sm:$0xff]
        %v8853 = vld [vmem:[%s267 + $0x20a] sm:$0xff]
        %v8854 = vld [vmem:[%s267 + $0x212] sm:$0xff]
        %v8855 = vld [vmem:[%s267 + $0x242] sm:$0xff]
        %v8856 = vld [vmem:[%s267 + $0x24a] sm:$0xff]
        %v8857 = vld [vmem:[%s267 + $0x27a] sm:$0xff]
        %v8858 = vld [vmem:[%s267 + $0x282] sm:$0xff]
        %v8859 = vld [vmem:[%s267 + $0x2b2] sm:$0xff]
        %v8860 = vld [vmem:[%s267 + $0x2ba] sm:$0xff]
        %v8861 = vld [vmem:[%s267 + $0x2ea] sm:$0xff]
        %v8862 = vld [vmem:[%s267 + $0x2f2] sm:$0xff]
        %v8863 = vld [vmem:[%s267 + $0x322] sm:$0xff]
        %v8864 = vld [vmem:[%s267 + $0x32a] sm:$0xff]
        %v8865 = vld [vmem:[%s267 + $0x35a] sm:$0xff]
        %v8866 = vld [vmem:[%s267 + $0x362] sm:$0xff]
        %v8867 = vld [vmem:[%s267 + $0x24] sm:$0xff]
        %v8868 = vld [vmem:[%s267 + $0x2c] sm:$0xff]
        %v8869 = vld [vmem:[%s267 + $0x5c] sm:$0xff]
        %v8870 = vld [vmem:[%s267 + $0x64] sm:$0xff]
        %v8871 = vld [vmem:[%s267 + $0x94] sm:$0xff]
        %v8872 = vld [vmem:[%s267 + $0x9c] sm:$0xff]
        %v8873 = vld [vmem:[%s267 + $0xcc] sm:$0xff]
        %v8874 = vld [vmem:[%s267 + $0xd4] sm:$0xff]
        %v8875 = vld [vmem:[%s267 + $0x104] sm:$0xff]
        %v8876 = vld [vmem:[%s267 + $0x10c] sm:$0xff]
        %v8877 = vld [vmem:[%s267 + $0x13c] sm:$0xff]
        %v8878 = vld [vmem:[%s267 + $0x144] sm:$0xff]
        %v8879 = vld [vmem:[%s267 + $0x174] sm:$0xff]
        %v8880 = vld [vmem:[%s267 + $0x17c] sm:$0xff]
        %v8881 = vld [vmem:[%s267 + $0x1ac] sm:$0xff]
        %v8882 = vld [vmem:[%s267 + $0x1b4] sm:$0xff]
        %v8883 = vld [vmem:[%s267 + $0x1e4] sm:$0xff]
        %v8884 = vld [vmem:[%s267 + $0x1ec] sm:$0xff]
        %v8885 = vld [vmem:[%s267 + $0x21c] sm:$0xff]
        %v8886 = vld [vmem:[%s267 + $0x224] sm:$0xff]
        %v8887 = vld [vmem:[%s267 + $0x254] sm:$0xff]
        %v8888 = vld [vmem:[%s267 + $0x25c] sm:$0xff]
        %v8889 = vld [vmem:[%s267 + $0x28c] sm:$0xff]
        %v8890 = vld [vmem:[%s267 + $0x294] sm:$0xff]
        %v8891 = vld [vmem:[%s267 + $0x2c4] sm:$0xff]
        %v8892 = vld [vmem:[%s267 + $0x2cc] sm:$0xff]
        %v8893 = vld [vmem:[%s267 + $0x2fc] sm:$0xff]
        %v8894 = vld [vmem:[%s267 + $0x304] sm:$0xff]
        %v8895 = vld [vmem:[%s267 + $0x334] sm:$0xff]
        %v8896 = vld [vmem:[%s267 + $0x33c] sm:$0xff]
        %v8897 = vld [vmem:[%s267 + $0x36c] sm:$0xff]
        %v8898 = vld [vmem:[%s267 + $0x374] sm:$0xff]
        %s8899 = scalar_lea.vmem %s168, 2016
        %v8900 = vld [vmem:[%s8899] sm:$0xff]
        %v8901 = vld [vmem:[%s8899 + $0x8] sm:$0xff]
        %v8902 = vld [vmem:[%s8899 + $0x38] sm:$0xff]
        %v8903 = vld [vmem:[%s8899 + $0x40] sm:$0xff]
        %v8904 = vld [vmem:[%s8899 + $0x70] sm:$0xff]
        %v8905 = vld [vmem:[%s8899 + $0x78] sm:$0xff]
        %v8906 = vld [vmem:[%s8899 + $0xa8] sm:$0xff]
        %v8907 = vld [vmem:[%s8899 + $0xb0] sm:$0xff]
        %v8908 = vld [vmem:[%s8899 + $0xe0] sm:$0xff]
        %v8909 = vld [vmem:[%s8899 + $0xe8] sm:$0xff]
        %v8910 = vld [vmem:[%s8899 + $0x118] sm:$0xff]
        %v8911 = vld [vmem:[%s8899 + $0x120] sm:$0xff]
        %v8912 = vld [vmem:[%s8899 + $0x150] sm:$0xff]
        %v8913 = vld [vmem:[%s8899 + $0x158] sm:$0xff]
        %v8914 = vld [vmem:[%s8899 + $0x188] sm:$0xff]
        %v8915 = vld [vmem:[%s8899 + $0x190] sm:$0xff]
        %v8916 = vld [vmem:[%s8899 + $0x1c0] sm:$0xff]
        %v8917 = vld [vmem:[%s8899 + $0x1c8] sm:$0xff]
        %v8918 = vld [vmem:[%s8899 + $0x1f8] sm:$0xff]
        %v8919 = vld [vmem:[%s8899 + $0x200] sm:$0xff]
        %v8920 = vld [vmem:[%s8899 + $0x230] sm:$0xff]
        %v8921 = vld [vmem:[%s8899 + $0x238] sm:$0xff]
        %v8922 = vld [vmem:[%s8899 + $0x268] sm:$0xff]
        %v8923 = vld [vmem:[%s8899 + $0x270] sm:$0xff]
        %v8924 = vld [vmem:[%s8899 + $0x2a0] sm:$0xff]
        %v8925 = vld [vmem:[%s8899 + $0x2a8] sm:$0xff]
        %v8926 = vld [vmem:[%s8899 + $0x2d8] sm:$0xff]
        %v8927 = vld [vmem:[%s8899 + $0x2e0] sm:$0xff]
        %v8928 = vld [vmem:[%s8899 + $0x310] sm:$0xff]
        %v8929 = vld [vmem:[%s8899 + $0x318] sm:$0xff]
        %v8930 = vld [vmem:[%s8899 + $0x348] sm:$0xff]
        %v8931 = vld [vmem:[%s8899 + $0x350] sm:$0xff]
        %v8932 = vld [vmem:[%s8899 + $0x12] sm:$0xff]
        %v8933 = vld [vmem:[%s8899 + $0x1a] sm:$0xff]
        %v8934 = vld [vmem:[%s8899 + $0x4a] sm:$0xff]
        %v8935 = vld [vmem:[%s8899 + $0x52] sm:$0xff]
        %v8936 = vld [vmem:[%s8899 + $0x82] sm:$0xff]
        %v8937 = vld [vmem:[%s8899 + $0x8a] sm:$0xff]
        %v8938 = vld [vmem:[%s8899 + $0xba] sm:$0xff]
        %v8939 = vld [vmem:[%s8899 + $0xc2] sm:$0xff]
        %v8940 = vld [vmem:[%s8899 + $0xf2] sm:$0xff]
        %v8941 = vld [vmem:[%s8899 + $0xfa] sm:$0xff]
        %v8942 = vld [vmem:[%s8899 + $0x12a] sm:$0xff]
        %v8943 = vld [vmem:[%s8899 + $0x132] sm:$0xff]
        %v8944 = vld [vmem:[%s8899 + $0x162] sm:$0xff]
        %v8945 = vld [vmem:[%s8899 + $0x16a] sm:$0xff]
        %v8946 = vld [vmem:[%s8899 + $0x19a] sm:$0xff]
        %v8947 = vld [vmem:[%s8899 + $0x1a2] sm:$0xff]
        %v8948 = vld [vmem:[%s8899 + $0x1d2] sm:$0xff]
        %v8949 = vld [vmem:[%s8899 + $0x1da] sm:$0xff]
        %v8950 = vld [vmem:[%s8899 + $0x20a] sm:$0xff]
        %v8951 = vld [vmem:[%s8899 + $0x212] sm:$0xff]
        %v8952 = vld [vmem:[%s8899 + $0x242] sm:$0xff]
        %v8953 = vld [vmem:[%s8899 + $0x24a] sm:$0xff]
        %v8954 = vld [vmem:[%s8899 + $0x27a] sm:$0xff]
        %v8955 = vld [vmem:[%s8899 + $0x282] sm:$0xff]
        %v8956 = vld [vmem:[%s8899 + $0x2b2] sm:$0xff]
        %v8957 = vld [vmem:[%s8899 + $0x2ba] sm:$0xff]
        %v8958 = vld [vmem:[%s8899 + $0x2ea] sm:$0xff]
        %v8959 = vld [vmem:[%s8899 + $0x2f2] sm:$0xff]
        %v8960 = vld [vmem:[%s8899 + $0x322] sm:$0xff]
        %v8961 = vld [vmem:[%s8899 + $0x32a] sm:$0xff]
        %v8962 = vld [vmem:[%s8899 + $0x35a] sm:$0xff]
        %v8963 = vld [vmem:[%s8899 + $0x362] sm:$0xff]
        %v8964 = vld [vmem:[%s8899 + $0x24] sm:$0xff]
        %v8965 = vld [vmem:[%s8899 + $0x2c] sm:$0xff]
        %v8966 = vld [vmem:[%s8899 + $0x5c] sm:$0xff]
        %v8967 = vld [vmem:[%s8899 + $0x64] sm:$0xff]
        %v8968 = vld [vmem:[%s8899 + $0x94] sm:$0xff]
        %v8969 = vld [vmem:[%s8899 + $0x9c] sm:$0xff]
        %v8970 = vld [vmem:[%s8899 + $0xcc] sm:$0xff]
        %v8971 = vld [vmem:[%s8899 + $0xd4] sm:$0xff]
        %v8972 = vld [vmem:[%s8899 + $0x104] sm:$0xff]
        %v8973 = vld [vmem:[%s8899 + $0x10c] sm:$0xff]
        %v8974 = vld [vmem:[%s8899 + $0x13c] sm:$0xff]
        %v8975 = vld [vmem:[%s8899 + $0x144] sm:$0xff]
        %v8976 = vld [vmem:[%s8899 + $0x174] sm:$0xff]
        %v8977 = vld [vmem:[%s8899 + $0x17c] sm:$0xff]
        %v8978 = vld [vmem:[%s8899 + $0x1ac] sm:$0xff]
        %v8979 = vld [vmem:[%s8899 + $0x1b4] sm:$0xff]
        %v8980 = vld [vmem:[%s8899 + $0x1e4] sm:$0xff]
        %v8981 = vld [vmem:[%s8899 + $0x1ec] sm:$0xff]
        %v8982 = vld [vmem:[%s8899 + $0x21c] sm:$0xff]
        %v8983 = vld [vmem:[%s8899 + $0x224] sm:$0xff]
        %v8984 = vld [vmem:[%s8899 + $0x254] sm:$0xff]
        %v8985 = vld [vmem:[%s8899 + $0x25c] sm:$0xff]
        %v8986 = vld [vmem:[%s8899 + $0x28c] sm:$0xff]
        %v8987 = vld [vmem:[%s8899 + $0x294] sm:$0xff]
        %v8988 = vld [vmem:[%s8899 + $0x2c4] sm:$0xff]
        %v8989 = vld [vmem:[%s8899 + $0x2cc] sm:$0xff]
        %v8990 = vld [vmem:[%s8899 + $0x2fc] sm:$0xff]
        %v8991 = vld [vmem:[%s8899 + $0x304] sm:$0xff]
        %v8992 = vld [vmem:[%s8899 + $0x334] sm:$0xff]
        %v8993 = vld [vmem:[%s8899 + $0x33c] sm:$0xff]
        %v8994 = vld [vmem:[%s8899 + $0x36c] sm:$0xff]
        %v8995 = vld [vmem:[%s8899 + $0x374] sm:$0xff]
        %9028 = vrot.lane.b32.xlu0 %v8739, 8
        %v9029 = vpop.permute.xlu0 %9028
        %9030 = vrot.lane.b32.xlu0 %v8740, 8
        %v9031 = vpop.permute.xlu0 %9030
        %9032 = vrot.lane.b32.xlu0 %v8741, 8
        %v9033 = vpop.permute.xlu0 %9032
        %9034 = vrot.lane.b32.xlu0 %v8742, 8
        %v9035 = vpop.permute.xlu0 %9034
        %9036 = vrot.lane.b32.xlu0 %v8743, 8
        %v9037 = vpop.permute.xlu0 %9036
        %9038 = vrot.lane.b32.xlu0 %v8744, 8
        %v9039 = vpop.permute.xlu0 %9038
        %9040 = vrot.lane.b32.xlu0 %v8745, 8
        %v9041 = vpop.permute.xlu0 %9040
        %9042 = vrot.lane.b32.xlu0 %v8746, 8
        %v9043 = vpop.permute.xlu0 %9042
        %9044 = vrot.lane.b32.xlu0 %v8747, 8
        %v9045 = vpop.permute.xlu0 %9044
        %9046 = vrot.lane.b32.xlu0 %v8748, 8
        %v9047 = vpop.permute.xlu0 %9046
        %9048 = vrot.lane.b32.xlu0 %v8749, 8
        %v9049 = vpop.permute.xlu0 %9048
        %9050 = vrot.lane.b32.xlu0 %v8750, 8
        %v9051 = vpop.permute.xlu0 %9050
        %9052 = vrot.lane.b32.xlu0 %v8751, 8
        %v9053 = vpop.permute.xlu0 %9052
        %9054 = vrot.lane.b32.xlu0 %v8752, 8
        %v9055 = vpop.permute.xlu0 %9054
        %9056 = vrot.lane.b32.xlu0 %v8753, 8
        %v9057 = vpop.permute.xlu0 %9056
        %9058 = vrot.lane.b32.xlu0 %v8754, 8
        %v9059 = vpop.permute.xlu0 %9058
        %9060 = vrot.lane.b32.xlu0 %v8755, 8
        %v9061 = vpop.permute.xlu0 %9060
        %9062 = vrot.lane.b32.xlu0 %v8756, 8
        %v9063 = vpop.permute.xlu0 %9062
        %9064 = vrot.lane.b32.xlu0 %v8757, 8
        %v9065 = vpop.permute.xlu0 %9064
        %9066 = vrot.lane.b32.xlu0 %v8758, 8
        %v9067 = vpop.permute.xlu0 %9066
        %9068 = vrot.lane.b32.xlu0 %v8759, 8
        %v9069 = vpop.permute.xlu0 %9068
        %9070 = vrot.lane.b32.xlu0 %v8760, 8
        %v9071 = vpop.permute.xlu0 %9070
        %9072 = vrot.lane.b32.xlu0 %v8761, 8
        %v9073 = vpop.permute.xlu0 %9072
        %9074 = vrot.lane.b32.xlu0 %v8762, 8
        %v9075 = vpop.permute.xlu0 %9074
        %9076 = vrot.lane.b32.xlu0 %v8763, 8
        %v9077 = vpop.permute.xlu0 %9076
        %9078 = vrot.lane.b32.xlu0 %v8764, 8
        %v9079 = vpop.permute.xlu0 %9078
        %9080 = vrot.lane.b32.xlu0 %v8765, 8
        %v9081 = vpop.permute.xlu0 %9080
        %9082 = vrot.lane.b32.xlu0 %v8766, 8
        %v9083 = vpop.permute.xlu0 %9082
        %9084 = vrot.lane.b32.xlu0 %v8767, 8
        %v9085 = vpop.permute.xlu0 %9084
        %9086 = vrot.lane.b32.xlu0 %v8768, 8
        %v9087 = vpop.permute.xlu0 %9086
        %9088 = vrot.lane.b32.xlu0 %v8769, 8
        %v9089 = vpop.permute.xlu0 %9088
        %9090 = vrot.lane.b32.xlu0 %v8770, 8
        %v9091 = vpop.permute.xlu0 %9090
        %9156 = vrot.lane.b32.xlu0 %v8771, 16
        %v9157 = vpop.permute.xlu0 %9156
        %9158 = vrot.lane.b32.xlu0 %v8772, 16
        %v9159 = vpop.permute.xlu0 %9158
        %9160 = vrot.lane.b32.xlu0 %v8773, 16
        %v9161 = vpop.permute.xlu0 %9160
        %9162 = vrot.lane.b32.xlu0 %v8774, 16
        %v9163 = vpop.permute.xlu0 %9162
        %9164 = vrot.lane.b32.xlu0 %v8775, 16
        %v9165 = vpop.permute.xlu0 %9164
        %9166 = vrot.lane.b32.xlu0 %v8776, 16
        %v9167 = vpop.permute.xlu0 %9166
        %9168 = vrot.lane.b32.xlu0 %v8777, 16
        %v9169 = vpop.permute.xlu0 %9168
        %9170 = vrot.lane.b32.xlu0 %v8778, 16
        %v9171 = vpop.permute.xlu0 %9170
        %9172 = vrot.lane.b32.xlu0 %v8779, 16
        %v9173 = vpop.permute.xlu0 %9172
        %9174 = vrot.lane.b32.xlu0 %v8780, 16
        %v9175 = vpop.permute.xlu0 %9174
        %9176 = vrot.lane.b32.xlu0 %v8781, 16
        %v9177 = vpop.permute.xlu0 %9176
        %9178 = vrot.lane.b32.xlu0 %v8782, 16
        %v9179 = vpop.permute.xlu0 %9178
        %9180 = vrot.lane.b32.xlu0 %v8783, 16
        %v9181 = vpop.permute.xlu0 %9180
        %9182 = vrot.lane.b32.xlu0 %v8784, 16
        %v9183 = vpop.permute.xlu0 %9182
        %9184 = vrot.lane.b32.xlu0 %v8785, 16
        %v9185 = vpop.permute.xlu0 %9184
        %9186 = vrot.lane.b32.xlu0 %v8786, 16
        %v9187 = vpop.permute.xlu0 %9186
        %9188 = vrot.lane.b32.xlu0 %v8787, 16
        %v9189 = vpop.permute.xlu0 %9188
        %9190 = vrot.lane.b32.xlu0 %v8788, 16
        %v9191 = vpop.permute.xlu0 %9190
        %9192 = vrot.lane.b32.xlu0 %v8789, 16
        %v9193 = vpop.permute.xlu0 %9192
        %9194 = vrot.lane.b32.xlu0 %v8790, 16
        %v9195 = vpop.permute.xlu0 %9194
        %9196 = vrot.lane.b32.xlu0 %v8791, 16
        %v9197 = vpop.permute.xlu0 %9196
        %9198 = vrot.lane.b32.xlu0 %v8792, 16
        %v9199 = vpop.permute.xlu0 %9198
        %9200 = vrot.lane.b32.xlu0 %v8793, 16
        %v9201 = vpop.permute.xlu0 %9200
        %9202 = vrot.lane.b32.xlu0 %v8794, 16
        %v9203 = vpop.permute.xlu0 %9202
        %9204 = vrot.lane.b32.xlu0 %v8795, 16
        %v9205 = vpop.permute.xlu0 %9204
        %9206 = vrot.lane.b32.xlu0 %v8796, 16
        %v9207 = vpop.permute.xlu0 %9206
        %9208 = vrot.lane.b32.xlu0 %v8797, 16
        %v9209 = vpop.permute.xlu0 %9208
        %9210 = vrot.lane.b32.xlu0 %v8798, 16
        %v9211 = vpop.permute.xlu0 %9210
        %9212 = vrot.lane.b32.xlu0 %v8799, 16
        %v9213 = vpop.permute.xlu0 %9212
        %9214 = vrot.lane.b32.xlu0 %v8800, 16
        %v9215 = vpop.permute.xlu0 %9214
        %9216 = vrot.lane.b32.xlu0 %v8801, 16
        %v9217 = vpop.permute.xlu0 %9216
        %9218 = vrot.lane.b32.xlu0 %v8802, 16
        %v9219 = vpop.permute.xlu0 %9218
        %9284 = vrot.lane.b32.xlu0 %v8803, 24
        %v9285 = vpop.permute.xlu0 %9284
        %9286 = vrot.lane.b32.xlu0 %v8804, 24
        %v9287 = vpop.permute.xlu0 %9286
        %9288 = vrot.lane.b32.xlu0 %v8805, 24
        %v9289 = vpop.permute.xlu0 %9288
        %9290 = vrot.lane.b32.xlu0 %v8806, 24
        %v9291 = vpop.permute.xlu0 %9290
        %9292 = vrot.lane.b32.xlu0 %v8807, 24
        %v9293 = vpop.permute.xlu0 %9292
        %9294 = vrot.lane.b32.xlu0 %v8808, 24
        %v9295 = vpop.permute.xlu0 %9294
        %9296 = vrot.lane.b32.xlu0 %v8809, 24
        %v9297 = vpop.permute.xlu0 %9296
        %9298 = vrot.lane.b32.xlu0 %v8810, 24
        %v9299 = vpop.permute.xlu0 %9298
        %9300 = vrot.lane.b32.xlu0 %v8811, 24
        %v9301 = vpop.permute.xlu0 %9300
        %9302 = vrot.lane.b32.xlu0 %v8812, 24
        %v9303 = vpop.permute.xlu0 %9302
        %9304 = vrot.lane.b32.xlu0 %v8813, 24
        %v9305 = vpop.permute.xlu0 %9304
        %9306 = vrot.lane.b32.xlu0 %v8814, 24
        %v9307 = vpop.permute.xlu0 %9306
        %9308 = vrot.lane.b32.xlu0 %v8815, 24
        %v9309 = vpop.permute.xlu0 %9308
        %9310 = vrot.lane.b32.xlu0 %v8816, 24
        %v9311 = vpop.permute.xlu0 %9310
        %9312 = vrot.lane.b32.xlu0 %v8817, 24
        %v9313 = vpop.permute.xlu0 %9312
        %9314 = vrot.lane.b32.xlu0 %v8818, 24
        %v9315 = vpop.permute.xlu0 %9314
        %9316 = vrot.lane.b32.xlu0 %v8819, 24
        %v9317 = vpop.permute.xlu0 %9316
        %9318 = vrot.lane.b32.xlu0 %v8820, 24
        %v9319 = vpop.permute.xlu0 %9318
        %9320 = vrot.lane.b32.xlu0 %v8821, 24
        %v9321 = vpop.permute.xlu0 %9320
        %9322 = vrot.lane.b32.xlu0 %v8822, 24
        %v9323 = vpop.permute.xlu0 %9322
        %9324 = vrot.lane.b32.xlu0 %v8823, 24
        %v9325 = vpop.permute.xlu0 %9324
        %9326 = vrot.lane.b32.xlu0 %v8824, 24
        %v9327 = vpop.permute.xlu0 %9326
        %9328 = vrot.lane.b32.xlu0 %v8825, 24
        %v9329 = vpop.permute.xlu0 %9328
        %9330 = vrot.lane.b32.xlu0 %v8826, 24
        %v9331 = vpop.permute.xlu0 %9330
        %9332 = vrot.lane.b32.xlu0 %v8827, 24
        %v9333 = vpop.permute.xlu0 %9332
        %9334 = vrot.lane.b32.xlu0 %v8828, 24
        %v9335 = vpop.permute.xlu0 %9334
        %9336 = vrot.lane.b32.xlu0 %v8829, 24
        %v9337 = vpop.permute.xlu0 %9336
        %9338 = vrot.lane.b32.xlu0 %v8830, 24
        %v9339 = vpop.permute.xlu0 %9338
        %9340 = vrot.lane.b32.xlu0 %v8831, 24
        %v9341 = vpop.permute.xlu0 %9340
        %9342 = vrot.lane.b32.xlu0 %v8832, 24
        %v9343 = vpop.permute.xlu0 %9342
        %9344 = vrot.lane.b32.xlu0 %v8833, 24
        %v9345 = vpop.permute.xlu0 %9344
        %9346 = vrot.lane.b32.xlu0 %v8834, 24
        %v9347 = vpop.permute.xlu0 %9346
        %9412 = vrot.lane.b32.xlu0 %v8835, 32
        %v9413 = vpop.permute.xlu0 %9412
        %9414 = vrot.lane.b32.xlu0 %v8836, 32
        %v9415 = vpop.permute.xlu0 %9414
        %9416 = vrot.lane.b32.xlu0 %v8837, 32
        %v9417 = vpop.permute.xlu0 %9416
        %9418 = vrot.lane.b32.xlu0 %v8838, 32
        %v9419 = vpop.permute.xlu0 %9418
        %9420 = vrot.lane.b32.xlu0 %v8839, 32
        %v9421 = vpop.permute.xlu0 %9420
        %9422 = vrot.lane.b32.xlu0 %v8840, 32
        %v9423 = vpop.permute.xlu0 %9422
        %9424 = vrot.lane.b32.xlu0 %v8841, 32
        %v9425 = vpop.permute.xlu0 %9424
        %9426 = vrot.lane.b32.xlu0 %v8842, 32
        %v9427 = vpop.permute.xlu0 %9426
        %9428 = vrot.lane.b32.xlu0 %v8843, 32
        %v9429 = vpop.permute.xlu0 %9428
        %9430 = vrot.lane.b32.xlu0 %v8844, 32
        %v9431 = vpop.permute.xlu0 %9430
        %9432 = vrot.lane.b32.xlu0 %v8845, 32
        %v9433 = vpop.permute.xlu0 %9432
        %9434 = vrot.lane.b32.xlu0 %v8846, 32
        %v9435 = vpop.permute.xlu0 %9434
        %9436 = vrot.lane.b32.xlu0 %v8847, 32
        %v9437 = vpop.permute.xlu0 %9436
        %9438 = vrot.lane.b32.xlu0 %v8848, 32
        %v9439 = vpop.permute.xlu0 %9438
        %9440 = vrot.lane.b32.xlu0 %v8849, 32
        %v9441 = vpop.permute.xlu0 %9440
        %9442 = vrot.lane.b32.xlu0 %v8850, 32
        %v9443 = vpop.permute.xlu0 %9442
        %9444 = vrot.lane.b32.xlu0 %v8851, 32
        %v9445 = vpop.permute.xlu0 %9444
        %9446 = vrot.lane.b32.xlu0 %v8852, 32
        %v9447 = vpop.permute.xlu0 %9446
        %9448 = vrot.lane.b32.xlu0 %v8853, 32
        %v9449 = vpop.permute.xlu0 %9448
        %9450 = vrot.lane.b32.xlu0 %v8854, 32
        %v9451 = vpop.permute.xlu0 %9450
        %9452 = vrot.lane.b32.xlu0 %v8855, 32
        %v9453 = vpop.permute.xlu0 %9452
        %9454 = vrot.lane.b32.xlu0 %v8856, 32
        %v9455 = vpop.permute.xlu0 %9454
        %9456 = vrot.lane.b32.xlu0 %v8857, 32
        %v9457 = vpop.permute.xlu0 %9456
        %9458 = vrot.lane.b32.xlu0 %v8858, 32
        %v9459 = vpop.permute.xlu0 %9458
        %9460 = vrot.lane.b32.xlu0 %v8859, 32
        %v9461 = vpop.permute.xlu0 %9460
        %9462 = vrot.lane.b32.xlu0 %v8860, 32
        %v9463 = vpop.permute.xlu0 %9462
        %9464 = vrot.lane.b32.xlu0 %v8861, 32
        %v9465 = vpop.permute.xlu0 %9464
        %9466 = vrot.lane.b32.xlu0 %v8862, 32
        %v9467 = vpop.permute.xlu0 %9466
        %9468 = vrot.lane.b32.xlu0 %v8863, 32
        %v9469 = vpop.permute.xlu0 %9468
        %9470 = vrot.lane.b32.xlu0 %v8864, 32
        %v9471 = vpop.permute.xlu0 %9470
        %9472 = vrot.lane.b32.xlu0 %v8865, 32
        %v9473 = vpop.permute.xlu0 %9472
        %9474 = vrot.lane.b32.xlu0 %v8866, 32
        %v9475 = vpop.permute.xlu0 %9474
        %9540 = vrot.lane.b32.xlu0 %v8867, 40
        %v9541 = vpop.permute.xlu0 %9540
        %9542 = vrot.lane.b32.xlu0 %v8868, 40
        %v9543 = vpop.permute.xlu0 %9542
        %9544 = vrot.lane.b32.xlu0 %v8869, 40
        %v9545 = vpop.permute.xlu0 %9544
        %9546 = vrot.lane.b32.xlu0 %v8870, 40
        %v9547 = vpop.permute.xlu0 %9546
        %9548 = vrot.lane.b32.xlu0 %v8871, 40
        %v9549 = vpop.permute.xlu0 %9548
        %9550 = vrot.lane.b32.xlu0 %v8872, 40
        %v9551 = vpop.permute.xlu0 %9550
        %9552 = vrot.lane.b32.xlu0 %v8873, 40
        %v9553 = vpop.permute.xlu0 %9552
        %9554 = vrot.lane.b32.xlu0 %v8874, 40
        %v9555 = vpop.permute.xlu0 %9554
        %9556 = vrot.lane.b32.xlu0 %v8875, 40
        %v9557 = vpop.permute.xlu0 %9556
        %9558 = vrot.lane.b32.xlu0 %v8876, 40
        %v9559 = vpop.permute.xlu0 %9558
        %9560 = vrot.lane.b32.xlu0 %v8877, 40
        %v9561 = vpop.permute.xlu0 %9560
        %9562 = vrot.lane.b32.xlu0 %v8878, 40
        %v9563 = vpop.permute.xlu0 %9562
        %9564 = vrot.lane.b32.xlu0 %v8879, 40
        %v9565 = vpop.permute.xlu0 %9564
        %9566 = vrot.lane.b32.xlu0 %v8880, 40
        %v9567 = vpop.permute.xlu0 %9566
        %9568 = vrot.lane.b32.xlu0 %v8881, 40
        %v9569 = vpop.permute.xlu0 %9568
        %9570 = vrot.lane.b32.xlu0 %v8882, 40
        %v9571 = vpop.permute.xlu0 %9570
        %9572 = vrot.lane.b32.xlu0 %v8883, 40
        %v9573 = vpop.permute.xlu0 %9572
        %9574 = vrot.lane.b32.xlu0 %v8884, 40
        %v9575 = vpop.permute.xlu0 %9574
        %9576 = vrot.lane.b32.xlu0 %v8885, 40
        %v9577 = vpop.permute.xlu0 %9576
        %9578 = vrot.lane.b32.xlu0 %v8886, 40
        %v9579 = vpop.permute.xlu0 %9578
        %9580 = vrot.lane.b32.xlu0 %v8887, 40
        %v9581 = vpop.permute.xlu0 %9580
        %9582 = vrot.lane.b32.xlu0 %v8888, 40
        %v9583 = vpop.permute.xlu0 %9582
        %9584 = vrot.lane.b32.xlu0 %v8889, 40
        %v9585 = vpop.permute.xlu0 %9584
        %9586 = vrot.lane.b32.xlu0 %v8890, 40
        %v9587 = vpop.permute.xlu0 %9586
        %9588 = vrot.lane.b32.xlu0 %v8891, 40
        %v9589 = vpop.permute.xlu0 %9588
        %9590 = vrot.lane.b32.xlu0 %v8892, 40
        %v9591 = vpop.permute.xlu0 %9590
        %9592 = vrot.lane.b32.xlu0 %v8893, 40
        %v9593 = vpop.permute.xlu0 %9592
        %9594 = vrot.lane.b32.xlu0 %v8894, 40
        %v9595 = vpop.permute.xlu0 %9594
        %9596 = vrot.lane.b32.xlu0 %v8895, 40
        %v9597 = vpop.permute.xlu0 %9596
        %9598 = vrot.lane.b32.xlu0 %v8896, 40
        %v9599 = vpop.permute.xlu0 %9598
        %9600 = vrot.lane.b32.xlu0 %v8897, 40
        %v9601 = vpop.permute.xlu0 %9600
        %9602 = vrot.lane.b32.xlu0 %v8898, 40
        %v9603 = vpop.permute.xlu0 %9602
        %9668 = vrot.lane.b32.xlu0 %v8900, 48
        %v9669 = vpop.permute.xlu0 %9668
        %9670 = vrot.lane.b32.xlu0 %v8901, 48
        %v9671 = vpop.permute.xlu0 %9670
        %9672 = vrot.lane.b32.xlu0 %v8902, 48
        %v9673 = vpop.permute.xlu0 %9672
        %9674 = vrot.lane.b32.xlu0 %v8903, 48
        %v9675 = vpop.permute.xlu0 %9674
        %9676 = vrot.lane.b32.xlu0 %v8904, 48
        %v9677 = vpop.permute.xlu0 %9676
        %9678 = vrot.lane.b32.xlu0 %v8905, 48
        %v9679 = vpop.permute.xlu0 %9678
        %9680 = vrot.lane.b32.xlu0 %v8906, 48
        %v9681 = vpop.permute.xlu0 %9680
        %9682 = vrot.lane.b32.xlu0 %v8907, 48
        %v9683 = vpop.permute.xlu0 %9682
        %9684 = vrot.lane.b32.xlu0 %v8908, 48
        %v9685 = vpop.permute.xlu0 %9684
        %9686 = vrot.lane.b32.xlu0 %v8909, 48
        %v9687 = vpop.permute.xlu0 %9686
        %9688 = vrot.lane.b32.xlu0 %v8910, 48
        %v9689 = vpop.permute.xlu0 %9688
        %9690 = vrot.lane.b32.xlu0 %v8911, 48
        %v9691 = vpop.permute.xlu0 %9690
        %9692 = vrot.lane.b32.xlu0 %v8912, 48
        %v9693 = vpop.permute.xlu0 %9692
        %9694 = vrot.lane.b32.xlu0 %v8913, 48
        %v9695 = vpop.permute.xlu0 %9694
        %9696 = vrot.lane.b32.xlu0 %v8914, 48
        %v9697 = vpop.permute.xlu0 %9696
        %9698 = vrot.lane.b32.xlu0 %v8915, 48
        %v9699 = vpop.permute.xlu0 %9698
        %9700 = vrot.lane.b32.xlu0 %v8916, 48
        %v9701 = vpop.permute.xlu0 %9700
        %9702 = vrot.lane.b32.xlu0 %v8917, 48
        %v9703 = vpop.permute.xlu0 %9702
        %9704 = vrot.lane.b32.xlu0 %v8918, 48
        %v9705 = vpop.permute.xlu0 %9704
        %9706 = vrot.lane.b32.xlu0 %v8919, 48
        %v9707 = vpop.permute.xlu0 %9706
        %9708 = vrot.lane.b32.xlu0 %v8920, 48
        %v9709 = vpop.permute.xlu0 %9708
        %9710 = vrot.lane.b32.xlu0 %v8921, 48
        %v9711 = vpop.permute.xlu0 %9710
        %9712 = vrot.lane.b32.xlu0 %v8922, 48
        %v9713 = vpop.permute.xlu0 %9712
        %9714 = vrot.lane.b32.xlu0 %v8923, 48
        %v9715 = vpop.permute.xlu0 %9714
        %9716 = vrot.lane.b32.xlu0 %v8924, 48
        %v9717 = vpop.permute.xlu0 %9716
        %9718 = vrot.lane.b32.xlu0 %v8925, 48
        %v9719 = vpop.permute.xlu0 %9718
        %9720 = vrot.lane.b32.xlu0 %v8926, 48
        %v9721 = vpop.permute.xlu0 %9720
        %9722 = vrot.lane.b32.xlu0 %v8927, 48
        %v9723 = vpop.permute.xlu0 %9722
        %9724 = vrot.lane.b32.xlu0 %v8928, 48
        %v9725 = vpop.permute.xlu0 %9724
        %9726 = vrot.lane.b32.xlu0 %v8929, 48
        %v9727 = vpop.permute.xlu0 %9726
        %9728 = vrot.lane.b32.xlu0 %v8930, 48
        %v9729 = vpop.permute.xlu0 %9728
        %9730 = vrot.lane.b32.xlu0 %v8931, 48
        %v9731 = vpop.permute.xlu0 %9730
        %9796 = vrot.lane.b32.xlu0 %v8932, 56
        %v9797 = vpop.permute.xlu0 %9796
        %9798 = vrot.lane.b32.xlu0 %v8933, 56
        %v9799 = vpop.permute.xlu0 %9798
        %9800 = vrot.lane.b32.xlu0 %v8934, 56
        %v9801 = vpop.permute.xlu0 %9800
        %9802 = vrot.lane.b32.xlu0 %v8935, 56
        %v9803 = vpop.permute.xlu0 %9802
        %9804 = vrot.lane.b32.xlu0 %v8936, 56
        %v9805 = vpop.permute.xlu0 %9804
        %9806 = vrot.lane.b32.xlu0 %v8937, 56
        %v9807 = vpop.permute.xlu0 %9806
        %9808 = vrot.lane.b32.xlu0 %v8938, 56
        %v9809 = vpop.permute.xlu0 %9808
        %9810 = vrot.lane.b32.xlu0 %v8939, 56
        %v9811 = vpop.permute.xlu0 %9810
        %9812 = vrot.lane.b32.xlu0 %v8940, 56
        %v9813 = vpop.permute.xlu0 %9812
        %9814 = vrot.lane.b32.xlu0 %v8941, 56
        %v9815 = vpop.permute.xlu0 %9814
        %9816 = vrot.lane.b32.xlu0 %v8942, 56
        %v9817 = vpop.permute.xlu0 %9816
        %9818 = vrot.lane.b32.xlu0 %v8943, 56
        %v9819 = vpop.permute.xlu0 %9818
        %9820 = vrot.lane.b32.xlu0 %v8944, 56
        %v9821 = vpop.permute.xlu0 %9820
        %9822 = vrot.lane.b32.xlu0 %v8945, 56
        %v9823 = vpop.permute.xlu0 %9822
        %9824 = vrot.lane.b32.xlu0 %v8946, 56
        %v9825 = vpop.permute.xlu0 %9824
        %9826 = vrot.lane.b32.xlu0 %v8947, 56
        %v9827 = vpop.permute.xlu0 %9826
        %9828 = vrot.lane.b32.xlu0 %v8948, 56
        %v9829 = vpop.permute.xlu0 %9828
        %9830 = vrot.lane.b32.xlu0 %v8949, 56
        %v9831 = vpop.permute.xlu0 %9830
        %9832 = vrot.lane.b32.xlu0 %v8950, 56
        %v9833 = vpop.permute.xlu0 %9832
        %9834 = vrot.lane.b32.xlu0 %v8951, 56
        %v9835 = vpop.permute.xlu0 %9834
        %9836 = vrot.lane.b32.xlu0 %v8952, 56
        %v9837 = vpop.permute.xlu0 %9836
        %9838 = vrot.lane.b32.xlu0 %v8953, 56
        %v9839 = vpop.permute.xlu0 %9838
        %9840 = vrot.lane.b32.xlu0 %v8954, 56
        %v9841 = vpop.permute.xlu0 %9840
        %9842 = vrot.lane.b32.xlu0 %v8955, 56
        %v9843 = vpop.permute.xlu0 %9842
        %9844 = vrot.lane.b32.xlu0 %v8956, 56
        %v9845 = vpop.permute.xlu0 %9844
        %9846 = vrot.lane.b32.xlu0 %v8957, 56
        %v9847 = vpop.permute.xlu0 %9846
        %9848 = vrot.lane.b32.xlu0 %v8958, 56
        %v9849 = vpop.permute.xlu0 %9848
        %9850 = vrot.lane.b32.xlu0 %v8959, 56
        %v9851 = vpop.permute.xlu0 %9850
        %9852 = vrot.lane.b32.xlu0 %v8960, 56
        %v9853 = vpop.permute.xlu0 %9852
        %9854 = vrot.lane.b32.xlu0 %v8961, 56
        %v9855 = vpop.permute.xlu0 %9854
        %9856 = vrot.lane.b32.xlu0 %v8962, 56
        %v9857 = vpop.permute.xlu0 %9856
        %9858 = vrot.lane.b32.xlu0 %v8963, 56
        %v9859 = vpop.permute.xlu0 %9858
        %9924 = vrot.lane.b32.xlu0 %v8964, 64
        %v9925 = vpop.permute.xlu0 %9924
        %9926 = vrot.lane.b32.xlu0 %v8965, 64
        %v9927 = vpop.permute.xlu0 %9926
        %9928 = vrot.lane.b32.xlu0 %v8966, 64
        %v9929 = vpop.permute.xlu0 %9928
        %9930 = vrot.lane.b32.xlu0 %v8967, 64
        %v9931 = vpop.permute.xlu0 %9930
        %9932 = vrot.lane.b32.xlu0 %v8968, 64
        %v9933 = vpop.permute.xlu0 %9932
        %9934 = vrot.lane.b32.xlu0 %v8969, 64
        %v9935 = vpop.permute.xlu0 %9934
        %9936 = vrot.lane.b32.xlu0 %v8970, 64
        %v9937 = vpop.permute.xlu0 %9936
        %9938 = vrot.lane.b32.xlu0 %v8971, 64
        %v9939 = vpop.permute.xlu0 %9938
        %9940 = vrot.lane.b32.xlu0 %v8972, 64
        %v9941 = vpop.permute.xlu0 %9940
        %9942 = vrot.lane.b32.xlu0 %v8973, 64
        %v9943 = vpop.permute.xlu0 %9942
        %9944 = vrot.lane.b32.xlu0 %v8974, 64
        %v9945 = vpop.permute.xlu0 %9944
        %9946 = vrot.lane.b32.xlu0 %v8975, 64
        %v9947 = vpop.permute.xlu0 %9946
        %9948 = vrot.lane.b32.xlu0 %v8976, 64
        %v9949 = vpop.permute.xlu0 %9948
        %9950 = vrot.lane.b32.xlu0 %v8977, 64
        %v9951 = vpop.permute.xlu0 %9950
        %9952 = vrot.lane.b32.xlu0 %v8978, 64
        %v9953 = vpop.permute.xlu0 %9952
        %9954 = vrot.lane.b32.xlu0 %v8979, 64
        %v9955 = vpop.permute.xlu0 %9954
        %9956 = vrot.lane.b32.xlu0 %v8980, 64
        %v9957 = vpop.permute.xlu0 %9956
        %9958 = vrot.lane.b32.xlu0 %v8981, 64
        %v9959 = vpop.permute.xlu0 %9958
        %9960 = vrot.lane.b32.xlu0 %v8982, 64
        %v9961 = vpop.permute.xlu0 %9960
        %9962 = vrot.lane.b32.xlu0 %v8983, 64
        %v9963 = vpop.permute.xlu0 %9962
        %9964 = vrot.lane.b32.xlu0 %v8984, 64
        %v9965 = vpop.permute.xlu0 %9964
        %9966 = vrot.lane.b32.xlu0 %v8985, 64
        %v9967 = vpop.permute.xlu0 %9966
        %9968 = vrot.lane.b32.xlu0 %v8986, 64
        %v9969 = vpop.permute.xlu0 %9968
        %9970 = vrot.lane.b32.xlu0 %v8987, 64
        %v9971 = vpop.permute.xlu0 %9970
        %9972 = vrot.lane.b32.xlu0 %v8988, 64
        %v9973 = vpop.permute.xlu0 %9972
        %9974 = vrot.lane.b32.xlu0 %v8989, 64
        %v9975 = vpop.permute.xlu0 %9974
        %9976 = vrot.lane.b32.xlu0 %v8990, 64
        %v9977 = vpop.permute.xlu0 %9976
        %9978 = vrot.lane.b32.xlu0 %v8991, 64
        %v9979 = vpop.permute.xlu0 %9978
        %9980 = vrot.lane.b32.xlu0 %v8992, 64
        %v9981 = vpop.permute.xlu0 %9980
        %9982 = vrot.lane.b32.xlu0 %v8993, 64
        %v9983 = vpop.permute.xlu0 %9982
        %9984 = vrot.lane.b32.xlu0 %v8994, 64
        %v9985 = vpop.permute.xlu0 %9984
        %9986 = vrot.lane.b32.xlu0 %v8995, 64
        %v9987 = vpop.permute.xlu0 %9986
        %v10020 = vsel %vm1485, %v8707, %v9029
        %v10021 = vsel %vm1485, %v8708, %v9031
        %v10022 = vsel %vm1485, %v8709, %v9033
        %v10023 = vsel %vm1485, %v8710, %v9035
        %v10024 = vsel %vm1485, %v8711, %v9037
        %v10025 = vsel %vm1485, %v8712, %v9039
        %v10026 = vsel %vm1485, %v8713, %v9041
        %v10027 = vsel %vm1485, %v8714, %v9043
        %v10028 = vsel %vm1485, %v8715, %v9045
        %v10029 = vsel %vm1485, %v8716, %v9047
        %v10030 = vsel %vm1485, %v8717, %v9049
        %v10031 = vsel %vm1485, %v8718, %v9051
        %v10032 = vsel %vm1485, %v8719, %v9053
        %v10033 = vsel %vm1485, %v8720, %v9055
        %v10034 = vsel %vm1485, %v8721, %v9057
        %v10035 = vsel %vm1485, %v8722, %v9059
        %v10036 = vsel %vm1485, %v8723, %v9061
        %v10037 = vsel %vm1485, %v8724, %v9063
        %v10038 = vsel %vm1485, %v8725, %v9065
        %v10039 = vsel %vm1485, %v8726, %v9067
        %v10040 = vsel %vm1485, %v8727, %v9069
        %v10041 = vsel %vm1485, %v8728, %v9071
        %v10042 = vsel %vm1485, %v8729, %v9073
        %v10043 = vsel %vm1485, %v8730, %v9075
        %v10044 = vsel %vm1485, %v8731, %v9077
        %v10045 = vsel %vm1485, %v8732, %v9079
        %v10046 = vsel %vm1485, %v8733, %v9081
        %v10047 = vsel %vm1485, %v8734, %v9083
        %v10048 = vsel %vm1485, %v8735, %v9085
        %v10049 = vsel %vm1485, %v8736, %v9087
        %v10050 = vsel %vm1485, %v8737, %v9089
        %v10051 = vsel %vm1485, %v8738, %v9091
        %v10052 = vsel %vm1518, %v10020, %v9157
        %v10053 = vsel %vm1518, %v10021, %v9159
        %v10054 = vsel %vm1518, %v10022, %v9161
        %v10055 = vsel %vm1518, %v10023, %v9163
        %v10056 = vsel %vm1518, %v10024, %v9165
        %v10057 = vsel %vm1518, %v10025, %v9167
        %v10058 = vsel %vm1518, %v10026, %v9169
        %v10059 = vsel %vm1518, %v10027, %v9171
        %v10060 = vsel %vm1518, %v10028, %v9173
        %v10061 = vsel %vm1518, %v10029, %v9175
        %v10062 = vsel %vm1518, %v10030, %v9177
        %v10063 = vsel %vm1518, %v10031, %v9179
        %v10064 = vsel %vm1518, %v10032, %v9181
        %v10065 = vsel %vm1518, %v10033, %v9183
        %v10066 = vsel %vm1518, %v10034, %v9185
        %v10067 = vsel %vm1518, %v10035, %v9187
        %v10068 = vsel %vm1518, %v10036, %v9189
        %v10069 = vsel %vm1518, %v10037, %v9191
        %v10070 = vsel %vm1518, %v10038, %v9193
        %v10071 = vsel %vm1518, %v10039, %v9195
        %v10072 = vsel %vm1518, %v10040, %v9197
        %v10073 = vsel %vm1518, %v10041, %v9199
        %v10074 = vsel %vm1518, %v10042, %v9201
        %v10075 = vsel %vm1518, %v10043, %v9203
        %v10076 = vsel %vm1518, %v10044, %v9205
        %v10077 = vsel %vm1518, %v10045, %v9207
        %v10078 = vsel %vm1518, %v10046, %v9209
        %v10079 = vsel %vm1518, %v10047, %v9211
        %v10080 = vsel %vm1518, %v10048, %v9213
        %v10081 = vsel %vm1518, %v10049, %v9215
        %v10082 = vsel %vm1518, %v10050, %v9217
        %v10083 = vsel %vm1518, %v10051, %v9219
        %v10084 = vsel %vm1551, %v10052, %v9285
        %v10085 = vsel %vm1551, %v10053, %v9287
        %v10086 = vsel %vm1551, %v10054, %v9289
        %v10087 = vsel %vm1551, %v10055, %v9291
        %v10088 = vsel %vm1551, %v10056, %v9293
        %v10089 = vsel %vm1551, %v10057, %v9295
        %v10090 = vsel %vm1551, %v10058, %v9297
        %v10091 = vsel %vm1551, %v10059, %v9299
        %v10092 = vsel %vm1551, %v10060, %v9301
        %v10093 = vsel %vm1551, %v10061, %v9303
        %v10094 = vsel %vm1551, %v10062, %v9305
        %v10095 = vsel %vm1551, %v10063, %v9307
        %v10096 = vsel %vm1551, %v10064, %v9309
        %v10097 = vsel %vm1551, %v10065, %v9311
        %v10098 = vsel %vm1551, %v10066, %v9313
        %v10099 = vsel %vm1551, %v10067, %v9315
        %v10100 = vsel %vm1551, %v10068, %v9317
        %v10101 = vsel %vm1551, %v10069, %v9319
        %v10102 = vsel %vm1551, %v10070, %v9321
        %v10103 = vsel %vm1551, %v10071, %v9323
        %v10104 = vsel %vm1551, %v10072, %v9325
        %v10105 = vsel %vm1551, %v10073, %v9327
        %v10106 = vsel %vm1551, %v10074, %v9329
        %v10107 = vsel %vm1551, %v10075, %v9331
        %v10108 = vsel %vm1551, %v10076, %v9333
        %v10109 = vsel %vm1551, %v10077, %v9335
        %v10110 = vsel %vm1551, %v10078, %v9337
        %v10111 = vsel %vm1551, %v10079, %v9339
        %v10112 = vsel %vm1551, %v10080, %v9341
        %v10113 = vsel %vm1551, %v10081, %v9343
        %v10114 = vsel %vm1551, %v10082, %v9345
        %v10115 = vsel %vm1551, %v10083, %v9347
        %v10116 = vsel %vm1584, %v10084, %v9413
        %v10117 = vsel %vm1584, %v10085, %v9415
        %v10118 = vsel %vm1584, %v10086, %v9417
        %v10119 = vsel %vm1584, %v10087, %v9419
        %v10120 = vsel %vm1584, %v10088, %v9421
        %v10121 = vsel %vm1584, %v10089, %v9423
        %v10122 = vsel %vm1584, %v10090, %v9425
        %v10123 = vsel %vm1584, %v10091, %v9427
        %v10124 = vsel %vm1584, %v10092, %v9429
        %v10125 = vsel %vm1584, %v10093, %v9431
        %v10126 = vsel %vm1584, %v10094, %v9433
        %v10127 = vsel %vm1584, %v10095, %v9435
        %v10128 = vsel %vm1584, %v10096, %v9437
        %v10129 = vsel %vm1584, %v10097, %v9439
        %v10130 = vsel %vm1584, %v10098, %v9441
        %v10131 = vsel %vm1584, %v10099, %v9443
        %v10132 = vsel %vm1584, %v10100, %v9445
        %v10133 = vsel %vm1584, %v10101, %v9447
        %v10134 = vsel %vm1584, %v10102, %v9449
        %v10135 = vsel %vm1584, %v10103, %v9451
        %v10136 = vsel %vm1584, %v10104, %v9453
        %v10137 = vsel %vm1584, %v10105, %v9455
        %v10138 = vsel %vm1584, %v10106, %v9457
        %v10139 = vsel %vm1584, %v10107, %v9459
        %v10140 = vsel %vm1584, %v10108, %v9461
        %v10141 = vsel %vm1584, %v10109, %v9463
        %v10142 = vsel %vm1584, %v10110, %v9465
        %v10143 = vsel %vm1584, %v10111, %v9467
        %v10144 = vsel %vm1584, %v10112, %v9469
        %v10145 = vsel %vm1584, %v10113, %v9471
        %v10146 = vsel %vm1584, %v10114, %v9473
        %v10147 = vsel %vm1584, %v10115, %v9475
        %v10148 = vsel %vm1617, %v10116, %v9541
        %v10149 = vsel %vm1617, %v10117, %v9543
        %v10150 = vsel %vm1617, %v10118, %v9545
        %v10151 = vsel %vm1617, %v10119, %v9547
        %v10152 = vsel %vm1617, %v10120, %v9549
        %v10153 = vsel %vm1617, %v10121, %v9551
        %v10154 = vsel %vm1617, %v10122, %v9553
        %v10155 = vsel %vm1617, %v10123, %v9555
        %v10156 = vsel %vm1617, %v10124, %v9557
        %v10157 = vsel %vm1617, %v10125, %v9559
        %v10158 = vsel %vm1617, %v10126, %v9561
        %v10159 = vsel %vm1617, %v10127, %v9563
        %v10160 = vsel %vm1617, %v10128, %v9565
        %v10161 = vsel %vm1617, %v10129, %v9567
        %v10162 = vsel %vm1617, %v10130, %v9569
        %v10163 = vsel %vm1617, %v10131, %v9571
        %v10164 = vsel %vm1617, %v10132, %v9573
        %v10165 = vsel %vm1617, %v10133, %v9575
        %v10166 = vsel %vm1617, %v10134, %v9577
        %v10167 = vsel %vm1617, %v10135, %v9579
        %v10168 = vsel %vm1617, %v10136, %v9581
        %v10169 = vsel %vm1617, %v10137, %v9583
        %v10170 = vsel %vm1617, %v10138, %v9585
        %v10171 = vsel %vm1617, %v10139, %v9587
        %v10172 = vsel %vm1617, %v10140, %v9589
        %v10173 = vsel %vm1617, %v10141, %v9591
        %v10174 = vsel %vm1617, %v10142, %v9593
        %v10175 = vsel %vm1617, %v10143, %v9595
        %v10176 = vsel %vm1617, %v10144, %v9597
        %v10177 = vsel %vm1617, %v10145, %v9599
        %v10178 = vsel %vm1617, %v10146, %v9601
        %v10179 = vsel %vm1617, %v10147, %v9603
        %v10180 = vsel %vm1650, %v10148, %v9669
        %v10181 = vsel %vm1650, %v10149, %v9671
        %v10182 = vsel %vm1650, %v10150, %v9673
        %v10183 = vsel %vm1650, %v10151, %v9675
        %v10184 = vsel %vm1650, %v10152, %v9677
        %v10185 = vsel %vm1650, %v10153, %v9679
        %v10186 = vsel %vm1650, %v10154, %v9681
        %v10187 = vsel %vm1650, %v10155, %v9683
        %v10188 = vsel %vm1650, %v10156, %v9685
        %v10189 = vsel %vm1650, %v10157, %v9687
        %v10190 = vsel %vm1650, %v10158, %v9689
        %v10191 = vsel %vm1650, %v10159, %v9691
        %v10192 = vsel %vm1650, %v10160, %v9693
        %v10193 = vsel %vm1650, %v10161, %v9695
        %v10194 = vsel %vm1650, %v10162, %v9697
        %v10195 = vsel %vm1650, %v10163, %v9699
        %v10196 = vsel %vm1650, %v10164, %v9701
        %v10197 = vsel %vm1650, %v10165, %v9703
        %v10198 = vsel %vm1650, %v10166, %v9705
        %v10199 = vsel %vm1650, %v10167, %v9707
        %v10200 = vsel %vm1650, %v10168, %v9709
        %v10201 = vsel %vm1650, %v10169, %v9711
        %v10202 = vsel %vm1650, %v10170, %v9713
        %v10203 = vsel %vm1650, %v10171, %v9715
        %v10204 = vsel %vm1650, %v10172, %v9717
        %v10205 = vsel %vm1650, %v10173, %v9719
        %v10206 = vsel %vm1650, %v10174, %v9721
        %v10207 = vsel %vm1650, %v10175, %v9723
        %v10208 = vsel %vm1650, %v10176, %v9725
        %v10209 = vsel %vm1650, %v10177, %v9727
        %v10210 = vsel %vm1650, %v10178, %v9729
        %v10211 = vsel %vm1650, %v10179, %v9731
        %v10212 = vsel %vm1683, %v10180, %v9797
        %v10213 = vsel %vm1683, %v10181, %v9799
        %v10214 = vsel %vm1683, %v10182, %v9801
        %v10215 = vsel %vm1683, %v10183, %v9803
        %v10216 = vsel %vm1683, %v10184, %v9805
        %v10217 = vsel %vm1683, %v10185, %v9807
        %v10218 = vsel %vm1683, %v10186, %v9809
        %v10219 = vsel %vm1683, %v10187, %v9811
        %v10220 = vsel %vm1683, %v10188, %v9813
        %v10221 = vsel %vm1683, %v10189, %v9815
        %v10222 = vsel %vm1683, %v10190, %v9817
        %v10223 = vsel %vm1683, %v10191, %v9819
        %v10224 = vsel %vm1683, %v10192, %v9821
        %v10225 = vsel %vm1683, %v10193, %v9823
        %v10226 = vsel %vm1683, %v10194, %v9825
        %v10227 = vsel %vm1683, %v10195, %v9827
        %v10228 = vsel %vm1683, %v10196, %v9829
        %v10229 = vsel %vm1683, %v10197, %v9831
        %v10230 = vsel %vm1683, %v10198, %v9833
        %v10231 = vsel %vm1683, %v10199, %v9835
        %v10232 = vsel %vm1683, %v10200, %v9837
        %v10233 = vsel %vm1683, %v10201, %v9839
        %v10234 = vsel %vm1683, %v10202, %v9841
        %v10235 = vsel %vm1683, %v10203, %v9843
        %v10236 = vsel %vm1683, %v10204, %v9845
        %v10237 = vsel %vm1683, %v10205, %v9847
        %v10238 = vsel %vm1683, %v10206, %v9849
        %v10239 = vsel %vm1683, %v10207, %v9851
        %v10240 = vsel %vm1683, %v10208, %v9853
        %v10241 = vsel %vm1683, %v10209, %v9855
        %v10242 = vsel %vm1683, %v10210, %v9857
        %v10243 = vsel %vm1683, %v10211, %v9859
        %v10244 = vsel %vm1716, %v10212, %v9925
        %v10245 = vsel %vm1716, %v10213, %v9927
        %v10246 = vsel %vm1716, %v10214, %v9929
        %v10247 = vsel %vm1716, %v10215, %v9931
        %v10248 = vsel %vm1716, %v10216, %v9933
        %v10249 = vsel %vm1716, %v10217, %v9935
        %v10250 = vsel %vm1716, %v10218, %v9937
        %v10251 = vsel %vm1716, %v10219, %v9939
        %v10252 = vsel %vm1716, %v10220, %v9941
        %v10253 = vsel %vm1716, %v10221, %v9943
        %v10254 = vsel %vm1716, %v10222, %v9945
        %v10255 = vsel %vm1716, %v10223, %v9947
        %v10256 = vsel %vm1716, %v10224, %v9949
        %v10257 = vsel %vm1716, %v10225, %v9951
        %v10258 = vsel %vm1716, %v10226, %v9953
        %v10259 = vsel %vm1716, %v10227, %v9955
        %v10260 = vsel %vm1716, %v10228, %v9957
        %v10261 = vsel %vm1716, %v10229, %v9959
        %v10262 = vsel %vm1716, %v10230, %v9961
        %v10263 = vsel %vm1716, %v10231, %v9963
        %v10264 = vsel %vm1716, %v10232, %v9965
        %v10265 = vsel %vm1716, %v10233, %v9967
        %v10266 = vsel %vm1716, %v10234, %v9969
        %v10267 = vsel %vm1716, %v10235, %v9971
        %v10268 = vsel %vm1716, %v10236, %v9973
        %v10269 = vsel %vm1716, %v10237, %v9975
        %v10270 = vsel %vm1716, %v10238, %v9977
        %v10271 = vsel %vm1716, %v10239, %v9979
        %v10272 = vsel %vm1716, %v10240, %v9981
        %v10273 = vsel %vm1716, %v10241, %v9983
        %v10274 = vsel %vm1716, %v10242, %v9985
        %v10275 = vsel %vm1716, %v10243, %v9987
        %v10276 = vpack.c.bf16 %v10245, %v10244
        %v10277 = vpack.c.bf16 %v10247, %v10246
        %v10278 = vpack.c.bf16 %v10249, %v10248
        %v10279 = vpack.c.bf16 %v10251, %v10250
        %v10280 = vpack.c.bf16 %v10253, %v10252
        %v10281 = vpack.c.bf16 %v10255, %v10254
        %v10282 = vpack.c.bf16 %v10257, %v10256
        %v10283 = vpack.c.bf16 %v10259, %v10258
        %v10284 = vpack.c.bf16 %v10261, %v10260
        %v10285 = vpack.c.bf16 %v10263, %v10262
        %v10286 = vpack.c.bf16 %v10265, %v10264
        %v10287 = vpack.c.bf16 %v10267, %v10266
        %v10288 = vpack.c.bf16 %v10269, %v10268
        %v10289 = vpack.c.bf16 %v10271, %v10270
        %v10290 = vpack.c.bf16 %v10273, %v10272
        %v10291 = vpack.c.bf16 %v10275, %v10274
        %s10292 = scalar_lea.vmem %s1, 40
        %v10293 = vld [vmem:[%s10292] sm:$0xf]
        %v10294 = vld [vmem:[%s10292 + $0x4] sm:$0xf]
        %s10295 = scalar_lea.vmem %s2, 80
        %v10296 = vld [vmem:[%s10295] sm:$0xff]
        %v10297 = vld [vmem:[%s10295 + $0x8] sm:$0xff]
        %10299 = vset.pattern.permute.xlu0 0
        %10300 = vperm.xlu0 %10299, %v10296
        %v10301 = vpop.permute.xlu0 %10300
        %10304 = vset.pattern.permute.xlu0 0
        %10305 = vperm.xlu0 %10304, %v10297
        %v10306 = vpop.permute.xlu0 %10305
        %v10310 = vunpack.c.l.b16 %v10293
        %v10311 = vunpack.c.l.b16 %v10294
        %v10312 = vpack.c.b16 %v10311, %v10310
        %v10314 = vsel %vm1784, %v10312, 0
        %v10317 = vsel %vm1784, %v10276, 0
        %v10320 = vsel %vm1784, %v10277, 0
        %v10323 = vsel %vm1784, %v10278, 0
        %v10326 = vsel %vm1784, %v10279, 0
        %v10329 = vsel %vm1784, %v10280, 0
        %v10332 = vsel %vm1784, %v10281, 0
        %v10335 = vsel %vm1784, %v10282, 0
        %v10338 = vsel %vm1784, %v10283, 0
        %v10341 = vsel %vm1784, %v10284, 0
        %v10344 = vsel %vm1784, %v10285, 0
        %v10347 = vsel %vm1784, %v10286, 0
        %v10350 = vsel %vm1784, %v10287, 0
        %v10353 = vsel %vm1784, %v10288, 0
        %v10356 = vsel %vm1784, %v10289, 0
        %v10359 = vsel %vm1784, %v10290, 0
        %v10362 = vsel %vm1784, %v10291, 0
        %10364 = vmatprep.subr.bf16.mxu0 0
        %10365 = vmatpush1.bf16.xpose.msra.mxu0 %v10338
        %10366 = vmatprep.subr.bf16.mxu0 0
        %10367 = vmatpush1.bf16.xpose.msra.mxu0 %v10335
        %10368 = vmatprep.subr.bf16.mxu0 0
        %10369 = vmatpush1.bf16.xpose.msra.mxu0 %v10332
        %10370 = vmatprep.subr.bf16.mxu0 0
        %10371 = vmatpush1.bf16.xpose.msra.mxu0 %v10329
        %10372 = vmatprep.subr.bf16.mxu0 0
        %10373 = vmatpush1.bf16.xpose.msra.mxu0 %v10326
        %10374 = vmatprep.subr.bf16.mxu0 0
        %10375 = vmatpush1.bf16.xpose.msra.mxu0 %v10323
        %10376 = vmatprep.subr.bf16.mxu0 0
        %10377 = vmatpush1.bf16.xpose.msra.mxu0 %v10320
        %10378 = vmatprep.subr.bf16.mxu0 0
        %10379 = vmatpush1.bf16.xpose.msra.mxu0 %v10317
        %10380 = vmatprep.subr.bf16.mxu0 0
        %10381 = vmatpush2.bf16.xpose.msra.mxu0 %v10362
        %10382 = vmatprep.subr.bf16.mxu0 0
        %10383 = vmatpush2.bf16.xpose.msra.mxu0 %v10359
        %10384 = vmatprep.subr.bf16.mxu0 0
        %10385 = vmatpush2.bf16.xpose.msra.mxu0 %v10356
        %10386 = vmatprep.subr.bf16.mxu0 0
        %10387 = vmatpush2.bf16.xpose.msra.mxu0 %v10353
        %10388 = vmatprep.subr.bf16.mxu0 0
        %10389 = vmatpush2.bf16.xpose.msra.mxu0 %v10350
        %10390 = vmatprep.subr.bf16.mxu0 0
        %10391 = vmatpush2.bf16.xpose.msra.mxu0 %v10347
        %10392 = vmatprep.subr.bf16.mxu0 0
        %10393 = vmatpush2.bf16.xpose.msra.mxu0 %v10344
        %10394 = vmatprep.subr.bf16.mxu0 0
        %10395 = vmatpush2.bf16.xpose.msra.mxu0 %v10341
        %10396 = vmatprep.mubr.bf16.mxu0 0
        %10397 = vmatmul.mubr.bf16.gmra.mxu0 %v10314
        %v10398 = vpop.f32.mrf.mxu0
        %v10399 = vadd.f32 %v10301, %v10398
        %v10400 = vpop.f32.mrf.mxu0
        %v10401 = vadd.f32 %v10301, %v10400
        %v10402 = vpop.f32.mrf.mxu0
        %v10403 = vadd.f32 %v10306, %v10402
        %v10404 = vpop.f32.mrf.mxu0
        %v10405 = vadd.f32 %v10306, %v10404
        %10406 = vdwg.mxu0
        %s10407 = scalar_lea.vmem %s163, 160 [#allocation2]
        %10408 = vst [vmem:[%s10407] sm:$0xff] %v10399
        %10409 = vst [vmem:[%s10407 + $0x8] sm:$0xff] %v10401
        %10410 = vst [vmem:[%s10407 + $0x10] sm:$0xff] %v10403
        %10411 = vst [vmem:[%s10407 + $0x18] sm:$0xff] %v10405
        %s10412 = sand.u32 %s93, 1
        %s10413 = scalar_lea.sflag [#allocation3], %s10412
        %s10414 = sand.u32 %s93, 1
        %s10415 = smul.addr %s10414, 192
        %s10416 = scalar_lea.vmem [#allocation2], %s10415
        // Predicated region
        $region33: #{tpu_custom_call.1} parent=31 // pred_check
          %p10417 = pneg %p103
        $region34: #{tpu_custom_call.1} parent=31 // pred_check_branch
          %10419 = sbr.rel (%p10417) target = $region36
        $region35: #{tpu_custom_call.1} parent=31 // pred_region
          %s10421 = ssub.s32 3072, 3072
          %10422 = vsyncadd %s10413, %s10421
          %s10423 = smul.addr %s17, 24
          %s10424 = smul.addr %s10423, 128
          %s10425 = scalar_lea.hbm %s3, %s10424
          %s10426 = sshll.u32 %s10416, 4
          %s10427 = int_to_ptr.vmem [resolvable:$true] %s10426
          %10432 = dma.vmem_to_hbm [thread:$0]  %s10427, 3072, %s10425, %s10413, 256, 256, 16
        $region36: #{tpu_custom_call.1} parent=31 // pred_fallthru
          _
      $region32: #{tpu_custom_call.1} parent=5 // pred_fallthru
        _
      %p10433 = scmp.le.s32.totalorder 2, %s12
      // Predicated region
      $region37: #{tpu_custom_call.1} parent=5 // pred_check
        %p10434 = pneg %p10433
      $region38: #{tpu_custom_call.1} parent=5 // pred_check_branch
        %10436 = sbr.rel (%p10434) target = $region40
      $region39: #{tpu_custom_call.1} parent=5 // pred_region
        %s10437 = ssub.s32 %s12, 2
        // Predicated region
        $region41: #{tpu_custom_call.1} parent=39 // pred_check
          %p10438 = pneg %p109
        $region42: #{tpu_custom_call.1} parent=39 // pred_check_branch
          %10440 = sbr.rel (%p10438) target = $region44
        $region43: #{tpu_custom_call.1} parent=39 // pred_region
          %s10441 = sand.u32 %s94, 1
          %s10442 = scalar_lea.sflag [#allocation3], %s10441
          %s10443 = sand.u32 %s94, 1
          %s10444 = smul.addr %s10443, 192
          %s10445 = scalar_lea.vmem [#allocation2], %s10444
          %10446 = dma.done %s10442, 3072
        $region44: #{tpu_custom_call.1} parent=39 // pred_fallthru
          _
      $region40: #{tpu_custom_call.1} parent=5 // pred_fallthru
        _
    $region6: #{tpu_custom_call.1} parent=1 // loop_footer
      %s16 = sadd.s32 1, %s12
    $region7: #{tpu_custom_call.1} parent=1 // loop_footer_branch
      %11 = sbr.rel target = $region3
    $region8: #{tpu_custom_call.1} parent=1 // loop_exit
      _
    %10447 = vsyncpa [#allocation3], 1
    %s10448 = scalar_lea.sflag [#allocation3], 1
    %10449 = vsyncpa %s10448, 1

</llo_original>
